<compile_context>
chip_gen: v7x
topology: tpu7x:2x2x1
jax: 0.10.0
libtpu: 0.0.40
codegen_flags: <defaults>
</compile_context>

<pallas_src>
import functools

import jax
import jax.numpy as jnp
from jax.experimental import pallas as pl
from jax.experimental.pallas import tpu as pltpu


# ----------------------------- small math helpers (in-kernel) ----------------------

def _layer_norm(x, g, b, eps=1e-5):
    # matches torch.nn.LayerNorm (biased variance, eps=1e-5); rsqrt routes to the EUP slot.
    m = jnp.mean(x, axis=-1, keepdims=True)
    v = jnp.mean(jnp.square(x - m), axis=-1, keepdims=True)
    return (x - m) * jax.lax.rsqrt(v + eps) * g + b


_SQRT_2_OVER_PI = 0.7978845608028654


def _gelu(x):
    # TODO(synk): tanh-form GELU (tanh goes to the EUP slot) instead of torch.nn.GELU()'s
    # exact erf form; max activation deviation ~1e-3.
    return 0.5 * x * (1.0 + jnp.tanh(_SQRT_2_OVER_PI * (x + 0.044715 * x * x * x)))


def _full_spec(shape):
    nd = len(shape)
    return pl.BlockSpec(shape, lambda i, _nd=nd: (0,) * _nd)


def _full_spec_prefetch(shape):
    nd = len(shape)
    return pl.BlockSpec(shape, lambda i, sref, _nd=nd: (0,) * _nd)


# ----------------------------- Pallas kernels --------------------------------------

def run_patch_embed(t_idx, patches, w_temp, b_temp, w_patch, b_patch):
    """Fused patch embedding + temporal position embedding.

      out[b, n*T + t] = patches[b, n*T + t] @ w_patch + b_patch
                        + (one_hot(t_idx[b, t], 365) @ w_temp + b_temp)

    The one-hot matmul is realized as a scalar-prefetched row gather of w_temp inside
    the kernel.  patches: (B, N*T, P) bf16, t_idx: (B, T) int32 -> (B, N*T, D) f32."""
    B, NT, P = patches.shape
    T = t_idx.shape[1]
    N = NT // T
    D = w_patch.shape[1]

    w_patch_bf = w_patch.astype(jnp.bfloat16)
    w_temp3 = w_temp.reshape(365, 1, D)          # dynamic indexing on a leading dim

    def kernel(tidx_ref, x_ref, wt_ref, bt_ref, w_ref, b_ref, o_ref):
        bb = pl.program_id(0)
        y = jnp.dot(x_ref[0].astype(jnp.bfloat16), w_ref[...],
                    preferred_element_type=jnp.float32) + b_ref[...]      # (N*T, D)
        # gather the T day-of-year embedding rows (indices live in SMEM via prefetch)
        rows = [wt_ref[tidx_ref[bb, t]] for t in range(T)]                # T x (1, D)
        tpe = jnp.concatenate(rows, axis=0) + bt_ref[...]                 # (T, D)
        o_ref[0] = y + jnp.tile(tpe, (N, 1))

    grid_spec = pltpu.PrefetchScalarGridSpec(
        num_scalar_prefetch=1,
        grid=(B,),                               # >=2 parallel steps -> both v7x TCs busy
        in_specs=[
            pl.BlockSpec((1, NT, P), lambda i, s: (i, 0, 0)),
            _full_spec_prefetch(w_temp3.shape),
            _full_spec_prefetch(b_temp.shape),
            _full_spec_prefetch(w_patch_bf.shape),
            _full_spec_prefetch(b_patch.shape),
        ],
        out_specs=pl.BlockSpec((1, NT, D), lambda i, s: (i, 0, 0)),
    )
    return pl.pallas_call(
        kernel,
        out_shape=jax.ShapeDtypeStruct((B, NT, D), jnp.float32),
        grid_spec=grid_spec,
        compiler_params=pltpu.CompilerParams(dimension_semantics=("parallel",)),
    )(t_idx, patches, w_temp3, b_temp, w_patch_bf, b_patch)


_TR_KEYS = ["ln1_g", "ln1_b", "wqkv", "wo", "bo", "ln2_g", "ln2_b",
            "w1", "b1", "w2", "b2", "lnf_g", "lnf_b"]
_BF16_KEYS = ("wqkv", "wo", "w1", "w2")


def run_transformer(x, tp, *, heads, dim_head, seq_len, out_tokens=None, head=None):
    """Pre-norm Transformer encoder stack (Attention + FF per layer, final LayerNorm).

    x:          (Bn, Lp, D) with Lp a multiple of 8 (zero-padded past `seq_len`).
    seq_len:    number of real tokens; padded key positions are masked in attention.
    out_tokens: if set (head is None) only the first `out_tokens` tokens are final-normed
                and written -> output (Bn, out_tokens, D).
    head:       optional (ln_g (1,D), ln_b (1,D), w_row (1,D), b (1,1)); fuses the
                mlp_head on token 0 and outputs logits of shape (Bn, 1, 1)."""
    Bn, Lp, D = x.shape
    L = seq_len
    depth = tp["ln1_g"].shape[0]
    inner = heads * dim_head
    scale = float(dim_head) ** -0.5
    fuse_head = head is not None
    n_out = Lp if out_tokens is None else out_tokens

    # Batch several sequences per grid step (amortizes the ~600-cycle step overhead,
    # raises the MXU M-dim, makes each DMA bigger) while keeping >=2 parallel grid steps
    # so both v7x TensorCores get work.
    # TODO(synk): at production TSViT sizes derive `block` from a per-generation VMEM budget.
    block = Bn // 2 if (Bn % 2 == 0 and Bn >= 4) else Bn
    nsteps = Bn // block
    M = block * Lp
    bf16 = jnp.bfloat16

    def kernel(*refs):
        x_ref = refs[0]
        (ln1g, ln1b, wqkv, wo, bo, ln2g, ln2b,
         w1, b1, w2, b2, lnfg, lnfb) = refs[1:14]
        if fuse_head:
            hg, hb, hw, hbias = refs[14:18]
        o_ref = refs[-1]

        # (block, Lp, D) -> (block*Lp, D): Lp is sublane-aligned, so this collapse is free.
        h = x_ref[...].reshape(M, D)
        if Lp != L:
            # additive bias masking padded key positions in the attention scores
            kbias = jnp.where(
                jax.lax.broadcasted_iota(jnp.int32, (1, 1, Lp), 2) < L, 0.0, -1e30)

        for l in range(depth):
            # ---- PreNorm + multi-head self-attention + residual ----
            hn = _layer_norm(h, ln1g[l], ln1b[l])
            qkv = jnp.dot(hn.astype(bf16), wqkv[l],
                          preferred_element_type=jnp.float32)             # (M, 3*inner)
            q3 = qkv[:, :inner].reshape(block, Lp, inner)
            k3 = qkv[:, inner:2 * inner].reshape(block, Lp, inner)
            v3 = qkv[:, 2 * inner:].reshape(block, Lp, inner)
            head_out = []
            for hh in range(heads):        # tiny loop; every dot is batched over `block`
                sl = slice(hh * dim_head, (hh + 1) * dim_head)
                qh = q3[..., sl].astype(bf16)
                kh = k3[..., sl].astype(bf16)
                vh = v3[..., sl].astype(bf16)
                s = jax.lax.dot_general(qh, kh, (((2,), (2,)), ((0,), (0,))),
                                        preferred_element_type=jnp.float32) * scale
                if Lp != L:
                    s = s + kbias
                s = s - jnp.max(s, axis=-1, keepdims=True)
                e = jnp.exp(s)
                att = e * pl.reciprocal(jnp.sum(e, axis=-1, keepdims=True), approx=True)
                head_out.append(
                    jax.lax.dot_general(att.astype(bf16), vh,
                                        (((2,), (1,)), ((0,), (0,))),
                                        preferred_element_type=jnp.float32))
            attn = jnp.concatenate(head_out, axis=-1).reshape(M, inner)
            h = h + jnp.dot(attn.astype(bf16), wo[l],
                            preferred_element_type=jnp.float32) + bo[l]
            # ---- PreNorm + MLP (Linear -> GELU -> Linear) + residual ----
            hn = _layer_norm(h, ln2g[l], ln2b[l])
            f = jnp.dot(hn.astype(bf16), w1[l],
                        preferred_element_type=jnp.float32) + b1[l]
            f = _gelu(f)
            f = jnp.dot(f.astype(bf16), w2[l],
                        preferred_element_type=jnp.float32) + b2[l]
            h = h + f

        h3 = h.reshape(block, Lp, D)
        if fuse_head:
            # Only token 0 is consumed downstream: final transformer LN + mlp_head
            # (LayerNorm + Linear(D, 1)) computed here; the width-1 projection is a VPU
            # multiply + lane reduce instead of an MXU matmul with N=1.
            x0 = _layer_norm(h3[:, 0:1, :], lnfg[...], lnfb[...])
            x0 = _layer_norm(x0, hg[...], hb[...])
            o_ref[...] = jnp.sum(x0 * hw[...], axis=-1, keepdims=True) + hbias[...]
        else:
            o_ref[...] = _layer_norm(h3[:, :n_out, :], lnfg[...], lnfb[...])

    tr_args = [tp[k].astype(bf16) if k in _BF16_KEYS else tp[k] for k in _TR_KEYS]
    head_args = list(head) if fuse_head else []
    operands = [x] + tr_args + head_args

    in_specs = ([pl.BlockSpec((block, Lp, D), lambda i: (i, 0, 0))]
                + [_full_spec(a.shape) for a in tr_args + head_args])
    if fuse_head:
        out_shape = jax.ShapeDtypeStruct((Bn, 1, 1), jnp.float32)
        out_specs = pl.BlockSpec((block, 1, 1), lambda i: (i, 0, 0))
    else:
        out_shape = jax.ShapeDtypeStruct((Bn, n_out, D), jnp.float32)
        out_specs = pl.BlockSpec((block, n_out, D), lambda i: (i, 0, 0))

    return pl.pallas_call(
        kernel,
        out_shape=out_shape,
        grid=(nsteps,),
        in_specs=in_specs,
        out_specs=out_specs,
        compiler_params=pltpu.CompilerParams(dimension_semantics=("parallel",)),
    )(*operands)


# ----------------------------- parameter construction -------------------------------

def init_transformer(key, depth, dim, heads, dim_head, mlp_dim):
    inner = heads * dim_head
    ks = jax.random.split(key, 4)
    std = 0.02
    f32 = jnp.float32
    return dict(
        ln1_g=jnp.ones((depth, 1, dim), f32),
        ln1_b=jnp.zeros((depth, 1, dim), f32),
        wqkv=jax.random.normal(ks[0], (depth, dim, 3 * inner), f32) * std,
        wo=jax.random.normal(ks[1], (depth, inner, dim), f32) * std,
        bo=jnp.zeros((depth, 1, dim), f32),
        ln2_g=jnp.ones((depth, 1, dim), f32),
        ln2_b=jnp.zeros((depth, 1, dim), f32),
        w1=jax.random.normal(ks[2], (depth, dim, mlp_dim), f32) * std,
        b1=jnp.zeros((depth, 1, mlp_dim), f32),
        w2=jax.random.normal(ks[3], (depth, mlp_dim, dim), f32) * std,
        b2=jnp.zeros((depth, 1, dim), f32),
        lnf_g=jnp.ones((1, dim), f32),
        lnf_b=jnp.zeros((1, dim), f32),
    )


def init_params(key, cfg):
    dim = cfg["dim"]
    K = cfg["num_classes"]
    ps = cfg["patch_size"]
    n1d = cfg["img_res"] // ps
    N = n1d * n1d
    patch_dim = (cfg["num_channels"] - 1) * ps * ps
    mlp_dim = dim * cfg["scale_dim"]
    ks = jax.random.split(key, 8)
    std = 0.02
    f32 = jnp.float32
    return {
        "w_patch": jax.random.normal(ks[0], (patch_dim, dim), f32) * std,
        "b_patch": jnp.zeros((1, dim), f32),
        "w_temp": jax.random.normal(ks[1], (365, dim), f32) * std,   # Linear(365, dim)
        "b_temp": jnp.zeros((1, dim), f32),
        "temporal_token": jax.random.normal(ks[2], (1, K, dim), f32),
        "space_pos": jax.random.normal(ks[3], (1, N, dim), f32),
        "space_token": jax.random.normal(ks[4], (1, 1, dim), f32),
        "temporal_tr": init_transformer(ks[5], cfg["temporal_depth"], dim,
                                        cfg["heads"], cfg["dim_head"], mlp_dim),
        "space_tr": init_transformer(ks[6], cfg["spatial_depth"], dim,
                                     cfg["heads"], cfg["dim_head"], mlp_dim),
        "head_ln_g": jnp.ones((1, dim), f32),
        "head_ln_b": jnp.zeros((1, dim), f32),
        "head_w": jax.random.normal(ks[7], (1, dim), f32) * std,     # Linear(dim, 1) weight row
        "head_b": jnp.zeros((1, 1), f32),
    }


# ----------------------------- full forward (glue + kernels) ------------------------

def tsvit_forward(x, p, cfg):
    # x: (B, T, H, W, C) channels-last, float32
    B, T, H, W, C = x.shape
    ps = cfg["patch_size"]
    dim = cfg["dim"]
    K = cfg["num_classes"]
    n1d = H // ps
    N = n1d * n1d
    heads, dim_head = cfg["heads"], cfg["dim_head"]

    # day-of-year index; clamp so xt == 1.0 cannot index row 365 (torch F.one_hot would raise)
    xt = x[:, :, 0, 0, C - 1]
    t_idx = jnp.clip((xt * 365.0001).astype(jnp.int32), 0, 364)

    # rearrange 'b t c (h p1) (w p2) -> b (h w) t (p1 p2 c)'  (channels-last source)
    xi = x[..., :C - 1]
    xi = xi.reshape(B, T, n1d, ps, n1d, ps, C - 1)
    xi = jnp.transpose(xi, (0, 2, 4, 1, 3, 5, 6))                    # (B, h, w, T, p1, p2, c)
    patches = xi.reshape(B, N * T, ps * ps * (C - 1)).astype(jnp.bfloat16)

    emb = run_patch_embed(t_idx, patches, p["w_temp"], p["b_temp"],
                          p["w_patch"], p["b_patch"])                # (B, N*T, dim) f32
    emb = emb.reshape(B * N, T, dim)

    # temporal transformer: K class tokens + T frame tokens, padded to a sublane multiple
    Lt = K + T
    Ltp = -(-Lt // 8) * 8
    cls_t = jnp.broadcast_to(p["temporal_token"], (B * N, K, dim))
    seq_t = jnp.concatenate([cls_t, emb], axis=1)                    # (B*N, K+T, dim)
    seq_t = jnp.pad(seq_t, ((0, 0), (0, Ltp - Lt), (0, 0)))
    xcls = run_transformer(seq_t, p["temporal_tr"], heads=heads, dim_head=dim_head,
                           seq_len=Lt, out_tokens=K)                 # (B*N, K, dim)

    # spatial transformer: one sequence of (1 cls + N patch tokens) per (batch, class)
    xs = jnp.transpose(xcls.reshape(B, N, K, dim), (0, 2, 1, 3)).reshape(B * K, N, dim)
    xs = xs + p["space_pos"]                                         # emb dropout: eval no-op
    Ls = 1 + N
    Lsp = -(-Ls // 8) * 8
    cls_s = jnp.broadcast_to(p["space_token"], (B * K, 1, dim))
    seq_s = jnp.concatenate([cls_s, xs], axis=1)                     # (B*K, 1+N, dim)
    seq_s = jnp.pad(seq_s, ((0, 0), (0, Lsp - Ls), (0, 0)))
    logits = run_transformer(seq_s, p["space_tr"], heads=heads, dim_head=dim_head,
                             seq_len=Ls,
                             head=(p["head_ln_g"], p["head_ln_b"],
                                   p["head_w"], p["head_b"]))        # (B*K, 1, 1)
    return logits.reshape(B, K)


# ----------------------------- main ----------------------------------------------

if __name__ == "__main__":
    cfg = dict(img_res=16, patch_size=8, num_classes=4, max_seq_len=8, dim=32,
               temporal_depth=2, spatial_depth=2, heads=2, dim_head=16,
               dropout=0.0, emb_dropout=0.0, pool="cls", scale_dim=2, num_channels=4)

    root = jax.random.PRNGKey(0)
    k_param, k_feat, k_time = jax.random.split(root, 3)
    params = init_params(k_param, cfg)

    B, T, H, W, C = 2, cfg["max_seq_len"], cfg["img_res"], cfg["img_res"], cfg["num_channels"]
    feat = jax.random.normal(k_feat, (B, T, H, W, C - 1), jnp.float32)
    tvals = jax.random.uniform(k_time, (B, T), jnp.float32, 0.0, 1.0)    # normalized DOY
    time_ch = jnp.broadcast_to(tvals[:, :, None, None, None], (B, T, H, W, 1))
    x = jnp.concatenate([feat, time_ch], axis=-1)                        # (B, T, H, W, C)

    fwd = jax.jit(functools.partial(tsvit_forward, cfg=cfg))
    out = jax.block_until_ready(fwd(x, params))
    assert out.shape == (B, cfg["num_classes"]), out.shape
    assert bool(jnp.all(jnp.isfinite(out)))
    print("KERNEL_OK")
</pallas_src>

<mosaic_0001>
module attributes {stable_mosaic.version = 11 : i64} {
  func.func @kernel(%arg0: i32, %arg1: memref<2x8xi32, #tpu.memory_space<smem>>, %arg2: memref<1x32x192xbf16, #tpu.memory_space<vmem>>, %arg3: memref<365x1x32xf32, #tpu.memory_space<vmem>>, %arg4: memref<1x32xf32, #tpu.memory_space<vmem>>, %arg5: memref<192x32xbf16, #tpu.memory_space<vmem>>, %arg6: memref<1x32xf32, #tpu.memory_space<vmem>>, %arg7: memref<1x32x32xf32, #tpu.memory_space<vmem>>) attributes {dimension_semantics = [#tpu.dimension_semantics<parallel>], iteration_bounds = array<i64: 2>, scalar_prefetch = 1 : i64, scratch_operands = 0 : i64, tpu.core_type = #tpu.core_type<tc>, window_params = [{transform_indices = @transform_0, window_bounds = array<i64: 1, 32, 192>}, {pipeline_mode = #tpu.pipeline_mode<synchronous>, transform_indices = @transform_1, window_bounds = array<i64: 365, 1, 32>}, {pipeline_mode = #tpu.pipeline_mode<synchronous>, transform_indices = @transform_2, window_bounds = array<i64: 1, 32>}, {pipeline_mode = #tpu.pipeline_mode<synchronous>, transform_indices = @transform_3, window_bounds = array<i64: 192, 32>}, {pipeline_mode = #tpu.pipeline_mode<synchronous>, transform_indices = @transform_4, window_bounds = array<i64: 1, 32>}, {transform_indices = @transform_5, window_bounds = array<i64: 1, 32, 32>}]} {
    %c0 = arith.constant 0 : index
    %c0_0 = arith.constant 0 : index
    %c0_1 = arith.constant 0 : index
    %0 = vector.load %arg2[%c0, %c0_0, %c0_1] : memref<1x32x192xbf16, #tpu.memory_space<vmem>>, vector<1x32x192xbf16>
    %1 = vector.shape_cast %0 : vector<1x32x192xbf16> to vector<32x192xbf16>
    %c0_2 = arith.constant 0 : index
    %c0_3 = arith.constant 0 : index
    %2 = vector.load %arg5[%c0_2, %c0_3] : memref<192x32xbf16, #tpu.memory_space<vmem>>, vector<192x32xbf16>
    %cst = arith.constant dense<0.000000e+00> : vector<32x32xf32>
    %3 = tpu.matmul %1, %2, %cst {dimension_numbers = #tpu.dot_dimension_numbers<[1], [0], [0], [1], [0, 0, 1, 1], [], []>} : vector<32x192xbf16>, vector<192x32xbf16>, vector<32x32xf32> -> vector<32x32xf32>
    %c0_4 = arith.constant 0 : index
    %c0_5 = arith.constant 0 : index
    %4 = vector.load %arg6[%c0_4, %c0_5] : memref<1x32xf32, #tpu.memory_space<vmem>>, vector<1x32xf32>
    %5 = vector.broadcast %4 : vector<1x32xf32> to vector<32x32xf32>
    %6 = arith.addf %3, %5 : vector<32x32xf32>
    %7 = arith.index_cast %arg0 : i32 to index
    %c0_6 = arith.constant 0 : index
    %8 = memref.load %arg1[%7, %c0_6] : memref<2x8xi32, #tpu.memory_space<smem>>
    %9 = arith.index_cast %8 : i32 to index
    %c0_7 = arith.constant 0 : index
    %c0_8 = arith.constant 0 : index
    %10 = vector.load %arg3[%9, %c0_7, %c0_8] : memref<365x1x32xf32, #tpu.memory_space<vmem>>, vector<1x1x32xf32>
    %11 = vector.shape_cast %10 : vector<1x1x32xf32> to vector<1x32xf32>
    %12 = arith.index_cast %arg0 : i32 to index
    %c1 = arith.constant 1 : index
    %13 = memref.load %arg1[%12, %c1] : memref<2x8xi32, #tpu.memory_space<smem>>
    %14 = arith.index_cast %13 : i32 to index
    %c0_9 = arith.constant 0 : index
    %c0_10 = arith.constant 0 : index
    %15 = vector.load %arg3[%14, %c0_9, %c0_10] : memref<365x1x32xf32, #tpu.memory_space<vmem>>, vector<1x1x32xf32>
    %16 = vector.shape_cast %15 : vector<1x1x32xf32> to vector<1x32xf32>
    %17 = arith.index_cast %arg0 : i32 to index
    %c2 = arith.constant 2 : index
    %18 = memref.load %arg1[%17, %c2] : memref<2x8xi32, #tpu.memory_space<smem>>
    %19 = arith.index_cast %18 : i32 to index
    %c0_11 = arith.constant 0 : index
    %c0_12 = arith.constant 0 : index
    %20 = vector.load %arg3[%19, %c0_11, %c0_12] : memref<365x1x32xf32, #tpu.memory_space<vmem>>, vector<1x1x32xf32>
    %21 = vector.shape_cast %20 : vector<1x1x32xf32> to vector<1x32xf32>
    %22 = arith.index_cast %arg0 : i32 to index
    %c3 = arith.constant 3 : index
    %23 = memref.load %arg1[%22, %c3] : memref<2x8xi32, #tpu.memory_space<smem>>
    %24 = arith.index_cast %23 : i32 to index
    %c0_13 = arith.constant 0 : index
    %c0_14 = arith.constant 0 : index
    %25 = vector.load %arg3[%24, %c0_13, %c0_14] : memref<365x1x32xf32, #tpu.memory_space<vmem>>, vector<1x1x32xf32>
    %26 = vector.shape_cast %25 : vector<1x1x32xf32> to vector<1x32xf32>
    %27 = arith.index_cast %arg0 : i32 to index
    %c4 = arith.constant 4 : index
    %28 = memref.load %arg1[%27, %c4] : memref<2x8xi32, #tpu.memory_space<smem>>
    %29 = arith.index_cast %28 : i32 to index
    %c0_15 = arith.constant 0 : index
    %c0_16 = arith.constant 0 : index
    %30 = vector.load %arg3[%29, %c0_15, %c0_16] : memref<365x1x32xf32, #tpu.memory_space<vmem>>, vector<1x1x32xf32>
    %31 = vector.shape_cast %30 : vector<1x1x32xf32> to vector<1x32xf32>
    %32 = arith.index_cast %arg0 : i32 to index
    %c5 = arith.constant 5 : index
    %33 = memref.load %arg1[%32, %c5] : memref<2x8xi32, #tpu.memory_space<smem>>
    %34 = arith.index_cast %33 : i32 to index
    %c0_17 = arith.constant 0 : index
    %c0_18 = arith.constant 0 : index
    %35 = vector.load %arg3[%34, %c0_17, %c0_18] : memref<365x1x32xf32, #tpu.memory_space<vmem>>, vector<1x1x32xf32>
    %36 = vector.shape_cast %35 : vector<1x1x32xf32> to vector<1x32xf32>
    %37 = arith.index_cast %arg0 : i32 to index
    %c6 = arith.constant 6 : index
    %38 = memref.load %arg1[%37, %c6] : memref<2x8xi32, #tpu.memory_space<smem>>
    %39 = arith.index_cast %38 : i32 to index
    %c0_19 = arith.constant 0 : index
    %c0_20 = arith.constant 0 : index
    %40 = vector.load %arg3[%39, %c0_19, %c0_20] : memref<365x1x32xf32, #tpu.memory_space<vmem>>, vector<1x1x32xf32>
    %41 = vector.shape_cast %40 : vector<1x1x32xf32> to vector<1x32xf32>
    %42 = arith.index_cast %arg0 : i32 to index
    %c7 = arith.constant 7 : index
    %43 = memref.load %arg1[%42, %c7] : memref<2x8xi32, #tpu.memory_space<smem>>
    %44 = arith.index_cast %43 : i32 to index
    %c0_21 = arith.constant 0 : index
    %c0_22 = arith.constant 0 : index
    %45 = vector.load %arg3[%44, %c0_21, %c0_22] : memref<365x1x32xf32, #tpu.memory_space<vmem>>, vector<1x1x32xf32>
    %46 = vector.shape_cast %45 : vector<1x1x32xf32> to vector<1x32xf32>
    %47 = tpu.concatenate %11, %16, %21, %26, %31, %36, %41, %46 in 0 : vector<1x32xf32>, vector<1x32xf32>, vector<1x32xf32>, vector<1x32xf32>, vector<1x32xf32>, vector<1x32xf32>, vector<1x32xf32>, vector<1x32xf32> -> vector<8x32xf32>
    %c0_23 = arith.constant 0 : index
    %c0_24 = arith.constant 0 : index
    %48 = vector.load %arg4[%c0_23, %c0_24] : memref<1x32xf32, #tpu.memory_space<vmem>>, vector<1x32xf32>
    %49 = vector.broadcast %48 : vector<1x32xf32> to vector<8x32xf32>
    %50 = arith.addf %47, %49 : vector<8x32xf32>
    %51 = tpu.concatenate %50, %50, %50, %50 in 0 : vector<8x32xf32>, vector<8x32xf32>, vector<8x32xf32>, vector<8x32xf32> -> vector<32x32xf32>
    %52 = arith.addf %6, %51 : vector<32x32xf32>
    %c0_25 = arith.constant 0 : index
    %c0_26 = arith.constant 0 : index
    %c0_27 = arith.constant 0 : index
    %53 = vector.load %arg7[%c0_25, %c0_26, %c0_27] : memref<1x32x32xf32, #tpu.memory_space<vmem>>, vector<1x32x32xf32>
    %54 = vector.shape_cast %53 : vector<1x32x32xf32> to vector<32x32xf32>
    %55 = vector.shape_cast %52 : vector<32x32xf32> to vector<1x32x32xf32>
    tpu.vector_store %arg7[%c0_25, %c0_26, %c0_27], %55 {strides = array<i32>} : memref<1x32x32xf32, #tpu.memory_space<vmem>>, vector<1x32x32xf32>,
    return
  }
  func.func @transform_0(%arg0: i32, %arg1: memref<2x8xi32, #tpu.memory_space<smem>>) -> (i32, i32, i32) {
    %c0_i32 = arith.constant 0 : i32
    %c0_i32_0 = arith.constant 0 : i32
    %c0_i32_1 = arith.constant 0 : i32
    return %arg0, %c0_i32, %c0_i32_0 : i32, i32, i32
  }
  func.func @transform_1(%arg0: i32, %arg1: memref<2x8xi32, #tpu.memory_space<smem>>) -> (i32, i32, i32) {
    %c0_i32 = arith.constant 0 : i32
    %c0_i32_0 = arith.constant 0 : i32
    %c0_i32_1 = arith.constant 0 : i32
    %c0_i32_2 = arith.constant 0 : i32
    return %c0_i32, %c0_i32_0, %c0_i32_1 : i32, i32, i32
  }
  func.func @transform_2(%arg0: i32, %arg1: memref<2x8xi32, #tpu.memory_space<smem>>) -> (i32, i32) {
    %c0_i32 = arith.constant 0 : i32
    %c0_i32_0 = arith.constant 0 : i32
    %c0_i32_1 = arith.constant 0 : i32
    return %c0_i32, %c0_i32_0 : i32, i32
  }
  func.func @transform_3(%arg0: i32, %arg1: memref<2x8xi32, #tpu.memory_space<smem>>) -> (i32, i32) {
    %c0_i32 = arith.constant 0 : i32
    %c0_i32_0 = arith.constant 0 : i32
    %c0_i32_1 = arith.constant 0 : i32
    return %c0_i32, %c0_i32_0 : i32, i32
  }
  func.func @transform_4(%arg0: i32, %arg1: memref<2x8xi32, #tpu.memory_space<smem>>) -> (i32, i32) {
    %c0_i32 = arith.constant 0 : i32
    %c0_i32_0 = arith.constant 0 : i32
    %c0_i32_1 = arith.constant 0 : i32
    return %c0_i32, %c0_i32_0 : i32, i32
  }
  func.func @transform_5(%arg0: i32, %arg1: memref<2x8xi32, #tpu.memory_space<smem>>) -> (i32, i32, i32) {
    %c0_i32 = arith.constant 0 : i32
    %c0_i32_0 = arith.constant 0 : i32
    %c0_i32_1 = arith.constant 0 : i32
    return %arg0, %c0_i32, %c0_i32_0 : i32, i32, i32
  }
}

module attributes {stable_mosaic.version = 11 : i64} {
  func.func @kernel(%arg0: i32, %arg1: memref<4x16x32xf32, #tpu.memory_space<vmem>>, %arg2: memref<2x1x32xf32, #tpu.memory_space<vmem>>, %arg3: memref<2x1x32xf32, #tpu.memory_space<vmem>>, %arg4: memref<2x32x96xbf16, #tpu.memory_space<vmem>>, %arg5: memref<2x32x32xbf16, #tpu.memory_space<vmem>>, %arg6: memref<2x1x32xf32, #tpu.memory_space<vmem>>, %arg7: memref<2x1x32xf32, #tpu.memory_space<vmem>>, %arg8: memref<2x1x32xf32, #tpu.memory_space<vmem>>, %arg9: memref<2x32x64xbf16, #tpu.memory_space<vmem>>, %arg10: memref<2x1x64xf32, #tpu.memory_space<vmem>>, %arg11: memref<2x64x32xbf16, #tpu.memory_space<vmem>>, %arg12: memref<2x1x32xf32, #tpu.memory_space<vmem>>, %arg13: memref<1x32xf32, #tpu.memory_space<vmem>>, %arg14: memref<1x32xf32, #tpu.memory_space<vmem>>, %arg15: memref<4x4x32xf32, #tpu.memory_space<vmem>>) attributes {dimension_semantics = [#tpu.dimension_semantics<parallel>], iteration_bounds = array<i64: 2>, scalar_prefetch = 0 : i64, scratch_operands = 0 : i64, tpu.core_type = #tpu.core_type<tc>, window_params = [{transform_indices = @transform_0, window_bounds = array<i64: 4, 16, 32>}, {pipeline_mode = #tpu.pipeline_mode<synchronous>, transform_indices = @transform_1, window_bounds = array<i64: 2, 1, 32>}, {pipeline_mode = #tpu.pipeline_mode<synchronous>, transform_indices = @transform_2, window_bounds = array<i64: 2, 1, 32>}, {pipeline_mode = #tpu.pipeline_mode<synchronous>, transform_indices = @transform_3, window_bounds = array<i64: 2, 32, 96>}, {pipeline_mode = #tpu.pipeline_mode<synchronous>, transform_indices = @transform_4, window_bounds = array<i64: 2, 32, 32>}, {pipeline_mode = #tpu.pipeline_mode<synchronous>, transform_indices = @transform_5, window_bounds = array<i64: 2, 1, 32>}, {pipeline_mode = #tpu.pipeline_mode<synchronous>, transform_indices = @transform_6, window_bounds = array<i64: 2, 1, 32>}, {pipeline_mode = #tpu.pipeline_mode<synchronous>, transform_indices = @transform_7, window_bounds = array<i64: 2, 1, 32>}, {pipeline_mode = #tpu.pipeline_mode<synchronous>, transform_indices = @transform_8, window_bounds = array<i64: 2, 32, 64>}, {pipeline_mode = #tpu.pipeline_mode<synchronous>, transform_indices = @transform_9, window_bounds = array<i64: 2, 1, 64>}, {pipeline_mode = #tpu.pipeline_mode<synchronous>, transform_indices = @transform_10, window_bounds = array<i64: 2, 64, 32>}, {pipeline_mode = #tpu.pipeline_mode<synchronous>, transform_indices = @transform_11, window_bounds = array<i64: 2, 1, 32>}, {pipeline_mode = #tpu.pipeline_mode<synchronous>, transform_indices = @transform_12, window_bounds = array<i64: 1, 32>}, {pipeline_mode = #tpu.pipeline_mode<synchronous>, transform_indices = @transform_13, window_bounds = array<i64: 1, 32>}, {transform_indices = @transform_14, window_bounds = array<i64: 4, 4, 32>}]} {
    %c0 = arith.constant 0 : index
    %c0_0 = arith.constant 0 : index
    %c0_1 = arith.constant 0 : index
    %0 = vector.load %arg1[%c0, %c0_0, %c0_1] : memref<4x16x32xf32, #tpu.memory_space<vmem>>, vector<4x16x32xf32>
    %1 = vector.shape_cast %0 : vector<4x16x32xf32> to vector<64x32xf32>
    %2 = tpu.iota {dimensions = array<i32: 2>} : vector<1x1x16xi32>
    %c12_i32 = arith.constant 12 : i32
    %3 = vector.broadcast %c12_i32 : i32 to vector<1x1x16xi32>
    %4 = arith.cmpi slt, %2, %3 : vector<1x1x16xi32>
    %cst = arith.constant 0.000000e+00 : f32
    %cst_2 = arith.constant -1.000000e+30 : f32
    %5 = vector.broadcast %cst : f32 to vector<1x1x16xf32>
    %6 = vector.broadcast %cst_2 : f32 to vector<1x1x16xf32>
    %7 = arith.select %4, %5, %6 : vector<1x1x16xi1>, vector<1x1x16xf32>
    %c0_3 = arith.constant 0 : index
    %c0_4 = arith.constant 0 : index
    %c0_5 = arith.constant 0 : index
    %8 = vector.load %arg2[%c0_3, %c0_4, %c0_5] : memref<2x1x32xf32, #tpu.memory_space<vmem>>, vector<1x1x32xf32>
    %9 = vector.shape_cast %8 : vector<1x1x32xf32> to vector<1x32xf32>
    %c0_6 = arith.constant 0 : index
    %c0_7 = arith.constant 0 : index
    %c0_8 = arith.constant 0 : index
    %10 = vector.load %arg3[%c0_6, %c0_7, %c0_8] : memref<2x1x32xf32, #tpu.memory_space<vmem>>, vector<1x1x32xf32>
    %11 = vector.shape_cast %10 : vector<1x1x32xf32> to vector<1x32xf32>
    %cst_9 = arith.constant dense<0.000000e+00> : vector<64xf32>
    %12 = vector.multi_reduction <add>, %1, %cst_9 [1] : vector<64x32xf32> to vector<64xf32>
    %13 = vector.shape_cast %12 : vector<64xf32> to vector<64x1xf32>
    %cst_10 = arith.constant 3.200000e+01 : f32
    %14 = vector.broadcast %cst_10 : f32 to vector<64x1xf32>
    %15 = arith.divf %13, %14 : vector<64x1xf32>
    %16 = vector.broadcast %15 : vector<64x1xf32> to vector<64x32xf32>
    %17 = arith.subf %1, %16 : vector<64x32xf32>
    %18 = arith.mulf %17, %17 : vector<64x32xf32>
    %cst_11 = arith.constant dense<0.000000e+00> : vector<64xf32>
    %19 = vector.multi_reduction <add>, %18, %cst_11 [1] : vector<64x32xf32> to vector<64xf32>
    %20 = vector.shape_cast %19 : vector<64xf32> to vector<64x1xf32>
    %cst_12 = arith.constant 3.200000e+01 : f32
    %21 = vector.broadcast %cst_12 : f32 to vector<64x1xf32>
    %22 = arith.divf %20, %21 : vector<64x1xf32>
    %23 = vector.broadcast %15 : vector<64x1xf32> to vector<64x32xf32>
    %24 = arith.subf %1, %23 : vector<64x32xf32>
    %cst_13 = arith.constant 9.99999974E-6 : f32
    %25 = vector.broadcast %cst_13 : f32 to vector<64x1xf32>
    %26 = arith.addf %22, %25 : vector<64x1xf32>
    %27 = math.rsqrt %26 : vector<64x1xf32>
    %28 = vector.broadcast %27 : vector<64x1xf32> to vector<64x32xf32>
    %29 = arith.mulf %24, %28 : vector<64x32xf32>
    %30 = vector.broadcast %9 : vector<1x32xf32> to vector<64x32xf32>
    %31 = arith.mulf %29, %30 : vector<64x32xf32>
    %32 = vector.broadcast %11 : vector<1x32xf32> to vector<64x32xf32>
    %33 = arith.addf %31, %32 : vector<64x32xf32>
    %34 = arith.truncf %33 : vector<64x32xf32> to vector<64x32xbf16>
    %c0_14 = arith.constant 0 : index
    %c0_15 = arith.constant 0 : index
    %c0_16 = arith.constant 0 : index
    %35 = vector.load %arg4[%c0_14, %c0_15, %c0_16] : memref<2x32x96xbf16, #tpu.memory_space<vmem>>, vector<1x32x96xbf16>
    %36 = vector.shape_cast %35 : vector<1x32x96xbf16> to vector<32x96xbf16>
    %cst_17 = arith.constant dense<0.000000e+00> : vector<64x96xf32>
    %37 = tpu.matmul %34, %36, %cst_17 {dimension_numbers = #tpu.dot_dimension_numbers<[1], [0], [0], [1], [0, 0, 1, 1], [], []>} : vector<64x32xbf16>, vector<32x96xbf16>, vector<64x96xf32> -> vector<64x96xf32>
    %38 = vector.extract_strided_slice %37 {offsets = [0, 0], sizes = [64, 32], strides = [1, 1]} : vector<64x96xf32> to vector<64x32xf32>
    %39 = vector.shape_cast %38 : vector<64x32xf32> to vector<4x16x32xf32>
    %40 = vector.extract_strided_slice %37 {offsets = [0, 32], sizes = [64, 32], strides = [1, 1]} : vector<64x96xf32> to vector<64x32xf32>
    %41 = vector.shape_cast %40 : vector<64x32xf32> to vector<4x16x32xf32>
    %42 = vector.extract_strided_slice %37 {offsets = [0, 64], sizes = [64, 32], strides = [1, 1]} : vector<64x96xf32> to vector<64x32xf32>
    %43 = vector.shape_cast %42 : vector<64x32xf32> to vector<4x16x32xf32>
    %44 = vector.extract_strided_slice %39 {offsets = [0, 0, 0], sizes = [4, 16, 16], strides = [1, 1, 1]} : vector<4x16x32xf32> to vector<4x16x16xf32>
    %45 = arith.truncf %44 : vector<4x16x16xf32> to vector<4x16x16xbf16>
    %46 = vector.extract_strided_slice %41 {offsets = [0, 0, 0], sizes = [4, 16, 16], strides = [1, 1, 1]} : vector<4x16x32xf32> to vector<4x16x16xf32>
    %47 = arith.truncf %46 : vector<4x16x16xf32> to vector<4x16x16xbf16>
    %48 = vector.extract_strided_slice %43 {offsets = [0, 0, 0], sizes = [4, 16, 16], strides = [1, 1, 1]} : vector<4x16x32xf32> to vector<4x16x16xf32>
    %49 = arith.truncf %48 : vector<4x16x16xf32> to vector<4x16x16xbf16>
    %cst_18 = arith.constant dense<0.000000e+00> : vector<4x16x16xf32>
    %50 = tpu.matmul %45, %47, %cst_18 {dimension_numbers = #tpu.dot_dimension_numbers<[2], [2], [1], [1], [0, 0, 0, 1, 1, 1], [0], [0]>} : vector<4x16x16xbf16>, vector<4x16x16xbf16>, vector<4x16x16xf32> -> vector<4x16x16xf32>
    %cst_19 = arith.constant 2.500000e-01 : f32
    %51 = vector.broadcast %cst_19 : f32 to vector<4x16x16xf32>
    %52 = arith.mulf %50, %51 : vector<4x16x16xf32>
    %53 = vector.broadcast %7 : vector<1x1x16xf32> to vector<4x16x16xf32>
    %54 = arith.addf %52, %53 : vector<4x16x16xf32>
    %cst_20 = arith.constant dense<0xFF800000> : vector<4x16xf32>
    %55 = vector.multi_reduction <maximumf>, %54, %cst_20 [2] : vector<4x16x16xf32> to vector<4x16xf32>
    %56 = vector.shape_cast %55 : vector<4x16xf32> to vector<4x16x1xf32>
    %57 = vector.broadcast %56 : vector<4x16x1xf32> to vector<4x16x16xf32>
    %58 = arith.subf %54, %57 : vector<4x16x16xf32>
    %59 = math.exp %58 : vector<4x16x16xf32>
    %cst_21 = arith.constant dense<0.000000e+00> : vector<4x16xf32>
    %60 = vector.multi_reduction <add>, %59, %cst_21 [2] : vector<4x16x16xf32> to vector<4x16xf32>
    %61 = vector.shape_cast %60 : vector<4x16xf32> to vector<4x16x1xf32>
    %62 = tpu.reciprocal %61 {approx = true} : vector<4x16x1xf32> -> vector<4x16x1xf32>
    %63 = vector.broadcast %62 : vector<4x16x1xf32> to vector<4x16x16xf32>
    %64 = arith.mulf %59, %63 : vector<4x16x16xf32>
    %65 = arith.truncf %64 : vector<4x16x16xf32> to vector<4x16x16xbf16>
    %cst_22 = arith.constant dense<0.000000e+00> : vector<4x16x16xf32>
    %66 = tpu.matmul %65, %49, %cst_22 {dimension_numbers = #tpu.dot_dimension_numbers<[2], [1], [1], [2], [0, 0, 0, 1, 1, 2], [0], [0]>} : vector<4x16x16xbf16>, vector<4x16x16xbf16>, vector<4x16x16xf32> -> vector<4x16x16xf32>
    %67 = vector.extract_strided_slice %39 {offsets = [0, 0, 16], sizes = [4, 16, 16], strides = [1, 1, 1]} : vector<4x16x32xf32> to vector<4x16x16xf32>
    %68 = arith.truncf %67 : vector<4x16x16xf32> to vector<4x16x16xbf16>
    %69 = vector.extract_strided_slice %41 {offsets = [0, 0, 16], sizes = [4, 16, 16], strides = [1, 1, 1]} : vector<4x16x32xf32> to vector<4x16x16xf32>
    %70 = arith.truncf %69 : vector<4x16x16xf32> to vector<4x16x16xbf16>
    %71 = vector.extract_strided_slice %43 {offsets = [0, 0, 16], sizes = [4, 16, 16], strides = [1, 1, 1]} : vector<4x16x32xf32> to vector<4x16x16xf32>
    %72 = arith.truncf %71 : vector<4x16x16xf32> to vector<4x16x16xbf16>
    %cst_23 = arith.constant dense<0.000000e+00> : vector<4x16x16xf32>
    %73 = tpu.matmul %68, %70, %cst_23 {dimension_numbers = #tpu.dot_dimension_numbers<[2], [2], [1], [1], [0, 0, 0, 1, 1, 1], [0], [0]>} : vector<4x16x16xbf16>, vector<4x16x16xbf16>, vector<4x16x16xf32> -> vector<4x16x16xf32>
    %cst_24 = arith.constant 2.500000e-01 : f32
    %74 = vector.broadcast %cst_24 : f32 to vector<4x16x16xf32>
    %75 = arith.mulf %73, %74 : vector<4x16x16xf32>
    %76 = vector.broadcast %7 : vector<1x1x16xf32> to vector<4x16x16xf32>
    %77 = arith.addf %75, %76 : vector<4x16x16xf32>
    %cst_25 = arith.constant dense<0xFF800000> : vector<4x16xf32>
    %78 = vector.multi_reduction <maximumf>, %77, %cst_25 [2] : vector<4x16x16xf32> to vector<4x16xf32>
    %79 = vector.shape_cast %78 : vector<4x16xf32> to vector<4x16x1xf32>
    %80 = vector.broadcast %79 : vector<4x16x1xf32> to vector<4x16x16xf32>
    %81 = arith.subf %77, %80 : vector<4x16x16xf32>
    %82 = math.exp %81 : vector<4x16x16xf32>
    %cst_26 = arith.constant dense<0.000000e+00> : vector<4x16xf32>
    %83 = vector.multi_reduction <add>, %82, %cst_26 [2] : vector<4x16x16xf32> to vector<4x16xf32>
    %84 = vector.shape_cast %83 : vector<4x16xf32> to vector<4x16x1xf32>
    %85 = tpu.reciprocal %84 {approx = true} : vector<4x16x1xf32> -> vector<4x16x1xf32>
    %86 = vector.broadcast %85 : vector<4x16x1xf32> to vector<4x16x16xf32>
    %87 = arith.mulf %82, %86 : vector<4x16x16xf32>
    %88 = arith.truncf %87 : vector<4x16x16xf32> to vector<4x16x16xbf16>
    %cst_27 = arith.constant dense<0.000000e+00> : vector<4x16x16xf32>
    %89 = tpu.matmul %88, %72, %cst_27 {dimension_numbers = #tpu.dot_dimension_numbers<[2], [1], [1], [2], [0, 0, 0, 1, 1, 2], [0], [0]>} : vector<4x16x16xbf16>, vector<4x16x16xbf16>, vector<4x16x16xf32> -> vector<4x16x16xf32>
    %90 = tpu.concatenate %66, %89 in 2 : vector<4x16x16xf32>, vector<4x16x16xf32> -> vector<4x16x32xf32>
    %91 = vector.shape_cast %90 : vector<4x16x32xf32> to vector<64x32xf32>
    %92 = arith.truncf %91 : vector<64x32xf32> to vector<64x32xbf16>
    %c0_28 = arith.constant 0 : index
    %c0_29 = arith.constant 0 : index
    %c0_30 = arith.constant 0 : index
    %93 = vector.load %arg5[%c0_28, %c0_29, %c0_30] : memref<2x32x32xbf16, #tpu.memory_space<vmem>>, vector<1x32x32xbf16>
    %94 = vector.shape_cast %93 : vector<1x32x32xbf16> to vector<32x32xbf16>
    %cst_31 = arith.constant dense<0.000000e+00> : vector<64x32xf32>
    %95 = tpu.matmul %92, %94, %cst_31 {dimension_numbers = #tpu.dot_dimension_numbers<[1], [0], [0], [1], [0, 0, 1, 1], [], []>} : vector<64x32xbf16>, vector<32x32xbf16>, vector<64x32xf32> -> vector<64x32xf32>
    %96 = arith.addf %1, %95 : vector<64x32xf32>
    %c0_32 = arith.constant 0 : index
    %c0_33 = arith.constant 0 : index
    %c0_34 = arith.constant 0 : index
    %97 = vector.load %arg6[%c0_32, %c0_33, %c0_34] : memref<2x1x32xf32, #tpu.memory_space<vmem>>, vector<1x1x32xf32>
    %98 = vector.shape_cast %97 : vector<1x1x32xf32> to vector<1x32xf32>
    %99 = vector.broadcast %98 : vector<1x32xf32> to vector<64x32xf32>
    %100 = arith.addf %96, %99 : vector<64x32xf32>
    %c0_35 = arith.constant 0 : index
    %c0_36 = arith.constant 0 : index
    %c0_37 = arith.constant 0 : index
    %101 = vector.load %arg7[%c0_35, %c0_36, %c0_37] : memref<2x1x32xf32, #tpu.memory_space<vmem>>, vector<1x1x32xf32>
    %102 = vector.shape_cast %101 : vector<1x1x32xf32> to vector<1x32xf32>
    %c0_38 = arith.constant 0 : index
    %c0_39 = arith.constant 0 : index
    %c0_40 = arith.constant 0 : index
    %103 = vector.load %arg8[%c0_38, %c0_39, %c0_40] : memref<2x1x32xf32, #tpu.memory_space<vmem>>, vector<1x1x32xf32>
    %104 = vector.shape_cast %103 : vector<1x1x32xf32> to vector<1x32xf32>
    %cst_41 = arith.constant dense<0.000000e+00> : vector<64xf32>
    %105 = vector.multi_reduction <add>, %100, %cst_41 [1] : vector<64x32xf32> to vector<64xf32>
    %106 = vector.shape_cast %105 : vector<64xf32> to vector<64x1xf32>
    %cst_42 = arith.constant 3.200000e+01 : f32
    %107 = vector.broadcast %cst_42 : f32 to vector<64x1xf32>
    %108 = arith.divf %106, %107 : vector<64x1xf32>
    %109 = vector.broadcast %108 : vector<64x1xf32> to vector<64x32xf32>
    %110 = arith.subf %100, %109 : vector<64x32xf32>
    %111 = arith.mulf %110, %110 : vector<64x32xf32>
    %cst_43 = arith.constant dense<0.000000e+00> : vector<64xf32>
    %112 = vector.multi_reduction <add>, %111, %cst_43 [1] : vector<64x32xf32> to vector<64xf32>
    %113 = vector.shape_cast %112 : vector<64xf32> to vector<64x1xf32>
    %cst_44 = arith.constant 3.200000e+01 : f32
    %114 = vector.broadcast %cst_44 : f32 to vector<64x1xf32>
    %115 = arith.divf %113, %114 : vector<64x1xf32>
    %116 = vector.broadcast %108 : vector<64x1xf32> to vector<64x32xf32>
    %117 = arith.subf %100, %116 : vector<64x32xf32>
    %cst_45 = arith.constant 9.99999974E-6 : f32
    %118 = vector.broadcast %cst_45 : f32 to vector<64x1xf32>
    %119 = arith.addf %115, %118 : vector<64x1xf32>
    %120 = math.rsqrt %119 : vector<64x1xf32>
    %121 = vector.broadcast %120 : vector<64x1xf32> to vector<64x32xf32>
    %122 = arith.mulf %117, %121 : vector<64x32xf32>
    %123 = vector.broadcast %102 : vector<1x32xf32> to vector<64x32xf32>
    %124 = arith.mulf %122, %123 : vector<64x32xf32>
    %125 = vector.broadcast %104 : vector<1x32xf32> to vector<64x32xf32>
    %126 = arith.addf %124, %125 : vector<64x32xf32>
    %127 = arith.truncf %126 : vector<64x32xf32> to vector<64x32xbf16>
    %c0_46 = arith.constant 0 : index
    %c0_47 = arith.constant 0 : index
    %c0_48 = arith.constant 0 : index
    %128 = vector.load %arg9[%c0_46, %c0_47, %c0_48] : memref<2x32x64xbf16, #tpu.memory_space<vmem>>, vector<1x32x64xbf16>
    %129 = vector.shape_cast %128 : vector<1x32x64xbf16> to vector<32x64xbf16>
    %cst_49 = arith.constant dense<0.000000e+00> : vector<64x64xf32>
    %130 = tpu.matmul %127, %129, %cst_49 {dimension_numbers = #tpu.dot_dimension_numbers<[1], [0], [0], [1], [0, 0, 1, 1], [], []>} : vector<64x32xbf16>, vector<32x64xbf16>, vector<64x64xf32> -> vector<64x64xf32>
    %c0_50 = arith.constant 0 : index
    %c0_51 = arith.constant 0 : index
    %c0_52 = arith.constant 0 : index
    %131 = vector.load %arg10[%c0_50, %c0_51, %c0_52] : memref<2x1x64xf32, #tpu.memory_space<vmem>>, vector<1x1x64xf32>
    %132 = vector.shape_cast %131 : vector<1x1x64xf32> to vector<1x64xf32>
    %133 = vector.broadcast %132 : vector<1x64xf32> to vector<64x64xf32>
    %134 = arith.addf %130, %133 : vector<64x64xf32>
    %cst_53 = arith.constant 5.000000e-01 : f32
    %135 = vector.broadcast %cst_53 : f32 to vector<64x64xf32>
    %136 = arith.mulf %135, %134 : vector<64x64xf32>
    %cst_54 = arith.constant 4.471500e-02 : f32
    %137 = vector.broadcast %cst_54 : f32 to vector<64x64xf32>
    %138 = arith.mulf %137, %134 : vector<64x64xf32>
    %139 = arith.mulf %138, %134 : vector<64x64xf32>
    %140 = arith.mulf %139, %134 : vector<64x64xf32>
    %141 = arith.addf %134, %140 : vector<64x64xf32>
    %cst_55 = arith.constant 0.797884583 : f32
    %142 = vector.broadcast %cst_55 : f32 to vector<64x64xf32>
    %143 = arith.mulf %142, %141 : vector<64x64xf32>
    %144 = math.tanh %143 : vector<64x64xf32>
    %cst_56 = arith.constant 1.000000e+00 : f32
    %145 = vector.broadcast %cst_56 : f32 to vector<64x64xf32>
    %146 = arith.addf %145, %144 : vector<64x64xf32>
    %147 = arith.mulf %136, %146 : vector<64x64xf32>
    %148 = arith.truncf %147 : vector<64x64xf32> to vector<64x64xbf16>
    %c0_57 = arith.constant 0 : index
    %c0_58 = arith.constant 0 : index
    %c0_59 = arith.constant 0 : index
    %149 = vector.load %arg11[%c0_57, %c0_58, %c0_59] : memref<2x64x32xbf16, #tpu.memory_space<vmem>>, vector<1x64x32xbf16>
    %150 = vector.shape_cast %149 : vector<1x64x32xbf16> to vector<64x32xbf16>
    %cst_60 = arith.constant dense<0.000000e+00> : vector<64x32xf32>
    %151 = tpu.matmul %148, %150, %cst_60 {dimension_numbers = #tpu.dot_dimension_numbers<[1], [0], [0], [1], [0, 0, 1, 1], [], []>} : vector<64x64xbf16>, vector<64x32xbf16>, vector<64x32xf32> -> vector<64x32xf32>
    %c0_61 = arith.constant 0 : index
    %c0_62 = arith.constant 0 : index
    %c0_63 = arith.constant 0 : index
    %152 = vector.load %arg12[%c0_61, %c0_62, %c0_63] : memref<2x1x32xf32, #tpu.memory_space<vmem>>, vector<1x1x32xf32>
    %153 = vector.shape_cast %152 : vector<1x1x32xf32> to vector<1x32xf32>
    %154 = vector.broadcast %153 : vector<1x32xf32> to vector<64x32xf32>
    %155 = arith.addf %151, %154 : vector<64x32xf32>
    %156 = arith.addf %100, %155 : vector<64x32xf32>
    %c1 = arith.constant 1 : index
    %c0_64 = arith.constant 0 : index
    %c0_65 = arith.constant 0 : index
    %157 = vector.load %arg2[%c1, %c0_64, %c0_65] : memref<2x1x32xf32, #tpu.memory_space<vmem>>, vector<1x1x32xf32>
    %158 = vector.shape_cast %157 : vector<1x1x32xf32> to vector<1x32xf32>
    %c1_66 = arith.constant 1 : index
    %c0_67 = arith.constant 0 : index
    %c0_68 = arith.constant 0 : index
    %159 = vector.load %arg3[%c1_66, %c0_67, %c0_68] : memref<2x1x32xf32, #tpu.memory_space<vmem>>, vector<1x1x32xf32>
    %160 = vector.shape_cast %159 : vector<1x1x32xf32> to vector<1x32xf32>
    %cst_69 = arith.constant dense<0.000000e+00> : vector<64xf32>
    %161 = vector.multi_reduction <add>, %156, %cst_69 [1] : vector<64x32xf32> to vector<64xf32>
    %162 = vector.shape_cast %161 : vector<64xf32> to vector<64x1xf32>
    %cst_70 = arith.constant 3.200000e+01 : f32
    %163 = vector.broadcast %cst_70 : f32 to vector<64x1xf32>
    %164 = arith.divf %162, %163 : vector<64x1xf32>
    %165 = vector.broadcast %164 : vector<64x1xf32> to vector<64x32xf32>
    %166 = arith.subf %156, %165 : vector<64x32xf32>
    %167 = arith.mulf %166, %166 : vector<64x32xf32>
    %cst_71 = arith.constant dense<0.000000e+00> : vector<64xf32>
    %168 = vector.multi_reduction <add>, %167, %cst_71 [1] : vector<64x32xf32> to vector<64xf32>
    %169 = vector.shape_cast %168 : vector<64xf32> to vector<64x1xf32>
    %cst_72 = arith.constant 3.200000e+01 : f32
    %170 = vector.broadcast %cst_72 : f32 to vector<64x1xf32>
    %171 = arith.divf %169, %170 : vector<64x1xf32>
    %172 = vector.broadcast %164 : vector<64x1xf32> to vector<64x32xf32>
    %173 = arith.subf %156, %172 : vector<64x32xf32>
    %cst_73 = arith.constant 9.99999974E-6 : f32
    %174 = vector.broadcast %cst_73 : f32 to vector<64x1xf32>
    %175 = arith.addf %171, %174 : vector<64x1xf32>
    %176 = math.rsqrt %175 : vector<64x1xf32>
    %177 = vector.broadcast %176 : vector<64x1xf32> to vector<64x32xf32>
    %178 = arith.mulf %173, %177 : vector<64x32xf32>
    %179 = vector.broadcast %158 : vector<1x32xf32> to vector<64x32xf32>
    %180 = arith.mulf %178, %179 : vector<64x32xf32>
    %181 = vector.broadcast %160 : vector<1x32xf32> to vector<64x32xf32>
    %182 = arith.addf %180, %181 : vector<64x32xf32>
    %183 = arith.truncf %182 : vector<64x32xf32> to vector<64x32xbf16>
    %c1_74 = arith.constant 1 : index
    %c0_75 = arith.constant 0 : index
    %c0_76 = arith.constant 0 : index
    %184 = vector.load %arg4[%c1_74, %c0_75, %c0_76] : memref<2x32x96xbf16, #tpu.memory_space<vmem>>, vector<1x32x96xbf16>
    %185 = vector.shape_cast %184 : vector<1x32x96xbf16> to vector<32x96xbf16>
    %cst_77 = arith.constant dense<0.000000e+00> : vector<64x96xf32>
    %186 = tpu.matmul %183, %185, %cst_77 {dimension_numbers = #tpu.dot_dimension_numbers<[1], [0], [0], [1], [0, 0, 1, 1], [], []>} : vector<64x32xbf16>, vector<32x96xbf16>, vector<64x96xf32> -> vector<64x96xf32>
    %187 = vector.extract_strided_slice %186 {offsets = [0, 0], sizes = [64, 32], strides = [1, 1]} : vector<64x96xf32> to vector<64x32xf32>
    %188 = vector.shape_cast %187 : vector<64x32xf32> to vector<4x16x32xf32>
    %189 = vector.extract_strided_slice %186 {offsets = [0, 32], sizes = [64, 32], strides = [1, 1]} : vector<64x96xf32> to vector<64x32xf32>
    %190 = vector.shape_cast %189 : vector<64x32xf32> to vector<4x16x32xf32>
    %191 = vector.extract_strided_slice %186 {offsets = [0, 64], sizes = [64, 32], strides = [1, 1]} : vector<64x96xf32> to vector<64x32xf32>
    %192 = vector.shape_cast %191 : vector<64x32xf32> to vector<4x16x32xf32>
    %193 = vector.extract_strided_slice %188 {offsets = [0, 0, 0], sizes = [4, 16, 16], strides = [1, 1, 1]} : vector<4x16x32xf32> to vector<4x16x16xf32>
    %194 = arith.truncf %193 : vector<4x16x16xf32> to vector<4x16x16xbf16>
    %195 = vector.extract_strided_slice %190 {offsets = [0, 0, 0], sizes = [4, 16, 16], strides = [1, 1, 1]} : vector<4x16x32xf32> to vector<4x16x16xf32>
    %196 = arith.truncf %195 : vector<4x16x16xf32> to vector<4x16x16xbf16>
    %197 = vector.extract_strided_slice %192 {offsets = [0, 0, 0], sizes = [4, 16, 16], strides = [1, 1, 1]} : vector<4x16x32xf32> to vector<4x16x16xf32>
    %198 = arith.truncf %197 : vector<4x16x16xf32> to vector<4x16x16xbf16>
    %cst_78 = arith.constant dense<0.000000e+00> : vector<4x16x16xf32>
    %199 = tpu.matmul %194, %196, %cst_78 {dimension_numbers = #tpu.dot_dimension_numbers<[2], [2], [1], [1], [0, 0, 0, 1, 1, 1], [0], [0]>} : vector<4x16x16xbf16>, vector<4x16x16xbf16>, vector<4x16x16xf32> -> vector<4x16x16xf32>
    %cst_79 = arith.constant 2.500000e-01 : f32
    %200 = vector.broadcast %cst_79 : f32 to vector<4x16x16xf32>
    %201 = arith.mulf %199, %200 : vector<4x16x16xf32>
    %202 = vector.broadcast %7 : vector<1x1x16xf32> to vector<4x16x16xf32>
    %203 = arith.addf %201, %202 : vector<4x16x16xf32>
    %cst_80 = arith.constant dense<0xFF800000> : vector<4x16xf32>
    %204 = vector.multi_reduction <maximumf>, %203, %cst_80 [2] : vector<4x16x16xf32> to vector<4x16xf32>
    %205 = vector.shape_cast %204 : vector<4x16xf32> to vector<4x16x1xf32>
    %206 = vector.broadcast %205 : vector<4x16x1xf32> to vector<4x16x16xf32>
    %207 = arith.subf %203, %206 : vector<4x16x16xf32>
    %208 = math.exp %207 : vector<4x16x16xf32>
    %cst_81 = arith.constant dense<0.000000e+00> : vector<4x16xf32>
    %209 = vector.multi_reduction <add>, %208, %cst_81 [2] : vector<4x16x16xf32> to vector<4x16xf32>
    %210 = vector.shape_cast %209 : vector<4x16xf32> to vector<4x16x1xf32>
    %211 = tpu.reciprocal %210 {approx = true} : vector<4x16x1xf32> -> vector<4x16x1xf32>
    %212 = vector.broadcast %211 : vector<4x16x1xf32> to vector<4x16x16xf32>
    %213 = arith.mulf %208, %212 : vector<4x16x16xf32>
    %214 = arith.truncf %213 : vector<4x16x16xf32> to vector<4x16x16xbf16>
    %cst_82 = arith.constant dense<0.000000e+00> : vector<4x16x16xf32>
    %215 = tpu.matmul %214, %198, %cst_82 {dimension_numbers = #tpu.dot_dimension_numbers<[2], [1], [1], [2], [0, 0, 0, 1, 1, 2], [0], [0]>} : vector<4x16x16xbf16>, vector<4x16x16xbf16>, vector<4x16x16xf32> -> vector<4x16x16xf32>
    %216 = vector.extract_strided_slice %188 {offsets = [0, 0, 16], sizes = [4, 16, 16], strides = [1, 1, 1]} : vector<4x16x32xf32> to vector<4x16x16xf32>
    %217 = arith.truncf %216 : vector<4x16x16xf32> to vector<4x16x16xbf16>
    %218 = vector.extract_strided_slice %190 {offsets = [0, 0, 16], sizes = [4, 16, 16], strides = [1, 1, 1]} : vector<4x16x32xf32> to vector<4x16x16xf32>
    %219 = arith.truncf %218 : vector<4x16x16xf32> to vector<4x16x16xbf16>
    %220 = vector.extract_strided_slice %192 {offsets = [0, 0, 16], sizes = [4, 16, 16], strides = [1, 1, 1]} : vector<4x16x32xf32> to vector<4x16x16xf32>
    %221 = arith.truncf %220 : vector<4x16x16xf32> to vector<4x16x16xbf16>
    %cst_83 = arith.constant dense<0.000000e+00> : vector<4x16x16xf32>
    %222 = tpu.matmul %217, %219, %cst_83 {dimension_numbers = #tpu.dot_dimension_numbers<[2], [2], [1], [1], [0, 0, 0, 1, 1, 1], [0], [0]>} : vector<4x16x16xbf16>, vector<4x16x16xbf16>, vector<4x16x16xf32> -> vector<4x16x16xf32>
    %cst_84 = arith.constant 2.500000e-01 : f32
    %223 = vector.broadcast %cst_84 : f32 to vector<4x16x16xf32>
    %224 = arith.mulf %222, %223 : vector<4x16x16xf32>
    %225 = vector.broadcast %7 : vector<1x1x16xf32> to vector<4x16x16xf32>
    %226 = arith.addf %224, %225 : vector<4x16x16xf32>
    %cst_85 = arith.constant dense<0xFF800000> : vector<4x16xf32>
    %227 = vector.multi_reduction <maximumf>, %226, %cst_85 [2] : vector<4x16x16xf32> to vector<4x16xf32>
    %228 = vector.shape_cast %227 : vector<4x16xf32> to vector<4x16x1xf32>
    %229 = vector.broadcast %228 : vector<4x16x1xf32> to vector<4x16x16xf32>
    %230 = arith.subf %226, %229 : vector<4x16x16xf32>
    %231 = math.exp %230 : vector<4x16x16xf32>
    %cst_86 = arith.constant dense<0.000000e+00> : vector<4x16xf32>
    %232 = vector.multi_reduction <add>, %231, %cst_86 [2] : vector<4x16x16xf32> to vector<4x16xf32>
    %233 = vector.shape_cast %232 : vector<4x16xf32> to vector<4x16x1xf32>
    %234 = tpu.reciprocal %233 {approx = true} : vector<4x16x1xf32> -> vector<4x16x1xf32>
    %235 = vector.broadcast %234 : vector<4x16x1xf32> to vector<4x16x16xf32>
    %236 = arith.mulf %231, %235 : vector<4x16x16xf32>
    %237 = arith.truncf %236 : vector<4x16x16xf32> to vector<4x16x16xbf16>
    %cst_87 = arith.constant dense<0.000000e+00> : vector<4x16x16xf32>
    %238 = tpu.matmul %237, %221, %cst_87 {dimension_numbers = #tpu.dot_dimension_numbers<[2], [1], [1], [2], [0, 0, 0, 1, 1, 2], [0], [0]>} : vector<4x16x16xbf16>, vector<4x16x16xbf16>, vector<4x16x16xf32> -> vector<4x16x16xf32>
    %239 = tpu.concatenate %215, %238 in 2 : vector<4x16x16xf32>, vector<4x16x16xf32> -> vector<4x16x32xf32>
    %240 = vector.shape_cast %239 : vector<4x16x32xf32> to vector<64x32xf32>
    %241 = arith.truncf %240 : vector<64x32xf32> to vector<64x32xbf16>
    %c1_88 = arith.constant 1 : index
    %c0_89 = arith.constant 0 : index
    %c0_90 = arith.constant 0 : index
    %242 = vector.load %arg5[%c1_88, %c0_89, %c0_90] : memref<2x32x32xbf16, #tpu.memory_space<vmem>>, vector<1x32x32xbf16>
    %243 = vector.shape_cast %242 : vector<1x32x32xbf16> to vector<32x32xbf16>
    %cst_91 = arith.constant dense<0.000000e+00> : vector<64x32xf32>
    %244 = tpu.matmul %241, %243, %cst_91 {dimension_numbers = #tpu.dot_dimension_numbers<[1], [0], [0], [1], [0, 0, 1, 1], [], []>} : vector<64x32xbf16>, vector<32x32xbf16>, vector<64x32xf32> -> vector<64x32xf32>
    %245 = arith.addf %156, %244 : vector<64x32xf32>
    %c1_92 = arith.constant 1 : index
    %c0_93 = arith.constant 0 : index
    %c0_94 = arith.constant 0 : index
    %246 = vector.load %arg6[%c1_92, %c0_93, %c0_94] : memref<2x1x32xf32, #tpu.memory_space<vmem>>, vector<1x1x32xf32>
    %247 = vector.shape_cast %246 : vector<1x1x32xf32> to vector<1x32xf32>
    %248 = vector.broadcast %247 : vector<1x32xf32> to vector<64x32xf32>
    %249 = arith.addf %245, %248 : vector<64x32xf32>
    %c1_95 = arith.constant 1 : index
    %c0_96 = arith.constant 0 : index
    %c0_97 = arith.constant 0 : index
    %250 = vector.load %arg7[%c1_95, %c0_96, %c0_97] : memref<2x1x32xf32, #tpu.memory_space<vmem>>, vector<1x1x32xf32>
    %251 = vector.shape_cast %250 : vector<1x1x32xf32> to vector<1x32xf32>
    %c1_98 = arith.constant 1 : index
    %c0_99 = arith.constant 0 : index
    %c0_100 = arith.constant 0 : index
    %252 = vector.load %arg8[%c1_98, %c0_99, %c0_100] : memref<2x1x32xf32, #tpu.memory_space<vmem>>, vector<1x1x32xf32>
    %253 = vector.shape_cast %252 : vector<1x1x32xf32> to vector<1x32xf32>
    %cst_101 = arith.constant dense<0.000000e+00> : vector<64xf32>
    %254 = vector.multi_reduction <add>, %249, %cst_101 [1] : vector<64x32xf32> to vector<64xf32>
    %255 = vector.shape_cast %254 : vector<64xf32> to vector<64x1xf32>
    %cst_102 = arith.constant 3.200000e+01 : f32
    %256 = vector.broadcast %cst_102 : f32 to vector<64x1xf32>
    %257 = arith.divf %255, %256 : vector<64x1xf32>
    %258 = vector.broadcast %257 : vector<64x1xf32> to vector<64x32xf32>
    %259 = arith.subf %249, %258 : vector<64x32xf32>
    %260 = arith.mulf %259, %259 : vector<64x32xf32>
    %cst_103 = arith.constant dense<0.000000e+00> : vector<64xf32>
    %261 = vector.multi_reduction <add>, %260, %cst_103 [1] : vector<64x32xf32> to vector<64xf32>
    %262 = vector.shape_cast %261 : vector<64xf32> to vector<64x1xf32>
    %cst_104 = arith.constant 3.200000e+01 : f32
    %263 = vector.broadcast %cst_104 : f32 to vector<64x1xf32>
    %264 = arith.divf %262, %263 : vector<64x1xf32>
    %265 = vector.broadcast %257 : vector<64x1xf32> to vector<64x32xf32>
    %266 = arith.subf %249, %265 : vector<64x32xf32>
    %cst_105 = arith.constant 9.99999974E-6 : f32
    %267 = vector.broadcast %cst_105 : f32 to vector<64x1xf32>
    %268 = arith.addf %264, %267 : vector<64x1xf32>
    %269 = math.rsqrt %268 : vector<64x1xf32>
    %270 = vector.broadcast %269 : vector<64x1xf32> to vector<64x32xf32>
    %271 = arith.mulf %266, %270 : vector<64x32xf32>
    %272 = vector.broadcast %251 : vector<1x32xf32> to vector<64x32xf32>
    %273 = arith.mulf %271, %272 : vector<64x32xf32>
    %274 = vector.broadcast %253 : vector<1x32xf32> to vector<64x32xf32>
    %275 = arith.addf %273, %274 : vector<64x32xf32>
    %276 = arith.truncf %275 : vector<64x32xf32> to vector<64x32xbf16>
    %c1_106 = arith.constant 1 : index
    %c0_107 = arith.constant 0 : index
    %c0_108 = arith.constant 0 : index
    %277 = vector.load %arg9[%c1_106, %c0_107, %c0_108] : memref<2x32x64xbf16, #tpu.memory_space<vmem>>, vector<1x32x64xbf16>
    %278 = vector.shape_cast %277 : vector<1x32x64xbf16> to vector<32x64xbf16>
    %cst_109 = arith.constant dense<0.000000e+00> : vector<64x64xf32>
    %279 = tpu.matmul %276, %278, %cst_109 {dimension_numbers = #tpu.dot_dimension_numbers<[1], [0], [0], [1], [0, 0, 1, 1], [], []>} : vector<64x32xbf16>, vector<32x64xbf16>, vector<64x64xf32> -> vector<64x64xf32>
    %c1_110 = arith.constant 1 : index
    %c0_111 = arith.constant 0 : index
    %c0_112 = arith.constant 0 : index
    %280 = vector.load %arg10[%c1_110, %c0_111, %c0_112] : memref<2x1x64xf32, #tpu.memory_space<vmem>>, vector<1x1x64xf32>
    %281 = vector.shape_cast %280 : vector<1x1x64xf32> to vector<1x64xf32>
    %282 = vector.broadcast %281 : vector<1x64xf32> to vector<64x64xf32>
    %283 = arith.addf %279, %282 : vector<64x64xf32>
    %cst_113 = arith.constant 5.000000e-01 : f32
    %284 = vector.broadcast %cst_113 : f32 to vector<64x64xf32>
    %285 = arith.mulf %284, %283 : vector<64x64xf32>
    %cst_114 = arith.constant 4.471500e-02 : f32
    %286 = vector.broadcast %cst_114 : f32 to vector<64x64xf32>
    %287 = arith.mulf %286, %283 : vector<64x64xf32>
    %288 = arith.mulf %287, %283 : vector<64x64xf32>
    %289 = arith.mulf %288, %283 : vector<64x64xf32>
    %290 = arith.addf %283, %289 : vector<64x64xf32>
    %cst_115 = arith.constant 0.797884583 : f32
    %291 = vector.broadcast %cst_115 : f32 to vector<64x64xf32>
    %292 = arith.mulf %291, %290 : vector<64x64xf32>
    %293 = math.tanh %292 : vector<64x64xf32>
    %cst_116 = arith.constant 1.000000e+00 : f32
    %294 = vector.broadcast %cst_116 : f32 to vector<64x64xf32>
    %295 = arith.addf %294, %293 : vector<64x64xf32>
    %296 = arith.mulf %285, %295 : vector<64x64xf32>
    %297 = arith.truncf %296 : vector<64x64xf32> to vector<64x64xbf16>
    %c1_117 = arith.constant 1 : index
    %c0_118 = arith.constant 0 : index
    %c0_119 = arith.constant 0 : index
    %298 = vector.load %arg11[%c1_117, %c0_118, %c0_119] : memref<2x64x32xbf16, #tpu.memory_space<vmem>>, vector<1x64x32xbf16>
    %299 = vector.shape_cast %298 : vector<1x64x32xbf16> to vector<64x32xbf16>
    %cst_120 = arith.constant dense<0.000000e+00> : vector<64x32xf32>
    %300 = tpu.matmul %297, %299, %cst_120 {dimension_numbers = #tpu.dot_dimension_numbers<[1], [0], [0], [1], [0, 0, 1, 1], [], []>} : vector<64x64xbf16>, vector<64x32xbf16>, vector<64x32xf32> -> vector<64x32xf32>
    %c1_121 = arith.constant 1 : index
    %c0_122 = arith.constant 0 : index
    %c0_123 = arith.constant 0 : index
    %301 = vector.load %arg12[%c1_121, %c0_122, %c0_123] : memref<2x1x32xf32, #tpu.memory_space<vmem>>, vector<1x1x32xf32>
    %302 = vector.shape_cast %301 : vector<1x1x32xf32> to vector<1x32xf32>
    %303 = vector.broadcast %302 : vector<1x32xf32> to vector<64x32xf32>
    %304 = arith.addf %300, %303 : vector<64x32xf32>
    %305 = arith.addf %249, %304 : vector<64x32xf32>
    %306 = vector.shape_cast %305 : vector<64x32xf32> to vector<4x16x32xf32>
    %307 = vector.extract_strided_slice %306 {offsets = [0, 0, 0], sizes = [4, 4, 32], strides = [1, 1, 1]} : vector<4x16x32xf32> to vector<4x4x32xf32>
    %c0_124 = arith.constant 0 : index
    %c0_125 = arith.constant 0 : index
    %308 = vector.load %arg13[%c0_124, %c0_125] : memref<1x32xf32, #tpu.memory_space<vmem>>, vector<1x32xf32>
    %c0_126 = arith.constant 0 : index
    %c0_127 = arith.constant 0 : index
    %309 = vector.load %arg14[%c0_126, %c0_127] : memref<1x32xf32, #tpu.memory_space<vmem>>, vector<1x32xf32>
    %cst_128 = arith.constant dense<0.000000e+00> : vector<4x4xf32>
    %310 = vector.multi_reduction <add>, %307, %cst_128 [2] : vector<4x4x32xf32> to vector<4x4xf32>
    %311 = vector.shape_cast %310 : vector<4x4xf32> to vector<4x4x1xf32>
    %cst_129 = arith.constant 3.200000e+01 : f32
    %312 = vector.broadcast %cst_129 : f32 to vector<4x4x1xf32>
    %313 = arith.divf %311, %312 : vector<4x4x1xf32>
    %314 = vector.broadcast %313 : vector<4x4x1xf32> to vector<4x4x32xf32>
    %315 = arith.subf %307, %314 : vector<4x4x32xf32>
    %316 = arith.mulf %315, %315 : vector<4x4x32xf32>
    %cst_130 = arith.constant dense<0.000000e+00> : vector<4x4xf32>
    %317 = vector.multi_reduction <add>, %316, %cst_130 [2] : vector<4x4x32xf32> to vector<4x4xf32>
    %318 = vector.shape_cast %317 : vector<4x4xf32> to vector<4x4x1xf32>
    %cst_131 = arith.constant 3.200000e+01 : f32
    %319 = vector.broadcast %cst_131 : f32 to vector<4x4x1xf32>
    %320 = arith.divf %318, %319 : vector<4x4x1xf32>
    %321 = vector.broadcast %313 : vector<4x4x1xf32> to vector<4x4x32xf32>
    %322 = arith.subf %307, %321 : vector<4x4x32xf32>
    %cst_132 = arith.constant 9.99999974E-6 : f32
    %323 = vector.broadcast %cst_132 : f32 to vector<4x4x1xf32>
    %324 = arith.addf %320, %323 : vector<4x4x1xf32>
    %325 = math.rsqrt %324 : vector<4x4x1xf32>
    %326 = vector.broadcast %325 : vector<4x4x1xf32> to vector<4x4x32xf32>
    %327 = arith.mulf %322, %326 : vector<4x4x32xf32>
    %328 = vector.shape_cast %308 : vector<1x32xf32> to vector<1x1x32xf32>
    %329 = vector.broadcast %328 : vector<1x1x32xf32> to vector<4x4x32xf32>
    %330 = arith.mulf %327, %329 : vector<4x4x32xf32>
    %331 = vector.shape_cast %309 : vector<1x32xf32> to vector<1x1x32xf32>
    %332 = vector.broadcast %331 : vector<1x1x32xf32> to vector<4x4x32xf32>
    %333 = arith.addf %330, %332 : vector<4x4x32xf32>
    %c0_133 = arith.constant 0 : index
    %c0_134 = arith.constant 0 : index
    %c0_135 = arith.constant 0 : index
    %334 = vector.load %arg15[%c0_133, %c0_134, %c0_135] : memref<4x4x32xf32, #tpu.memory_space<vmem>>, vector<4x4x32xf32>
    tpu.vector_store %arg15[%c0_133, %c0_134, %c0_135], %333 {strides = array<i32>} : memref<4x4x32xf32, #tpu.memory_space<vmem>>, vector<4x4x32xf32>,
    return
  }
  func.func @transform_0(%arg0: i32) -> (i32, i32, i32) {
    %c0_i32 = arith.constant 0 : i32
    %c0_i32_0 = arith.constant 0 : i32
    %c0_i32_1 = arith.constant 0 : i32
    return %arg0, %c0_i32, %c0_i32_0 : i32, i32, i32
  }
  func.func @transform_1(%arg0: i32) -> (i32, i32, i32) {
    %c0_i32 = arith.constant 0 : i32
    %c0_i32_0 = arith.constant 0 : i32
    %c0_i32_1 = arith.constant 0 : i32
    %c0_i32_2 = arith.constant 0 : i32
    return %c0_i32, %c0_i32_0, %c0_i32_1 : i32, i32, i32
  }
  func.func @transform_2(%arg0: i32) -> (i32, i32, i32) {
    %c0_i32 = arith.constant 0 : i32
    %c0_i32_0 = arith.constant 0 : i32
    %c0_i32_1 = arith.constant 0 : i32
    %c0_i32_2 = arith.constant 0 : i32
    return %c0_i32, %c0_i32_0, %c0_i32_1 : i32, i32, i32
  }
  func.func @transform_3(%arg0: i32) -> (i32, i32, i32) {
    %c0_i32 = arith.constant 0 : i32
    %c0_i32_0 = arith.constant 0 : i32
    %c0_i32_1 = arith.constant 0 : i32
    %c0_i32_2 = arith.constant 0 : i32
    return %c0_i32, %c0_i32_0, %c0_i32_1 : i32, i32, i32
  }
  func.func @transform_4(%arg0: i32) -> (i32, i32, i32) {
    %c0_i32 = arith.constant 0 : i32
    %c0_i32_0 = arith.constant 0 : i32
    %c0_i32_1 = arith.constant 0 : i32
    %c0_i32_2 = arith.constant 0 : i32
    return %c0_i32, %c0_i32_0, %c0_i32_1 : i32, i32, i32
  }
  func.func @transform_5(%arg0: i32) -> (i32, i32, i32) {
    %c0_i32 = arith.constant 0 : i32
    %c0_i32_0 = arith.constant 0 : i32
    %c0_i32_1 = arith.constant 0 : i32
    %c0_i32_2 = arith.constant 0 : i32
    return %c0_i32, %c0_i32_0, %c0_i32_1 : i32, i32, i32
  }
  func.func @transform_6(%arg0: i32) -> (i32, i32, i32) {
    %c0_i32 = arith.constant 0 : i32
    %c0_i32_0 = arith.constant 0 : i32
    %c0_i32_1 = arith.constant 0 : i32
    %c0_i32_2 = arith.constant 0 : i32
    return %c0_i32, %c0_i32_0, %c0_i32_1 : i32, i32, i32
  }
  func.func @transform_7(%arg0: i32) -> (i32, i32, i32) {
    %c0_i32 = arith.constant 0 : i32
    %c0_i32_0 = arith.constant 0 : i32
    %c0_i32_1 = arith.constant 0 : i32
    %c0_i32_2 = arith.constant 0 : i32
    return %c0_i32, %c0_i32_0, %c0_i32_1 : i32, i32, i32
  }
  func.func @transform_8(%arg0: i32) -> (i32, i32, i32) {
    %c0_i32 = arith.constant 0 : i32
    %c0_i32_0 = arith.constant 0 : i32
    %c0_i32_1 = arith.constant 0 : i32
    %c0_i32_2 = arith.constant 0 : i32
    return %c0_i32, %c0_i32_0, %c0_i32_1 : i32, i32, i32
  }
  func.func @transform_9(%arg0: i32) -> (i32, i32, i32) {
    %c0_i32 = arith.constant 0 : i32
    %c0_i32_0 = arith.constant 0 : i32
    %c0_i32_1 = arith.constant 0 : i32
    %c0_i32_2 = arith.constant 0 : i32
    return %c0_i32, %c0_i32_0, %c0_i32_1 : i32, i32, i32
  }
  func.func @transform_10(%arg0: i32) -> (i32, i32, i32) {
    %c0_i32 = arith.constant 0 : i32
    %c0_i32_0 = arith.constant 0 : i32
    %c0_i32_1 = arith.constant 0 : i32
    %c0_i32_2 = arith.constant 0 : i32
    return %c0_i32, %c0_i32_0, %c0_i32_1 : i32, i32, i32
  }
  func.func @transform_11(%arg0: i32) -> (i32, i32, i32) {
    %c0_i32 = arith.constant 0 : i32
    %c0_i32_0 = arith.constant 0 : i32
    %c0_i32_1 = arith.constant 0 : i32
    %c0_i32_2 = arith.constant 0 : i32
    return %c0_i32, %c0_i32_0, %c0_i32_1 : i32, i32, i32
  }
  func.func @transform_12(%arg0: i32) -> (i32, i32) {
    %c0_i32 = arith.constant 0 : i32
    %c0_i32_0 = arith.constant 0 : i32
    %c0_i32_1 = arith.constant 0 : i32
    return %c0_i32, %c0_i32_0 : i32, i32
  }
  func.func @transform_13(%arg0: i32) -> (i32, i32) {
    %c0_i32 = arith.constant 0 : i32
    %c0_i32_0 = arith.constant 0 : i32
    %c0_i32_1 = arith.constant 0 : i32
    return %c0_i32, %c0_i32_0 : i32, i32
  }
  func.func @transform_14(%arg0: i32) -> (i32, i32, i32) {
    %c0_i32 = arith.constant 0 : i32
    %c0_i32_0 = arith.constant 0 : i32
    %c0_i32_1 = arith.constant 0 : i32
    return %arg0, %c0_i32, %c0_i32_0 : i32, i32, i32
  }
}

module attributes {stable_mosaic.version = 11 : i64} {
  func.func @kernel(%arg0: i32, %arg1: memref<4x8x32xf32, #tpu.memory_space<vmem>>, %arg2: memref<2x1x32xf32, #tpu.memory_space<vmem>>, %arg3: memref<2x1x32xf32, #tpu.memory_space<vmem>>, %arg4: memref<2x32x96xbf16, #tpu.memory_space<vmem>>, %arg5: memref<2x32x32xbf16, #tpu.memory_space<vmem>>, %arg6: memref<2x1x32xf32, #tpu.memory_space<vmem>>, %arg7: memref<2x1x32xf32, #tpu.memory_space<vmem>>, %arg8: memref<2x1x32xf32, #tpu.memory_space<vmem>>, %arg9: memref<2x32x64xbf16, #tpu.memory_space<vmem>>, %arg10: memref<2x1x64xf32, #tpu.memory_space<vmem>>, %arg11: memref<2x64x32xbf16, #tpu.memory_space<vmem>>, %arg12: memref<2x1x32xf32, #tpu.memory_space<vmem>>, %arg13: memref<1x32xf32, #tpu.memory_space<vmem>>, %arg14: memref<1x32xf32, #tpu.memory_space<vmem>>, %arg15: memref<1x32xf32, #tpu.memory_space<vmem>>, %arg16: memref<1x32xf32, #tpu.memory_space<vmem>>, %arg17: memref<1x32xf32, #tpu.memory_space<vmem>>, %arg18: memref<1x1xf32, #tpu.memory_space<vmem>>, %arg19: memref<4x1x1xf32, #tpu.memory_space<vmem>>) attributes {dimension_semantics = [#tpu.dimension_semantics<parallel>], iteration_bounds = array<i64: 2>, scalar_prefetch = 0 : i64, scratch_operands = 0 : i64, tpu.core_type = #tpu.core_type<tc>, window_params = [{transform_indices = @transform_0, window_bounds = array<i64: 4, 8, 32>}, {pipeline_mode = #tpu.pipeline_mode<synchronous>, transform_indices = @transform_1, window_bounds = array<i64: 2, 1, 32>}, {pipeline_mode = #tpu.pipeline_mode<synchronous>, transform_indices = @transform_2, window_bounds = array<i64: 2, 1, 32>}, {pipeline_mode = #tpu.pipeline_mode<synchronous>, transform_indices = @transform_3, window_bounds = array<i64: 2, 32, 96>}, {pipeline_mode = #tpu.pipeline_mode<synchronous>, transform_indices = @transform_4, window_bounds = array<i64: 2, 32, 32>}, {pipeline_mode = #tpu.pipeline_mode<synchronous>, transform_indices = @transform_5, window_bounds = array<i64: 2, 1, 32>}, {pipeline_mode = #tpu.pipeline_mode<synchronous>, transform_indices = @transform_6, window_bounds = array<i64: 2, 1, 32>}, {pipeline_mode = #tpu.pipeline_mode<synchronous>, transform_indices = @transform_7, window_bounds = array<i64: 2, 1, 32>}, {pipeline_mode = #tpu.pipeline_mode<synchronous>, transform_indices = @transform_8, window_bounds = array<i64: 2, 32, 64>}, {pipeline_mode = #tpu.pipeline_mode<synchronous>, transform_indices = @transform_9, window_bounds = array<i64: 2, 1, 64>}, {pipeline_mode = #tpu.pipeline_mode<synchronous>, transform_indices = @transform_10, window_bounds = array<i64: 2, 64, 32>}, {pipeline_mode = #tpu.pipeline_mode<synchronous>, transform_indices = @transform_11, window_bounds = array<i64: 2, 1, 32>}, {pipeline_mode = #tpu.pipeline_mode<synchronous>, transform_indices = @transform_12, window_bounds = array<i64: 1, 32>}, {pipeline_mode = #tpu.pipeline_mode<synchronous>, transform_indices = @transform_13, window_bounds = array<i64: 1, 32>}, {pipeline_mode = #tpu.pipeline_mode<synchronous>, transform_indices = @transform_14, window_bounds = array<i64: 1, 32>}, {pipeline_mode = #tpu.pipeline_mode<synchronous>, transform_indices = @transform_15, window_bounds = array<i64: 1, 32>}, {pipeline_mode = #tpu.pipeline_mode<synchronous>, transform_indices = @transform_16, window_bounds = array<i64: 1, 32>}, {pipeline_mode = #tpu.pipeline_mode<synchronous>, transform_indices = @transform_17, window_bounds = array<i64: 1, 1>}, {transform_indices = @transform_18, window_bounds = array<i64: 4, 1, 1>}]} {
    %c0 = arith.constant 0 : index
    %c0_0 = arith.constant 0 : index
    %c0_1 = arith.constant 0 : index
    %0 = vector.load %arg1[%c0, %c0_0, %c0_1] : memref<4x8x32xf32, #tpu.memory_space<vmem>>, vector<4x8x32xf32>
    %1 = vector.shape_cast %0 : vector<4x8x32xf32> to vector<32x32xf32>
    %2 = tpu.iota {dimensions = array<i32: 2>} : vector<1x1x8xi32>
    %c5_i32 = arith.constant 5 : i32
    %3 = vector.broadcast %c5_i32 : i32 to vector<1x1x8xi32>
    %4 = arith.cmpi slt, %2, %3 : vector<1x1x8xi32>
    %cst = arith.constant 0.000000e+00 : f32
    %cst_2 = arith.constant -1.000000e+30 : f32
    %5 = vector.broadcast %cst : f32 to vector<1x1x8xf32>
    %6 = vector.broadcast %cst_2 : f32 to vector<1x1x8xf32>
    %7 = arith.select %4, %5, %6 : vector<1x1x8xi1>, vector<1x1x8xf32>
    %c0_3 = arith.constant 0 : index
    %c0_4 = arith.constant 0 : index
    %c0_5 = arith.constant 0 : index
    %8 = vector.load %arg2[%c0_3, %c0_4, %c0_5] : memref<2x1x32xf32, #tpu.memory_space<vmem>>, vector<1x1x32xf32>
    %9 = vector.shape_cast %8 : vector<1x1x32xf32> to vector<1x32xf32>
    %c0_6 = arith.constant 0 : index
    %c0_7 = arith.constant 0 : index
    %c0_8 = arith.constant 0 : index
    %10 = vector.load %arg3[%c0_6, %c0_7, %c0_8] : memref<2x1x32xf32, #tpu.memory_space<vmem>>, vector<1x1x32xf32>
    %11 = vector.shape_cast %10 : vector<1x1x32xf32> to vector<1x32xf32>
    %cst_9 = arith.constant dense<0.000000e+00> : vector<32xf32>
    %12 = vector.multi_reduction <add>, %1, %cst_9 [1] : vector<32x32xf32> to vector<32xf32>
    %13 = vector.shape_cast %12 : vector<32xf32> to vector<32x1xf32>
    %cst_10 = arith.constant 3.200000e+01 : f32
    %14 = vector.broadcast %cst_10 : f32 to vector<32x1xf32>
    %15 = arith.divf %13, %14 : vector<32x1xf32>
    %16 = vector.broadcast %15 : vector<32x1xf32> to vector<32x32xf32>
    %17 = arith.subf %1, %16 : vector<32x32xf32>
    %18 = arith.mulf %17, %17 : vector<32x32xf32>
    %cst_11 = arith.constant dense<0.000000e+00> : vector<32xf32>
    %19 = vector.multi_reduction <add>, %18, %cst_11 [1] : vector<32x32xf32> to vector<32xf32>
    %20 = vector.shape_cast %19 : vector<32xf32> to vector<32x1xf32>
    %cst_12 = arith.constant 3.200000e+01 : f32
    %21 = vector.broadcast %cst_12 : f32 to vector<32x1xf32>
    %22 = arith.divf %20, %21 : vector<32x1xf32>
    %23 = vector.broadcast %15 : vector<32x1xf32> to vector<32x32xf32>
    %24 = arith.subf %1, %23 : vector<32x32xf32>
    %cst_13 = arith.constant 9.99999974E-6 : f32
    %25 = vector.broadcast %cst_13 : f32 to vector<32x1xf32>
    %26 = arith.addf %22, %25 : vector<32x1xf32>
    %27 = math.rsqrt %26 : vector<32x1xf32>
    %28 = vector.broadcast %27 : vector<32x1xf32> to vector<32x32xf32>
    %29 = arith.mulf %24, %28 : vector<32x32xf32>
    %30 = vector.broadcast %9 : vector<1x32xf32> to vector<32x32xf32>
    %31 = arith.mulf %29, %30 : vector<32x32xf32>
    %32 = vector.broadcast %11 : vector<1x32xf32> to vector<32x32xf32>
    %33 = arith.addf %31, %32 : vector<32x32xf32>
    %34 = arith.truncf %33 : vector<32x32xf32> to vector<32x32xbf16>
    %c0_14 = arith.constant 0 : index
    %c0_15 = arith.constant 0 : index
    %c0_16 = arith.constant 0 : index
    %35 = vector.load %arg4[%c0_14, %c0_15, %c0_16] : memref<2x32x96xbf16, #tpu.memory_space<vmem>>, vector<1x32x96xbf16>
    %36 = vector.shape_cast %35 : vector<1x32x96xbf16> to vector<32x96xbf16>
    %cst_17 = arith.constant dense<0.000000e+00> : vector<32x96xf32>
    %37 = tpu.matmul %34, %36, %cst_17 {dimension_numbers = #tpu.dot_dimension_numbers<[1], [0], [0], [1], [0, 0, 1, 1], [], []>} : vector<32x32xbf16>, vector<32x96xbf16>, vector<32x96xf32> -> vector<32x96xf32>
    %38 = vector.extract_strided_slice %37 {offsets = [0, 0], sizes = [32, 32], strides = [1, 1]} : vector<32x96xf32> to vector<32x32xf32>
    %39 = vector.shape_cast %38 : vector<32x32xf32> to vector<4x8x32xf32>
    %40 = vector.extract_strided_slice %37 {offsets = [0, 32], sizes = [32, 32], strides = [1, 1]} : vector<32x96xf32> to vector<32x32xf32>
    %41 = vector.shape_cast %40 : vector<32x32xf32> to vector<4x8x32xf32>
    %42 = vector.extract_strided_slice %37 {offsets = [0, 64], sizes = [32, 32], strides = [1, 1]} : vector<32x96xf32> to vector<32x32xf32>
    %43 = vector.shape_cast %42 : vector<32x32xf32> to vector<4x8x32xf32>
    %44 = vector.extract_strided_slice %39 {offsets = [0, 0, 0], sizes = [4, 8, 16], strides = [1, 1, 1]} : vector<4x8x32xf32> to vector<4x8x16xf32>
    %45 = arith.truncf %44 : vector<4x8x16xf32> to vector<4x8x16xbf16>
    %46 = vector.extract_strided_slice %41 {offsets = [0, 0, 0], sizes = [4, 8, 16], strides = [1, 1, 1]} : vector<4x8x32xf32> to vector<4x8x16xf32>
    %47 = arith.truncf %46 : vector<4x8x16xf32> to vector<4x8x16xbf16>
    %48 = vector.extract_strided_slice %43 {offsets = [0, 0, 0], sizes = [4, 8, 16], strides = [1, 1, 1]} : vector<4x8x32xf32> to vector<4x8x16xf32>
    %49 = arith.truncf %48 : vector<4x8x16xf32> to vector<4x8x16xbf16>
    %cst_18 = arith.constant dense<0.000000e+00> : vector<4x8x8xf32>
    %50 = tpu.matmul %45, %47, %cst_18 {dimension_numbers = #tpu.dot_dimension_numbers<[2], [2], [1], [1], [0, 0, 0, 1, 1, 1], [0], [0]>} : vector<4x8x16xbf16>, vector<4x8x16xbf16>, vector<4x8x8xf32> -> vector<4x8x8xf32>
    %cst_19 = arith.constant 2.500000e-01 : f32
    %51 = vector.broadcast %cst_19 : f32 to vector<4x8x8xf32>
    %52 = arith.mulf %50, %51 : vector<4x8x8xf32>
    %53 = vector.broadcast %7 : vector<1x1x8xf32> to vector<4x8x8xf32>
    %54 = arith.addf %52, %53 : vector<4x8x8xf32>
    %cst_20 = arith.constant dense<0xFF800000> : vector<4x8xf32>
    %55 = vector.multi_reduction <maximumf>, %54, %cst_20 [2] : vector<4x8x8xf32> to vector<4x8xf32>
    %56 = vector.shape_cast %55 : vector<4x8xf32> to vector<4x8x1xf32>
    %57 = vector.broadcast %56 : vector<4x8x1xf32> to vector<4x8x8xf32>
    %58 = arith.subf %54, %57 : vector<4x8x8xf32>
    %59 = math.exp %58 : vector<4x8x8xf32>
    %cst_21 = arith.constant dense<0.000000e+00> : vector<4x8xf32>
    %60 = vector.multi_reduction <add>, %59, %cst_21 [2] : vector<4x8x8xf32> to vector<4x8xf32>
    %61 = vector.shape_cast %60 : vector<4x8xf32> to vector<4x8x1xf32>
    %62 = tpu.reciprocal %61 {approx = true} : vector<4x8x1xf32> -> vector<4x8x1xf32>
    %63 = vector.broadcast %62 : vector<4x8x1xf32> to vector<4x8x8xf32>
    %64 = arith.mulf %59, %63 : vector<4x8x8xf32>
    %65 = arith.truncf %64 : vector<4x8x8xf32> to vector<4x8x8xbf16>
    %cst_22 = arith.constant dense<0.000000e+00> : vector<4x8x16xf32>
    %66 = tpu.matmul %65, %49, %cst_22 {dimension_numbers = #tpu.dot_dimension_numbers<[2], [1], [1], [2], [0, 0, 0, 1, 1, 2], [0], [0]>} : vector<4x8x8xbf16>, vector<4x8x16xbf16>, vector<4x8x16xf32> -> vector<4x8x16xf32>
    %67 = vector.extract_strided_slice %39 {offsets = [0, 0, 16], sizes = [4, 8, 16], strides = [1, 1, 1]} : vector<4x8x32xf32> to vector<4x8x16xf32>
    %68 = arith.truncf %67 : vector<4x8x16xf32> to vector<4x8x16xbf16>
    %69 = vector.extract_strided_slice %41 {offsets = [0, 0, 16], sizes = [4, 8, 16], strides = [1, 1, 1]} : vector<4x8x32xf32> to vector<4x8x16xf32>
    %70 = arith.truncf %69 : vector<4x8x16xf32> to vector<4x8x16xbf16>
    %71 = vector.extract_strided_slice %43 {offsets = [0, 0, 16], sizes = [4, 8, 16], strides = [1, 1, 1]} : vector<4x8x32xf32> to vector<4x8x16xf32>
    %72 = arith.truncf %71 : vector<4x8x16xf32> to vector<4x8x16xbf16>
    %cst_23 = arith.constant dense<0.000000e+00> : vector<4x8x8xf32>
    %73 = tpu.matmul %68, %70, %cst_23 {dimension_numbers = #tpu.dot_dimension_numbers<[2], [2], [1], [1], [0, 0, 0, 1, 1, 1], [0], [0]>} : vector<4x8x16xbf16>, vector<4x8x16xbf16>, vector<4x8x8xf32> -> vector<4x8x8xf32>
    %cst_24 = arith.constant 2.500000e-01 : f32
    %74 = vector.broadcast %cst_24 : f32 to vector<4x8x8xf32>
    %75 = arith.mulf %73, %74 : vector<4x8x8xf32>
    %76 = vector.broadcast %7 : vector<1x1x8xf32> to vector<4x8x8xf32>
    %77 = arith.addf %75, %76 : vector<4x8x8xf32>
    %cst_25 = arith.constant dense<0xFF800000> : vector<4x8xf32>
    %78 = vector.multi_reduction <maximumf>, %77, %cst_25 [2] : vector<4x8x8xf32> to vector<4x8xf32>
    %79 = vector.shape_cast %78 : vector<4x8xf32> to vector<4x8x1xf32>
    %80 = vector.broadcast %79 : vector<4x8x1xf32> to vector<4x8x8xf32>
    %81 = arith.subf %77, %80 : vector<4x8x8xf32>
    %82 = math.exp %81 : vector<4x8x8xf32>
    %cst_26 = arith.constant dense<0.000000e+00> : vector<4x8xf32>
    %83 = vector.multi_reduction <add>, %82, %cst_26 [2] : vector<4x8x8xf32> to vector<4x8xf32>
    %84 = vector.shape_cast %83 : vector<4x8xf32> to vector<4x8x1xf32>
    %85 = tpu.reciprocal %84 {approx = true} : vector<4x8x1xf32> -> vector<4x8x1xf32>
    %86 = vector.broadcast %85 : vector<4x8x1xf32> to vector<4x8x8xf32>
    %87 = arith.mulf %82, %86 : vector<4x8x8xf32>
    %88 = arith.truncf %87 : vector<4x8x8xf32> to vector<4x8x8xbf16>
    %cst_27 = arith.constant dense<0.000000e+00> : vector<4x8x16xf32>
    %89 = tpu.matmul %88, %72, %cst_27 {dimension_numbers = #tpu.dot_dimension_numbers<[2], [1], [1], [2], [0, 0, 0, 1, 1, 2], [0], [0]>} : vector<4x8x8xbf16>, vector<4x8x16xbf16>, vector<4x8x16xf32> -> vector<4x8x16xf32>
    %90 = tpu.concatenate %66, %89 in 2 : vector<4x8x16xf32>, vector<4x8x16xf32> -> vector<4x8x32xf32>
    %91 = vector.shape_cast %90 : vector<4x8x32xf32> to vector<32x32xf32>
    %92 = arith.truncf %91 : vector<32x32xf32> to vector<32x32xbf16>
    %c0_28 = arith.constant 0 : index
    %c0_29 = arith.constant 0 : index
    %c0_30 = arith.constant 0 : index
    %93 = vector.load %arg5[%c0_28, %c0_29, %c0_30] : memref<2x32x32xbf16, #tpu.memory_space<vmem>>, vector<1x32x32xbf16>
    %94 = vector.shape_cast %93 : vector<1x32x32xbf16> to vector<32x32xbf16>
    %cst_31 = arith.constant dense<0.000000e+00> : vector<32x32xf32>
    %95 = tpu.matmul %92, %94, %cst_31 {dimension_numbers = #tpu.dot_dimension_numbers<[1], [0], [0], [1], [0, 0, 1, 1], [], []>} : vector<32x32xbf16>, vector<32x32xbf16>, vector<32x32xf32> -> vector<32x32xf32>
    %96 = arith.addf %1, %95 : vector<32x32xf32>
    %c0_32 = arith.constant 0 : index
    %c0_33 = arith.constant 0 : index
    %c0_34 = arith.constant 0 : index
    %97 = vector.load %arg6[%c0_32, %c0_33, %c0_34] : memref<2x1x32xf32, #tpu.memory_space<vmem>>, vector<1x1x32xf32>
    %98 = vector.shape_cast %97 : vector<1x1x32xf32> to vector<1x32xf32>
    %99 = vector.broadcast %98 : vector<1x32xf32> to vector<32x32xf32>
    %100 = arith.addf %96, %99 : vector<32x32xf32>
    %c0_35 = arith.constant 0 : index
    %c0_36 = arith.constant 0 : index
    %c0_37 = arith.constant 0 : index
    %101 = vector.load %arg7[%c0_35, %c0_36, %c0_37] : memref<2x1x32xf32, #tpu.memory_space<vmem>>, vector<1x1x32xf32>
    %102 = vector.shape_cast %101 : vector<1x1x32xf32> to vector<1x32xf32>
    %c0_38 = arith.constant 0 : index
    %c0_39 = arith.constant 0 : index
    %c0_40 = arith.constant 0 : index
    %103 = vector.load %arg8[%c0_38, %c0_39, %c0_40] : memref<2x1x32xf32, #tpu.memory_space<vmem>>, vector<1x1x32xf32>
    %104 = vector.shape_cast %103 : vector<1x1x32xf32> to vector<1x32xf32>
    %cst_41 = arith.constant dense<0.000000e+00> : vector<32xf32>
    %105 = vector.multi_reduction <add>, %100, %cst_41 [1] : vector<32x32xf32> to vector<32xf32>
    %106 = vector.shape_cast %105 : vector<32xf32> to vector<32x1xf32>
    %cst_42 = arith.constant 3.200000e+01 : f32
    %107 = vector.broadcast %cst_42 : f32 to vector<32x1xf32>
    %108 = arith.divf %106, %107 : vector<32x1xf32>
    %109 = vector.broadcast %108 : vector<32x1xf32> to vector<32x32xf32>
    %110 = arith.subf %100, %109 : vector<32x32xf32>
    %111 = arith.mulf %110, %110 : vector<32x32xf32>
    %cst_43 = arith.constant dense<0.000000e+00> : vector<32xf32>
    %112 = vector.multi_reduction <add>, %111, %cst_43 [1] : vector<32x32xf32> to vector<32xf32>
    %113 = vector.shape_cast %112 : vector<32xf32> to vector<32x1xf32>
    %cst_44 = arith.constant 3.200000e+01 : f32
    %114 = vector.broadcast %cst_44 : f32 to vector<32x1xf32>
    %115 = arith.divf %113, %114 : vector<32x1xf32>
    %116 = vector.broadcast %108 : vector<32x1xf32> to vector<32x32xf32>
    %117 = arith.subf %100, %116 : vector<32x32xf32>
    %cst_45 = arith.constant 9.99999974E-6 : f32
    %118 = vector.broadcast %cst_45 : f32 to vector<32x1xf32>
    %119 = arith.addf %115, %118 : vector<32x1xf32>
    %120 = math.rsqrt %119 : vector<32x1xf32>
    %121 = vector.broadcast %120 : vector<32x1xf32> to vector<32x32xf32>
    %122 = arith.mulf %117, %121 : vector<32x32xf32>
    %123 = vector.broadcast %102 : vector<1x32xf32> to vector<32x32xf32>
    %124 = arith.mulf %122, %123 : vector<32x32xf32>
    %125 = vector.broadcast %104 : vector<1x32xf32> to vector<32x32xf32>
    %126 = arith.addf %124, %125 : vector<32x32xf32>
    %127 = arith.truncf %126 : vector<32x32xf32> to vector<32x32xbf16>
    %c0_46 = arith.constant 0 : index
    %c0_47 = arith.constant 0 : index
    %c0_48 = arith.constant 0 : index
    %128 = vector.load %arg9[%c0_46, %c0_47, %c0_48] : memref<2x32x64xbf16, #tpu.memory_space<vmem>>, vector<1x32x64xbf16>
    %129 = vector.shape_cast %128 : vector<1x32x64xbf16> to vector<32x64xbf16>
    %cst_49 = arith.constant dense<0.000000e+00> : vector<32x64xf32>
    %130 = tpu.matmul %127, %129, %cst_49 {dimension_numbers = #tpu.dot_dimension_numbers<[1], [0], [0], [1], [0, 0, 1, 1], [], []>} : vector<32x32xbf16>, vector<32x64xbf16>, vector<32x64xf32> -> vector<32x64xf32>
    %c0_50 = arith.constant 0 : index
    %c0_51 = arith.constant 0 : index
    %c0_52 = arith.constant 0 : index
    %131 = vector.load %arg10[%c0_50, %c0_51, %c0_52] : memref<2x1x64xf32, #tpu.memory_space<vmem>>, vector<1x1x64xf32>
    %132 = vector.shape_cast %131 : vector<1x1x64xf32> to vector<1x64xf32>
    %133 = vector.broadcast %132 : vector<1x64xf32> to vector<32x64xf32>
    %134 = arith.addf %130, %133 : vector<32x64xf32>
    %cst_53 = arith.constant 5.000000e-01 : f32
    %135 = vector.broadcast %cst_53 : f32 to vector<32x64xf32>
    %136 = arith.mulf %135, %134 : vector<32x64xf32>
    %cst_54 = arith.constant 4.471500e-02 : f32
    %137 = vector.broadcast %cst_54 : f32 to vector<32x64xf32>
    %138 = arith.mulf %137, %134 : vector<32x64xf32>
    %139 = arith.mulf %138, %134 : vector<32x64xf32>
    %140 = arith.mulf %139, %134 : vector<32x64xf32>
    %141 = arith.addf %134, %140 : vector<32x64xf32>
    %cst_55 = arith.constant 0.797884583 : f32
    %142 = vector.broadcast %cst_55 : f32 to vector<32x64xf32>
    %143 = arith.mulf %142, %141 : vector<32x64xf32>
    %144 = math.tanh %143 : vector<32x64xf32>
    %cst_56 = arith.constant 1.000000e+00 : f32
    %145 = vector.broadcast %cst_56 : f32 to vector<32x64xf32>
    %146 = arith.addf %145, %144 : vector<32x64xf32>
    %147 = arith.mulf %136, %146 : vector<32x64xf32>
    %148 = arith.truncf %147 : vector<32x64xf32> to vector<32x64xbf16>
    %c0_57 = arith.constant 0 : index
    %c0_58 = arith.constant 0 : index
    %c0_59 = arith.constant 0 : index
    %149 = vector.load %arg11[%c0_57, %c0_58, %c0_59] : memref<2x64x32xbf16, #tpu.memory_space<vmem>>, vector<1x64x32xbf16>
    %150 = vector.shape_cast %149 : vector<1x64x32xbf16> to vector<64x32xbf16>
    %cst_60 = arith.constant dense<0.000000e+00> : vector<32x32xf32>
    %151 = tpu.matmul %148, %150, %cst_60 {dimension_numbers = #tpu.dot_dimension_numbers<[1], [0], [0], [1], [0, 0, 1, 1], [], []>} : vector<32x64xbf16>, vector<64x32xbf16>, vector<32x32xf32> -> vector<32x32xf32>
    %c0_61 = arith.constant 0 : index
    %c0_62 = arith.constant 0 : index
    %c0_63 = arith.constant 0 : index
    %152 = vector.load %arg12[%c0_61, %c0_62, %c0_63] : memref<2x1x32xf32, #tpu.memory_space<vmem>>, vector<1x1x32xf32>
    %153 = vector.shape_cast %152 : vector<1x1x32xf32> to vector<1x32xf32>
    %154 = vector.broadcast %153 : vector<1x32xf32> to vector<32x32xf32>
    %155 = arith.addf %151, %154 : vector<32x32xf32>
    %156 = arith.addf %100, %155 : vector<32x32xf32>
    %c1 = arith.constant 1 : index
    %c0_64 = arith.constant 0 : index
    %c0_65 = arith.constant 0 : index
    %157 = vector.load %arg2[%c1, %c0_64, %c0_65] : memref<2x1x32xf32, #tpu.memory_space<vmem>>, vector<1x1x32xf32>
    %158 = vector.shape_cast %157 : vector<1x1x32xf32> to vector<1x32xf32>
    %c1_66 = arith.constant 1 : index
    %c0_67 = arith.constant 0 : index
    %c0_68 = arith.constant 0 : index
    %159 = vector.load %arg3[%c1_66, %c0_67, %c0_68] : memref<2x1x32xf32, #tpu.memory_space<vmem>>, vector<1x1x32xf32>
    %160 = vector.shape_cast %159 : vector<1x1x32xf32> to vector<1x32xf32>
    %cst_69 = arith.constant dense<0.000000e+00> : vector<32xf32>
    %161 = vector.multi_reduction <add>, %156, %cst_69 [1] : vector<32x32xf32> to vector<32xf32>
    %162 = vector.shape_cast %161 : vector<32xf32> to vector<32x1xf32>
    %cst_70 = arith.constant 3.200000e+01 : f32
    %163 = vector.broadcast %cst_70 : f32 to vector<32x1xf32>
    %164 = arith.divf %162, %163 : vector<32x1xf32>
    %165 = vector.broadcast %164 : vector<32x1xf32> to vector<32x32xf32>
    %166 = arith.subf %156, %165 : vector<32x32xf32>
    %167 = arith.mulf %166, %166 : vector<32x32xf32>
    %cst_71 = arith.constant dense<0.000000e+00> : vector<32xf32>
    %168 = vector.multi_reduction <add>, %167, %cst_71 [1] : vector<32x32xf32> to vector<32xf32>
    %169 = vector.shape_cast %168 : vector<32xf32> to vector<32x1xf32>
    %cst_72 = arith.constant 3.200000e+01 : f32
    %170 = vector.broadcast %cst_72 : f32 to vector<32x1xf32>
    %171 = arith.divf %169, %170 : vector<32x1xf32>
    %172 = vector.broadcast %164 : vector<32x1xf32> to vector<32x32xf32>
    %173 = arith.subf %156, %172 : vector<32x32xf32>
    %cst_73 = arith.constant 9.99999974E-6 : f32
    %174 = vector.broadcast %cst_73 : f32 to vector<32x1xf32>
    %175 = arith.addf %171, %174 : vector<32x1xf32>
    %176 = math.rsqrt %175 : vector<32x1xf32>
    %177 = vector.broadcast %176 : vector<32x1xf32> to vector<32x32xf32>
    %178 = arith.mulf %173, %177 : vector<32x32xf32>
    %179 = vector.broadcast %158 : vector<1x32xf32> to vector<32x32xf32>
    %180 = arith.mulf %178, %179 : vector<32x32xf32>
    %181 = vector.broadcast %160 : vector<1x32xf32> to vector<32x32xf32>
    %182 = arith.addf %180, %181 : vector<32x32xf32>
    %183 = arith.truncf %182 : vector<32x32xf32> to vector<32x32xbf16>
    %c1_74 = arith.constant 1 : index
    %c0_75 = arith.constant 0 : index
    %c0_76 = arith.constant 0 : index
    %184 = vector.load %arg4[%c1_74, %c0_75, %c0_76] : memref<2x32x96xbf16, #tpu.memory_space<vmem>>, vector<1x32x96xbf16>
    %185 = vector.shape_cast %184 : vector<1x32x96xbf16> to vector<32x96xbf16>
    %cst_77 = arith.constant dense<0.000000e+00> : vector<32x96xf32>
    %186 = tpu.matmul %183, %185, %cst_77 {dimension_numbers = #tpu.dot_dimension_numbers<[1], [0], [0], [1], [0, 0, 1, 1], [], []>} : vector<32x32xbf16>, vector<32x96xbf16>, vector<32x96xf32> -> vector<32x96xf32>
    %187 = vector.extract_strided_slice %186 {offsets = [0, 0], sizes = [32, 32], strides = [1, 1]} : vector<32x96xf32> to vector<32x32xf32>
    %188 = vector.shape_cast %187 : vector<32x32xf32> to vector<4x8x32xf32>
    %189 = vector.extract_strided_slice %186 {offsets = [0, 32], sizes = [32, 32], strides = [1, 1]} : vector<32x96xf32> to vector<32x32xf32>
    %190 = vector.shape_cast %189 : vector<32x32xf32> to vector<4x8x32xf32>
    %191 = vector.extract_strided_slice %186 {offsets = [0, 64], sizes = [32, 32], strides = [1, 1]} : vector<32x96xf32> to vector<32x32xf32>
    %192 = vector.shape_cast %191 : vector<32x32xf32> to vector<4x8x32xf32>
    %193 = vector.extract_strided_slice %188 {offsets = [0, 0, 0], sizes = [4, 8, 16], strides = [1, 1, 1]} : vector<4x8x32xf32> to vector<4x8x16xf32>
    %194 = arith.truncf %193 : vector<4x8x16xf32> to vector<4x8x16xbf16>
    %195 = vector.extract_strided_slice %190 {offsets = [0, 0, 0], sizes = [4, 8, 16], strides = [1, 1, 1]} : vector<4x8x32xf32> to vector<4x8x16xf32>
    %196 = arith.truncf %195 : vector<4x8x16xf32> to vector<4x8x16xbf16>
    %197 = vector.extract_strided_slice %192 {offsets = [0, 0, 0], sizes = [4, 8, 16], strides = [1, 1, 1]} : vector<4x8x32xf32> to vector<4x8x16xf32>
    %198 = arith.truncf %197 : vector<4x8x16xf32> to vector<4x8x16xbf16>
    %cst_78 = arith.constant dense<0.000000e+00> : vector<4x8x8xf32>
    %199 = tpu.matmul %194, %196, %cst_78 {dimension_numbers = #tpu.dot_dimension_numbers<[2], [2], [1], [1], [0, 0, 0, 1, 1, 1], [0], [0]>} : vector<4x8x16xbf16>, vector<4x8x16xbf16>, vector<4x8x8xf32> -> vector<4x8x8xf32>
    %cst_79 = arith.constant 2.500000e-01 : f32
    %200 = vector.broadcast %cst_79 : f32 to vector<4x8x8xf32>
    %201 = arith.mulf %199, %200 : vector<4x8x8xf32>
    %202 = vector.broadcast %7 : vector<1x1x8xf32> to vector<4x8x8xf32>
    %203 = arith.addf %201, %202 : vector<4x8x8xf32>
    %cst_80 = arith.constant dense<0xFF800000> : vector<4x8xf32>
    %204 = vector.multi_reduction <maximumf>, %203, %cst_80 [2] : vector<4x8x8xf32> to vector<4x8xf32>
    %205 = vector.shape_cast %204 : vector<4x8xf32> to vector<4x8x1xf32>
    %206 = vector.broadcast %205 : vector<4x8x1xf32> to vector<4x8x8xf32>
    %207 = arith.subf %203, %206 : vector<4x8x8xf32>
    %208 = math.exp %207 : vector<4x8x8xf32>
    %cst_81 = arith.constant dense<0.000000e+00> : vector<4x8xf32>
    %209 = vector.multi_reduction <add>, %208, %cst_81 [2] : vector<4x8x8xf32> to vector<4x8xf32>
    %210 = vector.shape_cast %209 : vector<4x8xf32> to vector<4x8x1xf32>
    %211 = tpu.reciprocal %210 {approx = true} : vector<4x8x1xf32> -> vector<4x8x1xf32>
    %212 = vector.broadcast %211 : vector<4x8x1xf32> to vector<4x8x8xf32>
    %213 = arith.mulf %208, %212 : vector<4x8x8xf32>
    %214 = arith.truncf %213 : vector<4x8x8xf32> to vector<4x8x8xbf16>
    %cst_82 = arith.constant dense<0.000000e+00> : vector<4x8x16xf32>
    %215 = tpu.matmul %214, %198, %cst_82 {dimension_numbers = #tpu.dot_dimension_numbers<[2], [1], [1], [2], [0, 0, 0, 1, 1, 2], [0], [0]>} : vector<4x8x8xbf16>, vector<4x8x16xbf16>, vector<4x8x16xf32> -> vector<4x8x16xf32>
    %216 = vector.extract_strided_slice %188 {offsets = [0, 0, 16], sizes = [4, 8, 16], strides = [1, 1, 1]} : vector<4x8x32xf32> to vector<4x8x16xf32>
    %217 = arith.truncf %216 : vector<4x8x16xf32> to vector<4x8x16xbf16>
    %218 = vector.extract_strided_slice %190 {offsets = [0, 0, 16], sizes = [4, 8, 16], strides = [1, 1, 1]} : vector<4x8x32xf32> to vector<4x8x16xf32>
    %219 = arith.truncf %218 : vector<4x8x16xf32> to vector<4x8x16xbf16>
    %220 = vector.extract_strided_slice %192 {offsets = [0, 0, 16], sizes = [4, 8, 16], strides = [1, 1, 1]} : vector<4x8x32xf32> to vector<4x8x16xf32>
    %221 = arith.truncf %220 : vector<4x8x16xf32> to vector<4x8x16xbf16>
    %cst_83 = arith.constant dense<0.000000e+00> : vector<4x8x8xf32>
    %222 = tpu.matmul %217, %219, %cst_83 {dimension_numbers = #tpu.dot_dimension_numbers<[2], [2], [1], [1], [0, 0, 0, 1, 1, 1], [0], [0]>} : vector<4x8x16xbf16>, vector<4x8x16xbf16>, vector<4x8x8xf32> -> vector<4x8x8xf32>
    %cst_84 = arith.constant 2.500000e-01 : f32
    %223 = vector.broadcast %cst_84 : f32 to vector<4x8x8xf32>
    %224 = arith.mulf %222, %223 : vector<4x8x8xf32>
    %225 = vector.broadcast %7 : vector<1x1x8xf32> to vector<4x8x8xf32>
    %226 = arith.addf %224, %225 : vector<4x8x8xf32>
    %cst_85 = arith.constant dense<0xFF800000> : vector<4x8xf32>
    %227 = vector.multi_reduction <maximumf>, %226, %cst_85 [2] : vector<4x8x8xf32> to vector<4x8xf32>
    %228 = vector.shape_cast %227 : vector<4x8xf32> to vector<4x8x1xf32>
    %229 = vector.broadcast %228 : vector<4x8x1xf32> to vector<4x8x8xf32>
    %230 = arith.subf %226, %229 : vector<4x8x8xf32>
    %231 = math.exp %230 : vector<4x8x8xf32>
    %cst_86 = arith.constant dense<0.000000e+00> : vector<4x8xf32>
    %232 = vector.multi_reduction <add>, %231, %cst_86 [2] : vector<4x8x8xf32> to vector<4x8xf32>
    %233 = vector.shape_cast %232 : vector<4x8xf32> to vector<4x8x1xf32>
    %234 = tpu.reciprocal %233 {approx = true} : vector<4x8x1xf32> -> vector<4x8x1xf32>
    %235 = vector.broadcast %234 : vector<4x8x1xf32> to vector<4x8x8xf32>
    %236 = arith.mulf %231, %235 : vector<4x8x8xf32>
    %237 = arith.truncf %236 : vector<4x8x8xf32> to vector<4x8x8xbf16>
    %cst_87 = arith.constant dense<0.000000e+00> : vector<4x8x16xf32>
    %238 = tpu.matmul %237, %221, %cst_87 {dimension_numbers = #tpu.dot_dimension_numbers<[2], [1], [1], [2], [0, 0, 0, 1, 1, 2], [0], [0]>} : vector<4x8x8xbf16>, vector<4x8x16xbf16>, vector<4x8x16xf32> -> vector<4x8x16xf32>
    %239 = tpu.concatenate %215, %238 in 2 : vector<4x8x16xf32>, vector<4x8x16xf32> -> vector<4x8x32xf32>
    %240 = vector.shape_cast %239 : vector<4x8x32xf32> to vector<32x32xf32>
    %241 = arith.truncf %240 : vector<32x32xf32> to vector<32x32xbf16>
    %c1_88 = arith.constant 1 : index
    %c0_89 = arith.constant 0 : index
    %c0_90 = arith.constant 0 : index
    %242 = vector.load %arg5[%c1_88, %c0_89, %c0_90] : memref<2x32x32xbf16, #tpu.memory_space<vmem>>, vector<1x32x32xbf16>
    %243 = vector.shape_cast %242 : vector<1x32x32xbf16> to vector<32x32xbf16>
    %cst_91 = arith.constant dense<0.000000e+00> : vector<32x32xf32>
    %244 = tpu.matmul %241, %243, %cst_91 {dimension_numbers = #tpu.dot_dimension_numbers<[1], [0], [0], [1], [0, 0, 1, 1], [], []>} : vector<32x32xbf16>, vector<32x32xbf16>, vector<32x32xf32> -> vector<32x32xf32>
    %245 = arith.addf %156, %244 : vector<32x32xf32>
    %c1_92 = arith.constant 1 : index
    %c0_93 = arith.constant 0 : index
    %c0_94 = arith.constant 0 : index
    %246 = vector.load %arg6[%c1_92, %c0_93, %c0_94] : memref<2x1x32xf32, #tpu.memory_space<vmem>>, vector<1x1x32xf32>
    %247 = vector.shape_cast %246 : vector<1x1x32xf32> to vector<1x32xf32>
    %248 = vector.broadcast %247 : vector<1x32xf32> to vector<32x32xf32>
    %249 = arith.addf %245, %248 : vector<32x32xf32>
    %c1_95 = arith.constant 1 : index
    %c0_96 = arith.constant 0 : index
    %c0_97 = arith.constant 0 : index
    %250 = vector.load %arg7[%c1_95, %c0_96, %c0_97] : memref<2x1x32xf32, #tpu.memory_space<vmem>>, vector<1x1x32xf32>
    %251 = vector.shape_cast %250 : vector<1x1x32xf32> to vector<1x32xf32>
    %c1_98 = arith.constant 1 : index
    %c0_99 = arith.constant 0 : index
    %c0_100 = arith.constant 0 : index
    %252 = vector.load %arg8[%c1_98, %c0_99, %c0_100] : memref<2x1x32xf32, #tpu.memory_space<vmem>>, vector<1x1x32xf32>
    %253 = vector.shape_cast %252 : vector<1x1x32xf32> to vector<1x32xf32>
    %cst_101 = arith.constant dense<0.000000e+00> : vector<32xf32>
    %254 = vector.multi_reduction <add>, %249, %cst_101 [1] : vector<32x32xf32> to vector<32xf32>
    %255 = vector.shape_cast %254 : vector<32xf32> to vector<32x1xf32>
    %cst_102 = arith.constant 3.200000e+01 : f32
    %256 = vector.broadcast %cst_102 : f32 to vector<32x1xf32>
    %257 = arith.divf %255, %256 : vector<32x1xf32>
    %258 = vector.broadcast %257 : vector<32x1xf32> to vector<32x32xf32>
    %259 = arith.subf %249, %258 : vector<32x32xf32>
    %260 = arith.mulf %259, %259 : vector<32x32xf32>
    %cst_103 = arith.constant dense<0.000000e+00> : vector<32xf32>
    %261 = vector.multi_reduction <add>, %260, %cst_103 [1] : vector<32x32xf32> to vector<32xf32>
    %262 = vector.shape_cast %261 : vector<32xf32> to vector<32x1xf32>
    %cst_104 = arith.constant 3.200000e+01 : f32
    %263 = vector.broadcast %cst_104 : f32 to vector<32x1xf32>
    %264 = arith.divf %262, %263 : vector<32x1xf32>
    %265 = vector.broadcast %257 : vector<32x1xf32> to vector<32x32xf32>
    %266 = arith.subf %249, %265 : vector<32x32xf32>
    %cst_105 = arith.constant 9.99999974E-6 : f32
    %267 = vector.broadcast %cst_105 : f32 to vector<32x1xf32>
    %268 = arith.addf %264, %267 : vector<32x1xf32>
    %269 = math.rsqrt %268 : vector<32x1xf32>
    %270 = vector.broadcast %269 : vector<32x1xf32> to vector<32x32xf32>
    %271 = arith.mulf %266, %270 : vector<32x32xf32>
    %272 = vector.broadcast %251 : vector<1x32xf32> to vector<32x32xf32>
    %273 = arith.mulf %271, %272 : vector<32x32xf32>
    %274 = vector.broadcast %253 : vector<1x32xf32> to vector<32x32xf32>
    %275 = arith.addf %273, %274 : vector<32x32xf32>
    %276 = arith.truncf %275 : vector<32x32xf32> to vector<32x32xbf16>
    %c1_106 = arith.constant 1 : index
    %c0_107 = arith.constant 0 : index
    %c0_108 = arith.constant 0 : index
    %277 = vector.load %arg9[%c1_106, %c0_107, %c0_108] : memref<2x32x64xbf16, #tpu.memory_space<vmem>>, vector<1x32x64xbf16>
    %278 = vector.shape_cast %277 : vector<1x32x64xbf16> to vector<32x64xbf16>
    %cst_109 = arith.constant dense<0.000000e+00> : vector<32x64xf32>
    %279 = tpu.matmul %276, %278, %cst_109 {dimension_numbers = #tpu.dot_dimension_numbers<[1], [0], [0], [1], [0, 0, 1, 1], [], []>} : vector<32x32xbf16>, vector<32x64xbf16>, vector<32x64xf32> -> vector<32x64xf32>
    %c1_110 = arith.constant 1 : index
    %c0_111 = arith.constant 0 : index
    %c0_112 = arith.constant 0 : index
    %280 = vector.load %arg10[%c1_110, %c0_111, %c0_112] : memref<2x1x64xf32, #tpu.memory_space<vmem>>, vector<1x1x64xf32>
    %281 = vector.shape_cast %280 : vector<1x1x64xf32> to vector<1x64xf32>
    %282 = vector.broadcast %281 : vector<1x64xf32> to vector<32x64xf32>
    %283 = arith.addf %279, %282 : vector<32x64xf32>
    %cst_113 = arith.constant 5.000000e-01 : f32
    %284 = vector.broadcast %cst_113 : f32 to vector<32x64xf32>
    %285 = arith.mulf %284, %283 : vector<32x64xf32>
    %cst_114 = arith.constant 4.471500e-02 : f32
    %286 = vector.broadcast %cst_114 : f32 to vector<32x64xf32>
    %287 = arith.mulf %286, %283 : vector<32x64xf32>
    %288 = arith.mulf %287, %283 : vector<32x64xf32>
    %289 = arith.mulf %288, %283 : vector<32x64xf32>
    %290 = arith.addf %283, %289 : vector<32x64xf32>
    %cst_115 = arith.constant 0.797884583 : f32
    %291 = vector.broadcast %cst_115 : f32 to vector<32x64xf32>
    %292 = arith.mulf %291, %290 : vector<32x64xf32>
    %293 = math.tanh %292 : vector<32x64xf32>
    %cst_116 = arith.constant 1.000000e+00 : f32
    %294 = vector.broadcast %cst_116 : f32 to vector<32x64xf32>
    %295 = arith.addf %294, %293 : vector<32x64xf32>
    %296 = arith.mulf %285, %295 : vector<32x64xf32>
    %297 = arith.truncf %296 : vector<32x64xf32> to vector<32x64xbf16>
    %c1_117 = arith.constant 1 : index
    %c0_118 = arith.constant 0 : index
    %c0_119 = arith.constant 0 : index
    %298 = vector.load %arg11[%c1_117, %c0_118, %c0_119] : memref<2x64x32xbf16, #tpu.memory_space<vmem>>, vector<1x64x32xbf16>
    %299 = vector.shape_cast %298 : vector<1x64x32xbf16> to vector<64x32xbf16>
    %cst_120 = arith.constant dense<0.000000e+00> : vector<32x32xf32>
    %300 = tpu.matmul %297, %299, %cst_120 {dimension_numbers = #tpu.dot_dimension_numbers<[1], [0], [0], [1], [0, 0, 1, 1], [], []>} : vector<32x64xbf16>, vector<64x32xbf16>, vector<32x32xf32> -> vector<32x32xf32>
    %c1_121 = arith.constant 1 : index
    %c0_122 = arith.constant 0 : index
    %c0_123 = arith.constant 0 : index
    %301 = vector.load %arg12[%c1_121, %c0_122, %c0_123] : memref<2x1x32xf32, #tpu.memory_space<vmem>>, vector<1x1x32xf32>
    %302 = vector.shape_cast %301 : vector<1x1x32xf32> to vector<1x32xf32>
    %303 = vector.broadcast %302 : vector<1x32xf32> to vector<32x32xf32>
    %304 = arith.addf %300, %303 : vector<32x32xf32>
    %305 = arith.addf %249, %304 : vector<32x32xf32>
    %306 = vector.shape_cast %305 : vector<32x32xf32> to vector<4x8x32xf32>
    %307 = vector.extract_strided_slice %306 {offsets = [0, 0, 0], sizes = [4, 1, 32], strides = [1, 1, 1]} : vector<4x8x32xf32> to vector<4x1x32xf32>
    %c0_124 = arith.constant 0 : index
    %c0_125 = arith.constant 0 : index
    %308 = vector.load %arg13[%c0_124, %c0_125] : memref<1x32xf32, #tpu.memory_space<vmem>>, vector<1x32xf32>
    %c0_126 = arith.constant 0 : index
    %c0_127 = arith.constant 0 : index
    %309 = vector.load %arg14[%c0_126, %c0_127] : memref<1x32xf32, #tpu.memory_space<vmem>>, vector<1x32xf32>
    %cst_128 = arith.constant dense<0.000000e+00> : vector<4x1xf32>
    %310 = vector.multi_reduction <add>, %307, %cst_128 [2] : vector<4x1x32xf32> to vector<4x1xf32>
    %311 = vector.shape_cast %310 : vector<4x1xf32> to vector<4x1x1xf32>
    %cst_129 = arith.constant 3.200000e+01 : f32
    %312 = vector.broadcast %cst_129 : f32 to vector<4x1x1xf32>
    %313 = arith.divf %311, %312 : vector<4x1x1xf32>
    %314 = vector.broadcast %313 : vector<4x1x1xf32> to vector<4x1x32xf32>
    %315 = arith.subf %307, %314 : vector<4x1x32xf32>
    %316 = arith.mulf %315, %315 : vector<4x1x32xf32>
    %cst_130 = arith.constant dense<0.000000e+00> : vector<4x1xf32>
    %317 = vector.multi_reduction <add>, %316, %cst_130 [2] : vector<4x1x32xf32> to vector<4x1xf32>
    %318 = vector.shape_cast %317 : vector<4x1xf32> to vector<4x1x1xf32>
    %cst_131 = arith.constant 3.200000e+01 : f32
    %319 = vector.broadcast %cst_131 : f32 to vector<4x1x1xf32>
    %320 = arith.divf %318, %319 : vector<4x1x1xf32>
    %321 = vector.broadcast %313 : vector<4x1x1xf32> to vector<4x1x32xf32>
    %322 = arith.subf %307, %321 : vector<4x1x32xf32>
    %cst_132 = arith.constant 9.99999974E-6 : f32
    %323 = vector.broadcast %cst_132 : f32 to vector<4x1x1xf32>
    %324 = arith.addf %320, %323 : vector<4x1x1xf32>
    %325 = math.rsqrt %324 : vector<4x1x1xf32>
    %326 = vector.broadcast %325 : vector<4x1x1xf32> to vector<4x1x32xf32>
    %327 = arith.mulf %322, %326 : vector<4x1x32xf32>
    %328 = vector.shape_cast %308 : vector<1x32xf32> to vector<1x1x32xf32>
    %329 = vector.broadcast %328 : vector<1x1x32xf32> to vector<4x1x32xf32>
    %330 = arith.mulf %327, %329 : vector<4x1x32xf32>
    %331 = vector.shape_cast %309 : vector<1x32xf32> to vector<1x1x32xf32>
    %332 = vector.broadcast %331 : vector<1x1x32xf32> to vector<4x1x32xf32>
    %333 = arith.addf %330, %332 : vector<4x1x32xf32>
    %c0_133 = arith.constant 0 : index
    %c0_134 = arith.constant 0 : index
    %334 = vector.load %arg15[%c0_133, %c0_134] : memref<1x32xf32, #tpu.memory_space<vmem>>, vector<1x32xf32>
    %c0_135 = arith.constant 0 : index
    %c0_136 = arith.constant 0 : index
    %335 = vector.load %arg16[%c0_135, %c0_136] : memref<1x32xf32, #tpu.memory_space<vmem>>, vector<1x32xf32>
    %cst_137 = arith.constant dense<0.000000e+00> : vector<4x1xf32>
    %336 = vector.multi_reduction <add>, %333, %cst_137 [2] : vector<4x1x32xf32> to vector<4x1xf32>
    %337 = vector.shape_cast %336 : vector<4x1xf32> to vector<4x1x1xf32>
    %cst_138 = arith.constant 3.200000e+01 : f32
    %338 = vector.broadcast %cst_138 : f32 to vector<4x1x1xf32>
    %339 = arith.divf %337, %338 : vector<4x1x1xf32>
    %340 = vector.broadcast %339 : vector<4x1x1xf32> to vector<4x1x32xf32>
    %341 = arith.subf %333, %340 : vector<4x1x32xf32>
    %342 = arith.mulf %341, %341 : vector<4x1x32xf32>
    %cst_139 = arith.constant dense<0.000000e+00> : vector<4x1xf32>
    %343 = vector.multi_reduction <add>, %342, %cst_139 [2] : vector<4x1x32xf32> to vector<4x1xf32>
    %344 = vector.shape_cast %343 : vector<4x1xf32> to vector<4x1x1xf32>
    %cst_140 = arith.constant 3.200000e+01 : f32
    %345 = vector.broadcast %cst_140 : f32 to vector<4x1x1xf32>
    %346 = arith.divf %344, %345 : vector<4x1x1xf32>
    %347 = vector.broadcast %339 : vector<4x1x1xf32> to vector<4x1x32xf32>
    %348 = arith.subf %333, %347 : vector<4x1x32xf32>
    %cst_141 = arith.constant 9.99999974E-6 : f32
    %349 = vector.broadcast %cst_141 : f32 to vector<4x1x1xf32>
    %350 = arith.addf %346, %349 : vector<4x1x1xf32>
    %351 = math.rsqrt %350 : vector<4x1x1xf32>
    %352 = vector.broadcast %351 : vector<4x1x1xf32> to vector<4x1x32xf32>
    %353 = arith.mulf %348, %352 : vector<4x1x32xf32>
    %354 = vector.shape_cast %334 : vector<1x32xf32> to vector<1x1x32xf32>
    %355 = vector.broadcast %354 : vector<1x1x32xf32> to vector<4x1x32xf32>
    %356 = arith.mulf %353, %355 : vector<4x1x32xf32>
    %357 = vector.shape_cast %335 : vector<1x32xf32> to vector<1x1x32xf32>
    %358 = vector.broadcast %357 : vector<1x1x32xf32> to vector<4x1x32xf32>
    %359 = arith.addf %356, %358 : vector<4x1x32xf32>
    %c0_142 = arith.constant 0 : index
    %c0_143 = arith.constant 0 : index
    %360 = vector.load %arg17[%c0_142, %c0_143] : memref<1x32xf32, #tpu.memory_space<vmem>>, vector<1x32xf32>
    %361 = vector.shape_cast %360 : vector<1x32xf32> to vector<1x1x32xf32>
    %362 = vector.broadcast %361 : vector<1x1x32xf32> to vector<4x1x32xf32>
    %363 = arith.mulf %359, %362 : vector<4x1x32xf32>
    %cst_144 = arith.constant dense<0.000000e+00> : vector<4x1xf32>
    %364 = vector.multi_reduction <add>, %363, %cst_144 [2] : vector<4x1x32xf32> to vector<4x1xf32>
    %365 = vector.shape_cast %364 : vector<4x1xf32> to vector<4x1x1xf32>
    %c0_145 = arith.constant 0 : index
    %c0_146 = arith.constant 0 : index
    %366 = vector.load %arg18[%c0_145, %c0_146] : memref<1x1xf32, #tpu.memory_space<vmem>>, vector<1x1xf32>
    %367 = vector.shape_cast %366 : vector<1x1xf32> to vector<1x1x1xf32>
    %368 = vector.broadcast %367 : vector<1x1x1xf32> to vector<4x1x1xf32>
    %369 = arith.addf %365, %368 : vector<4x1x1xf32>
    %c0_147 = arith.constant 0 : index
    %c0_148 = arith.constant 0 : index
    %c0_149 = arith.constant 0 : index
    %370 = vector.load %arg19[%c0_147, %c0_148, %c0_149] : memref<4x1x1xf32, #tpu.memory_space<vmem>>, vector<4x1x1xf32>
    tpu.vector_store %arg19[%c0_147, %c0_148, %c0_149], %369 {strides = array<i32>} : memref<4x1x1xf32, #tpu.memory_space<vmem>>, vector<4x1x1xf32>,
    return
  }
  func.func @transform_0(%arg0: i32) -> (i32, i32, i32) {
    %c0_i32 = arith.constant 0 : i32
    %c0_i32_0 = arith.constant 0 : i32
    %c0_i32_1 = arith.constant 0 : i32
    return %arg0, %c0_i32, %c0_i32_0 : i32, i32, i32
  }
  func.func @transform_1(%arg0: i32) -> (i32, i32, i32) {
    %c0_i32 = arith.constant 0 : i32
    %c0_i32_0 = arith.constant 0 : i32
    %c0_i32_1 = arith.constant 0 : i32
    %c0_i32_2 = arith.constant 0 : i32
    return %c0_i32, %c0_i32_0, %c0_i32_1 : i32, i32, i32
  }
  func.func @transform_2(%arg0: i32) -> (i32, i32, i32) {
    %c0_i32 = arith.constant 0 : i32
    %c0_i32_0 = arith.constant 0 : i32
    %c0_i32_1 = arith.constant 0 : i32
    %c0_i32_2 = arith.constant 0 : i32
    return %c0_i32, %c0_i32_0, %c0_i32_1 : i32, i32, i32
  }
  func.func @transform_3(%arg0: i32) -> (i32, i32, i32) {
    %c0_i32 = arith.constant 0 : i32
    %c0_i32_0 = arith.constant 0 : i32
    %c0_i32_1 = arith.constant 0 : i32
    %c0_i32_2 = arith.constant 0 : i32
    return %c0_i32, %c0_i32_0, %c0_i32_1 : i32, i32, i32
  }
  func.func @transform_4(%arg0: i32) -> (i32, i32, i32) {
    %c0_i32 = arith.constant 0 : i32
    %c0_i32_0 = arith.constant 0 : i32
    %c0_i32_1 = arith.constant 0 : i32
    %c0_i32_2 = arith.constant 0 : i32
    return %c0_i32, %c0_i32_0, %c0_i32_1 : i32, i32, i32
  }
  func.func @transform_5(%arg0: i32) -> (i32, i32, i32) {
    %c0_i32 = arith.constant 0 : i32
    %c0_i32_0 = arith.constant 0 : i32
    %c0_i32_1 = arith.constant 0 : i32
    %c0_i32_2 = arith.constant 0 : i32
    return %c0_i32, %c0_i32_0, %c0_i32_1 : i32, i32, i32
  }
  func.func @transform_6(%arg0: i32) -> (i32, i32, i32) {
    %c0_i32 = arith.constant 0 : i32
    %c0_i32_0 = arith.constant 0 : i32
    %c0_i32_1 = arith.constant 0 : i32
    %c0_i32_2 = arith.constant 0 : i32
    return %c0_i32, %c0_i32_0, %c0_i32_1 : i32, i32, i32
  }
  func.func @transform_7(%arg0: i32) -> (i32, i32, i32) {
    %c0_i32 = arith.constant 0 : i32
    %c0_i32_0 = arith.constant 0 : i32
    %c0_i32_1 = arith.constant 0 : i32
    %c0_i32_2 = arith.constant 0 : i32
    return %c0_i32, %c0_i32_0, %c0_i32_1 : i32, i32, i32
  }
  func.func @transform_8(%arg0: i32) -> (i32, i32, i32) {
    %c0_i32 = arith.constant 0 : i32
    %c0_i32_0 = arith.constant 0 : i32
    %c0_i32_1 = arith.constant 0 : i32
    %c0_i32_2 = arith.constant 0 : i32
    return %c0_i32, %c0_i32_0, %c0_i32_1 : i32, i32, i32
  }
  func.func @transform_9(%arg0: i32) -> (i32, i32, i32) {
    %c0_i32 = arith.constant 0 : i32
    %c0_i32_0 = arith.constant 0 : i32
    %c0_i32_1 = arith.constant 0 : i32
    %c0_i32_2 = arith.constant 0 : i32
    return %c0_i32, %c0_i32_0, %c0_i32_1 : i32, i32, i32
  }
  func.func @transform_10(%arg0: i32) -> (i32, i32, i32) {
    %c0_i32 = arith.constant 0 : i32
    %c0_i32_0 = arith.constant 0 : i32
    %c0_i32_1 = arith.constant 0 : i32
    %c0_i32_2 = arith.constant 0 : i32
    return %c0_i32, %c0_i32_0, %c0_i32_1 : i32, i32, i32
  }
  func.func @transform_11(%arg0: i32) -> (i32, i32, i32) {
    %c0_i32 = arith.constant 0 : i32
    %c0_i32_0 = arith.constant 0 : i32
    %c0_i32_1 = arith.constant 0 : i32
    %c0_i32_2 = arith.constant 0 : i32
    return %c0_i32, %c0_i32_0, %c0_i32_1 : i32, i32, i32
  }
  func.func @transform_12(%arg0: i32) -> (i32, i32) {
    %c0_i32 = arith.constant 0 : i32
    %c0_i32_0 = arith.constant 0 : i32
    %c0_i32_1 = arith.constant 0 : i32
    return %c0_i32, %c0_i32_0 : i32, i32
  }
  func.func @transform_13(%arg0: i32) -> (i32, i32) {
    %c0_i32 = arith.constant 0 : i32
    %c0_i32_0 = arith.constant 0 : i32
    %c0_i32_1 = arith.constant 0 : i32
    return %c0_i32, %c0_i32_0 : i32, i32
  }
  func.func @transform_14(%arg0: i32) -> (i32, i32) {
    %c0_i32 = arith.constant 0 : i32
    %c0_i32_0 = arith.constant 0 : i32
    %c0_i32_1 = arith.constant 0 : i32
    return %c0_i32, %c0_i32_0 : i32, i32
  }
  func.func @transform_15(%arg0: i32) -> (i32, i32) {
    %c0_i32 = arith.constant 0 : i32
    %c0_i32_0 = arith.constant 0 : i32
    %c0_i32_1 = arith.constant 0 : i32
    return %c0_i32, %c0_i32_0 : i32, i32
  }
  func.func @transform_16(%arg0: i32) -> (i32, i32) {
    %c0_i32 = arith.constant 0 : i32
    %c0_i32_0 = arith.constant 0 : i32
    %c0_i32_1 = arith.constant 0 : i32
    return %c0_i32, %c0_i32_0 : i32, i32
  }
  func.func @transform_17(%arg0: i32) -> (i32, i32) {
    %c0_i32 = arith.constant 0 : i32
    %c0_i32_0 = arith.constant 0 : i32
    %c0_i32_1 = arith.constant 0 : i32
    return %c0_i32, %c0_i32_0 : i32, i32
  }
  func.func @transform_18(%arg0: i32) -> (i32, i32, i32) {
    %c0_i32 = arith.constant 0 : i32
    %c0_i32_0 = arith.constant 0 : i32
    %c0_i32_1 = arith.constant 0 : i32
    return %arg0, %c0_i32, %c0_i32_0 : i32, i32, i32
  }
}

</mosaic_0001>

<llo_original>
// kernel: tsvit_forward.3
$region0: #{tsvit_forward.3}
  #allocation0 [shape = 'u32[]', space=smem, size = 0x4, offset = 0x4, fixed_abs, tag = 'smem constant byte address 0x4 - core index']
  #allocation1 [shape = 'u32[144,128]{1,0:T(1,128)}', space=vmem, size = 0x12000, scoped, tag = 'internal scratch']
  #allocation2 [shape = 's32[1]{0}', space=sflag, size = 0x4, scoped, tag = 'scoped memory for tsvit_forward.3']
  #allocation3 [shape = 'u8[1024]{0}', space=smem, size = 0x400, scoped, tag = 'prefetched SMEM operand 0']
  %s0 = inlined_call_operand.vmem [shape: s32[2,8], index: 0, kind: input, shape index: {}]
  %s1 = inlined_call_operand.vmem [shape: bf16[2,32,192], index: 1, kind: input, shape index: {}]
  %s2 = inlined_call_operand.vmem [shape: f32[365,1,32], index: 2, kind: input, shape index: {}]
  %s3 = inlined_call_operand.vmem [shape: f32[1,32], index: 3, kind: input, shape index: {}]
  %s4 = inlined_call_operand.vmem [shape: bf16[192,32], index: 4, kind: input, shape index: {}]
  %s5 = inlined_call_operand.vmem [shape: f32[1,32], index: 5, kind: input, shape index: {}]
  %s6 = inlined_call_operand.vmem [shape: f32[2,32,32], index: 6, kind: output, shape index: {}]
  %s7 = sld [smem:[#allocation0]]
  $region53: #{tsvit_forward.3} parent=0
    _
  %s9 = ssub.s32 1, %s7
  %s10 = scalar_select 0, %s9, %s7
  %s11 = sshll.u32 %s0, 4
  %s12 = int_to_ptr.vmem [resolvable:$true] %s11
  %14 = dma.vmem_to_smem %s12, 32, [#allocation3], [#allocation2]
  %15 = dma.done [#allocation2], 32
  %16 = sfence
  loop: start=0, step=1, limit=4
  $region2: #{tsvit_forward.3} parent=0 // loop_pre_header
    _
  $region3: #{tsvit_forward.3} parent=0 // loop_header
    %s18 = sphi 0, %s22
    %p19 = scmp.ge.s32.totalorder %s18, 4
    %s28 = sphi 0, %s30
    %s31 = sphi 0, %s28
    %s32 = sphi 0, %s31
    %s48 = sphi 0, %s32
    %s52 = sphi 0, %s52
    %s54 = sphi 0, %s52
    %s55 = sphi 0, %s54
    %s69 = sphi 0, %s55
    %s73 = sphi 0, %s73
    %s75 = sphi 0, %s73
    %s76 = sphi 0, %s75
    %s90 = sphi 0, %s76
    %s94 = sphi 0, %s94
    %s96 = sphi 0, %s94
    %s97 = sphi 0, %s96
    %s111 = sphi 0, %s97
    %s115 = sphi 0, %s115
    %s117 = sphi 0, %s115
    %s118 = sphi 0, %s117
    %s132 = sphi 0, %s118
    %s138 = sphi 0, %s140
    %s141 = sphi 0, %s138
    %s142 = sphi 0, %s141
    %s158 = sphi 0, %s142
  $region4: #{tsvit_forward.3} parent=0 // loop_header_branch
    %21 = sbr.rel (%p19) target = $region8
  $region5: #{tsvit_forward.3} parent=0 // loop_body
    %s23 = ssub.s32 %s18, 1
    %s24 = ssub.s32 %s18, 2
    %s25 = sadd.s32 %s18, 1
    %s26 = ssub.s32 %s18, %s25
    %p27 = scmp.eq.s32.totalorder %s26, 0
    %s29 = sadd.s32 %s28, 1
    %s30 = scalar_select %p27, %s28, %s29
    %p33 = pneg %p27
    %p34 = scmp.eq.s32.totalorder %s18, 1
    %p35 = por %p33, %p34
    %p36 = scmp.ne.s32.totalorder %s28, %s31
    %p37 = scmp.eq.s32.totalorder %s18, 0
    %p38 = por %p36, %p37
    %p39 = scmp.ne.s32.totalorder %s28, %s31
    %p40 = scmp.eq.s32.totalorder %s23, 1
    %p41 = por %p39, %p40
    %p42 = scmp.ne.s32.totalorder %s31, %s32
    %p43 = scmp.eq.s32.totalorder %s23, 0
    %p44 = por %p42, %p43
    %p45 = scmp.ne.s32.totalorder %s31, %s32
    %p46 = scmp.eq.s32.totalorder %s24, 1
    %p47 = por %p45, %p46
    %p49 = scmp.ne.s32.totalorder %s32, %s48
    %p50 = scmp.eq.s32.totalorder %s24, 0
    %p51 = por %p49, %p50
    %s53 = sadd.s32 %s52, 1
    %p56 = scmp.eq.s32.totalorder %s18, 1
    %p57 = scmp.ne.s32.totalorder %s52, %s54
    %p58 = scmp.eq.s32.totalorder %s18, 0
    %p59 = por %p57, %p58
    %p60 = scmp.ne.s32.totalorder %s52, %s54
    %p61 = scmp.eq.s32.totalorder %s23, 1
    %p62 = por %p60, %p61
    %p63 = scmp.ne.s32.totalorder %s54, %s55
    %p64 = scmp.eq.s32.totalorder %s23, 0
    %p65 = por %p63, %p64
    %p66 = scmp.ne.s32.totalorder %s54, %s55
    %p67 = scmp.eq.s32.totalorder %s24, 1
    %p68 = por %p66, %p67
    %p70 = scmp.ne.s32.totalorder %s55, %s69
    %p71 = scmp.eq.s32.totalorder %s24, 0
    %p72 = por %p70, %p71
    %s74 = sadd.s32 %s73, 1
    %p77 = scmp.eq.s32.totalorder %s18, 1
    %p78 = scmp.ne.s32.totalorder %s73, %s75
    %p79 = scmp.eq.s32.totalorder %s18, 0
    %p80 = por %p78, %p79
    %p81 = scmp.ne.s32.totalorder %s73, %s75
    %p82 = scmp.eq.s32.totalorder %s23, 1
    %p83 = por %p81, %p82
    %p84 = scmp.ne.s32.totalorder %s75, %s76
    %p85 = scmp.eq.s32.totalorder %s23, 0
    %p86 = por %p84, %p85
    %p87 = scmp.ne.s32.totalorder %s75, %s76
    %p88 = scmp.eq.s32.totalorder %s24, 1
    %p89 = por %p87, %p88
    %p91 = scmp.ne.s32.totalorder %s76, %s90
    %p92 = scmp.eq.s32.totalorder %s24, 0
    %p93 = por %p91, %p92
    %s95 = sadd.s32 %s94, 1
    %p98 = scmp.eq.s32.totalorder %s18, 1
    %p99 = scmp.ne.s32.totalorder %s94, %s96
    %p100 = scmp.eq.s32.totalorder %s18, 0
    %p101 = por %p99, %p100
    %p102 = scmp.ne.s32.totalorder %s94, %s96
    %p103 = scmp.eq.s32.totalorder %s23, 1
    %p104 = por %p102, %p103
    %p105 = scmp.ne.s32.totalorder %s96, %s97
    %p106 = scmp.eq.s32.totalorder %s23, 0
    %p107 = por %p105, %p106
    %p108 = scmp.ne.s32.totalorder %s96, %s97
    %p109 = scmp.eq.s32.totalorder %s24, 1
    %p110 = por %p108, %p109
    %p112 = scmp.ne.s32.totalorder %s97, %s111
    %p113 = scmp.eq.s32.totalorder %s24, 0
    %p114 = por %p112, %p113
    %s116 = sadd.s32 %s115, 1
    %p119 = scmp.eq.s32.totalorder %s18, 1
    %p120 = scmp.ne.s32.totalorder %s115, %s117
    %p121 = scmp.eq.s32.totalorder %s18, 0
    %p122 = por %p120, %p121
    %p123 = scmp.ne.s32.totalorder %s115, %s117
    %p124 = scmp.eq.s32.totalorder %s23, 1
    %p125 = por %p123, %p124
    %p126 = scmp.ne.s32.totalorder %s117, %s118
    %p127 = scmp.eq.s32.totalorder %s23, 0
    %p128 = por %p126, %p127
    %p129 = scmp.ne.s32.totalorder %s117, %s118
    %p130 = scmp.eq.s32.totalorder %s24, 1
    %p131 = por %p129, %p130
    %p133 = scmp.ne.s32.totalorder %s118, %s132
    %p134 = scmp.eq.s32.totalorder %s24, 0
    %p135 = por %p133, %p134
    %s136 = ssub.s32 %s18, %s25
    %p137 = scmp.eq.s32.totalorder %s136, 0
    %s139 = sadd.s32 %s138, 1
    %s140 = scalar_select %p137, %s138, %s139
    %p143 = pneg %p137
    %p144 = scmp.eq.s32.totalorder %s18, 1
    %p145 = por %p143, %p144
    %p146 = scmp.ne.s32.totalorder %s138, %s141
    %p147 = scmp.eq.s32.totalorder %s18, 0
    %p148 = por %p146, %p147
    %p149 = scmp.ne.s32.totalorder %s138, %s141
    %p150 = scmp.eq.s32.totalorder %s23, 1
    %p151 = por %p149, %p150
    %p152 = scmp.ne.s32.totalorder %s141, %s142
    %p153 = scmp.eq.s32.totalorder %s23, 0
    %p154 = por %p152, %p153
    %p155 = scmp.ne.s32.totalorder %s141, %s142
    %p156 = scmp.eq.s32.totalorder %s24, 1
    %p157 = por %p155, %p156
    %p159 = scmp.ne.s32.totalorder %s142, %s158
    %p160 = scmp.eq.s32.totalorder %s24, 0
    %p161 = por %p159, %p160
    %p162 = scmp.le.s32.totalorder 1, %s18
    %p163 = scmp.lt.s32.totalorder %s18, 3
    %p164 = pnand %p162, %p163
    %p165 = pneg %p164
    // Predicated region
    $region9: #{tsvit_forward.3} parent=5 // pred_check
      _
    $region10: #{tsvit_forward.3} parent=5 // pred_check_branch
      %167 = sbr.rel (%p164) target = $region12
    $region11: #{tsvit_forward.3} parent=5 // pred_region
      %s168 = ssub.s32 %s18, 1
      // Predicated region
      $region13: #{tsvit_forward.3} parent=11 // pred_check
        %p169 = pneg %p65
      $region14: #{tsvit_forward.3} parent=11 // pred_check_branch
        %171 = sbr.rel (%p169) target = $region16
      $region15: #{tsvit_forward.3} parent=11 // pred_region
        _
      $region16: #{tsvit_forward.3} parent=11 // pred_fallthru
        _
      // Predicated region
      $region17: #{tsvit_forward.3} parent=11 // pred_check
        %p172 = pneg %p86
      $region18: #{tsvit_forward.3} parent=11 // pred_check_branch
        %174 = sbr.rel (%p172) target = $region20
      $region19: #{tsvit_forward.3} parent=11 // pred_region
        _
      $region20: #{tsvit_forward.3} parent=11 // pred_fallthru
        _
      // Predicated region
      $region21: #{tsvit_forward.3} parent=11 // pred_check
        %p175 = pneg %p107
      $region22: #{tsvit_forward.3} parent=11 // pred_check_branch
        %177 = sbr.rel (%p175) target = $region24
      $region23: #{tsvit_forward.3} parent=11 // pred_region
        _
      $region24: #{tsvit_forward.3} parent=11 // pred_fallthru
        _
      // Predicated region
      $region25: #{tsvit_forward.3} parent=11 // pred_check
        %p178 = pneg %p128
      $region26: #{tsvit_forward.3} parent=11 // pred_check_branch
        %180 = sbr.rel (%p178) target = $region28
      $region27: #{tsvit_forward.3} parent=11 // pred_region
        _
      $region28: #{tsvit_forward.3} parent=11 // pred_fallthru
        _
    $region12: #{tsvit_forward.3} parent=5 // pred_fallthru
      _
    %p181 = scmp.lt.s32.totalorder %s18, 2
    // Predicated region
    $region29: #{tsvit_forward.3} parent=5 // pred_check
      %p182 = pneg %p181
    $region30: #{tsvit_forward.3} parent=5 // pred_check_branch
      %184 = sbr.rel (%p182) target = $region32
    $region31: #{tsvit_forward.3} parent=5 // pred_region
      // Predicated region
      $region33: #{tsvit_forward.3} parent=31 // pred_check
        %p185 = pneg %p38
      $region34: #{tsvit_forward.3} parent=31 // pred_check_branch
        %187 = sbr.rel (%p185) target = $region36
      $region35: #{tsvit_forward.3} parent=31 // pred_region
        %p188 = scmp.lt.s32.totalorder %s18, 1
        %s189 = scalar_select %p188, %s18, 1
        %s190 = smul.addr %s189, 8
        %s191 = smul.addr %s190, 4
        %s192 = scalar_lea.vmem %s1, %s191
      $region36: #{tsvit_forward.3} parent=31 // pred_fallthru
        _
    $region32: #{tsvit_forward.3} parent=5 // pred_fallthru
      _
    %p193 = scmp.le.s32.totalorder 1, %s18
    %p194 = scmp.lt.s32.totalorder %s18, 3
    %p195 = pnand %p193, %p194
    %p196 = pneg %p195
    // Predicated region
    $region37: #{tsvit_forward.3} parent=5 // pred_check
      _
    $region38: #{tsvit_forward.3} parent=5 // pred_check_branch
      %198 = sbr.rel (%p195) target = $region40
    $region39: #{tsvit_forward.3} parent=5 // pred_region
      %s199 = ssub.s32 %s18, 1
      %p200 = scmp.lt.s32.totalorder %s23, 1
      %s201 = scalar_select %p200, %s23, 1
      %s202 = smul.addr %s201, 8
      %s203 = smul.addr %s202, 4
      %s204 = scalar_lea.vmem %s1, %s203
      %p205 = pneg %p44
      %p206 = pneg %p41
      %p207 = pneg %p65
      %p208 = pneg %p62
      %p209 = pneg %p86
      %p210 = pneg %p83
      %p211 = pneg %p107
      %p212 = pneg %p104
      %p213 = pneg %p128
      %p214 = pneg %p125
      %p215 = pneg %p154
      %p216 = pneg %p151
      %p217 = scmp.lt.s32.totalorder %s23, 1
      %s218 = scalar_select %p217, %s23, 1
      %s219 = smul.addr %s218, 4
      %s220 = smul.addr %s219, 8
      %s221 = scalar_lea.vmem %s6, %s220
      %p222 = scmp.lt.s32.totalorder %s23, 1
      %s223 = scalar_select %p222, %s23, 1
      %s224 = smul.addr %s223, 8
      %s225 = smul.addr %s224, 4
      %s226 = scalar_lea.vmem %s1, %s225
      %p227 = scmp.lt.s32.totalorder %s23, 1
      %s228 = scalar_select %p227, %s23, 1
      %s229 = smul.addr %s228, 4
      %s230 = smul.addr %s229, 8
      %s231 = scalar_lea.vmem %s6, %s230
      %v233 = vld [vmem:[%s226] sm:$0xff]
      %v234 = vld [vmem:[%s226 + $0x8] sm:$0xff]
      %v235 = vld [vmem:[%s226 + $0x10] sm:$0xff]
      %v236 = vld [vmem:[%s226 + $0x18] sm:$0xff]
      %v237 = vld [vmem:[%s4] sm:$0xf]
      %v238 = vld [vmem:[%s4 + $0x4] sm:$0xf]
      %v239 = vld [vmem:[%s4 + $0x8] sm:$0xf]
      %v240 = vld [vmem:[%s4 + $0xc] sm:$0xf]
      %v241 = vld [vmem:[%s4 + $0x10] sm:$0xf]
      %v242 = vld [vmem:[%s4 + $0x14] sm:$0xf]
      %v243 = vld [vmem:[%s4 + $0x18] sm:$0xf]
      %v244 = vld [vmem:[%s4 + $0x1c] sm:$0xf]
      %v245 = vld [vmem:[%s4 + $0x20] sm:$0xf]
      %v246 = vld [vmem:[%s4 + $0x24] sm:$0xf]
      %v247 = vld [vmem:[%s4 + $0x28] sm:$0xf]
      %v248 = vld [vmem:[%s4 + $0x2c] sm:$0xf]
      %v249 = vld [vmem:[%s4 + $0x30] sm:$0xf]
      %v250 = vld [vmem:[%s4 + $0x34] sm:$0xf]
      %v251 = vld [vmem:[%s4 + $0x38] sm:$0xf]
      %v252 = vld [vmem:[%s4 + $0x3c] sm:$0xf]
      %v253 = vld [vmem:[%s4 + $0x40] sm:$0xf]
      %v254 = vld [vmem:[%s4 + $0x44] sm:$0xf]
      %v255 = vld [vmem:[%s4 + $0x48] sm:$0xf]
      %v256 = vld [vmem:[%s4 + $0x4c] sm:$0xf]
      %v257 = vld [vmem:[%s4 + $0x50] sm:$0xf]
      %v258 = vld [vmem:[%s4 + $0x54] sm:$0xf]
      %v259 = vld [vmem:[%s4 + $0x58] sm:$0xf]
      %v260 = vld [vmem:[%s4 + $0x5c] sm:$0xf]
      %v261 = vld [vmem:[%s5] sm:$0x1]
      %v263 = vlaneseq
      %v264 = vshrl.u32 %v263, 7
      %v265 = vsub.s32 0, %v264
      %v266 = vrot.slane %v261, %v265
      %v272 = vunpack.c.l.b16 %v233
      %v273 = vunpack.c.h.b16 %v233
      %v274 = vunpack.c.l.b16 %v234
      %v275 = vunpack.c.h.b16 %v234
      %v276 = vunpack.c.l.b16 %v235
      %v277 = vunpack.c.h.b16 %v235
      %v278 = vunpack.c.l.b16 %v236
      %v279 = vunpack.c.h.b16 %v236
      %v280 = vpack.c.b16 %v274, %v272
      %v281 = vpack.c.b16 %v275, %v273
      %v282 = vpack.c.b16 %v278, %v276
      %v283 = vpack.c.b16 %v279, %v277
      %v310 = vunpack.c.l.b16 %v237
      %v311 = vunpack.c.l.b16 %v238
      %v312 = vunpack.c.l.b16 %v239
      %v313 = vunpack.c.l.b16 %v240
      %v314 = vunpack.c.l.b16 %v241
      %v315 = vunpack.c.l.b16 %v242
      %v316 = vunpack.c.l.b16 %v243
      %v317 = vunpack.c.l.b16 %v244
      %v318 = vunpack.c.l.b16 %v245
      %v319 = vunpack.c.l.b16 %v246
      %v320 = vunpack.c.l.b16 %v247
      %v321 = vunpack.c.l.b16 %v248
      %v322 = vunpack.c.l.b16 %v249
      %v323 = vunpack.c.l.b16 %v250
      %v324 = vunpack.c.l.b16 %v251
      %v325 = vunpack.c.l.b16 %v252
      %v326 = vunpack.c.l.b16 %v253
      %v327 = vunpack.c.l.b16 %v254
      %v328 = vunpack.c.l.b16 %v255
      %v329 = vunpack.c.l.b16 %v256
      %v330 = vunpack.c.l.b16 %v257
      %v331 = vunpack.c.l.b16 %v258
      %v332 = vunpack.c.l.b16 %v259
      %v333 = vunpack.c.l.b16 %v260
      %v334 = vpack.c.b16 %v311, %v310
      %v335 = vpack.c.b16 %v313, %v312
      %v336 = vpack.c.b16 %v315, %v314
      %v337 = vpack.c.b16 %v317, %v316
      %v338 = vpack.c.b16 %v319, %v318
      %v339 = vpack.c.b16 %v321, %v320
      %v340 = vpack.c.b16 %v323, %v322
      %v341 = vpack.c.b16 %v325, %v324
      %v342 = vpack.c.b16 %v327, %v326
      %v343 = vpack.c.b16 %v329, %v328
      %v344 = vpack.c.b16 %v331, %v330
      %v345 = vpack.c.b16 %v333, %v332
      %vm358 = vcmask 523264
      %v360 = vsel %vm358, %v281, 0
      %v363 = vsel %vm358, %v283, 0
      %365 = vmatprep.subr.bf16.mxu0 0
      %366 = vmatpush1.bf16.msra.mxu0 %v334
      %367 = vmatprep.subr.bf16.mxu0 0
      %368 = vmatpush1.bf16.msra.mxu0 %v335
      %369 = vmatprep.subr.bf16.mxu0 0
      %370 = vmatpush1.bf16.msra.mxu0 %v336
      %371 = vmatprep.subr.bf16.mxu0 0
      %372 = vmatpush1.bf16.msra.mxu0 %v337
      %373 = vmatprep.subr.bf16.mxu0 0
      %374 = vmatpush1.bf16.msra.mxu0 %v338
      %375 = vmatprep.subr.bf16.mxu0 0
      %376 = vmatpush1.bf16.msra.mxu0 %v339
      %377 = vmatprep.subr.bf16.mxu0 0
      %378 = vmatpush1.bf16.msra.mxu0 %v340
      %379 = vmatprep.subr.bf16.mxu0 0
      %380 = vmatpush1.bf16.msra.mxu0 %v341
      %381 = vmatprep.subr.bf16.mxu0 0
      %382 = vmatpush1.bf16.msra.mxu0 %v342
      %383 = vmatprep.subr.bf16.mxu0 0
      %384 = vmatpush1.bf16.msra.mxu0 %v343
      %385 = vmatprep.subr.bf16.mxu0 0
      %386 = vmatpush1.bf16.msra.mxu0 %v344
      %387 = vmatprep.subr.bf16.mxu0 0
      %388 = vmatpush1.bf16.msra.mxu0 %v345
      %389 = vmatprep.subr.bf16.mxu0 0
      %390 = vmatpush1.bf16.msra.mxu0 0
      %391 = vmatprep.subr.bf16.mxu0 0
      %392 = vmatpush1.bf16.msra.mxu0 0
      %393 = vmatprep.subr.bf16.mxu0 0
      %394 = vmatpush1.bf16.msra.mxu0 0
      %395 = vmatprep.subr.bf16.mxu0 0
      %396 = vmatpush1.bf16.msra.mxu0 0
      %397 = vmatprep.mubr.bf16.mxu0 %v360
      %398 = vmatmul.mubr.bf16.gmra.mrb[0].mxu0 %v280
      %v399 = vpop.f32.mrb[0].mxu0
      %v400 = vadd.f32 %v266, %v399
      %v401 = vpop.f32.mrb[0].mxu0
      %v402 = vpop.f32.mrb[0].mxu0
      %v403 = vadd.f32 %v266, %v402
      %v404 = vpop.f32.mrb[0].mxu0
      %405 = vmatprep.mubr.bf16.mxu0 %v363
      %406 = vmatmul.mubr.bf16.gmra.mrb[0].mxu0 %v282
      %v407 = vpop.f32.mrb[0].mxu0
      %v408 = vadd.f32 %v266, %v407
      %v409 = vpop.f32.mrb[0].mxu0
      %v410 = vpop.f32.mrb[0].mxu0
      %v411 = vadd.f32 %v266, %v410
      %v412 = vpop.f32.mrb[0].mxu0
      %413 = vdwg.mxu0
      %s414 = smul.u32 %s23, 128
      %s415 = sld [smem:[#allocation3 + %s414]]
      %s416 = scalar_lea.vmem %s2, %s415
      %v417 = vld [vmem:[%s416] sm:$0x1]
      %s418 = sadd.s32 %s414, 1
      %s419 = sld [smem:[#allocation3 + %s418]]
      %s420 = scalar_lea.vmem %s2, %s419
      %v421 = vld [vmem:[%s420] sm:$0x1]
      %s422 = sadd.s32 %s414, 2
      %s423 = sld [smem:[#allocation3 + %s422]]
      %s424 = scalar_lea.vmem %s2, %s423
      %v425 = vld [vmem:[%s424] sm:$0x1]
      %s426 = sadd.s32 %s414, 3
      %s427 = sld [smem:[#allocation3 + %s426]]
      %s428 = scalar_lea.vmem %s2, %s427
      %v429 = vld [vmem:[%s428] sm:$0x1]
      %s430 = sadd.s32 %s414, 4
      %s431 = sld [smem:[#allocation3 + %s430]]
      %s432 = scalar_lea.vmem %s2, %s431
      %v433 = vld [vmem:[%s432] sm:$0x1]
      %s434 = sadd.s32 %s414, 5
      %s435 = sld [smem:[#allocation3 + %s434]]
      %s436 = scalar_lea.vmem %s2, %s435
      %v437 = vld [vmem:[%s436] sm:$0x1]
      %s438 = sadd.s32 %s414, 6
      %s439 = sld [smem:[#allocation3 + %s438]]
      %s440 = scalar_lea.vmem %s2, %s439
      %v441 = vld [vmem:[%s440] sm:$0x1]
      %s442 = sadd.s32 %s414, 7
      %s443 = sld [smem:[#allocation3 + %s442]]
      %s444 = scalar_lea.vmem %s2, %s443
      %v445 = vld [vmem:[%s444] sm:$0x1]
      %v447 = vlaneseq
      %v448 = vshrl.u32 %v447, 7
      %v449 = vsub.s32 0, %v448
      %v450 = vrot.slane %v421, %v449
      %v453 = vlaneseq
      %v454 = vshrl.u32 %v453, 7
      %v455 = vsub.s32 0, %v454
      %v456 = vrot.slane %v425, %v455
      %v459 = vlaneseq
      %v460 = vshrl.u32 %v459, 7
      %v461 = vsub.s32 0, %v460
      %v462 = vrot.slane %v429, %v461
      %v465 = vlaneseq
      %v466 = vshrl.u32 %v465, 7
      %v467 = vsub.s32 0, %v466
      %v468 = vrot.slane %v433, %v467
      %v471 = vlaneseq
      %v472 = vshrl.u32 %v471, 7
      %v473 = vsub.s32 0, %v472
      %v474 = vrot.slane %v437, %v473
      %v477 = vlaneseq
      %v478 = vshrl.u32 %v477, 7
      %v479 = vsub.s32 0, %v478
      %v480 = vrot.slane %v441, %v479
      %v483 = vlaneseq
      %v484 = vshrl.u32 %v483, 7
      %v485 = vsub.s32 0, %v484
      %v486 = vrot.slane %v445, %v485
      %vm488 = vcmask 1040384
      %v489 = vsel %vm488, %v417, %v450
      %vm490 = vcmask 1041408
      %v491 = vsel %vm490, %v489, %v456
      %vm492 = vcmask 1042432
      %v493 = vsel %vm492, %v491, %v462
      %vm494 = vcmask 1043456
      %v495 = vsel %vm494, %v493, %v468
      %vm496 = vcmask 1044480
      %v497 = vsel %vm496, %v495, %v474
      %vm498 = vcmask 1045504
      %v499 = vsel %vm498, %v497, %v480
      %vm500 = vcmask 1046528
      %v501 = vsel %vm500, %v499, %v486
      %v502 = vld [vmem:[%s3] sm:$0x1]
      %v504 = vlaneseq
      %v505 = vshrl.u32 %v504, 7
      %v506 = vsub.s32 0, %v505
      %v507 = vrot.slane %v502, %v506
      %v509 = vadd.f32 %v501, %v507
      %v510 = vadd.f32 %v400, %v509
      %v511 = vadd.f32 %v403, %v509
      %v512 = vadd.f32 %v408, %v509
      %v513 = vadd.f32 %v411, %v509
      %vm514 = vcmask 261120
      %515 = vst.msk [vmem:[%s231] sm:$0xff] %vm514, %v510
      %516 = vst.msk [vmem:[%s231 + $0x8] sm:$0xff] %vm514, %v511
      %517 = vst.msk [vmem:[%s231 + $0x10] sm:$0xff] %vm514, %v512
      %518 = vst.msk [vmem:[%s231 + $0x18] sm:$0xff] %vm514, %v513
      %p519 = scmp.lt.s32.totalorder %s23, 1
      %s520 = scalar_select %p519, %s23, 1
      %s521 = smul.addr %s520, 4
      %s522 = smul.addr %s521, 8
      %s523 = scalar_lea.vmem %s6, %s522
      // Predicated region
      $region41: #{tsvit_forward.3} parent=39 // pred_check
        %p524 = pneg %p151
      $region42: #{tsvit_forward.3} parent=39 // pred_check_branch
        %526 = sbr.rel (%p524) target = $region44
      $region43: #{tsvit_forward.3} parent=39 // pred_region
        _
      $region44: #{tsvit_forward.3} parent=39 // pred_fallthru
        _
    $region40: #{tsvit_forward.3} parent=5 // pred_fallthru
      _
    %p527 = scmp.le.s32.totalorder 2, %s18
    // Predicated region
    $region45: #{tsvit_forward.3} parent=5 // pred_check
      %p528 = pneg %p527
    $region46: #{tsvit_forward.3} parent=5 // pred_check_branch
      %530 = sbr.rel (%p528) target = $region48
    $region47: #{tsvit_forward.3} parent=5 // pred_region
      %s531 = ssub.s32 %s18, 2
      // Predicated region
      $region49: #{tsvit_forward.3} parent=47 // pred_check
        %p532 = pneg %p157
      $region50: #{tsvit_forward.3} parent=47 // pred_check_branch
        %534 = sbr.rel (%p532) target = $region52
      $region51: #{tsvit_forward.3} parent=47 // pred_region
        %p535 = scmp.lt.s32.totalorder %s24, 1
        %s536 = scalar_select %p535, %s24, 1
        %s537 = smul.addr %s536, 4
        %s538 = smul.addr %s537, 8
        %s539 = scalar_lea.vmem %s6, %s538
      $region52: #{tsvit_forward.3} parent=47 // pred_fallthru
        _
    $region48: #{tsvit_forward.3} parent=5 // pred_fallthru
      _
  $region6: #{tsvit_forward.3} parent=0 // loop_footer
    %s22 = sadd.s32 1, %s18
  $region7: #{tsvit_forward.3} parent=0 // loop_footer_branch
    %17 = sbr.rel target = $region3
  $region8: #{tsvit_forward.3} parent=0 // loop_exit
    _

// kernel: tsvit_forward.4
$region0: #{tsvit_forward.4}
  #allocation0 [shape = 'u32[]', space=smem, size = 0x4, offset = 0x4, fixed_abs, tag = 'smem constant byte address 0x4 - core index']
  #allocation1 [shape = 'u32[144,128]{1,0:T(1,128)}', space=vmem, size = 0x12000, scoped, tag = 'internal scratch']
  %s0 = inlined_call_operand.vmem [shape: f32[8,16,32], index: 0, kind: input, shape index: {}]
  %s1 = inlined_call_operand.vmem [shape: f32[2,1,32], index: 1, kind: input, shape index: {}]
  %s2 = inlined_call_operand.vmem [shape: f32[2,1,32], index: 2, kind: input, shape index: {}]
  %s3 = inlined_call_operand.vmem [shape: bf16[2,32,96], index: 3, kind: input, shape index: {}]
  %s4 = inlined_call_operand.vmem [shape: bf16[2,32,32], index: 4, kind: input, shape index: {}]
  %s5 = inlined_call_operand.vmem [shape: f32[2,1,32], index: 5, kind: input, shape index: {}]
  %s6 = inlined_call_operand.vmem [shape: f32[2,1,32], index: 6, kind: input, shape index: {}]
  %s7 = inlined_call_operand.vmem [shape: f32[2,1,32], index: 7, kind: input, shape index: {}]
  %s8 = inlined_call_operand.vmem [shape: bf16[2,32,64], index: 8, kind: input, shape index: {}]
  %s9 = inlined_call_operand.vmem [shape: f32[2,1,64], index: 9, kind: input, shape index: {}]
  %s10 = inlined_call_operand.vmem [shape: bf16[2,64,32], index: 10, kind: input, shape index: {}]
  %s11 = inlined_call_operand.vmem [shape: f32[2,1,32], index: 11, kind: input, shape index: {}]
  %s12 = inlined_call_operand.vmem [shape: f32[1,32], index: 12, kind: input, shape index: {}]
  %s13 = inlined_call_operand.vmem [shape: f32[1,32], index: 13, kind: input, shape index: {}]
  %s14 = inlined_call_operand.vmem [shape: f32[8,4,32], index: 14, kind: output, shape index: {}]
  %s15 = sld [smem:[#allocation0]]
  $region89: #{tsvit_forward.4} parent=0
    _
  %s17 = ssub.s32 1, %s15
  %s18 = scalar_select 0, %s17, %s15
  loop: start=0, step=1, limit=4
  $region2: #{tsvit_forward.4} parent=0 // loop_pre_header
    _
  $region3: #{tsvit_forward.4} parent=0 // loop_header
    %s20 = sphi 0, %s24
    %p21 = scmp.ge.s32.totalorder %s20, 4
    %s30 = sphi 0, %s32
    %s33 = sphi 0, %s30
    %s34 = sphi 0, %s33
    %s50 = sphi 0, %s34
    %s54 = sphi 0, %s54
    %s56 = sphi 0, %s54
    %s57 = sphi 0, %s56
    %s71 = sphi 0, %s57
    %s75 = sphi 0, %s75
    %s77 = sphi 0, %s75
    %s78 = sphi 0, %s77
    %s92 = sphi 0, %s78
    %s96 = sphi 0, %s96
    %s98 = sphi 0, %s96
    %s99 = sphi 0, %s98
    %s113 = sphi 0, %s99
    %s117 = sphi 0, %s117
    %s119 = sphi 0, %s117
    %s120 = sphi 0, %s119
    %s134 = sphi 0, %s120
    %s138 = sphi 0, %s138
    %s140 = sphi 0, %s138
    %s141 = sphi 0, %s140
    %s155 = sphi 0, %s141
    %s159 = sphi 0, %s159
    %s161 = sphi 0, %s159
    %s162 = sphi 0, %s161
    %s176 = sphi 0, %s162
    %s180 = sphi 0, %s180
    %s182 = sphi 0, %s180
    %s183 = sphi 0, %s182
    %s197 = sphi 0, %s183
    %s201 = sphi 0, %s201
    %s203 = sphi 0, %s201
    %s204 = sphi 0, %s203
    %s218 = sphi 0, %s204
    %s222 = sphi 0, %s222
    %s224 = sphi 0, %s222
    %s225 = sphi 0, %s224
    %s239 = sphi 0, %s225
    %s243 = sphi 0, %s243
    %s245 = sphi 0, %s243
    %s246 = sphi 0, %s245
    %s260 = sphi 0, %s246
    %s264 = sphi 0, %s264
    %s266 = sphi 0, %s264
    %s267 = sphi 0, %s266
    %s281 = sphi 0, %s267
    %s285 = sphi 0, %s285
    %s287 = sphi 0, %s285
    %s288 = sphi 0, %s287
    %s302 = sphi 0, %s288
    %s306 = sphi 0, %s306
    %s308 = sphi 0, %s306
    %s309 = sphi 0, %s308
    %s323 = sphi 0, %s309
    %s329 = sphi 0, %s331
    %s332 = sphi 0, %s329
    %s333 = sphi 0, %s332
    %s349 = sphi 0, %s333
  $region4: #{tsvit_forward.4} parent=0 // loop_header_branch
    %23 = sbr.rel (%p21) target = $region8
  $region5: #{tsvit_forward.4} parent=0 // loop_body
    %s25 = ssub.s32 %s20, 1
    %s26 = ssub.s32 %s20, 2
    %s27 = sadd.s32 %s20, 1
    %s28 = ssub.s32 %s20, %s27
    %p29 = scmp.eq.s32.totalorder %s28, 0
    %s31 = sadd.s32 %s30, 1
    %s32 = scalar_select %p29, %s30, %s31
    %p35 = pneg %p29
    %p36 = scmp.eq.s32.totalorder %s20, 1
    %p37 = por %p35, %p36
    %p38 = scmp.ne.s32.totalorder %s30, %s33
    %p39 = scmp.eq.s32.totalorder %s20, 0
    %p40 = por %p38, %p39
    %p41 = scmp.ne.s32.totalorder %s30, %s33
    %p42 = scmp.eq.s32.totalorder %s25, 1
    %p43 = por %p41, %p42
    %p44 = scmp.ne.s32.totalorder %s33, %s34
    %p45 = scmp.eq.s32.totalorder %s25, 0
    %p46 = por %p44, %p45
    %p47 = scmp.ne.s32.totalorder %s33, %s34
    %p48 = scmp.eq.s32.totalorder %s26, 1
    %p49 = por %p47, %p48
    %p51 = scmp.ne.s32.totalorder %s34, %s50
    %p52 = scmp.eq.s32.totalorder %s26, 0
    %p53 = por %p51, %p52
    %s55 = sadd.s32 %s54, 1
    %p58 = scmp.eq.s32.totalorder %s20, 1
    %p59 = scmp.ne.s32.totalorder %s54, %s56
    %p60 = scmp.eq.s32.totalorder %s20, 0
    %p61 = por %p59, %p60
    %p62 = scmp.ne.s32.totalorder %s54, %s56
    %p63 = scmp.eq.s32.totalorder %s25, 1
    %p64 = por %p62, %p63
    %p65 = scmp.ne.s32.totalorder %s56, %s57
    %p66 = scmp.eq.s32.totalorder %s25, 0
    %p67 = por %p65, %p66
    %p68 = scmp.ne.s32.totalorder %s56, %s57
    %p69 = scmp.eq.s32.totalorder %s26, 1
    %p70 = por %p68, %p69
    %p72 = scmp.ne.s32.totalorder %s57, %s71
    %p73 = scmp.eq.s32.totalorder %s26, 0
    %p74 = por %p72, %p73
    %s76 = sadd.s32 %s75, 1
    %p79 = scmp.eq.s32.totalorder %s20, 1
    %p80 = scmp.ne.s32.totalorder %s75, %s77
    %p81 = scmp.eq.s32.totalorder %s20, 0
    %p82 = por %p80, %p81
    %p83 = scmp.ne.s32.totalorder %s75, %s77
    %p84 = scmp.eq.s32.totalorder %s25, 1
    %p85 = por %p83, %p84
    %p86 = scmp.ne.s32.totalorder %s77, %s78
    %p87 = scmp.eq.s32.totalorder %s25, 0
    %p88 = por %p86, %p87
    %p89 = scmp.ne.s32.totalorder %s77, %s78
    %p90 = scmp.eq.s32.totalorder %s26, 1
    %p91 = por %p89, %p90
    %p93 = scmp.ne.s32.totalorder %s78, %s92
    %p94 = scmp.eq.s32.totalorder %s26, 0
    %p95 = por %p93, %p94
    %s97 = sadd.s32 %s96, 1
    %p100 = scmp.eq.s32.totalorder %s20, 1
    %p101 = scmp.ne.s32.totalorder %s96, %s98
    %p102 = scmp.eq.s32.totalorder %s20, 0
    %p103 = por %p101, %p102
    %p104 = scmp.ne.s32.totalorder %s96, %s98
    %p105 = scmp.eq.s32.totalorder %s25, 1
    %p106 = por %p104, %p105
    %p107 = scmp.ne.s32.totalorder %s98, %s99
    %p108 = scmp.eq.s32.totalorder %s25, 0
    %p109 = por %p107, %p108
    %p110 = scmp.ne.s32.totalorder %s98, %s99
    %p111 = scmp.eq.s32.totalorder %s26, 1
    %p112 = por %p110, %p111
    %p114 = scmp.ne.s32.totalorder %s99, %s113
    %p115 = scmp.eq.s32.totalorder %s26, 0
    %p116 = por %p114, %p115
    %s118 = sadd.s32 %s117, 1
    %p121 = scmp.eq.s32.totalorder %s20, 1
    %p122 = scmp.ne.s32.totalorder %s117, %s119
    %p123 = scmp.eq.s32.totalorder %s20, 0
    %p124 = por %p122, %p123
    %p125 = scmp.ne.s32.totalorder %s117, %s119
    %p126 = scmp.eq.s32.totalorder %s25, 1
    %p127 = por %p125, %p126
    %p128 = scmp.ne.s32.totalorder %s119, %s120
    %p129 = scmp.eq.s32.totalorder %s25, 0
    %p130 = por %p128, %p129
    %p131 = scmp.ne.s32.totalorder %s119, %s120
    %p132 = scmp.eq.s32.totalorder %s26, 1
    %p133 = por %p131, %p132
    %p135 = scmp.ne.s32.totalorder %s120, %s134
    %p136 = scmp.eq.s32.totalorder %s26, 0
    %p137 = por %p135, %p136
    %s139 = sadd.s32 %s138, 1
    %p142 = scmp.eq.s32.totalorder %s20, 1
    %p143 = scmp.ne.s32.totalorder %s138, %s140
    %p144 = scmp.eq.s32.totalorder %s20, 0
    %p145 = por %p143, %p144
    %p146 = scmp.ne.s32.totalorder %s138, %s140
    %p147 = scmp.eq.s32.totalorder %s25, 1
    %p148 = por %p146, %p147
    %p149 = scmp.ne.s32.totalorder %s140, %s141
    %p150 = scmp.eq.s32.totalorder %s25, 0
    %p151 = por %p149, %p150
    %p152 = scmp.ne.s32.totalorder %s140, %s141
    %p153 = scmp.eq.s32.totalorder %s26, 1
    %p154 = por %p152, %p153
    %p156 = scmp.ne.s32.totalorder %s141, %s155
    %p157 = scmp.eq.s32.totalorder %s26, 0
    %p158 = por %p156, %p157
    %s160 = sadd.s32 %s159, 1
    %p163 = scmp.eq.s32.totalorder %s20, 1
    %p164 = scmp.ne.s32.totalorder %s159, %s161
    %p165 = scmp.eq.s32.totalorder %s20, 0
    %p166 = por %p164, %p165
    %p167 = scmp.ne.s32.totalorder %s159, %s161
    %p168 = scmp.eq.s32.totalorder %s25, 1
    %p169 = por %p167, %p168
    %p170 = scmp.ne.s32.totalorder %s161, %s162
    %p171 = scmp.eq.s32.totalorder %s25, 0
    %p172 = por %p170, %p171
    %p173 = scmp.ne.s32.totalorder %s161, %s162
    %p174 = scmp.eq.s32.totalorder %s26, 1
    %p175 = por %p173, %p174
    %p177 = scmp.ne.s32.totalorder %s162, %s176
    %p178 = scmp.eq.s32.totalorder %s26, 0
    %p179 = por %p177, %p178
    %s181 = sadd.s32 %s180, 1
    %p184 = scmp.eq.s32.totalorder %s20, 1
    %p185 = scmp.ne.s32.totalorder %s180, %s182
    %p186 = scmp.eq.s32.totalorder %s20, 0
    %p187 = por %p185, %p186
    %p188 = scmp.ne.s32.totalorder %s180, %s182
    %p189 = scmp.eq.s32.totalorder %s25, 1
    %p190 = por %p188, %p189
    %p191 = scmp.ne.s32.totalorder %s182, %s183
    %p192 = scmp.eq.s32.totalorder %s25, 0
    %p193 = por %p191, %p192
    %p194 = scmp.ne.s32.totalorder %s182, %s183
    %p195 = scmp.eq.s32.totalorder %s26, 1
    %p196 = por %p194, %p195
    %p198 = scmp.ne.s32.totalorder %s183, %s197
    %p199 = scmp.eq.s32.totalorder %s26, 0
    %p200 = por %p198, %p199
    %s202 = sadd.s32 %s201, 1
    %p205 = scmp.eq.s32.totalorder %s20, 1
    %p206 = scmp.ne.s32.totalorder %s201, %s203
    %p207 = scmp.eq.s32.totalorder %s20, 0
    %p208 = por %p206, %p207
    %p209 = scmp.ne.s32.totalorder %s201, %s203
    %p210 = scmp.eq.s32.totalorder %s25, 1
    %p211 = por %p209, %p210
    %p212 = scmp.ne.s32.totalorder %s203, %s204
    %p213 = scmp.eq.s32.totalorder %s25, 0
    %p214 = por %p212, %p213
    %p215 = scmp.ne.s32.totalorder %s203, %s204
    %p216 = scmp.eq.s32.totalorder %s26, 1
    %p217 = por %p215, %p216
    %p219 = scmp.ne.s32.totalorder %s204, %s218
    %p220 = scmp.eq.s32.totalorder %s26, 0
    %p221 = por %p219, %p220
    %s223 = sadd.s32 %s222, 1
    %p226 = scmp.eq.s32.totalorder %s20, 1
    %p227 = scmp.ne.s32.totalorder %s222, %s224
    %p228 = scmp.eq.s32.totalorder %s20, 0
    %p229 = por %p227, %p228
    %p230 = scmp.ne.s32.totalorder %s222, %s224
    %p231 = scmp.eq.s32.totalorder %s25, 1
    %p232 = por %p230, %p231
    %p233 = scmp.ne.s32.totalorder %s224, %s225
    %p234 = scmp.eq.s32.totalorder %s25, 0
    %p235 = por %p233, %p234
    %p236 = scmp.ne.s32.totalorder %s224, %s225
    %p237 = scmp.eq.s32.totalorder %s26, 1
    %p238 = por %p236, %p237
    %p240 = scmp.ne.s32.totalorder %s225, %s239
    %p241 = scmp.eq.s32.totalorder %s26, 0
    %p242 = por %p240, %p241
    %s244 = sadd.s32 %s243, 1
    %p247 = scmp.eq.s32.totalorder %s20, 1
    %p248 = scmp.ne.s32.totalorder %s243, %s245
    %p249 = scmp.eq.s32.totalorder %s20, 0
    %p250 = por %p248, %p249
    %p251 = scmp.ne.s32.totalorder %s243, %s245
    %p252 = scmp.eq.s32.totalorder %s25, 1
    %p253 = por %p251, %p252
    %p254 = scmp.ne.s32.totalorder %s245, %s246
    %p255 = scmp.eq.s32.totalorder %s25, 0
    %p256 = por %p254, %p255
    %p257 = scmp.ne.s32.totalorder %s245, %s246
    %p258 = scmp.eq.s32.totalorder %s26, 1
    %p259 = por %p257, %p258
    %p261 = scmp.ne.s32.totalorder %s246, %s260
    %p262 = scmp.eq.s32.totalorder %s26, 0
    %p263 = por %p261, %p262
    %s265 = sadd.s32 %s264, 1
    %p268 = scmp.eq.s32.totalorder %s20, 1
    %p269 = scmp.ne.s32.totalorder %s264, %s266
    %p270 = scmp.eq.s32.totalorder %s20, 0
    %p271 = por %p269, %p270
    %p272 = scmp.ne.s32.totalorder %s264, %s266
    %p273 = scmp.eq.s32.totalorder %s25, 1
    %p274 = por %p272, %p273
    %p275 = scmp.ne.s32.totalorder %s266, %s267
    %p276 = scmp.eq.s32.totalorder %s25, 0
    %p277 = por %p275, %p276
    %p278 = scmp.ne.s32.totalorder %s266, %s267
    %p279 = scmp.eq.s32.totalorder %s26, 1
    %p280 = por %p278, %p279
    %p282 = scmp.ne.s32.totalorder %s267, %s281
    %p283 = scmp.eq.s32.totalorder %s26, 0
    %p284 = por %p282, %p283
    %s286 = sadd.s32 %s285, 1
    %p289 = scmp.eq.s32.totalorder %s20, 1
    %p290 = scmp.ne.s32.totalorder %s285, %s287
    %p291 = scmp.eq.s32.totalorder %s20, 0
    %p292 = por %p290, %p291
    %p293 = scmp.ne.s32.totalorder %s285, %s287
    %p294 = scmp.eq.s32.totalorder %s25, 1
    %p295 = por %p293, %p294
    %p296 = scmp.ne.s32.totalorder %s287, %s288
    %p297 = scmp.eq.s32.totalorder %s25, 0
    %p298 = por %p296, %p297
    %p299 = scmp.ne.s32.totalorder %s287, %s288
    %p300 = scmp.eq.s32.totalorder %s26, 1
    %p301 = por %p299, %p300
    %p303 = scmp.ne.s32.totalorder %s288, %s302
    %p304 = scmp.eq.s32.totalorder %s26, 0
    %p305 = por %p303, %p304
    %s307 = sadd.s32 %s306, 1
    %p310 = scmp.eq.s32.totalorder %s20, 1
    %p311 = scmp.ne.s32.totalorder %s306, %s308
    %p312 = scmp.eq.s32.totalorder %s20, 0
    %p313 = por %p311, %p312
    %p314 = scmp.ne.s32.totalorder %s306, %s308
    %p315 = scmp.eq.s32.totalorder %s25, 1
    %p316 = por %p314, %p315
    %p317 = scmp.ne.s32.totalorder %s308, %s309
    %p318 = scmp.eq.s32.totalorder %s25, 0
    %p319 = por %p317, %p318
    %p320 = scmp.ne.s32.totalorder %s308, %s309
    %p321 = scmp.eq.s32.totalorder %s26, 1
    %p322 = por %p320, %p321
    %p324 = scmp.ne.s32.totalorder %s309, %s323
    %p325 = scmp.eq.s32.totalorder %s26, 0
    %p326 = por %p324, %p325
    %s327 = ssub.s32 %s20, %s27
    %p328 = scmp.eq.s32.totalorder %s327, 0
    %s330 = sadd.s32 %s329, 1
    %s331 = scalar_select %p328, %s329, %s330
    %p334 = pneg %p328
    %p335 = scmp.eq.s32.totalorder %s20, 1
    %p336 = por %p334, %p335
    %p337 = scmp.ne.s32.totalorder %s329, %s332
    %p338 = scmp.eq.s32.totalorder %s20, 0
    %p339 = por %p337, %p338
    %p340 = scmp.ne.s32.totalorder %s329, %s332
    %p341 = scmp.eq.s32.totalorder %s25, 1
    %p342 = por %p340, %p341
    %p343 = scmp.ne.s32.totalorder %s332, %s333
    %p344 = scmp.eq.s32.totalorder %s25, 0
    %p345 = por %p343, %p344
    %p346 = scmp.ne.s32.totalorder %s332, %s333
    %p347 = scmp.eq.s32.totalorder %s26, 1
    %p348 = por %p346, %p347
    %p350 = scmp.ne.s32.totalorder %s333, %s349
    %p351 = scmp.eq.s32.totalorder %s26, 0
    %p352 = por %p350, %p351
    %p353 = scmp.le.s32.totalorder 1, %s20
    %p354 = scmp.lt.s32.totalorder %s20, 3
    %p355 = pnand %p353, %p354
    %p356 = pneg %p355
    // Predicated region
    $region9: #{tsvit_forward.4} parent=5 // pred_check
      _
    $region10: #{tsvit_forward.4} parent=5 // pred_check_branch
      %358 = sbr.rel (%p355) target = $region12
    $region11: #{tsvit_forward.4} parent=5 // pred_region
      %s359 = ssub.s32 %s20, 1
      // Predicated region
      $region13: #{tsvit_forward.4} parent=11 // pred_check
        %p360 = pneg %p67
      $region14: #{tsvit_forward.4} parent=11 // pred_check_branch
        %362 = sbr.rel (%p360) target = $region16
      $region15: #{tsvit_forward.4} parent=11 // pred_region
        _
      $region16: #{tsvit_forward.4} parent=11 // pred_fallthru
        _
      // Predicated region
      $region17: #{tsvit_forward.4} parent=11 // pred_check
        %p363 = pneg %p88
      $region18: #{tsvit_forward.4} parent=11 // pred_check_branch
        %365 = sbr.rel (%p363) target = $region20
      $region19: #{tsvit_forward.4} parent=11 // pred_region
        _
      $region20: #{tsvit_forward.4} parent=11 // pred_fallthru
        _
      // Predicated region
      $region21: #{tsvit_forward.4} parent=11 // pred_check
        %p366 = pneg %p109
      $region22: #{tsvit_forward.4} parent=11 // pred_check_branch
        %368 = sbr.rel (%p366) target = $region24
      $region23: #{tsvit_forward.4} parent=11 // pred_region
        _
      $region24: #{tsvit_forward.4} parent=11 // pred_fallthru
        _
      // Predicated region
      $region25: #{tsvit_forward.4} parent=11 // pred_check
        %p369 = pneg %p130
      $region26: #{tsvit_forward.4} parent=11 // pred_check_branch
        %371 = sbr.rel (%p369) target = $region28
      $region27: #{tsvit_forward.4} parent=11 // pred_region
        _
      $region28: #{tsvit_forward.4} parent=11 // pred_fallthru
        _
      // Predicated region
      $region29: #{tsvit_forward.4} parent=11 // pred_check
        %p372 = pneg %p151
      $region30: #{tsvit_forward.4} parent=11 // pred_check_branch
        %374 = sbr.rel (%p372) target = $region32
      $region31: #{tsvit_forward.4} parent=11 // pred_region
        _
      $region32: #{tsvit_forward.4} parent=11 // pred_fallthru
        _
      // Predicated region
      $region33: #{tsvit_forward.4} parent=11 // pred_check
        %p375 = pneg %p172
      $region34: #{tsvit_forward.4} parent=11 // pred_check_branch
        %377 = sbr.rel (%p375) target = $region36
      $region35: #{tsvit_forward.4} parent=11 // pred_region
        _
      $region36: #{tsvit_forward.4} parent=11 // pred_fallthru
        _
      // Predicated region
      $region37: #{tsvit_forward.4} parent=11 // pred_check
        %p378 = pneg %p193
      $region38: #{tsvit_forward.4} parent=11 // pred_check_branch
        %380 = sbr.rel (%p378) target = $region40
      $region39: #{tsvit_forward.4} parent=11 // pred_region
        _
      $region40: #{tsvit_forward.4} parent=11 // pred_fallthru
        _
      // Predicated region
      $region41: #{tsvit_forward.4} parent=11 // pred_check
        %p381 = pneg %p214
      $region42: #{tsvit_forward.4} parent=11 // pred_check_branch
        %383 = sbr.rel (%p381) target = $region44
      $region43: #{tsvit_forward.4} parent=11 // pred_region
        _
      $region44: #{tsvit_forward.4} parent=11 // pred_fallthru
        _
      // Predicated region
      $region45: #{tsvit_forward.4} parent=11 // pred_check
        %p384 = pneg %p235
      $region46: #{tsvit_forward.4} parent=11 // pred_check_branch
        %386 = sbr.rel (%p384) target = $region48
      $region47: #{tsvit_forward.4} parent=11 // pred_region
        _
      $region48: #{tsvit_forward.4} parent=11 // pred_fallthru
        _
      // Predicated region
      $region49: #{tsvit_forward.4} parent=11 // pred_check
        %p387 = pneg %p256
      $region50: #{tsvit_forward.4} parent=11 // pred_check_branch
        %389 = sbr.rel (%p387) target = $region52
      $region51: #{tsvit_forward.4} parent=11 // pred_region
        _
      $region52: #{tsvit_forward.4} parent=11 // pred_fallthru
        _
      // Predicated region
      $region53: #{tsvit_forward.4} parent=11 // pred_check
        %p390 = pneg %p277
      $region54: #{tsvit_forward.4} parent=11 // pred_check_branch
        %392 = sbr.rel (%p390) target = $region56
      $region55: #{tsvit_forward.4} parent=11 // pred_region
        _
      $region56: #{tsvit_forward.4} parent=11 // pred_fallthru
        _
      // Predicated region
      $region57: #{tsvit_forward.4} parent=11 // pred_check
        %p393 = pneg %p298
      $region58: #{tsvit_forward.4} parent=11 // pred_check_branch
        %395 = sbr.rel (%p393) target = $region60
      $region59: #{tsvit_forward.4} parent=11 // pred_region
        _
      $region60: #{tsvit_forward.4} parent=11 // pred_fallthru
        _
      // Predicated region
      $region61: #{tsvit_forward.4} parent=11 // pred_check
        %p396 = pneg %p319
      $region62: #{tsvit_forward.4} parent=11 // pred_check_branch
        %398 = sbr.rel (%p396) target = $region64
      $region63: #{tsvit_forward.4} parent=11 // pred_region
        _
      $region64: #{tsvit_forward.4} parent=11 // pred_fallthru
        _
    $region12: #{tsvit_forward.4} parent=5 // pred_fallthru
      _
    %p399 = scmp.lt.s32.totalorder %s20, 2
    // Predicated region
    $region65: #{tsvit_forward.4} parent=5 // pred_check
      %p400 = pneg %p399
    $region66: #{tsvit_forward.4} parent=5 // pred_check_branch
      %402 = sbr.rel (%p400) target = $region68
    $region67: #{tsvit_forward.4} parent=5 // pred_region
      // Predicated region
      $region69: #{tsvit_forward.4} parent=67 // pred_check
        %p403 = pneg %p40
      $region70: #{tsvit_forward.4} parent=67 // pred_check_branch
        %405 = sbr.rel (%p403) target = $region72
      $region71: #{tsvit_forward.4} parent=67 // pred_region
        %s406 = smul.u32 4, %s20
        %p407 = scmp.lt.s32.totalorder %s406, 7
        %s408 = scalar_select %p407, %s406, 7
        %s409 = smul.addr %s408, 2
        %s410 = smul.addr %s409, 8
        %s411 = scalar_lea.vmem %s0, %s410
        %s412 = smul.u32 4, %s20
      $region72: #{tsvit_forward.4} parent=67 // pred_fallthru
        _
    $region68: #{tsvit_forward.4} parent=5 // pred_fallthru
      _
    %p413 = scmp.le.s32.totalorder 1, %s20
    %p414 = scmp.lt.s32.totalorder %s20, 3
    %p415 = pnand %p413, %p414
    %p416 = pneg %p415
    // Predicated region
    $region73: #{tsvit_forward.4} parent=5 // pred_check
      _
    $region74: #{tsvit_forward.4} parent=5 // pred_check_branch
      %418 = sbr.rel (%p415) target = $region76
    $region75: #{tsvit_forward.4} parent=5 // pred_region
      %s419 = ssub.s32 %s20, 1
      %s420 = smul.u32 4, %s25
      %p421 = scmp.lt.s32.totalorder %s420, 7
      %s422 = scalar_select %p421, %s420, 7
      %s423 = smul.addr %s422, 2
      %s424 = smul.addr %s423, 8
      %s425 = scalar_lea.vmem %s0, %s424
      %p426 = pneg %p46
      %p427 = pneg %p43
      %p428 = pneg %p67
      %p429 = pneg %p64
      %p430 = pneg %p88
      %p431 = pneg %p85
      %p432 = pneg %p109
      %p433 = pneg %p106
      %p434 = pneg %p130
      %p435 = pneg %p127
      %p436 = pneg %p151
      %p437 = pneg %p148
      %p438 = pneg %p172
      %p439 = pneg %p169
      %p440 = pneg %p193
      %p441 = pneg %p190
      %p442 = pneg %p214
      %p443 = pneg %p211
      %p444 = pneg %p235
      %p445 = pneg %p232
      %p446 = pneg %p256
      %p447 = pneg %p253
      %p448 = pneg %p277
      %p449 = pneg %p274
      %p450 = pneg %p298
      %p451 = pneg %p295
      %p452 = pneg %p319
      %p453 = pneg %p316
      %p454 = pneg %p345
      %p455 = pneg %p342
      %s456 = smul.u32 4, %s25
      %p457 = scmp.lt.s32.totalorder %s456, 7
      %s458 = scalar_select %p457, %s456, 7
      %s459 = smul.addr %s458, 4
      %s460 = scalar_lea.vmem %s14, %s459
      %s461 = smul.u32 4, %s25
      %p462 = scmp.lt.s32.totalorder %s461, 7
      %s463 = scalar_select %p462, %s461, 7
      %s464 = smul.addr %s463, 2
      %s465 = smul.addr %s464, 8
      %s466 = scalar_lea.vmem %s0, %s465
      %s467 = smul.u32 4, %s25
      %s468 = smul.u32 4, %s25
      %p469 = scmp.lt.s32.totalorder %s468, 7
      %s470 = scalar_select %p469, %s468, 7
      %s471 = smul.addr %s470, 4
      %s472 = scalar_lea.vmem %s14, %s471
      %s473 = smul.u32 4, %s25
      %v475 = vld [vmem:[%s466] sm:$0xff]
      %v476 = vld [vmem:[%s466 + $0x8] sm:$0xff]
      %v477 = vld [vmem:[%s466 + $0x10] sm:$0xff]
      %v478 = vld [vmem:[%s466 + $0x18] sm:$0xff]
      %v479 = vld [vmem:[%s466 + $0x20] sm:$0xff]
      %v480 = vld [vmem:[%s466 + $0x28] sm:$0xff]
      %v481 = vld [vmem:[%s466 + $0x30] sm:$0xff]
      %v482 = vld [vmem:[%s466 + $0x38] sm:$0xff]
      %v483 = vlaneseq
      %v484 = vand.u32 %v483, 127
      %vm485 = vcmp.lt.s32.totalorder %v484, 12
      %v486 = vsel %vm485, 0.0, -1e+30
      %v487 = vld [vmem:[%s1] sm:$0x1]
      %v488 = vld [vmem:[%s2] sm:$0x1]
      %vm489 = vcmask 261120
      %v490 = vsel %vm489, %v475, 0.0
      %491 = vadd.xlane.f32.xlu0 %v490
      %v492 = vpop.xlane.xlu0 %491
      %v493 = vsel %vm489, %v476, 0.0
      %494 = vadd.xlane.f32.xlu0 %v493
      %v495 = vpop.xlane.xlu0 %494
      %v496 = vsel %vm489, %v477, 0.0
      %497 = vadd.xlane.f32.xlu0 %v496
      %v498 = vpop.xlane.xlu0 %497
      %v499 = vsel %vm489, %v478, 0.0
      %500 = vadd.xlane.f32.xlu0 %v499
      %v501 = vpop.xlane.xlu0 %500
      %v502 = vsel %vm489, %v479, 0.0
      %503 = vadd.xlane.f32.xlu0 %v502
      %v504 = vpop.xlane.xlu0 %503
      %v505 = vsel %vm489, %v480, 0.0
      %506 = vadd.xlane.f32.xlu0 %v505
      %v507 = vpop.xlane.xlu0 %506
      %v508 = vsel %vm489, %v481, 0.0
      %509 = vadd.xlane.f32.xlu0 %v508
      %v510 = vpop.xlane.xlu0 %509
      %v511 = vsel %vm489, %v482, 0.0
      %512 = vadd.xlane.f32.xlu0 %v511
      %v513 = vpop.xlane.xlu0 %512
      %v514 = vrcp.pop 32.0
      %v515 = vmul.f32 %v492, %v514
      %v516 = vmul.f32 %v495, %v514
      %v517 = vmul.f32 %v498, %v514
      %v518 = vmul.f32 %v501, %v514
      %v519 = vmul.f32 %v504, %v514
      %v520 = vmul.f32 %v507, %v514
      %v521 = vmul.f32 %v510, %v514
      %v522 = vmul.f32 %v513, %v514
      %v523 = vsub.f32 %v475, %v515
      %v524 = vsub.f32 %v476, %v516
      %v525 = vsub.f32 %v477, %v517
      %v526 = vsub.f32 %v478, %v518
      %v527 = vsub.f32 %v479, %v519
      %v528 = vsub.f32 %v480, %v520
      %v529 = vsub.f32 %v481, %v521
      %v530 = vsub.f32 %v482, %v522
      %v531 = vmul.f32 %v523, %v523
      %v532 = vmul.f32 %v524, %v524
      %v533 = vmul.f32 %v525, %v525
      %v534 = vmul.f32 %v526, %v526
      %v535 = vmul.f32 %v527, %v527
      %v536 = vmul.f32 %v528, %v528
      %v537 = vmul.f32 %v529, %v529
      %v538 = vmul.f32 %v530, %v530
      %v539 = vsel %vm489, %v531, 0.0
      %540 = vadd.xlane.f32.xlu0 %v539
      %v541 = vpop.xlane.xlu0 %540
      %v542 = vsel %vm489, %v532, 0.0
      %543 = vadd.xlane.f32.xlu0 %v542
      %v544 = vpop.xlane.xlu0 %543
      %v545 = vsel %vm489, %v533, 0.0
      %546 = vadd.xlane.f32.xlu0 %v545
      %v547 = vpop.xlane.xlu0 %546
      %v548 = vsel %vm489, %v534, 0.0
      %549 = vadd.xlane.f32.xlu0 %v548
      %v550 = vpop.xlane.xlu0 %549
      %v551 = vsel %vm489, %v535, 0.0
      %552 = vadd.xlane.f32.xlu0 %v551
      %v553 = vpop.xlane.xlu0 %552
      %v554 = vsel %vm489, %v536, 0.0
      %555 = vadd.xlane.f32.xlu0 %v554
      %v556 = vpop.xlane.xlu0 %555
      %v557 = vsel %vm489, %v537, 0.0
      %558 = vadd.xlane.f32.xlu0 %v557
      %v559 = vpop.xlane.xlu0 %558
      %v560 = vsel %vm489, %v538, 0.0
      %561 = vadd.xlane.f32.xlu0 %v560
      %v562 = vpop.xlane.xlu0 %561
      %v563 = vmul.f32 %v541, %v514
      %v564 = vmul.f32 %v544, %v514
      %v565 = vmul.f32 %v547, %v514
      %v566 = vmul.f32 %v550, %v514
      %v567 = vmul.f32 %v553, %v514
      %v568 = vmul.f32 %v556, %v514
      %v569 = vmul.f32 %v559, %v514
      %v570 = vmul.f32 %v562, %v514
      %v571 = vadd.f32 %v563, 1e-05
      %v572 = vadd.f32 %v564, 1e-05
      %v573 = vadd.f32 %v565, 1e-05
      %v574 = vadd.f32 %v566, 1e-05
      %v575 = vadd.f32 %v567, 1e-05
      %v576 = vadd.f32 %v568, 1e-05
      %v577 = vadd.f32 %v569, 1e-05
      %v578 = vadd.f32 %v570, 1e-05
      %v579 = vrsqrt.pop %v571
      %v580 = vrsqrt.pop %v572
      %v581 = vrsqrt.pop %v573
      %v582 = vrsqrt.pop %v574
      %v583 = vrsqrt.pop %v575
      %v584 = vrsqrt.pop %v576
      %v585 = vrsqrt.pop %v577
      %v586 = vrsqrt.pop %v578
      %v587 = vmul.f32 %v523, %v579
      %v588 = vmul.f32 %v524, %v580
      %v589 = vmul.f32 %v525, %v581
      %v590 = vmul.f32 %v526, %v582
      %v591 = vmul.f32 %v527, %v583
      %v592 = vmul.f32 %v528, %v584
      %v593 = vmul.f32 %v529, %v585
      %v594 = vmul.f32 %v530, %v586
      %v596 = vlaneseq
      %v597 = vshrl.u32 %v596, 7
      %v598 = vsub.s32 0, %v597
      %v599 = vrot.slane %v487, %v598
      %v601 = vmul.f32 %v587, %v599
      %v602 = vmul.f32 %v588, %v599
      %v603 = vmul.f32 %v589, %v599
      %v604 = vmul.f32 %v590, %v599
      %v605 = vmul.f32 %v591, %v599
      %v606 = vmul.f32 %v592, %v599
      %v607 = vmul.f32 %v593, %v599
      %v608 = vmul.f32 %v594, %v599
      %v610 = vlaneseq
      %v611 = vshrl.u32 %v610, 7
      %v612 = vsub.s32 0, %v611
      %v613 = vrot.slane %v488, %v612
      %v615 = vadd.f32 %v601, %v613
      %v616 = vadd.f32 %v602, %v613
      %v617 = vadd.f32 %v603, %v613
      %v618 = vadd.f32 %v604, %v613
      %v619 = vadd.f32 %v605, %v613
      %v620 = vadd.f32 %v606, %v613
      %v621 = vadd.f32 %v607, %v613
      %v622 = vadd.f32 %v608, %v613
      %v623 = vpack.c.bf16 %v616, %v615
      %v624 = vpack.c.bf16 %v618, %v617
      %v625 = vpack.c.bf16 %v620, %v619
      %v626 = vpack.c.bf16 %v622, %v621
      %v627 = vld [vmem:[%s3] sm:$0xf]
      %v628 = vld [vmem:[%s3 + $0x4] sm:$0xf]
      %v629 = vld [vmem:[%s3 + $0x8] sm:$0xf]
      %v630 = vld [vmem:[%s3 + $0xc] sm:$0xf]
      %v635 = vunpack.c.l.b16 %v627
      %v636 = vunpack.c.l.b16 %v628
      %v637 = vunpack.c.l.b16 %v629
      %v638 = vunpack.c.l.b16 %v630
      %v639 = vpack.c.b16 %v636, %v635
      %v640 = vpack.c.b16 %v638, %v637
      %v644 = vsel %vm489, %v623, 0
      %v647 = vsel %vm489, %v624, 0
      %v650 = vsel %vm489, %v625, 0
      %v653 = vsel %vm489, %v626, 0
      %655 = vmatprep.subr.bf16.mxu0 0
      %656 = vmatpush1.bf16.msra.mxu0 %v639
      %657 = vmatprep.subr.bf16.mxu0 0
      %658 = vmatpush1.bf16.msra.mxu0 %v640
      %659 = vmatprep.subr.bf16.mxu0 0
      %660 = vmatpush1.bf16.msra.mxu0 0
      %661 = vmatprep.subr.bf16.mxu0 0
      %662 = vmatpush1.bf16.msra.mxu0 0
      %663 = vmatprep.subr.bf16.mxu0 0
      %664 = vmatpush1.bf16.msra.mxu0 0
      %665 = vmatprep.subr.bf16.mxu0 0
      %666 = vmatpush1.bf16.msra.mxu0 0
      %667 = vmatprep.subr.bf16.mxu0 0
      %668 = vmatpush1.bf16.msra.mxu0 0
      %669 = vmatprep.subr.bf16.mxu0 0
      %670 = vmatpush1.bf16.msra.mxu0 0
      %671 = vmatprep.subr.bf16.mxu0 0
      %672 = vmatpush1.bf16.msra.mxu0 0
      %673 = vmatprep.subr.bf16.mxu0 0
      %674 = vmatpush1.bf16.msra.mxu0 0
      %675 = vmatprep.subr.bf16.mxu0 0
      %676 = vmatpush1.bf16.msra.mxu0 0
      %677 = vmatprep.subr.bf16.mxu0 0
      %678 = vmatpush1.bf16.msra.mxu0 0
      %679 = vmatprep.subr.bf16.mxu0 0
      %680 = vmatpush1.bf16.msra.mxu0 0
      %681 = vmatprep.subr.bf16.mxu0 0
      %682 = vmatpush1.bf16.msra.mxu0 0
      %683 = vmatprep.subr.bf16.mxu0 0
      %684 = vmatpush1.bf16.msra.mxu0 0
      %685 = vmatprep.subr.bf16.mxu0 0
      %686 = vmatpush1.bf16.msra.mxu0 0
      %687 = vmatprep.mubr.bf16.mxu0 0
      %688 = vmatmul.mubr.bf16.gmra.mrb[0].mxu0 %v644
      %v689 = vpop.f32.mrb[0].mxu0
      %v690 = vadd.f32 0.0, %v689
      %v691 = vpop.f32.mrb[0].mxu0
      %v692 = vpop.f32.mrb[0].mxu0
      %v693 = vadd.f32 0.0, %v692
      %v694 = vpop.f32.mrb[0].mxu0
      %695 = vmatprep.mubr.bf16.mxu0 0
      %696 = vmatmul.mubr.bf16.gmra.mrb[0].mxu0 %v647
      %v697 = vpop.f32.mrb[0].mxu0
      %v698 = vadd.f32 0.0, %v697
      %v699 = vpop.f32.mrb[0].mxu0
      %v700 = vpop.f32.mrb[0].mxu0
      %v701 = vadd.f32 0.0, %v700
      %v702 = vpop.f32.mrb[0].mxu0
      %703 = vmatprep.mubr.bf16.mxu0 0
      %704 = vmatmul.mubr.bf16.gmra.mrb[0].mxu0 %v650
      %v705 = vpop.f32.mrb[0].mxu0
      %v706 = vadd.f32 0.0, %v705
      %v707 = vpop.f32.mrb[0].mxu0
      %v708 = vpop.f32.mrb[0].mxu0
      %v709 = vadd.f32 0.0, %v708
      %v710 = vpop.f32.mrb[0].mxu0
      %711 = vmatprep.mubr.bf16.mxu0 0
      %712 = vmatmul.mubr.bf16.gmra.mrb[0].mxu0 %v653
      %v713 = vpop.f32.mrb[0].mxu0
      %v714 = vadd.f32 0.0, %v713
      %v715 = vpop.f32.mrb[0].mxu0
      %v716 = vpop.f32.mrb[0].mxu0
      %v717 = vadd.f32 0.0, %v716
      %v718 = vpop.f32.mrb[0].mxu0
      %719 = vdwg.mxu0
      %v720 = vpack.c.bf16 %v693, %v690
      %v721 = vpack.c.bf16 %v701, %v698
      %v722 = vpack.c.bf16 %v709, %v706
      %v723 = vpack.c.bf16 %v717, %v714
      %725 = vrot.lane.b32.xlu0 %v720, 96
      %v726 = vpop.permute.xlu0 %725
      %vm727 = vcmask 130048
      %v729 = vsel %vm727, %v720, 0
      %v732 = vsel %vm727, %v726, 0
      %734 = vmatprep.subr.bf16.mxu0 0
      %735 = vmatpush1.bf16.xpose.msra.mxu0 %v732
      %736 = vmatprep.subr.bf16.mxu0 0
      %737 = vmatpush1.bf16.xpose.msra.mxu0 0
      %738 = vmatprep.subr.bf16.mxu0 0
      %739 = vmatpush1.bf16.xpose.msra.mxu0 0
      %740 = vmatprep.subr.bf16.mxu0 0
      %741 = vmatpush1.bf16.xpose.msra.mxu0 0
      %742 = vmatprep.subr.bf16.mxu0 0
      %743 = vmatpush1.bf16.xpose.msra.mxu0 0
      %744 = vmatprep.subr.bf16.mxu0 0
      %745 = vmatpush1.bf16.xpose.msra.mxu0 0
      %746 = vmatprep.subr.bf16.mxu0 0
      %747 = vmatpush1.bf16.xpose.msra.mxu0 0
      %748 = vmatprep.subr.bf16.mxu0 0
      %749 = vmatpush1.bf16.xpose.msra.mxu0 0
      %750 = vmatprep.subr.bf16.mxu0 0
      %751 = vmatpush1.bf16.xpose.msra.mxu0 0
      %752 = vmatprep.subr.bf16.mxu0 0
      %753 = vmatpush1.bf16.xpose.msra.mxu0 0
      %754 = vmatprep.subr.bf16.mxu0 0
      %755 = vmatpush1.bf16.xpose.msra.mxu0 0
      %756 = vmatprep.subr.bf16.mxu0 0
      %757 = vmatpush1.bf16.xpose.msra.mxu0 0
      %758 = vmatprep.subr.bf16.mxu0 0
      %759 = vmatpush1.bf16.xpose.msra.mxu0 0
      %760 = vmatprep.subr.bf16.mxu0 0
      %761 = vmatpush1.bf16.xpose.msra.mxu0 0
      %762 = vmatprep.subr.bf16.mxu0 0
      %763 = vmatpush1.bf16.xpose.msra.mxu0 0
      %764 = vmatprep.subr.bf16.mxu0 0
      %765 = vmatpush1.bf16.xpose.msra.mxu0 0
      %766 = vmatprep.mubr.bf16.mxu0 0
      %767 = vmatmul.mubr.bf16.gmra.mrb[0].mxu0 %v729
      %v768 = vpop.f32.mrb[0].mxu0
      %v769 = vadd.f32 0.0, %v768
      %v770 = vpop.f32.mrb[0].mxu0
      %v771 = vpop.f32.mrb[0].mxu0
      %v772 = vadd.f32 0.0, %v771
      %v773 = vpop.f32.mrb[0].mxu0
      %774 = vdwg.mxu0
      %776 = vrot.lane.b32.xlu0 %v721, 96
      %v777 = vpop.permute.xlu0 %776
      %v779 = vsel %vm727, %v721, 0
      %v782 = vsel %vm727, %v777, 0
      %784 = vmatprep.subr.bf16.mxu0 0
      %785 = vmatpush1.bf16.xpose.msra.mxu0 %v782
      %786 = vmatprep.subr.bf16.mxu0 0
      %787 = vmatpush1.bf16.xpose.msra.mxu0 0
      %788 = vmatprep.subr.bf16.mxu0 0
      %789 = vmatpush1.bf16.xpose.msra.mxu0 0
      %790 = vmatprep.subr.bf16.mxu0 0
      %791 = vmatpush1.bf16.xpose.msra.mxu0 0
      %792 = vmatprep.subr.bf16.mxu0 0
      %793 = vmatpush1.bf16.xpose.msra.mxu0 0
      %794 = vmatprep.subr.bf16.mxu0 0
      %795 = vmatpush1.bf16.xpose.msra.mxu0 0
      %796 = vmatprep.subr.bf16.mxu0 0
      %797 = vmatpush1.bf16.xpose.msra.mxu0 0
      %798 = vmatprep.subr.bf16.mxu0 0
      %799 = vmatpush1.bf16.xpose.msra.mxu0 0
      %800 = vmatprep.subr.bf16.mxu0 0
      %801 = vmatpush1.bf16.xpose.msra.mxu0 0
      %802 = vmatprep.subr.bf16.mxu0 0
      %803 = vmatpush1.bf16.xpose.msra.mxu0 0
      %804 = vmatprep.subr.bf16.mxu0 0
      %805 = vmatpush1.bf16.xpose.msra.mxu0 0
      %806 = vmatprep.subr.bf16.mxu0 0
      %807 = vmatpush1.bf16.xpose.msra.mxu0 0
      %808 = vmatprep.subr.bf16.mxu0 0
      %809 = vmatpush1.bf16.xpose.msra.mxu0 0
      %810 = vmatprep.subr.bf16.mxu0 0
      %811 = vmatpush1.bf16.xpose.msra.mxu0 0
      %812 = vmatprep.subr.bf16.mxu0 0
      %813 = vmatpush1.bf16.xpose.msra.mxu0 0
      %814 = vmatprep.subr.bf16.mxu0 0
      %815 = vmatpush1.bf16.xpose.msra.mxu0 0
      %816 = vmatprep.mubr.bf16.mxu0 0
      %817 = vmatmul.mubr.bf16.gmra.mrb[0].mxu0 %v779
      %v818 = vpop.f32.mrb[0].mxu0
      %v819 = vadd.f32 0.0, %v818
      %v820 = vpop.f32.mrb[0].mxu0
      %v821 = vpop.f32.mrb[0].mxu0
      %v822 = vadd.f32 0.0, %v821
      %v823 = vpop.f32.mrb[0].mxu0
      %824 = vdwg.mxu0
      %826 = vrot.lane.b32.xlu0 %v722, 96
      %v827 = vpop.permute.xlu0 %826
      %v829 = vsel %vm727, %v722, 0
      %v832 = vsel %vm727, %v827, 0
      %834 = vmatprep.subr.bf16.mxu0 0
      %835 = vmatpush1.bf16.xpose.msra.mxu0 %v832
      %836 = vmatprep.subr.bf16.mxu0 0
      %837 = vmatpush1.bf16.xpose.msra.mxu0 0
      %838 = vmatprep.subr.bf16.mxu0 0
      %839 = vmatpush1.bf16.xpose.msra.mxu0 0
      %840 = vmatprep.subr.bf16.mxu0 0
      %841 = vmatpush1.bf16.xpose.msra.mxu0 0
      %842 = vmatprep.subr.bf16.mxu0 0
      %843 = vmatpush1.bf16.xpose.msra.mxu0 0
      %844 = vmatprep.subr.bf16.mxu0 0
      %845 = vmatpush1.bf16.xpose.msra.mxu0 0
      %846 = vmatprep.subr.bf16.mxu0 0
      %847 = vmatpush1.bf16.xpose.msra.mxu0 0
      %848 = vmatprep.subr.bf16.mxu0 0
      %849 = vmatpush1.bf16.xpose.msra.mxu0 0
      %850 = vmatprep.subr.bf16.mxu0 0
      %851 = vmatpush1.bf16.xpose.msra.mxu0 0
      %852 = vmatprep.subr.bf16.mxu0 0
      %853 = vmatpush1.bf16.xpose.msra.mxu0 0
      %854 = vmatprep.subr.bf16.mxu0 0
      %855 = vmatpush1.bf16.xpose.msra.mxu0 0
      %856 = vmatprep.subr.bf16.mxu0 0
      %857 = vmatpush1.bf16.xpose.msra.mxu0 0
      %858 = vmatprep.subr.bf16.mxu0 0
      %859 = vmatpush1.bf16.xpose.msra.mxu0 0
      %860 = vmatprep.subr.bf16.mxu0 0
      %861 = vmatpush1.bf16.xpose.msra.mxu0 0
      %862 = vmatprep.subr.bf16.mxu0 0
      %863 = vmatpush1.bf16.xpose.msra.mxu0 0
      %864 = vmatprep.subr.bf16.mxu0 0
      %865 = vmatpush1.bf16.xpose.msra.mxu0 0
      %866 = vmatprep.mubr.bf16.mxu0 0
      %867 = vmatmul.mubr.bf16.gmra.mrb[0].mxu0 %v829
      %v868 = vpop.f32.mrb[0].mxu0
      %v869 = vadd.f32 0.0, %v868
      %v870 = vpop.f32.mrb[0].mxu0
      %v871 = vpop.f32.mrb[0].mxu0
      %v872 = vadd.f32 0.0, %v871
      %v873 = vpop.f32.mrb[0].mxu0
      %874 = vdwg.mxu0
      %876 = vrot.lane.b32.xlu0 %v723, 96
      %v877 = vpop.permute.xlu0 %876
      %v879 = vsel %vm727, %v723, 0
      %v882 = vsel %vm727, %v877, 0
      %884 = vmatprep.subr.bf16.mxu0 0
      %885 = vmatpush1.bf16.xpose.msra.mxu0 %v882
      %886 = vmatprep.subr.bf16.mxu0 0
      %887 = vmatpush1.bf16.xpose.msra.mxu0 0
      %888 = vmatprep.subr.bf16.mxu0 0
      %889 = vmatpush1.bf16.xpose.msra.mxu0 0
      %890 = vmatprep.subr.bf16.mxu0 0
      %891 = vmatpush1.bf16.xpose.msra.mxu0 0
      %892 = vmatprep.subr.bf16.mxu0 0
      %893 = vmatpush1.bf16.xpose.msra.mxu0 0
      %894 = vmatprep.subr.bf16.mxu0 0
      %895 = vmatpush1.bf16.xpose.msra.mxu0 0
      %896 = vmatprep.subr.bf16.mxu0 0
      %897 = vmatpush1.bf16.xpose.msra.mxu0 0
      %898 = vmatprep.subr.bf16.mxu0 0
      %899 = vmatpush1.bf16.xpose.msra.mxu0 0
      %900 = vmatprep.subr.bf16.mxu0 0
      %901 = vmatpush1.bf16.xpose.msra.mxu0 0
      %902 = vmatprep.subr.bf16.mxu0 0
      %903 = vmatpush1.bf16.xpose.msra.mxu0 0
      %904 = vmatprep.subr.bf16.mxu0 0
      %905 = vmatpush1.bf16.xpose.msra.mxu0 0
      %906 = vmatprep.subr.bf16.mxu0 0
      %907 = vmatpush1.bf16.xpose.msra.mxu0 0
      %908 = vmatprep.subr.bf16.mxu0 0
      %909 = vmatpush1.bf16.xpose.msra.mxu0 0
      %910 = vmatprep.subr.bf16.mxu0 0
      %911 = vmatpush1.bf16.xpose.msra.mxu0 0
      %912 = vmatprep.subr.bf16.mxu0 0
      %913 = vmatpush1.bf16.xpose.msra.mxu0 0
      %914 = vmatprep.subr.bf16.mxu0 0
      %915 = vmatpush1.bf16.xpose.msra.mxu0 0
      %916 = vmatprep.mubr.bf16.mxu0 0
      %917 = vmatmul.mubr.bf16.gmra.mrb[0].mxu0 %v879
      %v918 = vpop.f32.mrb[0].mxu0
      %v919 = vadd.f32 0.0, %v918
      %v920 = vpop.f32.mrb[0].mxu0
      %v921 = vpop.f32.mrb[0].mxu0
      %v922 = vadd.f32 0.0, %v921
      %v923 = vpop.f32.mrb[0].mxu0
      %924 = vdwg.mxu0
      %v925 = vmul.f32 %v769, 0.25
      %v926 = vmul.f32 %v772, 0.25
      %v927 = vmul.f32 %v819, 0.25
      %v928 = vmul.f32 %v822, 0.25
      %v929 = vmul.f32 %v869, 0.25
      %v930 = vmul.f32 %v872, 0.25
      %v931 = vmul.f32 %v919, 0.25
      %v932 = vmul.f32 %v922, 0.25
      %v933 = vadd.f32 %v925, %v486
      %v934 = vadd.f32 %v926, %v486
      %v935 = vadd.f32 %v927, %v486
      %v936 = vadd.f32 %v928, %v486
      %v937 = vadd.f32 %v929, %v486
      %v938 = vadd.f32 %v930, %v486
      %v939 = vadd.f32 %v931, %v486
      %v940 = vadd.f32 %v932, %v486
      %v941 = vsel %vm727, %v933, -inf
      %942 = vmax.xlane.f32.xlu0 %v941
      %v943 = vpop.xlane.xlu0 %942
      %v944 = vsel %vm727, %v934, -inf
      %945 = vmax.xlane.f32.xlu0 %v944
      %v946 = vpop.xlane.xlu0 %945
      %v947 = vsel %vm727, %v935, -inf
      %948 = vmax.xlane.f32.xlu0 %v947
      %v949 = vpop.xlane.xlu0 %948
      %v950 = vsel %vm727, %v936, -inf
      %951 = vmax.xlane.f32.xlu0 %v950
      %v952 = vpop.xlane.xlu0 %951
      %v953 = vsel %vm727, %v937, -inf
      %954 = vmax.xlane.f32.xlu0 %v953
      %v955 = vpop.xlane.xlu0 %954
      %v956 = vsel %vm727, %v938, -inf
      %957 = vmax.xlane.f32.xlu0 %v956
      %v958 = vpop.xlane.xlu0 %957
      %v959 = vsel %vm727, %v939, -inf
      %960 = vmax.xlane.f32.xlu0 %v959
      %v961 = vpop.xlane.xlu0 %960
      %v962 = vsel %vm727, %v940, -inf
      %963 = vmax.xlane.f32.xlu0 %v962
      %v964 = vpop.xlane.xlu0 %963
      %v965 = vsub.f32 %v933, %v943
      %v966 = vsub.f32 %v934, %v946
      %v967 = vsub.f32 %v935, %v949
      %v968 = vsub.f32 %v936, %v952
      %v969 = vsub.f32 %v937, %v955
      %v970 = vsub.f32 %v938, %v958
      %v971 = vsub.f32 %v939, %v961
      %v972 = vsub.f32 %v940, %v964
      %v973 = vmul.f32 %v965, 1.442695
      %v974 = vpow.pop %v973
      %v975 = vmul.f32 %v966, 1.442695
      %v976 = vpow.pop %v975
      %v977 = vmul.f32 %v967, 1.442695
      %v978 = vpow.pop %v977
      %v979 = vmul.f32 %v968, 1.442695
      %v980 = vpow.pop %v979
      %v981 = vmul.f32 %v969, 1.442695
      %v982 = vpow.pop %v981
      %v983 = vmul.f32 %v970, 1.442695
      %v984 = vpow.pop %v983
      %v985 = vmul.f32 %v971, 1.442695
      %v986 = vpow.pop %v985
      %v987 = vmul.f32 %v972, 1.442695
      %v988 = vpow.pop %v987
      %v989 = vsel %vm727, %v974, 0.0
      %990 = vadd.xlane.f32.xlu0 %v989
      %v991 = vpop.xlane.xlu0 %990
      %v992 = vsel %vm727, %v976, 0.0
      %993 = vadd.xlane.f32.xlu0 %v992
      %v994 = vpop.xlane.xlu0 %993
      %v995 = vsel %vm727, %v978, 0.0
      %996 = vadd.xlane.f32.xlu0 %v995
      %v997 = vpop.xlane.xlu0 %996
      %v998 = vsel %vm727, %v980, 0.0
      %999 = vadd.xlane.f32.xlu0 %v998
      %v1000 = vpop.xlane.xlu0 %999
      %v1001 = vsel %vm727, %v982, 0.0
      %1002 = vadd.xlane.f32.xlu0 %v1001
      %v1003 = vpop.xlane.xlu0 %1002
      %v1004 = vsel %vm727, %v984, 0.0
      %1005 = vadd.xlane.f32.xlu0 %v1004
      %v1006 = vpop.xlane.xlu0 %1005
      %v1007 = vsel %vm727, %v986, 0.0
      %1008 = vadd.xlane.f32.xlu0 %v1007
      %v1009 = vpop.xlane.xlu0 %1008
      %v1010 = vsel %vm727, %v988, 0.0
      %1011 = vadd.xlane.f32.xlu0 %v1010
      %v1012 = vpop.xlane.xlu0 %1011
      %v1013 = vrcp.pop %v991
      %v1014 = vrcp.pop %v994
      %v1015 = vrcp.pop %v997
      %v1016 = vrcp.pop %v1000
      %v1017 = vrcp.pop %v1003
      %v1018 = vrcp.pop %v1006
      %v1019 = vrcp.pop %v1009
      %v1020 = vrcp.pop %v1012
      %v1021 = vmul.f32 %v974, %v1013
      %v1022 = vmul.f32 %v976, %v1014
      %v1023 = vmul.f32 %v978, %v1015
      %v1024 = vmul.f32 %v980, %v1016
      %v1025 = vmul.f32 %v982, %v1017
      %v1026 = vmul.f32 %v984, %v1018
      %v1027 = vmul.f32 %v986, %v1019
      %v1028 = vmul.f32 %v988, %v1020
      %v1029 = vpack.c.bf16 %v1022, %v1021
      %v1030 = vpack.c.bf16 %v1024, %v1023
      %v1031 = vpack.c.bf16 %v1026, %v1025
      %v1032 = vpack.c.bf16 %v1028, %v1027
      %1033 = vrot.lane.b32.xlu0 %v720, 64
      %v1034 = vpop.permute.xlu0 %1033
      %v1037 = vsel %vm727, %v1029, 0
      %1039 = vmatprep.subr.bf16.mxu0 0
      %1040 = vmatpush1.bf16.msra.mxu0 %v1034
      %1041 = vmatprep.subr.bf16.mxu0 0
      %1042 = vmatpush1.bf16.msra.mxu0 0
      %1043 = vmatprep.subr.bf16.mxu0 0
      %1044 = vmatpush1.bf16.msra.mxu0 0
      %1045 = vmatprep.subr.bf16.mxu0 0
      %1046 = vmatpush1.bf16.msra.mxu0 0
      %1047 = vmatprep.subr.bf16.mxu0 0
      %1048 = vmatpush1.bf16.msra.mxu0 0
      %1049 = vmatprep.subr.bf16.mxu0 0
      %1050 = vmatpush1.bf16.msra.mxu0 0
      %1051 = vmatprep.subr.bf16.mxu0 0
      %1052 = vmatpush1.bf16.msra.mxu0 0
      %1053 = vmatprep.subr.bf16.mxu0 0
      %1054 = vmatpush1.bf16.msra.mxu0 0
      %1055 = vmatprep.subr.bf16.mxu0 0
      %1056 = vmatpush1.bf16.msra.mxu0 0
      %1057 = vmatprep.subr.bf16.mxu0 0
      %1058 = vmatpush1.bf16.msra.mxu0 0
      %1059 = vmatprep.subr.bf16.mxu0 0
      %1060 = vmatpush1.bf16.msra.mxu0 0
      %1061 = vmatprep.subr.bf16.mxu0 0
      %1062 = vmatpush1.bf16.msra.mxu0 0
      %1063 = vmatprep.subr.bf16.mxu0 0
      %1064 = vmatpush1.bf16.msra.mxu0 0
      %1065 = vmatprep.subr.bf16.mxu0 0
      %1066 = vmatpush1.bf16.msra.mxu0 0
      %1067 = vmatprep.subr.bf16.mxu0 0
      %1068 = vmatpush1.bf16.msra.mxu0 0
      %1069 = vmatprep.subr.bf16.mxu0 0
      %1070 = vmatpush1.bf16.msra.mxu0 0
      %1071 = vmatprep.mubr.bf16.mxu0 0
      %1072 = vmatmul.mubr.bf16.gmra.mrb[0].mxu0 %v1037
      %v1073 = vpop.f32.mrb[0].mxu0
      %v1074 = vadd.f32 0.0, %v1073
      %v1075 = vpop.f32.mrb[0].mxu0
      %v1076 = vpop.f32.mrb[0].mxu0
      %v1077 = vadd.f32 0.0, %v1076
      %v1078 = vpop.f32.mrb[0].mxu0
      %1079 = vdwg.mxu0
      %1080 = vrot.lane.b32.xlu0 %v721, 64
      %v1081 = vpop.permute.xlu0 %1080
      %v1084 = vsel %vm727, %v1030, 0
      %1086 = vmatprep.subr.bf16.mxu0 0
      %1087 = vmatpush1.bf16.msra.mxu0 %v1081
      %1088 = vmatprep.subr.bf16.mxu0 0
      %1089 = vmatpush1.bf16.msra.mxu0 0
      %1090 = vmatprep.subr.bf16.mxu0 0
      %1091 = vmatpush1.bf16.msra.mxu0 0
      %1092 = vmatprep.subr.bf16.mxu0 0
      %1093 = vmatpush1.bf16.msra.mxu0 0
      %1094 = vmatprep.subr.bf16.mxu0 0
      %1095 = vmatpush1.bf16.msra.mxu0 0
      %1096 = vmatprep.subr.bf16.mxu0 0
      %1097 = vmatpush1.bf16.msra.mxu0 0
      %1098 = vmatprep.subr.bf16.mxu0 0
      %1099 = vmatpush1.bf16.msra.mxu0 0
      %1100 = vmatprep.subr.bf16.mxu0 0
      %1101 = vmatpush1.bf16.msra.mxu0 0
      %1102 = vmatprep.subr.bf16.mxu0 0
      %1103 = vmatpush1.bf16.msra.mxu0 0
      %1104 = vmatprep.subr.bf16.mxu0 0
      %1105 = vmatpush1.bf16.msra.mxu0 0
      %1106 = vmatprep.subr.bf16.mxu0 0
      %1107 = vmatpush1.bf16.msra.mxu0 0
      %1108 = vmatprep.subr.bf16.mxu0 0
      %1109 = vmatpush1.bf16.msra.mxu0 0
      %1110 = vmatprep.subr.bf16.mxu0 0
      %1111 = vmatpush1.bf16.msra.mxu0 0
      %1112 = vmatprep.subr.bf16.mxu0 0
      %1113 = vmatpush1.bf16.msra.mxu0 0
      %1114 = vmatprep.subr.bf16.mxu0 0
      %1115 = vmatpush1.bf16.msra.mxu0 0
      %1116 = vmatprep.subr.bf16.mxu0 0
      %1117 = vmatpush1.bf16.msra.mxu0 0
      %1118 = vmatprep.mubr.bf16.mxu0 0
      %1119 = vmatmul.mubr.bf16.gmra.mrb[0].mxu0 %v1084
      %v1120 = vpop.f32.mrb[0].mxu0
      %v1121 = vadd.f32 0.0, %v1120
      %v1122 = vpop.f32.mrb[0].mxu0
      %v1123 = vpop.f32.mrb[0].mxu0
      %v1124 = vadd.f32 0.0, %v1123
      %v1125 = vpop.f32.mrb[0].mxu0
      %1126 = vdwg.mxu0
      %1127 = vrot.lane.b32.xlu0 %v722, 64
      %v1128 = vpop.permute.xlu0 %1127
      %v1131 = vsel %vm727, %v1031, 0
      %1133 = vmatprep.subr.bf16.mxu0 0
      %1134 = vmatpush1.bf16.msra.mxu0 %v1128
      %1135 = vmatprep.subr.bf16.mxu0 0
      %1136 = vmatpush1.bf16.msra.mxu0 0
      %1137 = vmatprep.subr.bf16.mxu0 0
      %1138 = vmatpush1.bf16.msra.mxu0 0
      %1139 = vmatprep.subr.bf16.mxu0 0
      %1140 = vmatpush1.bf16.msra.mxu0 0
      %1141 = vmatprep.subr.bf16.mxu0 0
      %1142 = vmatpush1.bf16.msra.mxu0 0
      %1143 = vmatprep.subr.bf16.mxu0 0
      %1144 = vmatpush1.bf16.msra.mxu0 0
      %1145 = vmatprep.subr.bf16.mxu0 0
      %1146 = vmatpush1.bf16.msra.mxu0 0
      %1147 = vmatprep.subr.bf16.mxu0 0
      %1148 = vmatpush1.bf16.msra.mxu0 0
      %1149 = vmatprep.subr.bf16.mxu0 0
      %1150 = vmatpush1.bf16.msra.mxu0 0
      %1151 = vmatprep.subr.bf16.mxu0 0
      %1152 = vmatpush1.bf16.msra.mxu0 0
      %1153 = vmatprep.subr.bf16.mxu0 0
      %1154 = vmatpush1.bf16.msra.mxu0 0
      %1155 = vmatprep.subr.bf16.mxu0 0
      %1156 = vmatpush1.bf16.msra.mxu0 0
      %1157 = vmatprep.subr.bf16.mxu0 0
      %1158 = vmatpush1.bf16.msra.mxu0 0
      %1159 = vmatprep.subr.bf16.mxu0 0
      %1160 = vmatpush1.bf16.msra.mxu0 0
      %1161 = vmatprep.subr.bf16.mxu0 0
      %1162 = vmatpush1.bf16.msra.mxu0 0
      %1163 = vmatprep.subr.bf16.mxu0 0
      %1164 = vmatpush1.bf16.msra.mxu0 0
      %1165 = vmatprep.mubr.bf16.mxu0 0
      %1166 = vmatmul.mubr.bf16.gmra.mrb[0].mxu0 %v1131
      %v1167 = vpop.f32.mrb[0].mxu0
      %v1168 = vadd.f32 0.0, %v1167
      %v1169 = vpop.f32.mrb[0].mxu0
      %v1170 = vpop.f32.mrb[0].mxu0
      %v1171 = vadd.f32 0.0, %v1170
      %v1172 = vpop.f32.mrb[0].mxu0
      %1173 = vdwg.mxu0
      %1174 = vrot.lane.b32.xlu0 %v723, 64
      %v1175 = vpop.permute.xlu0 %1174
      %v1178 = vsel %vm727, %v1032, 0
      %1180 = vmatprep.subr.bf16.mxu0 0
      %1181 = vmatpush1.bf16.msra.mxu0 %v1175
      %1182 = vmatprep.subr.bf16.mxu0 0
      %1183 = vmatpush1.bf16.msra.mxu0 0
      %1184 = vmatprep.subr.bf16.mxu0 0
      %1185 = vmatpush1.bf16.msra.mxu0 0
      %1186 = vmatprep.subr.bf16.mxu0 0
      %1187 = vmatpush1.bf16.msra.mxu0 0
      %1188 = vmatprep.subr.bf16.mxu0 0
      %1189 = vmatpush1.bf16.msra.mxu0 0
      %1190 = vmatprep.subr.bf16.mxu0 0
      %1191 = vmatpush1.bf16.msra.mxu0 0
      %1192 = vmatprep.subr.bf16.mxu0 0
      %1193 = vmatpush1.bf16.msra.mxu0 0
      %1194 = vmatprep.subr.bf16.mxu0 0
      %1195 = vmatpush1.bf16.msra.mxu0 0
      %1196 = vmatprep.subr.bf16.mxu0 0
      %1197 = vmatpush1.bf16.msra.mxu0 0
      %1198 = vmatprep.subr.bf16.mxu0 0
      %1199 = vmatpush1.bf16.msra.mxu0 0
      %1200 = vmatprep.subr.bf16.mxu0 0
      %1201 = vmatpush1.bf16.msra.mxu0 0
      %1202 = vmatprep.subr.bf16.mxu0 0
      %1203 = vmatpush1.bf16.msra.mxu0 0
      %1204 = vmatprep.subr.bf16.mxu0 0
      %1205 = vmatpush1.bf16.msra.mxu0 0
      %1206 = vmatprep.subr.bf16.mxu0 0
      %1207 = vmatpush1.bf16.msra.mxu0 0
      %1208 = vmatprep.subr.bf16.mxu0 0
      %1209 = vmatpush1.bf16.msra.mxu0 0
      %1210 = vmatprep.subr.bf16.mxu0 0
      %1211 = vmatpush1.bf16.msra.mxu0 0
      %1212 = vmatprep.mubr.bf16.mxu0 0
      %1213 = vmatmul.mubr.bf16.gmra.mrb[0].mxu0 %v1178
      %v1214 = vpop.f32.mrb[0].mxu0
      %v1215 = vadd.f32 0.0, %v1214
      %v1216 = vpop.f32.mrb[0].mxu0
      %v1217 = vpop.f32.mrb[0].mxu0
      %v1218 = vadd.f32 0.0, %v1217
      %v1219 = vpop.f32.mrb[0].mxu0
      %1220 = vdwg.mxu0
      %1221 = vrot.lane.b32.xlu0 %v720, 112
      %v1222 = vpop.permute.xlu0 %1221
      %1223 = vrot.lane.b32.xlu0 %v720, 80
      %v1224 = vpop.permute.xlu0 %1223
      %v1226 = vsel %vm727, %v1222, 0
      %v1229 = vsel %vm727, %v1224, 0
      %1231 = vmatprep.subr.bf16.mxu0 0
      %1232 = vmatpush1.bf16.xpose.msra.mxu0 %v1229
      %1233 = vmatprep.subr.bf16.mxu0 0
      %1234 = vmatpush1.bf16.xpose.msra.mxu0 0
      %1235 = vmatprep.subr.bf16.mxu0 0
      %1236 = vmatpush1.bf16.xpose.msra.mxu0 0
      %1237 = vmatprep.subr.bf16.mxu0 0
      %1238 = vmatpush1.bf16.xpose.msra.mxu0 0
      %1239 = vmatprep.subr.bf16.mxu0 0
      %1240 = vmatpush1.bf16.xpose.msra.mxu0 0
      %1241 = vmatprep.subr.bf16.mxu0 0
      %1242 = vmatpush1.bf16.xpose.msra.mxu0 0
      %1243 = vmatprep.subr.bf16.mxu0 0
      %1244 = vmatpush1.bf16.xpose.msra.mxu0 0
      %1245 = vmatprep.subr.bf16.mxu0 0
      %1246 = vmatpush1.bf16.xpose.msra.mxu0 0
      %1247 = vmatprep.subr.bf16.mxu0 0
      %1248 = vmatpush1.bf16.xpose.msra.mxu0 0
      %1249 = vmatprep.subr.bf16.mxu0 0
      %1250 = vmatpush1.bf16.xpose.msra.mxu0 0
      %1251 = vmatprep.subr.bf16.mxu0 0
      %1252 = vmatpush1.bf16.xpose.msra.mxu0 0
      %1253 = vmatprep.subr.bf16.mxu0 0
      %1254 = vmatpush1.bf16.xpose.msra.mxu0 0
      %1255 = vmatprep.subr.bf16.mxu0 0
      %1256 = vmatpush1.bf16.xpose.msra.mxu0 0
      %1257 = vmatprep.subr.bf16.mxu0 0
      %1258 = vmatpush1.bf16.xpose.msra.mxu0 0
      %1259 = vmatprep.subr.bf16.mxu0 0
      %1260 = vmatpush1.bf16.xpose.msra.mxu0 0
      %1261 = vmatprep.subr.bf16.mxu0 0
      %1262 = vmatpush1.bf16.xpose.msra.mxu0 0
      %1263 = vmatprep.mubr.bf16.mxu0 0
      %1264 = vmatmul.mubr.bf16.gmra.mrb[0].mxu0 %v1226
      %v1265 = vpop.f32.mrb[0].mxu0
      %v1266 = vadd.f32 0.0, %v1265
      %v1267 = vpop.f32.mrb[0].mxu0
      %v1268 = vpop.f32.mrb[0].mxu0
      %v1269 = vadd.f32 0.0, %v1268
      %v1270 = vpop.f32.mrb[0].mxu0
      %1271 = vdwg.mxu0
      %1272 = vrot.lane.b32.xlu0 %v721, 112
      %v1273 = vpop.permute.xlu0 %1272
      %1274 = vrot.lane.b32.xlu0 %v721, 80
      %v1275 = vpop.permute.xlu0 %1274
      %v1277 = vsel %vm727, %v1273, 0
      %v1280 = vsel %vm727, %v1275, 0
      %1282 = vmatprep.subr.bf16.mxu0 0
      %1283 = vmatpush1.bf16.xpose.msra.mxu0 %v1280
      %1284 = vmatprep.subr.bf16.mxu0 0
      %1285 = vmatpush1.bf16.xpose.msra.mxu0 0
      %1286 = vmatprep.subr.bf16.mxu0 0
      %1287 = vmatpush1.bf16.xpose.msra.mxu0 0
      %1288 = vmatprep.subr.bf16.mxu0 0
      %1289 = vmatpush1.bf16.xpose.msra.mxu0 0
      %1290 = vmatprep.subr.bf16.mxu0 0
      %1291 = vmatpush1.bf16.xpose.msra.mxu0 0
      %1292 = vmatprep.subr.bf16.mxu0 0
      %1293 = vmatpush1.bf16.xpose.msra.mxu0 0
      %1294 = vmatprep.subr.bf16.mxu0 0
      %1295 = vmatpush1.bf16.xpose.msra.mxu0 0
      %1296 = vmatprep.subr.bf16.mxu0 0
      %1297 = vmatpush1.bf16.xpose.msra.mxu0 0
      %1298 = vmatprep.subr.bf16.mxu0 0
      %1299 = vmatpush1.bf16.xpose.msra.mxu0 0
      %1300 = vmatprep.subr.bf16.mxu0 0
      %1301 = vmatpush1.bf16.xpose.msra.mxu0 0
      %1302 = vmatprep.subr.bf16.mxu0 0
      %1303 = vmatpush1.bf16.xpose.msra.mxu0 0
      %1304 = vmatprep.subr.bf16.mxu0 0
      %1305 = vmatpush1.bf16.xpose.msra.mxu0 0
      %1306 = vmatprep.subr.bf16.mxu0 0
      %1307 = vmatpush1.bf16.xpose.msra.mxu0 0
      %1308 = vmatprep.subr.bf16.mxu0 0
      %1309 = vmatpush1.bf16.xpose.msra.mxu0 0
      %1310 = vmatprep.subr.bf16.mxu0 0
      %1311 = vmatpush1.bf16.xpose.msra.mxu0 0
      %1312 = vmatprep.subr.bf16.mxu0 0
      %1313 = vmatpush1.bf16.xpose.msra.mxu0 0
      %1314 = vmatprep.mubr.bf16.mxu0 0
      %1315 = vmatmul.mubr.bf16.gmra.mrb[0].mxu0 %v1277
      %v1316 = vpop.f32.mrb[0].mxu0
      %v1317 = vadd.f32 0.0, %v1316
      %v1318 = vpop.f32.mrb[0].mxu0
      %v1319 = vpop.f32.mrb[0].mxu0
      %v1320 = vadd.f32 0.0, %v1319
      %v1321 = vpop.f32.mrb[0].mxu0
      %1322 = vdwg.mxu0
      %1323 = vrot.lane.b32.xlu0 %v722, 112
      %v1324 = vpop.permute.xlu0 %1323
      %1325 = vrot.lane.b32.xlu0 %v722, 80
      %v1326 = vpop.permute.xlu0 %1325
      %v1328 = vsel %vm727, %v1324, 0
      %v1331 = vsel %vm727, %v1326, 0
      %1333 = vmatprep.subr.bf16.mxu0 0
      %1334 = vmatpush1.bf16.xpose.msra.mxu0 %v1331
      %1335 = vmatprep.subr.bf16.mxu0 0
      %1336 = vmatpush1.bf16.xpose.msra.mxu0 0
      %1337 = vmatprep.subr.bf16.mxu0 0
      %1338 = vmatpush1.bf16.xpose.msra.mxu0 0
      %1339 = vmatprep.subr.bf16.mxu0 0
      %1340 = vmatpush1.bf16.xpose.msra.mxu0 0
      %1341 = vmatprep.subr.bf16.mxu0 0
      %1342 = vmatpush1.bf16.xpose.msra.mxu0 0
      %1343 = vmatprep.subr.bf16.mxu0 0
      %1344 = vmatpush1.bf16.xpose.msra.mxu0 0
      %1345 = vmatprep.subr.bf16.mxu0 0
      %1346 = vmatpush1.bf16.xpose.msra.mxu0 0
      %1347 = vmatprep.subr.bf16.mxu0 0
      %1348 = vmatpush1.bf16.xpose.msra.mxu0 0
      %1349 = vmatprep.subr.bf16.mxu0 0
      %1350 = vmatpush1.bf16.xpose.msra.mxu0 0
      %1351 = vmatprep.subr.bf16.mxu0 0
      %1352 = vmatpush1.bf16.xpose.msra.mxu0 0
      %1353 = vmatprep.subr.bf16.mxu0 0
      %1354 = vmatpush1.bf16.xpose.msra.mxu0 0
      %1355 = vmatprep.subr.bf16.mxu0 0
      %1356 = vmatpush1.bf16.xpose.msra.mxu0 0
      %1357 = vmatprep.subr.bf16.mxu0 0
      %1358 = vmatpush1.bf16.xpose.msra.mxu0 0
      %1359 = vmatprep.subr.bf16.mxu0 0
      %1360 = vmatpush1.bf16.xpose.msra.mxu0 0
      %1361 = vmatprep.subr.bf16.mxu0 0
      %1362 = vmatpush1.bf16.xpose.msra.mxu0 0
      %1363 = vmatprep.subr.bf16.mxu0 0
      %1364 = vmatpush1.bf16.xpose.msra.mxu0 0
      %1365 = vmatprep.mubr.bf16.mxu0 0
      %1366 = vmatmul.mubr.bf16.gmra.mrb[0].mxu0 %v1328
      %v1367 = vpop.f32.mrb[0].mxu0
      %v1368 = vadd.f32 0.0, %v1367
      %v1369 = vpop.f32.mrb[0].mxu0
      %v1370 = vpop.f32.mrb[0].mxu0
      %v1371 = vadd.f32 0.0, %v1370
      %v1372 = vpop.f32.mrb[0].mxu0
      %1373 = vdwg.mxu0
      %1374 = vrot.lane.b32.xlu0 %v723, 112
      %v1375 = vpop.permute.xlu0 %1374
      %1376 = vrot.lane.b32.xlu0 %v723, 80
      %v1377 = vpop.permute.xlu0 %1376
      %v1379 = vsel %vm727, %v1375, 0
      %v1382 = vsel %vm727, %v1377, 0
      %1384 = vmatprep.subr.bf16.mxu0 0
      %1385 = vmatpush1.bf16.xpose.msra.mxu0 %v1382
      %1386 = vmatprep.subr.bf16.mxu0 0
      %1387 = vmatpush1.bf16.xpose.msra.mxu0 0
      %1388 = vmatprep.subr.bf16.mxu0 0
      %1389 = vmatpush1.bf16.xpose.msra.mxu0 0
      %1390 = vmatprep.subr.bf16.mxu0 0
      %1391 = vmatpush1.bf16.xpose.msra.mxu0 0
      %1392 = vmatprep.subr.bf16.mxu0 0
      %1393 = vmatpush1.bf16.xpose.msra.mxu0 0
      %1394 = vmatprep.subr.bf16.mxu0 0
      %1395 = vmatpush1.bf16.xpose.msra.mxu0 0
      %1396 = vmatprep.subr.bf16.mxu0 0
      %1397 = vmatpush1.bf16.xpose.msra.mxu0 0
      %1398 = vmatprep.subr.bf16.mxu0 0
      %1399 = vmatpush1.bf16.xpose.msra.mxu0 0
      %1400 = vmatprep.subr.bf16.mxu0 0
      %1401 = vmatpush1.bf16.xpose.msra.mxu0 0
      %1402 = vmatprep.subr.bf16.mxu0 0
      %1403 = vmatpush1.bf16.xpose.msra.mxu0 0
      %1404 = vmatprep.subr.bf16.mxu0 0
      %1405 = vmatpush1.bf16.xpose.msra.mxu0 0
      %1406 = vmatprep.subr.bf16.mxu0 0
      %1407 = vmatpush1.bf16.xpose.msra.mxu0 0
      %1408 = vmatprep.subr.bf16.mxu0 0
      %1409 = vmatpush1.bf16.xpose.msra.mxu0 0
      %1410 = vmatprep.subr.bf16.mxu0 0
      %1411 = vmatpush1.bf16.xpose.msra.mxu0 0
      %1412 = vmatprep.subr.bf16.mxu0 0
      %1413 = vmatpush1.bf16.xpose.msra.mxu0 0
      %1414 = vmatprep.subr.bf16.mxu0 0
      %1415 = vmatpush1.bf16.xpose.msra.mxu0 0
      %1416 = vmatprep.mubr.bf16.mxu0 0
      %1417 = vmatmul.mubr.bf16.gmra.mrb[0].mxu0 %v1379
      %v1418 = vpop.f32.mrb[0].mxu0
      %v1419 = vadd.f32 0.0, %v1418
      %v1420 = vpop.f32.mrb[0].mxu0
      %v1421 = vpop.f32.mrb[0].mxu0
      %v1422 = vadd.f32 0.0, %v1421
      %v1423 = vpop.f32.mrb[0].mxu0
      %1424 = vdwg.mxu0
      %v1425 = vmul.f32 %v1266, 0.25
      %v1426 = vmul.f32 %v1269, 0.25
      %v1427 = vmul.f32 %v1317, 0.25
      %v1428 = vmul.f32 %v1320, 0.25
      %v1429 = vmul.f32 %v1368, 0.25
      %v1430 = vmul.f32 %v1371, 0.25
      %v1431 = vmul.f32 %v1419, 0.25
      %v1432 = vmul.f32 %v1422, 0.25
      %v1433 = vadd.f32 %v1425, %v486
      %v1434 = vadd.f32 %v1426, %v486
      %v1435 = vadd.f32 %v1427, %v486
      %v1436 = vadd.f32 %v1428, %v486
      %v1437 = vadd.f32 %v1429, %v486
      %v1438 = vadd.f32 %v1430, %v486
      %v1439 = vadd.f32 %v1431, %v486
      %v1440 = vadd.f32 %v1432, %v486
      %v1441 = vsel %vm727, %v1433, -inf
      %1442 = vmax.xlane.f32.xlu0 %v1441
      %v1443 = vpop.xlane.xlu0 %1442
      %v1444 = vsel %vm727, %v1434, -inf
      %1445 = vmax.xlane.f32.xlu0 %v1444
      %v1446 = vpop.xlane.xlu0 %1445
      %v1447 = vsel %vm727, %v1435, -inf
      %1448 = vmax.xlane.f32.xlu0 %v1447
      %v1449 = vpop.xlane.xlu0 %1448
      %v1450 = vsel %vm727, %v1436, -inf
      %1451 = vmax.xlane.f32.xlu0 %v1450
      %v1452 = vpop.xlane.xlu0 %1451
      %v1453 = vsel %vm727, %v1437, -inf
      %1454 = vmax.xlane.f32.xlu0 %v1453
      %v1455 = vpop.xlane.xlu0 %1454
      %v1456 = vsel %vm727, %v1438, -inf
      %1457 = vmax.xlane.f32.xlu0 %v1456
      %v1458 = vpop.xlane.xlu0 %1457
      %v1459 = vsel %vm727, %v1439, -inf
      %1460 = vmax.xlane.f32.xlu0 %v1459
      %v1461 = vpop.xlane.xlu0 %1460
      %v1462 = vsel %vm727, %v1440, -inf
      %1463 = vmax.xlane.f32.xlu0 %v1462
      %v1464 = vpop.xlane.xlu0 %1463
      %v1465 = vsub.f32 %v1433, %v1443
      %v1466 = vsub.f32 %v1434, %v1446
      %v1467 = vsub.f32 %v1435, %v1449
      %v1468 = vsub.f32 %v1436, %v1452
      %v1469 = vsub.f32 %v1437, %v1455
      %v1470 = vsub.f32 %v1438, %v1458
      %v1471 = vsub.f32 %v1439, %v1461
      %v1472 = vsub.f32 %v1440, %v1464
      %v1473 = vmul.f32 %v1465, 1.442695
      %v1474 = vpow.pop %v1473
      %v1475 = vmul.f32 %v1466, 1.442695
      %v1476 = vpow.pop %v1475
      %v1477 = vmul.f32 %v1467, 1.442695
      %v1478 = vpow.pop %v1477
      %v1479 = vmul.f32 %v1468, 1.442695
      %v1480 = vpow.pop %v1479
      %v1481 = vmul.f32 %v1469, 1.442695
      %v1482 = vpow.pop %v1481
      %v1483 = vmul.f32 %v1470, 1.442695
      %v1484 = vpow.pop %v1483
      %v1485 = vmul.f32 %v1471, 1.442695
      %v1486 = vpow.pop %v1485
      %v1487 = vmul.f32 %v1472, 1.442695
      %v1488 = vpow.pop %v1487
      %v1489 = vsel %vm727, %v1474, 0.0
      %1490 = vadd.xlane.f32.xlu0 %v1489
      %v1491 = vpop.xlane.xlu0 %1490
      %v1492 = vsel %vm727, %v1476, 0.0
      %1493 = vadd.xlane.f32.xlu0 %v1492
      %v1494 = vpop.xlane.xlu0 %1493
      %v1495 = vsel %vm727, %v1478, 0.0
      %1496 = vadd.xlane.f32.xlu0 %v1495
      %v1497 = vpop.xlane.xlu0 %1496
      %v1498 = vsel %vm727, %v1480, 0.0
      %1499 = vadd.xlane.f32.xlu0 %v1498
      %v1500 = vpop.xlane.xlu0 %1499
      %v1501 = vsel %vm727, %v1482, 0.0
      %1502 = vadd.xlane.f32.xlu0 %v1501
      %v1503 = vpop.xlane.xlu0 %1502
      %v1504 = vsel %vm727, %v1484, 0.0
      %1505 = vadd.xlane.f32.xlu0 %v1504
      %v1506 = vpop.xlane.xlu0 %1505
      %v1507 = vsel %vm727, %v1486, 0.0
      %1508 = vadd.xlane.f32.xlu0 %v1507
      %v1509 = vpop.xlane.xlu0 %1508
      %v1510 = vsel %vm727, %v1488, 0.0
      %1511 = vadd.xlane.f32.xlu0 %v1510
      %v1512 = vpop.xlane.xlu0 %1511
      %v1513 = vrcp.pop %v1491
      %v1514 = vrcp.pop %v1494
      %v1515 = vrcp.pop %v1497
      %v1516 = vrcp.pop %v1500
      %v1517 = vrcp.pop %v1503
      %v1518 = vrcp.pop %v1506
      %v1519 = vrcp.pop %v1509
      %v1520 = vrcp.pop %v1512
      %v1521 = vmul.f32 %v1474, %v1513
      %v1522 = vmul.f32 %v1476, %v1514
      %v1523 = vmul.f32 %v1478, %v1515
      %v1524 = vmul.f32 %v1480, %v1516
      %v1525 = vmul.f32 %v1482, %v1517
      %v1526 = vmul.f32 %v1484, %v1518
      %v1527 = vmul.f32 %v1486, %v1519
      %v1528 = vmul.f32 %v1488, %v1520
      %v1529 = vpack.c.bf16 %v1522, %v1521
      %v1530 = vpack.c.bf16 %v1524, %v1523
      %v1531 = vpack.c.bf16 %v1526, %v1525
      %v1532 = vpack.c.bf16 %v1528, %v1527
      %1533 = vrot.lane.b32.xlu0 %v720, 48
      %v1534 = vpop.permute.xlu0 %1533
      %v1537 = vsel %vm727, %v1529, 0
      %1539 = vmatprep.subr.bf16.mxu0 0
      %1540 = vmatpush1.bf16.msra.mxu0 %v1534
      %1541 = vmatprep.subr.bf16.mxu0 0
      %1542 = vmatpush1.bf16.msra.mxu0 0
      %1543 = vmatprep.subr.bf16.mxu0 0
      %1544 = vmatpush1.bf16.msra.mxu0 0
      %1545 = vmatprep.subr.bf16.mxu0 0
      %1546 = vmatpush1.bf16.msra.mxu0 0
      %1547 = vmatprep.subr.bf16.mxu0 0
      %1548 = vmatpush1.bf16.msra.mxu0 0
      %1549 = vmatprep.subr.bf16.mxu0 0
      %1550 = vmatpush1.bf16.msra.mxu0 0
      %1551 = vmatprep.subr.bf16.mxu0 0
      %1552 = vmatpush1.bf16.msra.mxu0 0
      %1553 = vmatprep.subr.bf16.mxu0 0
      %1554 = vmatpush1.bf16.msra.mxu0 0
      %1555 = vmatprep.subr.bf16.mxu0 0
      %1556 = vmatpush1.bf16.msra.mxu0 0
      %1557 = vmatprep.subr.bf16.mxu0 0
      %1558 = vmatpush1.bf16.msra.mxu0 0
      %1559 = vmatprep.subr.bf16.mxu0 0
      %1560 = vmatpush1.bf16.msra.mxu0 0
      %1561 = vmatprep.subr.bf16.mxu0 0
      %1562 = vmatpush1.bf16.msra.mxu0 0
      %1563 = vmatprep.subr.bf16.mxu0 0
      %1564 = vmatpush1.bf16.msra.mxu0 0
      %1565 = vmatprep.subr.bf16.mxu0 0
      %1566 = vmatpush1.bf16.msra.mxu0 0
      %1567 = vmatprep.subr.bf16.mxu0 0
      %1568 = vmatpush1.bf16.msra.mxu0 0
      %1569 = vmatprep.subr.bf16.mxu0 0
      %1570 = vmatpush1.bf16.msra.mxu0 0
      %1571 = vmatprep.mubr.bf16.mxu0 0
      %1572 = vmatmul.mubr.bf16.gmra.mrb[0].mxu0 %v1537
      %v1573 = vpop.f32.mrb[0].mxu0
      %v1574 = vadd.f32 0.0, %v1573
      %v1575 = vpop.f32.mrb[0].mxu0
      %v1576 = vpop.f32.mrb[0].mxu0
      %v1577 = vadd.f32 0.0, %v1576
      %v1578 = vpop.f32.mrb[0].mxu0
      %1579 = vdwg.mxu0
      %1580 = vrot.lane.b32.xlu0 %v721, 48
      %v1581 = vpop.permute.xlu0 %1580
      %v1584 = vsel %vm727, %v1530, 0
      %1586 = vmatprep.subr.bf16.mxu0 0
      %1587 = vmatpush1.bf16.msra.mxu0 %v1581
      %1588 = vmatprep.subr.bf16.mxu0 0
      %1589 = vmatpush1.bf16.msra.mxu0 0
      %1590 = vmatprep.subr.bf16.mxu0 0
      %1591 = vmatpush1.bf16.msra.mxu0 0
      %1592 = vmatprep.subr.bf16.mxu0 0
      %1593 = vmatpush1.bf16.msra.mxu0 0
      %1594 = vmatprep.subr.bf16.mxu0 0
      %1595 = vmatpush1.bf16.msra.mxu0 0
      %1596 = vmatprep.subr.bf16.mxu0 0
      %1597 = vmatpush1.bf16.msra.mxu0 0
      %1598 = vmatprep.subr.bf16.mxu0 0
      %1599 = vmatpush1.bf16.msra.mxu0 0
      %1600 = vmatprep.subr.bf16.mxu0 0
      %1601 = vmatpush1.bf16.msra.mxu0 0
      %1602 = vmatprep.subr.bf16.mxu0 0
      %1603 = vmatpush1.bf16.msra.mxu0 0
      %1604 = vmatprep.subr.bf16.mxu0 0
      %1605 = vmatpush1.bf16.msra.mxu0 0
      %1606 = vmatprep.subr.bf16.mxu0 0
      %1607 = vmatpush1.bf16.msra.mxu0 0
      %1608 = vmatprep.subr.bf16.mxu0 0
      %1609 = vmatpush1.bf16.msra.mxu0 0
      %1610 = vmatprep.subr.bf16.mxu0 0
      %1611 = vmatpush1.bf16.msra.mxu0 0
      %1612 = vmatprep.subr.bf16.mxu0 0
      %1613 = vmatpush1.bf16.msra.mxu0 0
      %1614 = vmatprep.subr.bf16.mxu0 0
      %1615 = vmatpush1.bf16.msra.mxu0 0
      %1616 = vmatprep.subr.bf16.mxu0 0
      %1617 = vmatpush1.bf16.msra.mxu0 0
      %1618 = vmatprep.mubr.bf16.mxu0 0
      %1619 = vmatmul.mubr.bf16.gmra.mrb[0].mxu0 %v1584
      %v1620 = vpop.f32.mrb[0].mxu0
      %v1621 = vadd.f32 0.0, %v1620
      %v1622 = vpop.f32.mrb[0].mxu0
      %v1623 = vpop.f32.mrb[0].mxu0
      %v1624 = vadd.f32 0.0, %v1623
      %v1625 = vpop.f32.mrb[0].mxu0
      %1626 = vdwg.mxu0
      %1627 = vrot.lane.b32.xlu0 %v722, 48
      %v1628 = vpop.permute.xlu0 %1627
      %v1631 = vsel %vm727, %v1531, 0
      %1633 = vmatprep.subr.bf16.mxu0 0
      %1634 = vmatpush1.bf16.msra.mxu0 %v1628
      %1635 = vmatprep.subr.bf16.mxu0 0
      %1636 = vmatpush1.bf16.msra.mxu0 0
      %1637 = vmatprep.subr.bf16.mxu0 0
      %1638 = vmatpush1.bf16.msra.mxu0 0
      %1639 = vmatprep.subr.bf16.mxu0 0
      %1640 = vmatpush1.bf16.msra.mxu0 0
      %1641 = vmatprep.subr.bf16.mxu0 0
      %1642 = vmatpush1.bf16.msra.mxu0 0
      %1643 = vmatprep.subr.bf16.mxu0 0
      %1644 = vmatpush1.bf16.msra.mxu0 0
      %1645 = vmatprep.subr.bf16.mxu0 0
      %1646 = vmatpush1.bf16.msra.mxu0 0
      %1647 = vmatprep.subr.bf16.mxu0 0
      %1648 = vmatpush1.bf16.msra.mxu0 0
      %1649 = vmatprep.subr.bf16.mxu0 0
      %1650 = vmatpush1.bf16.msra.mxu0 0
      %1651 = vmatprep.subr.bf16.mxu0 0
      %1652 = vmatpush1.bf16.msra.mxu0 0
      %1653 = vmatprep.subr.bf16.mxu0 0
      %1654 = vmatpush1.bf16.msra.mxu0 0
      %1655 = vmatprep.subr.bf16.mxu0 0
      %1656 = vmatpush1.bf16.msra.mxu0 0
      %1657 = vmatprep.subr.bf16.mxu0 0
      %1658 = vmatpush1.bf16.msra.mxu0 0
      %1659 = vmatprep.subr.bf16.mxu0 0
      %1660 = vmatpush1.bf16.msra.mxu0 0
      %1661 = vmatprep.subr.bf16.mxu0 0
      %1662 = vmatpush1.bf16.msra.mxu0 0
      %1663 = vmatprep.subr.bf16.mxu0 0
      %1664 = vmatpush1.bf16.msra.mxu0 0
      %1665 = vmatprep.mubr.bf16.mxu0 0
      %1666 = vmatmul.mubr.bf16.gmra.mrb[0].mxu0 %v1631
      %v1667 = vpop.f32.mrb[0].mxu0
      %v1668 = vadd.f32 0.0, %v1667
      %v1669 = vpop.f32.mrb[0].mxu0
      %v1670 = vpop.f32.mrb[0].mxu0
      %v1671 = vadd.f32 0.0, %v1670
      %v1672 = vpop.f32.mrb[0].mxu0
      %1673 = vdwg.mxu0
      %1674 = vrot.lane.b32.xlu0 %v723, 48
      %v1675 = vpop.permute.xlu0 %1674
      %v1678 = vsel %vm727, %v1532, 0
      %1680 = vmatprep.subr.bf16.mxu0 0
      %1681 = vmatpush1.bf16.msra.mxu0 %v1675
      %1682 = vmatprep.subr.bf16.mxu0 0
      %1683 = vmatpush1.bf16.msra.mxu0 0
      %1684 = vmatprep.subr.bf16.mxu0 0
      %1685 = vmatpush1.bf16.msra.mxu0 0
      %1686 = vmatprep.subr.bf16.mxu0 0
      %1687 = vmatpush1.bf16.msra.mxu0 0
      %1688 = vmatprep.subr.bf16.mxu0 0
      %1689 = vmatpush1.bf16.msra.mxu0 0
      %1690 = vmatprep.subr.bf16.mxu0 0
      %1691 = vmatpush1.bf16.msra.mxu0 0
      %1692 = vmatprep.subr.bf16.mxu0 0
      %1693 = vmatpush1.bf16.msra.mxu0 0
      %1694 = vmatprep.subr.bf16.mxu0 0
      %1695 = vmatpush1.bf16.msra.mxu0 0
      %1696 = vmatprep.subr.bf16.mxu0 0
      %1697 = vmatpush1.bf16.msra.mxu0 0
      %1698 = vmatprep.subr.bf16.mxu0 0
      %1699 = vmatpush1.bf16.msra.mxu0 0
      %1700 = vmatprep.subr.bf16.mxu0 0
      %1701 = vmatpush1.bf16.msra.mxu0 0
      %1702 = vmatprep.subr.bf16.mxu0 0
      %1703 = vmatpush1.bf16.msra.mxu0 0
      %1704 = vmatprep.subr.bf16.mxu0 0
      %1705 = vmatpush1.bf16.msra.mxu0 0
      %1706 = vmatprep.subr.bf16.mxu0 0
      %1707 = vmatpush1.bf16.msra.mxu0 0
      %1708 = vmatprep.subr.bf16.mxu0 0
      %1709 = vmatpush1.bf16.msra.mxu0 0
      %1710 = vmatprep.subr.bf16.mxu0 0
      %1711 = vmatpush1.bf16.msra.mxu0 0
      %1712 = vmatprep.mubr.bf16.mxu0 0
      %1713 = vmatmul.mubr.bf16.gmra.mrb[0].mxu0 %v1678
      %v1714 = vpop.f32.mrb[0].mxu0
      %v1715 = vadd.f32 0.0, %v1714
      %v1716 = vpop.f32.mrb[0].mxu0
      %v1717 = vpop.f32.mrb[0].mxu0
      %v1718 = vadd.f32 0.0, %v1717
      %v1719 = vpop.f32.mrb[0].mxu0
      %1720 = vdwg.mxu0
      %1729 = vrot.lane.b32.xlu0 %v1574, 16
      %v1730 = vpop.permute.xlu0 %1729
      %1731 = vrot.lane.b32.xlu0 %v1577, 16
      %v1732 = vpop.permute.xlu0 %1731
      %1733 = vrot.lane.b32.xlu0 %v1621, 16
      %v1734 = vpop.permute.xlu0 %1733
      %1735 = vrot.lane.b32.xlu0 %v1624, 16
      %v1736 = vpop.permute.xlu0 %1735
      %1737 = vrot.lane.b32.xlu0 %v1668, 16
      %v1738 = vpop.permute.xlu0 %1737
      %1739 = vrot.lane.b32.xlu0 %v1671, 16
      %v1740 = vpop.permute.xlu0 %1739
      %1741 = vrot.lane.b32.xlu0 %v1715, 16
      %v1742 = vpop.permute.xlu0 %1741
      %1743 = vrot.lane.b32.xlu0 %v1718, 16
      %v1744 = vpop.permute.xlu0 %1743
      %v1753 = vsel %vm727, %v1074, %v1730
      %v1754 = vsel %vm727, %v1077, %v1732
      %v1755 = vsel %vm727, %v1121, %v1734
      %v1756 = vsel %vm727, %v1124, %v1736
      %v1757 = vsel %vm727, %v1168, %v1738
      %v1758 = vsel %vm727, %v1171, %v1740
      %v1759 = vsel %vm727, %v1215, %v1742
      %v1760 = vsel %vm727, %v1218, %v1744
      %v1761 = vpack.c.bf16 %v1754, %v1753
      %v1762 = vpack.c.bf16 %v1756, %v1755
      %v1763 = vpack.c.bf16 %v1758, %v1757
      %v1764 = vpack.c.bf16 %v1760, %v1759
      %v1765 = vld [vmem:[%s4] sm:$0xf]
      %v1766 = vld [vmem:[%s4 + $0x4] sm:$0xf]
      %v1767 = vld [vmem:[%s4 + $0x8] sm:$0xf]
      %v1768 = vld [vmem:[%s4 + $0xc] sm:$0xf]
      %v1773 = vunpack.c.l.b16 %v1765
      %v1774 = vunpack.c.l.b16 %v1766
      %v1775 = vunpack.c.l.b16 %v1767
      %v1776 = vunpack.c.l.b16 %v1768
      %v1777 = vpack.c.b16 %v1774, %v1773
      %v1778 = vpack.c.b16 %v1776, %v1775
      %v1782 = vsel %vm489, %v1761, 0
      %v1785 = vsel %vm489, %v1762, 0
      %v1788 = vsel %vm489, %v1763, 0
      %v1791 = vsel %vm489, %v1764, 0
      %1793 = vmatprep.subr.bf16.mxu0 0
      %1794 = vmatpush1.bf16.msra.mxu0 %v1777
      %1795 = vmatprep.subr.bf16.mxu0 0
      %1796 = vmatpush1.bf16.msra.mxu0 %v1778
      %1797 = vmatprep.subr.bf16.mxu0 0
      %1798 = vmatpush1.bf16.msra.mxu0 0
      %1799 = vmatprep.subr.bf16.mxu0 0
      %1800 = vmatpush1.bf16.msra.mxu0 0
      %1801 = vmatprep.subr.bf16.mxu0 0
      %1802 = vmatpush1.bf16.msra.mxu0 0
      %1803 = vmatprep.subr.bf16.mxu0 0
      %1804 = vmatpush1.bf16.msra.mxu0 0
      %1805 = vmatprep.subr.bf16.mxu0 0
      %1806 = vmatpush1.bf16.msra.mxu0 0
      %1807 = vmatprep.subr.bf16.mxu0 0
      %1808 = vmatpush1.bf16.msra.mxu0 0
      %1809 = vmatprep.subr.bf16.mxu0 0
      %1810 = vmatpush1.bf16.msra.mxu0 0
      %1811 = vmatprep.subr.bf16.mxu0 0
      %1812 = vmatpush1.bf16.msra.mxu0 0
      %1813 = vmatprep.subr.bf16.mxu0 0
      %1814 = vmatpush1.bf16.msra.mxu0 0
      %1815 = vmatprep.subr.bf16.mxu0 0
      %1816 = vmatpush1.bf16.msra.mxu0 0
      %1817 = vmatprep.subr.bf16.mxu0 0
      %1818 = vmatpush1.bf16.msra.mxu0 0
      %1819 = vmatprep.subr.bf16.mxu0 0
      %1820 = vmatpush1.bf16.msra.mxu0 0
      %1821 = vmatprep.subr.bf16.mxu0 0
      %1822 = vmatpush1.bf16.msra.mxu0 0
      %1823 = vmatprep.subr.bf16.mxu0 0
      %1824 = vmatpush1.bf16.msra.mxu0 0
      %1825 = vmatprep.mubr.bf16.mxu0 0
      %1826 = vmatmul.mubr.bf16.gmra.mrb[0].mxu0 %v1782
      %v1827 = vpop.f32.mrb[0].mxu0
      %v1828 = vadd.f32 0.0, %v1827
      %v1829 = vpop.f32.mrb[0].mxu0
      %v1830 = vpop.f32.mrb[0].mxu0
      %v1831 = vadd.f32 0.0, %v1830
      %v1832 = vpop.f32.mrb[0].mxu0
      %1833 = vmatprep.mubr.bf16.mxu0 0
      %1834 = vmatmul.mubr.bf16.gmra.mrb[0].mxu0 %v1785
      %v1835 = vpop.f32.mrb[0].mxu0
      %v1836 = vadd.f32 0.0, %v1835
      %v1837 = vpop.f32.mrb[0].mxu0
      %v1838 = vpop.f32.mrb[0].mxu0
      %v1839 = vadd.f32 0.0, %v1838
      %v1840 = vpop.f32.mrb[0].mxu0
      %1841 = vmatprep.mubr.bf16.mxu0 0
      %1842 = vmatmul.mubr.bf16.gmra.mrb[0].mxu0 %v1788
      %v1843 = vpop.f32.mrb[0].mxu0
      %v1844 = vadd.f32 0.0, %v1843
      %v1845 = vpop.f32.mrb[0].mxu0
      %v1846 = vpop.f32.mrb[0].mxu0
      %v1847 = vadd.f32 0.0, %v1846
      %v1848 = vpop.f32.mrb[0].mxu0
      %1849 = vmatprep.mubr.bf16.mxu0 0
      %1850 = vmatmul.mubr.bf16.gmra.mrb[0].mxu0 %v1791
      %v1851 = vpop.f32.mrb[0].mxu0
      %v1852 = vadd.f32 0.0, %v1851
      %v1853 = vpop.f32.mrb[0].mxu0
      %v1854 = vpop.f32.mrb[0].mxu0
      %v1855 = vadd.f32 0.0, %v1854
      %v1856 = vpop.f32.mrb[0].mxu0
      %1857 = vdwg.mxu0
      %v1858 = vadd.f32 %v475, %v1828
      %v1859 = vadd.f32 %v476, %v1831
      %v1860 = vadd.f32 %v477, %v1836
      %v1861 = vadd.f32 %v478, %v1839
      %v1862 = vadd.f32 %v479, %v1844
      %v1863 = vadd.f32 %v480, %v1847
      %v1864 = vadd.f32 %v481, %v1852
      %v1865 = vadd.f32 %v482, %v1855
      %v1866 = vld [vmem:[%s5] sm:$0x1]
      %v1868 = vlaneseq
      %v1869 = vshrl.u32 %v1868, 7
      %v1870 = vsub.s32 0, %v1869
      %v1871 = vrot.slane %v1866, %v1870
      %v1873 = vadd.f32 %v1858, %v1871
      %v1874 = vadd.f32 %v1859, %v1871
      %v1875 = vadd.f32 %v1860, %v1871
      %v1876 = vadd.f32 %v1861, %v1871
      %v1877 = vadd.f32 %v1862, %v1871
      %v1878 = vadd.f32 %v1863, %v1871
      %v1879 = vadd.f32 %v1864, %v1871
      %v1880 = vadd.f32 %v1865, %v1871
      %v1881 = vld [vmem:[%s6] sm:$0x1]
      %v1882 = vld [vmem:[%s7] sm:$0x1]
      %v1883 = vsel %vm489, %v1873, 0.0
      %1884 = vadd.xlane.f32.xlu0 %v1883
      %v1885 = vpop.xlane.xlu0 %1884
      %v1886 = vsel %vm489, %v1874, 0.0
      %1887 = vadd.xlane.f32.xlu0 %v1886
      %v1888 = vpop.xlane.xlu0 %1887
      %v1889 = vsel %vm489, %v1875, 0.0
      %1890 = vadd.xlane.f32.xlu0 %v1889
      %v1891 = vpop.xlane.xlu0 %1890
      %v1892 = vsel %vm489, %v1876, 0.0
      %1893 = vadd.xlane.f32.xlu0 %v1892
      %v1894 = vpop.xlane.xlu0 %1893
      %v1895 = vsel %vm489, %v1877, 0.0
      %1896 = vadd.xlane.f32.xlu0 %v1895
      %v1897 = vpop.xlane.xlu0 %1896
      %v1898 = vsel %vm489, %v1878, 0.0
      %1899 = vadd.xlane.f32.xlu0 %v1898
      %v1900 = vpop.xlane.xlu0 %1899
      %v1901 = vsel %vm489, %v1879, 0.0
      %1902 = vadd.xlane.f32.xlu0 %v1901
      %v1903 = vpop.xlane.xlu0 %1902
      %v1904 = vsel %vm489, %v1880, 0.0
      %1905 = vadd.xlane.f32.xlu0 %v1904
      %v1906 = vpop.xlane.xlu0 %1905
      %v1907 = vmul.f32 %v1885, %v514
      %v1908 = vmul.f32 %v1888, %v514
      %v1909 = vmul.f32 %v1891, %v514
      %v1910 = vmul.f32 %v1894, %v514
      %v1911 = vmul.f32 %v1897, %v514
      %v1912 = vmul.f32 %v1900, %v514
      %v1913 = vmul.f32 %v1903, %v514
      %v1914 = vmul.f32 %v1906, %v514
      %v1915 = vsub.f32 %v1873, %v1907
      %v1916 = vsub.f32 %v1874, %v1908
      %v1917 = vsub.f32 %v1875, %v1909
      %v1918 = vsub.f32 %v1876, %v1910
      %v1919 = vsub.f32 %v1877, %v1911
      %v1920 = vsub.f32 %v1878, %v1912
      %v1921 = vsub.f32 %v1879, %v1913
      %v1922 = vsub.f32 %v1880, %v1914
      %v1923 = vmul.f32 %v1915, %v1915
      %v1924 = vmul.f32 %v1916, %v1916
      %v1925 = vmul.f32 %v1917, %v1917
      %v1926 = vmul.f32 %v1918, %v1918
      %v1927 = vmul.f32 %v1919, %v1919
      %v1928 = vmul.f32 %v1920, %v1920
      %v1929 = vmul.f32 %v1921, %v1921
      %v1930 = vmul.f32 %v1922, %v1922
      %v1931 = vsel %vm489, %v1923, 0.0
      %1932 = vadd.xlane.f32.xlu0 %v1931
      %v1933 = vpop.xlane.xlu0 %1932
      %v1934 = vsel %vm489, %v1924, 0.0
      %1935 = vadd.xlane.f32.xlu0 %v1934
      %v1936 = vpop.xlane.xlu0 %1935
      %v1937 = vsel %vm489, %v1925, 0.0
      %1938 = vadd.xlane.f32.xlu0 %v1937
      %v1939 = vpop.xlane.xlu0 %1938
      %v1940 = vsel %vm489, %v1926, 0.0
      %1941 = vadd.xlane.f32.xlu0 %v1940
      %v1942 = vpop.xlane.xlu0 %1941
      %v1943 = vsel %vm489, %v1927, 0.0
      %1944 = vadd.xlane.f32.xlu0 %v1943
      %v1945 = vpop.xlane.xlu0 %1944
      %v1946 = vsel %vm489, %v1928, 0.0
      %1947 = vadd.xlane.f32.xlu0 %v1946
      %v1948 = vpop.xlane.xlu0 %1947
      %v1949 = vsel %vm489, %v1929, 0.0
      %1950 = vadd.xlane.f32.xlu0 %v1949
      %v1951 = vpop.xlane.xlu0 %1950
      %v1952 = vsel %vm489, %v1930, 0.0
      %1953 = vadd.xlane.f32.xlu0 %v1952
      %v1954 = vpop.xlane.xlu0 %1953
      %v1955 = vmul.f32 %v1933, %v514
      %v1956 = vmul.f32 %v1936, %v514
      %v1957 = vmul.f32 %v1939, %v514
      %v1958 = vmul.f32 %v1942, %v514
      %v1959 = vmul.f32 %v1945, %v514
      %v1960 = vmul.f32 %v1948, %v514
      %v1961 = vmul.f32 %v1951, %v514
      %v1962 = vmul.f32 %v1954, %v514
      %v1963 = vadd.f32 %v1955, 1e-05
      %v1964 = vadd.f32 %v1956, 1e-05
      %v1965 = vadd.f32 %v1957, 1e-05
      %v1966 = vadd.f32 %v1958, 1e-05
      %v1967 = vadd.f32 %v1959, 1e-05
      %v1968 = vadd.f32 %v1960, 1e-05
      %v1969 = vadd.f32 %v1961, 1e-05
      %v1970 = vadd.f32 %v1962, 1e-05
      %v1971 = vrsqrt.pop %v1963
      %v1972 = vrsqrt.pop %v1964
      %v1973 = vrsqrt.pop %v1965
      %v1974 = vrsqrt.pop %v1966
      %v1975 = vrsqrt.pop %v1967
      %v1976 = vrsqrt.pop %v1968
      %v1977 = vrsqrt.pop %v1969
      %v1978 = vrsqrt.pop %v1970
      %v1979 = vmul.f32 %v1915, %v1971
      %v1980 = vmul.f32 %v1916, %v1972
      %v1981 = vmul.f32 %v1917, %v1973
      %v1982 = vmul.f32 %v1918, %v1974
      %v1983 = vmul.f32 %v1919, %v1975
      %v1984 = vmul.f32 %v1920, %v1976
      %v1985 = vmul.f32 %v1921, %v1977
      %v1986 = vmul.f32 %v1922, %v1978
      %v1988 = vlaneseq
      %v1989 = vshrl.u32 %v1988, 7
      %v1990 = vsub.s32 0, %v1989
      %v1991 = vrot.slane %v1881, %v1990
      %v1993 = vmul.f32 %v1979, %v1991
      %v1994 = vmul.f32 %v1980, %v1991
      %v1995 = vmul.f32 %v1981, %v1991
      %v1996 = vmul.f32 %v1982, %v1991
      %v1997 = vmul.f32 %v1983, %v1991
      %v1998 = vmul.f32 %v1984, %v1991
      %v1999 = vmul.f32 %v1985, %v1991
      %v2000 = vmul.f32 %v1986, %v1991
      %v2002 = vlaneseq
      %v2003 = vshrl.u32 %v2002, 7
      %v2004 = vsub.s32 0, %v2003
      %v2005 = vrot.slane %v1882, %v2004
      %v2007 = vadd.f32 %v1993, %v2005
      %v2008 = vadd.f32 %v1994, %v2005
      %v2009 = vadd.f32 %v1995, %v2005
      %v2010 = vadd.f32 %v1996, %v2005
      %v2011 = vadd.f32 %v1997, %v2005
      %v2012 = vadd.f32 %v1998, %v2005
      %v2013 = vadd.f32 %v1999, %v2005
      %v2014 = vadd.f32 %v2000, %v2005
      %v2015 = vpack.c.bf16 %v2008, %v2007
      %v2016 = vpack.c.bf16 %v2010, %v2009
      %v2017 = vpack.c.bf16 %v2012, %v2011
      %v2018 = vpack.c.bf16 %v2014, %v2013
      %v2019 = vld [vmem:[%s8] sm:$0xf]
      %v2020 = vld [vmem:[%s8 + $0x4] sm:$0xf]
      %v2021 = vld [vmem:[%s8 + $0x8] sm:$0xf]
      %v2022 = vld [vmem:[%s8 + $0xc] sm:$0xf]
      %v2023 = vld [vmem:[%s9] sm:$0x1]
      %v2025 = vlaneseq
      %v2026 = vshrl.u32 %v2025, 7
      %v2027 = vsub.s32 0, %v2026
      %v2028 = vrot.slane %v2023, %v2027
      %v2034 = vunpack.c.l.b16 %v2019
      %v2035 = vunpack.c.l.b16 %v2020
      %v2036 = vunpack.c.l.b16 %v2021
      %v2037 = vunpack.c.l.b16 %v2022
      %v2038 = vpack.c.b16 %v2035, %v2034
      %v2039 = vpack.c.b16 %v2037, %v2036
      %v2043 = vsel %vm489, %v2015, 0
      %v2046 = vsel %vm489, %v2016, 0
      %v2049 = vsel %vm489, %v2017, 0
      %v2052 = vsel %vm489, %v2018, 0
      %2054 = vmatprep.subr.bf16.mxu0 0
      %2055 = vmatpush1.bf16.msra.mxu0 %v2038
      %2056 = vmatprep.subr.bf16.mxu0 0
      %2057 = vmatpush1.bf16.msra.mxu0 %v2039
      %2058 = vmatprep.subr.bf16.mxu0 0
      %2059 = vmatpush1.bf16.msra.mxu0 0
      %2060 = vmatprep.subr.bf16.mxu0 0
      %2061 = vmatpush1.bf16.msra.mxu0 0
      %2062 = vmatprep.subr.bf16.mxu0 0
      %2063 = vmatpush1.bf16.msra.mxu0 0
      %2064 = vmatprep.subr.bf16.mxu0 0
      %2065 = vmatpush1.bf16.msra.mxu0 0
      %2066 = vmatprep.subr.bf16.mxu0 0
      %2067 = vmatpush1.bf16.msra.mxu0 0
      %2068 = vmatprep.subr.bf16.mxu0 0
      %2069 = vmatpush1.bf16.msra.mxu0 0
      %2070 = vmatprep.subr.bf16.mxu0 0
      %2071 = vmatpush1.bf16.msra.mxu0 0
      %2072 = vmatprep.subr.bf16.mxu0 0
      %2073 = vmatpush1.bf16.msra.mxu0 0
      %2074 = vmatprep.subr.bf16.mxu0 0
      %2075 = vmatpush1.bf16.msra.mxu0 0
      %2076 = vmatprep.subr.bf16.mxu0 0
      %2077 = vmatpush1.bf16.msra.mxu0 0
      %2078 = vmatprep.subr.bf16.mxu0 0
      %2079 = vmatpush1.bf16.msra.mxu0 0
      %2080 = vmatprep.subr.bf16.mxu0 0
      %2081 = vmatpush1.bf16.msra.mxu0 0
      %2082 = vmatprep.subr.bf16.mxu0 0
      %2083 = vmatpush1.bf16.msra.mxu0 0
      %2084 = vmatprep.subr.bf16.mxu0 0
      %2085 = vmatpush1.bf16.msra.mxu0 0
      %2086 = vmatprep.mubr.bf16.mxu0 0
      %2087 = vmatmul.mubr.bf16.gmra.mrb[0].mxu0 %v2043
      %v2088 = vpop.f32.mrb[0].mxu0
      %v2089 = vadd.f32 %v2028, %v2088
      %v2090 = vpop.f32.mrb[0].mxu0
      %v2091 = vpop.f32.mrb[0].mxu0
      %v2092 = vadd.f32 %v2028, %v2091
      %v2093 = vpop.f32.mrb[0].mxu0
      %2094 = vmatprep.mubr.bf16.mxu0 0
      %2095 = vmatmul.mubr.bf16.gmra.mrb[0].mxu0 %v2046
      %v2096 = vpop.f32.mrb[0].mxu0
      %v2097 = vadd.f32 %v2028, %v2096
      %v2098 = vpop.f32.mrb[0].mxu0
      %v2099 = vpop.f32.mrb[0].mxu0
      %v2100 = vadd.f32 %v2028, %v2099
      %v2101 = vpop.f32.mrb[0].mxu0
      %2102 = vmatprep.mubr.bf16.mxu0 0
      %2103 = vmatmul.mubr.bf16.gmra.mrb[0].mxu0 %v2049
      %v2104 = vpop.f32.mrb[0].mxu0
      %v2105 = vadd.f32 %v2028, %v2104
      %v2106 = vpop.f32.mrb[0].mxu0
      %v2107 = vpop.f32.mrb[0].mxu0
      %v2108 = vadd.f32 %v2028, %v2107
      %v2109 = vpop.f32.mrb[0].mxu0
      %2110 = vmatprep.mubr.bf16.mxu0 0
      %2111 = vmatmul.mubr.bf16.gmra.mrb[0].mxu0 %v2052
      %v2112 = vpop.f32.mrb[0].mxu0
      %v2113 = vadd.f32 %v2028, %v2112
      %v2114 = vpop.f32.mrb[0].mxu0
      %v2115 = vpop.f32.mrb[0].mxu0
      %v2116 = vadd.f32 %v2028, %v2115
      %v2117 = vpop.f32.mrb[0].mxu0
      %2118 = vdwg.mxu0
      %v2119 = vmul.f32 %v2089, 0.5
      %v2120 = vmul.f32 %v2092, 0.5
      %v2121 = vmul.f32 %v2097, 0.5
      %v2122 = vmul.f32 %v2100, 0.5
      %v2123 = vmul.f32 %v2105, 0.5
      %v2124 = vmul.f32 %v2108, 0.5
      %v2125 = vmul.f32 %v2113, 0.5
      %v2126 = vmul.f32 %v2116, 0.5
      %v2127 = vmul.f32 %v2089, 0.044715
      %v2128 = vmul.f32 %v2092, 0.044715
      %v2129 = vmul.f32 %v2097, 0.044715
      %v2130 = vmul.f32 %v2100, 0.044715
      %v2131 = vmul.f32 %v2105, 0.044715
      %v2132 = vmul.f32 %v2108, 0.044715
      %v2133 = vmul.f32 %v2113, 0.044715
      %v2134 = vmul.f32 %v2116, 0.044715
      %v2135 = vmul.f32 %v2127, %v2089
      %v2136 = vmul.f32 %v2128, %v2092
      %v2137 = vmul.f32 %v2129, %v2097
      %v2138 = vmul.f32 %v2130, %v2100
      %v2139 = vmul.f32 %v2131, %v2105
      %v2140 = vmul.f32 %v2132, %v2108
      %v2141 = vmul.f32 %v2133, %v2113
      %v2142 = vmul.f32 %v2134, %v2116
      %v2143 = vmul.f32 %v2135, %v2089
      %v2144 = vmul.f32 %v2136, %v2092
      %v2145 = vmul.f32 %v2137, %v2097
      %v2146 = vmul.f32 %v2138, %v2100
      %v2147 = vmul.f32 %v2139, %v2105
      %v2148 = vmul.f32 %v2140, %v2108
      %v2149 = vmul.f32 %v2141, %v2113
      %v2150 = vmul.f32 %v2142, %v2116
      %v2151 = vadd.f32 %v2089, %v2143
      %v2152 = vadd.f32 %v2092, %v2144
      %v2153 = vadd.f32 %v2097, %v2145
      %v2154 = vadd.f32 %v2100, %v2146
      %v2155 = vadd.f32 %v2105, %v2147
      %v2156 = vadd.f32 %v2108, %v2148
      %v2157 = vadd.f32 %v2113, %v2149
      %v2158 = vadd.f32 %v2116, %v2150
      %v2159 = vmul.f32 %v2151, 0.7978846
      %v2160 = vmul.f32 %v2152, 0.7978846
      %v2161 = vmul.f32 %v2153, 0.7978846
      %v2162 = vmul.f32 %v2154, 0.7978846
      %v2163 = vmul.f32 %v2155, 0.7978846
      %v2164 = vmul.f32 %v2156, 0.7978846
      %v2165 = vmul.f32 %v2157, 0.7978846
      %v2166 = vmul.f32 %v2158, 0.7978846
      %v2167 = vtanh.pop %v2159
      %v2168 = vtanh.pop %v2160
      %v2169 = vtanh.pop %v2161
      %v2170 = vtanh.pop %v2162
      %v2171 = vtanh.pop %v2163
      %v2172 = vtanh.pop %v2164
      %v2173 = vtanh.pop %v2165
      %v2174 = vtanh.pop %v2166
      %v2175 = vadd.f32 %v2167, 1.0
      %v2176 = vadd.f32 %v2168, 1.0
      %v2177 = vadd.f32 %v2169, 1.0
      %v2178 = vadd.f32 %v2170, 1.0
      %v2179 = vadd.f32 %v2171, 1.0
      %v2180 = vadd.f32 %v2172, 1.0
      %v2181 = vadd.f32 %v2173, 1.0
      %v2182 = vadd.f32 %v2174, 1.0
      %v2183 = vmul.f32 %v2119, %v2175
      %v2184 = vmul.f32 %v2120, %v2176
      %v2185 = vmul.f32 %v2121, %v2177
      %v2186 = vmul.f32 %v2122, %v2178
      %v2187 = vmul.f32 %v2123, %v2179
      %v2188 = vmul.f32 %v2124, %v2180
      %v2189 = vmul.f32 %v2125, %v2181
      %v2190 = vmul.f32 %v2126, %v2182
      %v2191 = vpack.c.bf16 %v2184, %v2183
      %v2192 = vpack.c.bf16 %v2186, %v2185
      %v2193 = vpack.c.bf16 %v2188, %v2187
      %v2194 = vpack.c.bf16 %v2190, %v2189
      %v2195 = vld [vmem:[%s10] sm:$0xf]
      %v2196 = vld [vmem:[%s10 + $0x4] sm:$0xf]
      %v2197 = vld [vmem:[%s10 + $0x8] sm:$0xf]
      %v2198 = vld [vmem:[%s10 + $0xc] sm:$0xf]
      %v2199 = vld [vmem:[%s10 + $0x10] sm:$0xf]
      %v2200 = vld [vmem:[%s10 + $0x14] sm:$0xf]
      %v2201 = vld [vmem:[%s10 + $0x18] sm:$0xf]
      %v2202 = vld [vmem:[%s10 + $0x1c] sm:$0xf]
      %v2203 = vld [vmem:[%s11] sm:$0x1]
      %v2205 = vlaneseq
      %v2206 = vshrl.u32 %v2205, 7
      %v2207 = vsub.s32 0, %v2206
      %v2208 = vrot.slane %v2203, %v2207
      %v2218 = vunpack.c.l.b16 %v2195
      %v2219 = vunpack.c.l.b16 %v2196
      %v2220 = vunpack.c.l.b16 %v2197
      %v2221 = vunpack.c.l.b16 %v2198
      %v2222 = vunpack.c.l.b16 %v2199
      %v2223 = vunpack.c.l.b16 %v2200
      %v2224 = vunpack.c.l.b16 %v2201
      %v2225 = vunpack.c.l.b16 %v2202
      %v2226 = vpack.c.b16 %v2219, %v2218
      %v2227 = vpack.c.b16 %v2221, %v2220
      %v2228 = vpack.c.b16 %v2223, %v2222
      %v2229 = vpack.c.b16 %v2225, %v2224
      %vm2234 = vcmask 523264
      %v2236 = vsel %vm2234, %v2191, 0
      %v2239 = vsel %vm2234, %v2192, 0
      %v2242 = vsel %vm2234, %v2193, 0
      %v2245 = vsel %vm2234, %v2194, 0
      %2247 = vmatprep.subr.bf16.mxu0 0
      %2248 = vmatpush1.bf16.msra.mxu0 %v2226
      %2249 = vmatprep.subr.bf16.mxu0 0
      %2250 = vmatpush1.bf16.msra.mxu0 %v2227
      %2251 = vmatprep.subr.bf16.mxu0 0
      %2252 = vmatpush1.bf16.msra.mxu0 %v2228
      %2253 = vmatprep.subr.bf16.mxu0 0
      %2254 = vmatpush1.bf16.msra.mxu0 %v2229
      %2255 = vmatprep.subr.bf16.mxu0 0
      %2256 = vmatpush1.bf16.msra.mxu0 0
      %2257 = vmatprep.subr.bf16.mxu0 0
      %2258 = vmatpush1.bf16.msra.mxu0 0
      %2259 = vmatprep.subr.bf16.mxu0 0
      %2260 = vmatpush1.bf16.msra.mxu0 0
      %2261 = vmatprep.subr.bf16.mxu0 0
      %2262 = vmatpush1.bf16.msra.mxu0 0
      %2263 = vmatprep.subr.bf16.mxu0 0
      %2264 = vmatpush1.bf16.msra.mxu0 0
      %2265 = vmatprep.subr.bf16.mxu0 0
      %2266 = vmatpush1.bf16.msra.mxu0 0
      %2267 = vmatprep.subr.bf16.mxu0 0
      %2268 = vmatpush1.bf16.msra.mxu0 0
      %2269 = vmatprep.subr.bf16.mxu0 0
      %2270 = vmatpush1.bf16.msra.mxu0 0
      %2271 = vmatprep.subr.bf16.mxu0 0
      %2272 = vmatpush1.bf16.msra.mxu0 0
      %2273 = vmatprep.subr.bf16.mxu0 0
      %2274 = vmatpush1.bf16.msra.mxu0 0
      %2275 = vmatprep.subr.bf16.mxu0 0
      %2276 = vmatpush1.bf16.msra.mxu0 0
      %2277 = vmatprep.subr.bf16.mxu0 0
      %2278 = vmatpush1.bf16.msra.mxu0 0
      %2279 = vmatprep.mubr.bf16.mxu0 0
      %2280 = vmatmul.mubr.bf16.gmra.mrb[0].mxu0 %v2236
      %v2281 = vpop.f32.mrb[0].mxu0
      %v2282 = vadd.f32 %v2208, %v2281
      %v2283 = vpop.f32.mrb[0].mxu0
      %v2284 = vpop.f32.mrb[0].mxu0
      %v2285 = vadd.f32 %v2208, %v2284
      %v2286 = vpop.f32.mrb[0].mxu0
      %2287 = vmatprep.mubr.bf16.mxu0 0
      %2288 = vmatmul.mubr.bf16.gmra.mrb[0].mxu0 %v2239
      %v2289 = vpop.f32.mrb[0].mxu0
      %v2290 = vadd.f32 %v2208, %v2289
      %v2291 = vpop.f32.mrb[0].mxu0
      %v2292 = vpop.f32.mrb[0].mxu0
      %v2293 = vadd.f32 %v2208, %v2292
      %v2294 = vpop.f32.mrb[0].mxu0
      %2295 = vmatprep.mubr.bf16.mxu0 0
      %2296 = vmatmul.mubr.bf16.gmra.mrb[0].mxu0 %v2242
      %v2297 = vpop.f32.mrb[0].mxu0
      %v2298 = vadd.f32 %v2208, %v2297
      %v2299 = vpop.f32.mrb[0].mxu0
      %v2300 = vpop.f32.mrb[0].mxu0
      %v2301 = vadd.f32 %v2208, %v2300
      %v2302 = vpop.f32.mrb[0].mxu0
      %2303 = vmatprep.mubr.bf16.mxu0 0
      %2304 = vmatmul.mubr.bf16.gmra.mrb[0].mxu0 %v2245
      %v2305 = vpop.f32.mrb[0].mxu0
      %v2306 = vadd.f32 %v2208, %v2305
      %v2307 = vpop.f32.mrb[0].mxu0
      %v2308 = vpop.f32.mrb[0].mxu0
      %v2309 = vadd.f32 %v2208, %v2308
      %v2310 = vpop.f32.mrb[0].mxu0
      %2311 = vdwg.mxu0
      %v2312 = vadd.f32 %v1873, %v2282
      %v2313 = vadd.f32 %v1874, %v2285
      %v2314 = vadd.f32 %v1875, %v2290
      %v2315 = vadd.f32 %v1876, %v2293
      %v2316 = vadd.f32 %v1877, %v2298
      %v2317 = vadd.f32 %v1878, %v2301
      %v2318 = vadd.f32 %v1879, %v2306
      %v2319 = vadd.f32 %v1880, %v2309
      %s2320 = scalar_lea.vmem %s1, 1
      %v2321 = vld [vmem:[%s2320] sm:$0x1]
      %s2322 = scalar_lea.vmem %s2, 1
      %v2323 = vld [vmem:[%s2322] sm:$0x1]
      %v2324 = vsel %vm489, %v2312, 0.0
      %2325 = vadd.xlane.f32.xlu0 %v2324
      %v2326 = vpop.xlane.xlu0 %2325
      %v2327 = vsel %vm489, %v2313, 0.0
      %2328 = vadd.xlane.f32.xlu0 %v2327
      %v2329 = vpop.xlane.xlu0 %2328
      %v2330 = vsel %vm489, %v2314, 0.0
      %2331 = vadd.xlane.f32.xlu0 %v2330
      %v2332 = vpop.xlane.xlu0 %2331
      %v2333 = vsel %vm489, %v2315, 0.0
      %2334 = vadd.xlane.f32.xlu0 %v2333
      %v2335 = vpop.xlane.xlu0 %2334
      %v2336 = vsel %vm489, %v2316, 0.0
      %2337 = vadd.xlane.f32.xlu0 %v2336
      %v2338 = vpop.xlane.xlu0 %2337
      %v2339 = vsel %vm489, %v2317, 0.0
      %2340 = vadd.xlane.f32.xlu0 %v2339
      %v2341 = vpop.xlane.xlu0 %2340
      %v2342 = vsel %vm489, %v2318, 0.0
      %2343 = vadd.xlane.f32.xlu0 %v2342
      %v2344 = vpop.xlane.xlu0 %2343
      %v2345 = vsel %vm489, %v2319, 0.0
      %2346 = vadd.xlane.f32.xlu0 %v2345
      %v2347 = vpop.xlane.xlu0 %2346
      %v2348 = vmul.f32 %v2326, %v514
      %v2349 = vmul.f32 %v2329, %v514
      %v2350 = vmul.f32 %v2332, %v514
      %v2351 = vmul.f32 %v2335, %v514
      %v2352 = vmul.f32 %v2338, %v514
      %v2353 = vmul.f32 %v2341, %v514
      %v2354 = vmul.f32 %v2344, %v514
      %v2355 = vmul.f32 %v2347, %v514
      %v2356 = vsub.f32 %v2312, %v2348
      %v2357 = vsub.f32 %v2313, %v2349
      %v2358 = vsub.f32 %v2314, %v2350
      %v2359 = vsub.f32 %v2315, %v2351
      %v2360 = vsub.f32 %v2316, %v2352
      %v2361 = vsub.f32 %v2317, %v2353
      %v2362 = vsub.f32 %v2318, %v2354
      %v2363 = vsub.f32 %v2319, %v2355
      %v2364 = vmul.f32 %v2356, %v2356
      %v2365 = vmul.f32 %v2357, %v2357
      %v2366 = vmul.f32 %v2358, %v2358
      %v2367 = vmul.f32 %v2359, %v2359
      %v2368 = vmul.f32 %v2360, %v2360
      %v2369 = vmul.f32 %v2361, %v2361
      %v2370 = vmul.f32 %v2362, %v2362
      %v2371 = vmul.f32 %v2363, %v2363
      %v2372 = vsel %vm489, %v2364, 0.0
      %2373 = vadd.xlane.f32.xlu0 %v2372
      %v2374 = vpop.xlane.xlu0 %2373
      %v2375 = vsel %vm489, %v2365, 0.0
      %2376 = vadd.xlane.f32.xlu0 %v2375
      %v2377 = vpop.xlane.xlu0 %2376
      %v2378 = vsel %vm489, %v2366, 0.0
      %2379 = vadd.xlane.f32.xlu0 %v2378
      %v2380 = vpop.xlane.xlu0 %2379
      %v2381 = vsel %vm489, %v2367, 0.0
      %2382 = vadd.xlane.f32.xlu0 %v2381
      %v2383 = vpop.xlane.xlu0 %2382
      %v2384 = vsel %vm489, %v2368, 0.0
      %2385 = vadd.xlane.f32.xlu0 %v2384
      %v2386 = vpop.xlane.xlu0 %2385
      %v2387 = vsel %vm489, %v2369, 0.0
      %2388 = vadd.xlane.f32.xlu0 %v2387
      %v2389 = vpop.xlane.xlu0 %2388
      %v2390 = vsel %vm489, %v2370, 0.0
      %2391 = vadd.xlane.f32.xlu0 %v2390
      %v2392 = vpop.xlane.xlu0 %2391
      %v2393 = vsel %vm489, %v2371, 0.0
      %2394 = vadd.xlane.f32.xlu0 %v2393
      %v2395 = vpop.xlane.xlu0 %2394
      %v2396 = vmul.f32 %v2374, %v514
      %v2397 = vmul.f32 %v2377, %v514
      %v2398 = vmul.f32 %v2380, %v514
      %v2399 = vmul.f32 %v2383, %v514
      %v2400 = vmul.f32 %v2386, %v514
      %v2401 = vmul.f32 %v2389, %v514
      %v2402 = vmul.f32 %v2392, %v514
      %v2403 = vmul.f32 %v2395, %v514
      %v2404 = vadd.f32 %v2396, 1e-05
      %v2405 = vadd.f32 %v2397, 1e-05
      %v2406 = vadd.f32 %v2398, 1e-05
      %v2407 = vadd.f32 %v2399, 1e-05
      %v2408 = vadd.f32 %v2400, 1e-05
      %v2409 = vadd.f32 %v2401, 1e-05
      %v2410 = vadd.f32 %v2402, 1e-05
      %v2411 = vadd.f32 %v2403, 1e-05
      %v2412 = vrsqrt.pop %v2404
      %v2413 = vrsqrt.pop %v2405
      %v2414 = vrsqrt.pop %v2406
      %v2415 = vrsqrt.pop %v2407
      %v2416 = vrsqrt.pop %v2408
      %v2417 = vrsqrt.pop %v2409
      %v2418 = vrsqrt.pop %v2410
      %v2419 = vrsqrt.pop %v2411
      %v2420 = vmul.f32 %v2356, %v2412
      %v2421 = vmul.f32 %v2357, %v2413
      %v2422 = vmul.f32 %v2358, %v2414
      %v2423 = vmul.f32 %v2359, %v2415
      %v2424 = vmul.f32 %v2360, %v2416
      %v2425 = vmul.f32 %v2361, %v2417
      %v2426 = vmul.f32 %v2362, %v2418
      %v2427 = vmul.f32 %v2363, %v2419
      %v2429 = vlaneseq
      %v2430 = vshrl.u32 %v2429, 7
      %v2431 = vsub.s32 0, %v2430
      %v2432 = vrot.slane %v2321, %v2431
      %v2434 = vmul.f32 %v2420, %v2432
      %v2435 = vmul.f32 %v2421, %v2432
      %v2436 = vmul.f32 %v2422, %v2432
      %v2437 = vmul.f32 %v2423, %v2432
      %v2438 = vmul.f32 %v2424, %v2432
      %v2439 = vmul.f32 %v2425, %v2432
      %v2440 = vmul.f32 %v2426, %v2432
      %v2441 = vmul.f32 %v2427, %v2432
      %v2443 = vlaneseq
      %v2444 = vshrl.u32 %v2443, 7
      %v2445 = vsub.s32 0, %v2444
      %v2446 = vrot.slane %v2323, %v2445
      %v2448 = vadd.f32 %v2434, %v2446
      %v2449 = vadd.f32 %v2435, %v2446
      %v2450 = vadd.f32 %v2436, %v2446
      %v2451 = vadd.f32 %v2437, %v2446
      %v2452 = vadd.f32 %v2438, %v2446
      %v2453 = vadd.f32 %v2439, %v2446
      %v2454 = vadd.f32 %v2440, %v2446
      %v2455 = vadd.f32 %v2441, %v2446
      %v2456 = vpack.c.bf16 %v2449, %v2448
      %v2457 = vpack.c.bf16 %v2451, %v2450
      %v2458 = vpack.c.bf16 %v2453, %v2452
      %v2459 = vpack.c.bf16 %v2455, %v2454
      %s2460 = scalar_lea.vmem %s3, 16
      %v2461 = vld [vmem:[%s2460] sm:$0xf]
      %v2462 = vld [vmem:[%s2460 + $0x4] sm:$0xf]
      %v2463 = vld [vmem:[%s2460 + $0x8] sm:$0xf]
      %v2464 = vld [vmem:[%s2460 + $0xc] sm:$0xf]
      %v2469 = vunpack.c.l.b16 %v2461
      %v2470 = vunpack.c.l.b16 %v2462
      %v2471 = vunpack.c.l.b16 %v2463
      %v2472 = vunpack.c.l.b16 %v2464
      %v2473 = vpack.c.b16 %v2470, %v2469
      %v2474 = vpack.c.b16 %v2472, %v2471
      %v2478 = vsel %vm489, %v2456, 0
      %v2481 = vsel %vm489, %v2457, 0
      %v2484 = vsel %vm489, %v2458, 0
      %v2487 = vsel %vm489, %v2459, 0
      %2489 = vmatprep.subr.bf16.mxu0 0
      %2490 = vmatpush1.bf16.msra.mxu0 %v2473
      %2491 = vmatprep.subr.bf16.mxu0 0
      %2492 = vmatpush1.bf16.msra.mxu0 %v2474
      %2493 = vmatprep.subr.bf16.mxu0 0
      %2494 = vmatpush1.bf16.msra.mxu0 0
      %2495 = vmatprep.subr.bf16.mxu0 0
      %2496 = vmatpush1.bf16.msra.mxu0 0
      %2497 = vmatprep.subr.bf16.mxu0 0
      %2498 = vmatpush1.bf16.msra.mxu0 0
      %2499 = vmatprep.subr.bf16.mxu0 0
      %2500 = vmatpush1.bf16.msra.mxu0 0
      %2501 = vmatprep.subr.bf16.mxu0 0
      %2502 = vmatpush1.bf16.msra.mxu0 0
      %2503 = vmatprep.subr.bf16.mxu0 0
      %2504 = vmatpush1.bf16.msra.mxu0 0
      %2505 = vmatprep.subr.bf16.mxu0 0
      %2506 = vmatpush1.bf16.msra.mxu0 0
      %2507 = vmatprep.subr.bf16.mxu0 0
      %2508 = vmatpush1.bf16.msra.mxu0 0
      %2509 = vmatprep.subr.bf16.mxu0 0
      %2510 = vmatpush1.bf16.msra.mxu0 0
      %2511 = vmatprep.subr.bf16.mxu0 0
      %2512 = vmatpush1.bf16.msra.mxu0 0
      %2513 = vmatprep.subr.bf16.mxu0 0
      %2514 = vmatpush1.bf16.msra.mxu0 0
      %2515 = vmatprep.subr.bf16.mxu0 0
      %2516 = vmatpush1.bf16.msra.mxu0 0
      %2517 = vmatprep.subr.bf16.mxu0 0
      %2518 = vmatpush1.bf16.msra.mxu0 0
      %2519 = vmatprep.subr.bf16.mxu0 0
      %2520 = vmatpush1.bf16.msra.mxu0 0
      %2521 = vmatprep.mubr.bf16.mxu0 0
      %2522 = vmatmul.mubr.bf16.gmra.mrb[0].mxu0 %v2478
      %v2523 = vpop.f32.mrb[0].mxu0
      %v2524 = vadd.f32 0.0, %v2523
      %v2525 = vpop.f32.mrb[0].mxu0
      %v2526 = vpop.f32.mrb[0].mxu0
      %v2527 = vadd.f32 0.0, %v2526
      %v2528 = vpop.f32.mrb[0].mxu0
      %2529 = vmatprep.mubr.bf16.mxu0 0
      %2530 = vmatmul.mubr.bf16.gmra.mrb[0].mxu0 %v2481
      %v2531 = vpop.f32.mrb[0].mxu0
      %v2532 = vadd.f32 0.0, %v2531
      %v2533 = vpop.f32.mrb[0].mxu0
      %v2534 = vpop.f32.mrb[0].mxu0
      %v2535 = vadd.f32 0.0, %v2534
      %v2536 = vpop.f32.mrb[0].mxu0
      %2537 = vmatprep.mubr.bf16.mxu0 0
      %2538 = vmatmul.mubr.bf16.gmra.mrb[0].mxu0 %v2484
      %v2539 = vpop.f32.mrb[0].mxu0
      %v2540 = vadd.f32 0.0, %v2539
      %v2541 = vpop.f32.mrb[0].mxu0
      %v2542 = vpop.f32.mrb[0].mxu0
      %v2543 = vadd.f32 0.0, %v2542
      %v2544 = vpop.f32.mrb[0].mxu0
      %2545 = vmatprep.mubr.bf16.mxu0 0
      %2546 = vmatmul.mubr.bf16.gmra.mrb[0].mxu0 %v2487
      %v2547 = vpop.f32.mrb[0].mxu0
      %v2548 = vadd.f32 0.0, %v2547
      %v2549 = vpop.f32.mrb[0].mxu0
      %v2550 = vpop.f32.mrb[0].mxu0
      %v2551 = vadd.f32 0.0, %v2550
      %v2552 = vpop.f32.mrb[0].mxu0
      %2553 = vdwg.mxu0
      %v2554 = vpack.c.bf16 %v2527, %v2524
      %v2555 = vpack.c.bf16 %v2535, %v2532
      %v2556 = vpack.c.bf16 %v2543, %v2540
      %v2557 = vpack.c.bf16 %v2551, %v2548
      %2559 = vrot.lane.b32.xlu0 %v2554, 96
      %v2560 = vpop.permute.xlu0 %2559
      %v2562 = vsel %vm727, %v2554, 0
      %v2565 = vsel %vm727, %v2560, 0
      %2567 = vmatprep.subr.bf16.mxu0 0
      %2568 = vmatpush1.bf16.xpose.msra.mxu0 %v2565
      %2569 = vmatprep.subr.bf16.mxu0 0
      %2570 = vmatpush1.bf16.xpose.msra.mxu0 0
      %2571 = vmatprep.subr.bf16.mxu0 0
      %2572 = vmatpush1.bf16.xpose.msra.mxu0 0
      %2573 = vmatprep.subr.bf16.mxu0 0
      %2574 = vmatpush1.bf16.xpose.msra.mxu0 0
      %2575 = vmatprep.subr.bf16.mxu0 0
      %2576 = vmatpush1.bf16.xpose.msra.mxu0 0
      %2577 = vmatprep.subr.bf16.mxu0 0
      %2578 = vmatpush1.bf16.xpose.msra.mxu0 0
      %2579 = vmatprep.subr.bf16.mxu0 0
      %2580 = vmatpush1.bf16.xpose.msra.mxu0 0
      %2581 = vmatprep.subr.bf16.mxu0 0
      %2582 = vmatpush1.bf16.xpose.msra.mxu0 0
      %2583 = vmatprep.subr.bf16.mxu0 0
      %2584 = vmatpush1.bf16.xpose.msra.mxu0 0
      %2585 = vmatprep.subr.bf16.mxu0 0
      %2586 = vmatpush1.bf16.xpose.msra.mxu0 0
      %2587 = vmatprep.subr.bf16.mxu0 0
      %2588 = vmatpush1.bf16.xpose.msra.mxu0 0
      %2589 = vmatprep.subr.bf16.mxu0 0
      %2590 = vmatpush1.bf16.xpose.msra.mxu0 0
      %2591 = vmatprep.subr.bf16.mxu0 0
      %2592 = vmatpush1.bf16.xpose.msra.mxu0 0
      %2593 = vmatprep.subr.bf16.mxu0 0
      %2594 = vmatpush1.bf16.xpose.msra.mxu0 0
      %2595 = vmatprep.subr.bf16.mxu0 0
      %2596 = vmatpush1.bf16.xpose.msra.mxu0 0
      %2597 = vmatprep.subr.bf16.mxu0 0
      %2598 = vmatpush1.bf16.xpose.msra.mxu0 0
      %2599 = vmatprep.mubr.bf16.mxu0 0
      %2600 = vmatmul.mubr.bf16.gmra.mrb[0].mxu0 %v2562
      %v2601 = vpop.f32.mrb[0].mxu0
      %v2602 = vadd.f32 0.0, %v2601
      %v2603 = vpop.f32.mrb[0].mxu0
      %v2604 = vpop.f32.mrb[0].mxu0
      %v2605 = vadd.f32 0.0, %v2604
      %v2606 = vpop.f32.mrb[0].mxu0
      %2607 = vdwg.mxu0
      %2609 = vrot.lane.b32.xlu0 %v2555, 96
      %v2610 = vpop.permute.xlu0 %2609
      %v2612 = vsel %vm727, %v2555, 0
      %v2615 = vsel %vm727, %v2610, 0
      %2617 = vmatprep.subr.bf16.mxu0 0
      %2618 = vmatpush1.bf16.xpose.msra.mxu0 %v2615
      %2619 = vmatprep.subr.bf16.mxu0 0
      %2620 = vmatpush1.bf16.xpose.msra.mxu0 0
      %2621 = vmatprep.subr.bf16.mxu0 0
      %2622 = vmatpush1.bf16.xpose.msra.mxu0 0
      %2623 = vmatprep.subr.bf16.mxu0 0
      %2624 = vmatpush1.bf16.xpose.msra.mxu0 0
      %2625 = vmatprep.subr.bf16.mxu0 0
      %2626 = vmatpush1.bf16.xpose.msra.mxu0 0
      %2627 = vmatprep.subr.bf16.mxu0 0
      %2628 = vmatpush1.bf16.xpose.msra.mxu0 0
      %2629 = vmatprep.subr.bf16.mxu0 0
      %2630 = vmatpush1.bf16.xpose.msra.mxu0 0
      %2631 = vmatprep.subr.bf16.mxu0 0
      %2632 = vmatpush1.bf16.xpose.msra.mxu0 0
      %2633 = vmatprep.subr.bf16.mxu0 0
      %2634 = vmatpush1.bf16.xpose.msra.mxu0 0
      %2635 = vmatprep.subr.bf16.mxu0 0
      %2636 = vmatpush1.bf16.xpose.msra.mxu0 0
      %2637 = vmatprep.subr.bf16.mxu0 0
      %2638 = vmatpush1.bf16.xpose.msra.mxu0 0
      %2639 = vmatprep.subr.bf16.mxu0 0
      %2640 = vmatpush1.bf16.xpose.msra.mxu0 0
      %2641 = vmatprep.subr.bf16.mxu0 0
      %2642 = vmatpush1.bf16.xpose.msra.mxu0 0
      %2643 = vmatprep.subr.bf16.mxu0 0
      %2644 = vmatpush1.bf16.xpose.msra.mxu0 0
      %2645 = vmatprep.subr.bf16.mxu0 0
      %2646 = vmatpush1.bf16.xpose.msra.mxu0 0
      %2647 = vmatprep.subr.bf16.mxu0 0
      %2648 = vmatpush1.bf16.xpose.msra.mxu0 0
      %2649 = vmatprep.mubr.bf16.mxu0 0
      %2650 = vmatmul.mubr.bf16.gmra.mrb[0].mxu0 %v2612
      %v2651 = vpop.f32.mrb[0].mxu0
      %v2652 = vadd.f32 0.0, %v2651
      %v2653 = vpop.f32.mrb[0].mxu0
      %v2654 = vpop.f32.mrb[0].mxu0
      %v2655 = vadd.f32 0.0, %v2654
      %v2656 = vpop.f32.mrb[0].mxu0
      %2657 = vdwg.mxu0
      %2659 = vrot.lane.b32.xlu0 %v2556, 96
      %v2660 = vpop.permute.xlu0 %2659
      %v2662 = vsel %vm727, %v2556, 0
      %v2665 = vsel %vm727, %v2660, 0
      %2667 = vmatprep.subr.bf16.mxu0 0
      %2668 = vmatpush1.bf16.xpose.msra.mxu0 %v2665
      %2669 = vmatprep.subr.bf16.mxu0 0
      %2670 = vmatpush1.bf16.xpose.msra.mxu0 0
      %2671 = vmatprep.subr.bf16.mxu0 0
      %2672 = vmatpush1.bf16.xpose.msra.mxu0 0
      %2673 = vmatprep.subr.bf16.mxu0 0
      %2674 = vmatpush1.bf16.xpose.msra.mxu0 0
      %2675 = vmatprep.subr.bf16.mxu0 0
      %2676 = vmatpush1.bf16.xpose.msra.mxu0 0
      %2677 = vmatprep.subr.bf16.mxu0 0
      %2678 = vmatpush1.bf16.xpose.msra.mxu0 0
      %2679 = vmatprep.subr.bf16.mxu0 0
      %2680 = vmatpush1.bf16.xpose.msra.mxu0 0
      %2681 = vmatprep.subr.bf16.mxu0 0
      %2682 = vmatpush1.bf16.xpose.msra.mxu0 0
      %2683 = vmatprep.subr.bf16.mxu0 0
      %2684 = vmatpush1.bf16.xpose.msra.mxu0 0
      %2685 = vmatprep.subr.bf16.mxu0 0
      %2686 = vmatpush1.bf16.xpose.msra.mxu0 0
      %2687 = vmatprep.subr.bf16.mxu0 0
      %2688 = vmatpush1.bf16.xpose.msra.mxu0 0
      %2689 = vmatprep.subr.bf16.mxu0 0
      %2690 = vmatpush1.bf16.xpose.msra.mxu0 0
      %2691 = vmatprep.subr.bf16.mxu0 0
      %2692 = vmatpush1.bf16.xpose.msra.mxu0 0
      %2693 = vmatprep.subr.bf16.mxu0 0
      %2694 = vmatpush1.bf16.xpose.msra.mxu0 0
      %2695 = vmatprep.subr.bf16.mxu0 0
      %2696 = vmatpush1.bf16.xpose.msra.mxu0 0
      %2697 = vmatprep.subr.bf16.mxu0 0
      %2698 = vmatpush1.bf16.xpose.msra.mxu0 0
      %2699 = vmatprep.mubr.bf16.mxu0 0
      %2700 = vmatmul.mubr.bf16.gmra.mrb[0].mxu0 %v2662
      %v2701 = vpop.f32.mrb[0].mxu0
      %v2702 = vadd.f32 0.0, %v2701
      %v2703 = vpop.f32.mrb[0].mxu0
      %v2704 = vpop.f32.mrb[0].mxu0
      %v2705 = vadd.f32 0.0, %v2704
      %v2706 = vpop.f32.mrb[0].mxu0
      %2707 = vdwg.mxu0
      %2709 = vrot.lane.b32.xlu0 %v2557, 96
      %v2710 = vpop.permute.xlu0 %2709
      %v2712 = vsel %vm727, %v2557, 0
      %v2715 = vsel %vm727, %v2710, 0
      %2717 = vmatprep.subr.bf16.mxu0 0
      %2718 = vmatpush1.bf16.xpose.msra.mxu0 %v2715
      %2719 = vmatprep.subr.bf16.mxu0 0
      %2720 = vmatpush1.bf16.xpose.msra.mxu0 0
      %2721 = vmatprep.subr.bf16.mxu0 0
      %2722 = vmatpush1.bf16.xpose.msra.mxu0 0
      %2723 = vmatprep.subr.bf16.mxu0 0
      %2724 = vmatpush1.bf16.xpose.msra.mxu0 0
      %2725 = vmatprep.subr.bf16.mxu0 0
      %2726 = vmatpush1.bf16.xpose.msra.mxu0 0
      %2727 = vmatprep.subr.bf16.mxu0 0
      %2728 = vmatpush1.bf16.xpose.msra.mxu0 0
      %2729 = vmatprep.subr.bf16.mxu0 0
      %2730 = vmatpush1.bf16.xpose.msra.mxu0 0
      %2731 = vmatprep.subr.bf16.mxu0 0
      %2732 = vmatpush1.bf16.xpose.msra.mxu0 0
      %2733 = vmatprep.subr.bf16.mxu0 0
      %2734 = vmatpush1.bf16.xpose.msra.mxu0 0
      %2735 = vmatprep.subr.bf16.mxu0 0
      %2736 = vmatpush1.bf16.xpose.msra.mxu0 0
      %2737 = vmatprep.subr.bf16.mxu0 0
      %2738 = vmatpush1.bf16.xpose.msra.mxu0 0
      %2739 = vmatprep.subr.bf16.mxu0 0
      %2740 = vmatpush1.bf16.xpose.msra.mxu0 0
      %2741 = vmatprep.subr.bf16.mxu0 0
      %2742 = vmatpush1.bf16.xpose.msra.mxu0 0
      %2743 = vmatprep.subr.bf16.mxu0 0
      %2744 = vmatpush1.bf16.xpose.msra.mxu0 0
      %2745 = vmatprep.subr.bf16.mxu0 0
      %2746 = vmatpush1.bf16.xpose.msra.mxu0 0
      %2747 = vmatprep.subr.bf16.mxu0 0
      %2748 = vmatpush1.bf16.xpose.msra.mxu0 0
      %2749 = vmatprep.mubr.bf16.mxu0 0
      %2750 = vmatmul.mubr.bf16.gmra.mrb[0].mxu0 %v2712
      %v2751 = vpop.f32.mrb[0].mxu0
      %v2752 = vadd.f32 0.0, %v2751
      %v2753 = vpop.f32.mrb[0].mxu0
      %v2754 = vpop.f32.mrb[0].mxu0
      %v2755 = vadd.f32 0.0, %v2754
      %v2756 = vpop.f32.mrb[0].mxu0
      %2757 = vdwg.mxu0
      %v2758 = vmul.f32 %v2602, 0.25
      %v2759 = vmul.f32 %v2605, 0.25
      %v2760 = vmul.f32 %v2652, 0.25
      %v2761 = vmul.f32 %v2655, 0.25
      %v2762 = vmul.f32 %v2702, 0.25
      %v2763 = vmul.f32 %v2705, 0.25
      %v2764 = vmul.f32 %v2752, 0.25
      %v2765 = vmul.f32 %v2755, 0.25
      %v2766 = vadd.f32 %v2758, %v486
      %v2767 = vadd.f32 %v2759, %v486
      %v2768 = vadd.f32 %v2760, %v486
      %v2769 = vadd.f32 %v2761, %v486
      %v2770 = vadd.f32 %v2762, %v486
      %v2771 = vadd.f32 %v2763, %v486
      %v2772 = vadd.f32 %v2764, %v486
      %v2773 = vadd.f32 %v2765, %v486
      %v2774 = vsel %vm727, %v2766, -inf
      %2775 = vmax.xlane.f32.xlu0 %v2774
      %v2776 = vpop.xlane.xlu0 %2775
      %v2777 = vsel %vm727, %v2767, -inf
      %2778 = vmax.xlane.f32.xlu0 %v2777
      %v2779 = vpop.xlane.xlu0 %2778
      %v2780 = vsel %vm727, %v2768, -inf
      %2781 = vmax.xlane.f32.xlu0 %v2780
      %v2782 = vpop.xlane.xlu0 %2781
      %v2783 = vsel %vm727, %v2769, -inf
      %2784 = vmax.xlane.f32.xlu0 %v2783
      %v2785 = vpop.xlane.xlu0 %2784
      %v2786 = vsel %vm727, %v2770, -inf
      %2787 = vmax.xlane.f32.xlu0 %v2786
      %v2788 = vpop.xlane.xlu0 %2787
      %v2789 = vsel %vm727, %v2771, -inf
      %2790 = vmax.xlane.f32.xlu0 %v2789
      %v2791 = vpop.xlane.xlu0 %2790
      %v2792 = vsel %vm727, %v2772, -inf
      %2793 = vmax.xlane.f32.xlu0 %v2792
      %v2794 = vpop.xlane.xlu0 %2793
      %v2795 = vsel %vm727, %v2773, -inf
      %2796 = vmax.xlane.f32.xlu0 %v2795
      %v2797 = vpop.xlane.xlu0 %2796
      %v2798 = vsub.f32 %v2766, %v2776
      %v2799 = vsub.f32 %v2767, %v2779
      %v2800 = vsub.f32 %v2768, %v2782
      %v2801 = vsub.f32 %v2769, %v2785
      %v2802 = vsub.f32 %v2770, %v2788
      %v2803 = vsub.f32 %v2771, %v2791
      %v2804 = vsub.f32 %v2772, %v2794
      %v2805 = vsub.f32 %v2773, %v2797
      %v2806 = vmul.f32 %v2798, 1.442695
      %v2807 = vpow.pop %v2806
      %v2808 = vmul.f32 %v2799, 1.442695
      %v2809 = vpow.pop %v2808
      %v2810 = vmul.f32 %v2800, 1.442695
      %v2811 = vpow.pop %v2810
      %v2812 = vmul.f32 %v2801, 1.442695
      %v2813 = vpow.pop %v2812
      %v2814 = vmul.f32 %v2802, 1.442695
      %v2815 = vpow.pop %v2814
      %v2816 = vmul.f32 %v2803, 1.442695
      %v2817 = vpow.pop %v2816
      %v2818 = vmul.f32 %v2804, 1.442695
      %v2819 = vpow.pop %v2818
      %v2820 = vmul.f32 %v2805, 1.442695
      %v2821 = vpow.pop %v2820
      %v2822 = vsel %vm727, %v2807, 0.0
      %2823 = vadd.xlane.f32.xlu0 %v2822
      %v2824 = vpop.xlane.xlu0 %2823
      %v2825 = vsel %vm727, %v2809, 0.0
      %2826 = vadd.xlane.f32.xlu0 %v2825
      %v2827 = vpop.xlane.xlu0 %2826
      %v2828 = vsel %vm727, %v2811, 0.0
      %2829 = vadd.xlane.f32.xlu0 %v2828
      %v2830 = vpop.xlane.xlu0 %2829
      %v2831 = vsel %vm727, %v2813, 0.0
      %2832 = vadd.xlane.f32.xlu0 %v2831
      %v2833 = vpop.xlane.xlu0 %2832
      %v2834 = vsel %vm727, %v2815, 0.0
      %2835 = vadd.xlane.f32.xlu0 %v2834
      %v2836 = vpop.xlane.xlu0 %2835
      %v2837 = vsel %vm727, %v2817, 0.0
      %2838 = vadd.xlane.f32.xlu0 %v2837
      %v2839 = vpop.xlane.xlu0 %2838
      %v2840 = vsel %vm727, %v2819, 0.0
      %2841 = vadd.xlane.f32.xlu0 %v2840
      %v2842 = vpop.xlane.xlu0 %2841
      %v2843 = vsel %vm727, %v2821, 0.0
      %2844 = vadd.xlane.f32.xlu0 %v2843
      %v2845 = vpop.xlane.xlu0 %2844
      %v2846 = vrcp.pop %v2824
      %v2847 = vrcp.pop %v2827
      %v2848 = vrcp.pop %v2830
      %v2849 = vrcp.pop %v2833
      %v2850 = vrcp.pop %v2836
      %v2851 = vrcp.pop %v2839
      %v2852 = vrcp.pop %v2842
      %v2853 = vrcp.pop %v2845
      %v2854 = vmul.f32 %v2807, %v2846
      %v2855 = vmul.f32 %v2809, %v2847
      %v2856 = vmul.f32 %v2811, %v2848
      %v2857 = vmul.f32 %v2813, %v2849
      %v2858 = vmul.f32 %v2815, %v2850
      %v2859 = vmul.f32 %v2817, %v2851
      %v2860 = vmul.f32 %v2819, %v2852
      %v2861 = vmul.f32 %v2821, %v2853
      %v2862 = vpack.c.bf16 %v2855, %v2854
      %v2863 = vpack.c.bf16 %v2857, %v2856
      %v2864 = vpack.c.bf16 %v2859, %v2858
      %v2865 = vpack.c.bf16 %v2861, %v2860
      %2866 = vrot.lane.b32.xlu0 %v2554, 64
      %v2867 = vpop.permute.xlu0 %2866
      %v2870 = vsel %vm727, %v2862, 0
      %2872 = vmatprep.subr.bf16.mxu0 0
      %2873 = vmatpush1.bf16.msra.mxu0 %v2867
      %2874 = vmatprep.subr.bf16.mxu0 0
      %2875 = vmatpush1.bf16.msra.mxu0 0
      %2876 = vmatprep.subr.bf16.mxu0 0
      %2877 = vmatpush1.bf16.msra.mxu0 0
      %2878 = vmatprep.subr.bf16.mxu0 0
      %2879 = vmatpush1.bf16.msra.mxu0 0
      %2880 = vmatprep.subr.bf16.mxu0 0
      %2881 = vmatpush1.bf16.msra.mxu0 0
      %2882 = vmatprep.subr.bf16.mxu0 0
      %2883 = vmatpush1.bf16.msra.mxu0 0
      %2884 = vmatprep.subr.bf16.mxu0 0
      %2885 = vmatpush1.bf16.msra.mxu0 0
      %2886 = vmatprep.subr.bf16.mxu0 0
      %2887 = vmatpush1.bf16.msra.mxu0 0
      %2888 = vmatprep.subr.bf16.mxu0 0
      %2889 = vmatpush1.bf16.msra.mxu0 0
      %2890 = vmatprep.subr.bf16.mxu0 0
      %2891 = vmatpush1.bf16.msra.mxu0 0
      %2892 = vmatprep.subr.bf16.mxu0 0
      %2893 = vmatpush1.bf16.msra.mxu0 0
      %2894 = vmatprep.subr.bf16.mxu0 0
      %2895 = vmatpush1.bf16.msra.mxu0 0
      %2896 = vmatprep.subr.bf16.mxu0 0
      %2897 = vmatpush1.bf16.msra.mxu0 0
      %2898 = vmatprep.subr.bf16.mxu0 0
      %2899 = vmatpush1.bf16.msra.mxu0 0
      %2900 = vmatprep.subr.bf16.mxu0 0
      %2901 = vmatpush1.bf16.msra.mxu0 0
      %2902 = vmatprep.subr.bf16.mxu0 0
      %2903 = vmatpush1.bf16.msra.mxu0 0
      %2904 = vmatprep.mubr.bf16.mxu0 0
      %2905 = vmatmul.mubr.bf16.gmra.mrb[0].mxu0 %v2870
      %v2906 = vpop.f32.mrb[0].mxu0
      %v2907 = vadd.f32 0.0, %v2906
      %v2908 = vpop.f32.mrb[0].mxu0
      %v2909 = vpop.f32.mrb[0].mxu0
      %v2910 = vadd.f32 0.0, %v2909
      %v2911 = vpop.f32.mrb[0].mxu0
      %2912 = vdwg.mxu0
      %2913 = vrot.lane.b32.xlu0 %v2555, 64
      %v2914 = vpop.permute.xlu0 %2913
      %v2917 = vsel %vm727, %v2863, 0
      %2919 = vmatprep.subr.bf16.mxu0 0
      %2920 = vmatpush1.bf16.msra.mxu0 %v2914
      %2921 = vmatprep.subr.bf16.mxu0 0
      %2922 = vmatpush1.bf16.msra.mxu0 0
      %2923 = vmatprep.subr.bf16.mxu0 0
      %2924 = vmatpush1.bf16.msra.mxu0 0
      %2925 = vmatprep.subr.bf16.mxu0 0
      %2926 = vmatpush1.bf16.msra.mxu0 0
      %2927 = vmatprep.subr.bf16.mxu0 0
      %2928 = vmatpush1.bf16.msra.mxu0 0
      %2929 = vmatprep.subr.bf16.mxu0 0
      %2930 = vmatpush1.bf16.msra.mxu0 0
      %2931 = vmatprep.subr.bf16.mxu0 0
      %2932 = vmatpush1.bf16.msra.mxu0 0
      %2933 = vmatprep.subr.bf16.mxu0 0
      %2934 = vmatpush1.bf16.msra.mxu0 0
      %2935 = vmatprep.subr.bf16.mxu0 0
      %2936 = vmatpush1.bf16.msra.mxu0 0
      %2937 = vmatprep.subr.bf16.mxu0 0
      %2938 = vmatpush1.bf16.msra.mxu0 0
      %2939 = vmatprep.subr.bf16.mxu0 0
      %2940 = vmatpush1.bf16.msra.mxu0 0
      %2941 = vmatprep.subr.bf16.mxu0 0
      %2942 = vmatpush1.bf16.msra.mxu0 0
      %2943 = vmatprep.subr.bf16.mxu0 0
      %2944 = vmatpush1.bf16.msra.mxu0 0
      %2945 = vmatprep.subr.bf16.mxu0 0
      %2946 = vmatpush1.bf16.msra.mxu0 0
      %2947 = vmatprep.subr.bf16.mxu0 0
      %2948 = vmatpush1.bf16.msra.mxu0 0
      %2949 = vmatprep.subr.bf16.mxu0 0
      %2950 = vmatpush1.bf16.msra.mxu0 0
      %2951 = vmatprep.mubr.bf16.mxu0 0
      %2952 = vmatmul.mubr.bf16.gmra.mrb[0].mxu0 %v2917
      %v2953 = vpop.f32.mrb[0].mxu0
      %v2954 = vadd.f32 0.0, %v2953
      %v2955 = vpop.f32.mrb[0].mxu0
      %v2956 = vpop.f32.mrb[0].mxu0
      %v2957 = vadd.f32 0.0, %v2956
      %v2958 = vpop.f32.mrb[0].mxu0
      %2959 = vdwg.mxu0
      %2960 = vrot.lane.b32.xlu0 %v2556, 64
      %v2961 = vpop.permute.xlu0 %2960
      %v2964 = vsel %vm727, %v2864, 0
      %2966 = vmatprep.subr.bf16.mxu0 0
      %2967 = vmatpush1.bf16.msra.mxu0 %v2961
      %2968 = vmatprep.subr.bf16.mxu0 0
      %2969 = vmatpush1.bf16.msra.mxu0 0
      %2970 = vmatprep.subr.bf16.mxu0 0
      %2971 = vmatpush1.bf16.msra.mxu0 0
      %2972 = vmatprep.subr.bf16.mxu0 0
      %2973 = vmatpush1.bf16.msra.mxu0 0
      %2974 = vmatprep.subr.bf16.mxu0 0
      %2975 = vmatpush1.bf16.msra.mxu0 0
      %2976 = vmatprep.subr.bf16.mxu0 0
      %2977 = vmatpush1.bf16.msra.mxu0 0
      %2978 = vmatprep.subr.bf16.mxu0 0
      %2979 = vmatpush1.bf16.msra.mxu0 0
      %2980 = vmatprep.subr.bf16.mxu0 0
      %2981 = vmatpush1.bf16.msra.mxu0 0
      %2982 = vmatprep.subr.bf16.mxu0 0
      %2983 = vmatpush1.bf16.msra.mxu0 0
      %2984 = vmatprep.subr.bf16.mxu0 0
      %2985 = vmatpush1.bf16.msra.mxu0 0
      %2986 = vmatprep.subr.bf16.mxu0 0
      %2987 = vmatpush1.bf16.msra.mxu0 0
      %2988 = vmatprep.subr.bf16.mxu0 0
      %2989 = vmatpush1.bf16.msra.mxu0 0
      %2990 = vmatprep.subr.bf16.mxu0 0
      %2991 = vmatpush1.bf16.msra.mxu0 0
      %2992 = vmatprep.subr.bf16.mxu0 0
      %2993 = vmatpush1.bf16.msra.mxu0 0
      %2994 = vmatprep.subr.bf16.mxu0 0
      %2995 = vmatpush1.bf16.msra.mxu0 0
      %2996 = vmatprep.subr.bf16.mxu0 0
      %2997 = vmatpush1.bf16.msra.mxu0 0
      %2998 = vmatprep.mubr.bf16.mxu0 0
      %2999 = vmatmul.mubr.bf16.gmra.mrb[0].mxu0 %v2964
      %v3000 = vpop.f32.mrb[0].mxu0
      %v3001 = vadd.f32 0.0, %v3000
      %v3002 = vpop.f32.mrb[0].mxu0
      %v3003 = vpop.f32.mrb[0].mxu0
      %v3004 = vadd.f32 0.0, %v3003
      %v3005 = vpop.f32.mrb[0].mxu0
      %3006 = vdwg.mxu0
      %3007 = vrot.lane.b32.xlu0 %v2557, 64
      %v3008 = vpop.permute.xlu0 %3007
      %v3011 = vsel %vm727, %v2865, 0
      %3013 = vmatprep.subr.bf16.mxu0 0
      %3014 = vmatpush1.bf16.msra.mxu0 %v3008
      %3015 = vmatprep.subr.bf16.mxu0 0
      %3016 = vmatpush1.bf16.msra.mxu0 0
      %3017 = vmatprep.subr.bf16.mxu0 0
      %3018 = vmatpush1.bf16.msra.mxu0 0
      %3019 = vmatprep.subr.bf16.mxu0 0
      %3020 = vmatpush1.bf16.msra.mxu0 0
      %3021 = vmatprep.subr.bf16.mxu0 0
      %3022 = vmatpush1.bf16.msra.mxu0 0
      %3023 = vmatprep.subr.bf16.mxu0 0
      %3024 = vmatpush1.bf16.msra.mxu0 0
      %3025 = vmatprep.subr.bf16.mxu0 0
      %3026 = vmatpush1.bf16.msra.mxu0 0
      %3027 = vmatprep.subr.bf16.mxu0 0
      %3028 = vmatpush1.bf16.msra.mxu0 0
      %3029 = vmatprep.subr.bf16.mxu0 0
      %3030 = vmatpush1.bf16.msra.mxu0 0
      %3031 = vmatprep.subr.bf16.mxu0 0
      %3032 = vmatpush1.bf16.msra.mxu0 0
      %3033 = vmatprep.subr.bf16.mxu0 0
      %3034 = vmatpush1.bf16.msra.mxu0 0
      %3035 = vmatprep.subr.bf16.mxu0 0
      %3036 = vmatpush1.bf16.msra.mxu0 0
      %3037 = vmatprep.subr.bf16.mxu0 0
      %3038 = vmatpush1.bf16.msra.mxu0 0
      %3039 = vmatprep.subr.bf16.mxu0 0
      %3040 = vmatpush1.bf16.msra.mxu0 0
      %3041 = vmatprep.subr.bf16.mxu0 0
      %3042 = vmatpush1.bf16.msra.mxu0 0
      %3043 = vmatprep.subr.bf16.mxu0 0
      %3044 = vmatpush1.bf16.msra.mxu0 0
      %3045 = vmatprep.mubr.bf16.mxu0 0
      %3046 = vmatmul.mubr.bf16.gmra.mrb[0].mxu0 %v3011
      %v3047 = vpop.f32.mrb[0].mxu0
      %v3048 = vadd.f32 0.0, %v3047
      %v3049 = vpop.f32.mrb[0].mxu0
      %v3050 = vpop.f32.mrb[0].mxu0
      %v3051 = vadd.f32 0.0, %v3050
      %v3052 = vpop.f32.mrb[0].mxu0
      %3053 = vdwg.mxu0
      %3054 = vrot.lane.b32.xlu0 %v2554, 112
      %v3055 = vpop.permute.xlu0 %3054
      %3056 = vrot.lane.b32.xlu0 %v2554, 80
      %v3057 = vpop.permute.xlu0 %3056
      %v3059 = vsel %vm727, %v3055, 0
      %v3062 = vsel %vm727, %v3057, 0
      %3064 = vmatprep.subr.bf16.mxu0 0
      %3065 = vmatpush1.bf16.xpose.msra.mxu0 %v3062
      %3066 = vmatprep.subr.bf16.mxu0 0
      %3067 = vmatpush1.bf16.xpose.msra.mxu0 0
      %3068 = vmatprep.subr.bf16.mxu0 0
      %3069 = vmatpush1.bf16.xpose.msra.mxu0 0
      %3070 = vmatprep.subr.bf16.mxu0 0
      %3071 = vmatpush1.bf16.xpose.msra.mxu0 0
      %3072 = vmatprep.subr.bf16.mxu0 0
      %3073 = vmatpush1.bf16.xpose.msra.mxu0 0
      %3074 = vmatprep.subr.bf16.mxu0 0
      %3075 = vmatpush1.bf16.xpose.msra.mxu0 0
      %3076 = vmatprep.subr.bf16.mxu0 0
      %3077 = vmatpush1.bf16.xpose.msra.mxu0 0
      %3078 = vmatprep.subr.bf16.mxu0 0
      %3079 = vmatpush1.bf16.xpose.msra.mxu0 0
      %3080 = vmatprep.subr.bf16.mxu0 0
      %3081 = vmatpush1.bf16.xpose.msra.mxu0 0
      %3082 = vmatprep.subr.bf16.mxu0 0
      %3083 = vmatpush1.bf16.xpose.msra.mxu0 0
      %3084 = vmatprep.subr.bf16.mxu0 0
      %3085 = vmatpush1.bf16.xpose.msra.mxu0 0
      %3086 = vmatprep.subr.bf16.mxu0 0
      %3087 = vmatpush1.bf16.xpose.msra.mxu0 0
      %3088 = vmatprep.subr.bf16.mxu0 0
      %3089 = vmatpush1.bf16.xpose.msra.mxu0 0
      %3090 = vmatprep.subr.bf16.mxu0 0
      %3091 = vmatpush1.bf16.xpose.msra.mxu0 0
      %3092 = vmatprep.subr.bf16.mxu0 0
      %3093 = vmatpush1.bf16.xpose.msra.mxu0 0
      %3094 = vmatprep.subr.bf16.mxu0 0
      %3095 = vmatpush1.bf16.xpose.msra.mxu0 0
      %3096 = vmatprep.mubr.bf16.mxu0 0
      %3097 = vmatmul.mubr.bf16.gmra.mrb[0].mxu0 %v3059
      %v3098 = vpop.f32.mrb[0].mxu0
      %v3099 = vadd.f32 0.0, %v3098
      %v3100 = vpop.f32.mrb[0].mxu0
      %v3101 = vpop.f32.mrb[0].mxu0
      %v3102 = vadd.f32 0.0, %v3101
      %v3103 = vpop.f32.mrb[0].mxu0
      %3104 = vdwg.mxu0
      %3105 = vrot.lane.b32.xlu0 %v2555, 112
      %v3106 = vpop.permute.xlu0 %3105
      %3107 = vrot.lane.b32.xlu0 %v2555, 80
      %v3108 = vpop.permute.xlu0 %3107
      %v3110 = vsel %vm727, %v3106, 0
      %v3113 = vsel %vm727, %v3108, 0
      %3115 = vmatprep.subr.bf16.mxu0 0
      %3116 = vmatpush1.bf16.xpose.msra.mxu0 %v3113
      %3117 = vmatprep.subr.bf16.mxu0 0
      %3118 = vmatpush1.bf16.xpose.msra.mxu0 0
      %3119 = vmatprep.subr.bf16.mxu0 0
      %3120 = vmatpush1.bf16.xpose.msra.mxu0 0
      %3121 = vmatprep.subr.bf16.mxu0 0
      %3122 = vmatpush1.bf16.xpose.msra.mxu0 0
      %3123 = vmatprep.subr.bf16.mxu0 0
      %3124 = vmatpush1.bf16.xpose.msra.mxu0 0
      %3125 = vmatprep.subr.bf16.mxu0 0
      %3126 = vmatpush1.bf16.xpose.msra.mxu0 0
      %3127 = vmatprep.subr.bf16.mxu0 0
      %3128 = vmatpush1.bf16.xpose.msra.mxu0 0
      %3129 = vmatprep.subr.bf16.mxu0 0
      %3130 = vmatpush1.bf16.xpose.msra.mxu0 0
      %3131 = vmatprep.subr.bf16.mxu0 0
      %3132 = vmatpush1.bf16.xpose.msra.mxu0 0
      %3133 = vmatprep.subr.bf16.mxu0 0
      %3134 = vmatpush1.bf16.xpose.msra.mxu0 0
      %3135 = vmatprep.subr.bf16.mxu0 0
      %3136 = vmatpush1.bf16.xpose.msra.mxu0 0
      %3137 = vmatprep.subr.bf16.mxu0 0
      %3138 = vmatpush1.bf16.xpose.msra.mxu0 0
      %3139 = vmatprep.subr.bf16.mxu0 0
      %3140 = vmatpush1.bf16.xpose.msra.mxu0 0
      %3141 = vmatprep.subr.bf16.mxu0 0
      %3142 = vmatpush1.bf16.xpose.msra.mxu0 0
      %3143 = vmatprep.subr.bf16.mxu0 0
      %3144 = vmatpush1.bf16.xpose.msra.mxu0 0
      %3145 = vmatprep.subr.bf16.mxu0 0
      %3146 = vmatpush1.bf16.xpose.msra.mxu0 0
      %3147 = vmatprep.mubr.bf16.mxu0 0
      %3148 = vmatmul.mubr.bf16.gmra.mrb[0].mxu0 %v3110
      %v3149 = vpop.f32.mrb[0].mxu0
      %v3150 = vadd.f32 0.0, %v3149
      %v3151 = vpop.f32.mrb[0].mxu0
      %v3152 = vpop.f32.mrb[0].mxu0
      %v3153 = vadd.f32 0.0, %v3152
      %v3154 = vpop.f32.mrb[0].mxu0
      %3155 = vdwg.mxu0
      %3156 = vrot.lane.b32.xlu0 %v2556, 112
      %v3157 = vpop.permute.xlu0 %3156
      %3158 = vrot.lane.b32.xlu0 %v2556, 80
      %v3159 = vpop.permute.xlu0 %3158
      %v3161 = vsel %vm727, %v3157, 0
      %v3164 = vsel %vm727, %v3159, 0
      %3166 = vmatprep.subr.bf16.mxu0 0
      %3167 = vmatpush1.bf16.xpose.msra.mxu0 %v3164
      %3168 = vmatprep.subr.bf16.mxu0 0
      %3169 = vmatpush1.bf16.xpose.msra.mxu0 0
      %3170 = vmatprep.subr.bf16.mxu0 0
      %3171 = vmatpush1.bf16.xpose.msra.mxu0 0
      %3172 = vmatprep.subr.bf16.mxu0 0
      %3173 = vmatpush1.bf16.xpose.msra.mxu0 0
      %3174 = vmatprep.subr.bf16.mxu0 0
      %3175 = vmatpush1.bf16.xpose.msra.mxu0 0
      %3176 = vmatprep.subr.bf16.mxu0 0
      %3177 = vmatpush1.bf16.xpose.msra.mxu0 0
      %3178 = vmatprep.subr.bf16.mxu0 0
      %3179 = vmatpush1.bf16.xpose.msra.mxu0 0
      %3180 = vmatprep.subr.bf16.mxu0 0
      %3181 = vmatpush1.bf16.xpose.msra.mxu0 0
      %3182 = vmatprep.subr.bf16.mxu0 0
      %3183 = vmatpush1.bf16.xpose.msra.mxu0 0
      %3184 = vmatprep.subr.bf16.mxu0 0
      %3185 = vmatpush1.bf16.xpose.msra.mxu0 0
      %3186 = vmatprep.subr.bf16.mxu0 0
      %3187 = vmatpush1.bf16.xpose.msra.mxu0 0
      %3188 = vmatprep.subr.bf16.mxu0 0
      %3189 = vmatpush1.bf16.xpose.msra.mxu0 0
      %3190 = vmatprep.subr.bf16.mxu0 0
      %3191 = vmatpush1.bf16.xpose.msra.mxu0 0
      %3192 = vmatprep.subr.bf16.mxu0 0
      %3193 = vmatpush1.bf16.xpose.msra.mxu0 0
      %3194 = vmatprep.subr.bf16.mxu0 0
      %3195 = vmatpush1.bf16.xpose.msra.mxu0 0
      %3196 = vmatprep.subr.bf16.mxu0 0
      %3197 = vmatpush1.bf16.xpose.msra.mxu0 0
      %3198 = vmatprep.mubr.bf16.mxu0 0
      %3199 = vmatmul.mubr.bf16.gmra.mrb[0].mxu0 %v3161
      %v3200 = vpop.f32.mrb[0].mxu0
      %v3201 = vadd.f32 0.0, %v3200
      %v3202 = vpop.f32.mrb[0].mxu0
      %v3203 = vpop.f32.mrb[0].mxu0
      %v3204 = vadd.f32 0.0, %v3203
      %v3205 = vpop.f32.mrb[0].mxu0
      %3206 = vdwg.mxu0
      %3207 = vrot.lane.b32.xlu0 %v2557, 112
      %v3208 = vpop.permute.xlu0 %3207
      %3209 = vrot.lane.b32.xlu0 %v2557, 80
      %v3210 = vpop.permute.xlu0 %3209
      %v3212 = vsel %vm727, %v3208, 0
      %v3215 = vsel %vm727, %v3210, 0
      %3217 = vmatprep.subr.bf16.mxu0 0
      %3218 = vmatpush1.bf16.xpose.msra.mxu0 %v3215
      %3219 = vmatprep.subr.bf16.mxu0 0
      %3220 = vmatpush1.bf16.xpose.msra.mxu0 0
      %3221 = vmatprep.subr.bf16.mxu0 0
      %3222 = vmatpush1.bf16.xpose.msra.mxu0 0
      %3223 = vmatprep.subr.bf16.mxu0 0
      %3224 = vmatpush1.bf16.xpose.msra.mxu0 0
      %3225 = vmatprep.subr.bf16.mxu0 0
      %3226 = vmatpush1.bf16.xpose.msra.mxu0 0
      %3227 = vmatprep.subr.bf16.mxu0 0
      %3228 = vmatpush1.bf16.xpose.msra.mxu0 0
      %3229 = vmatprep.subr.bf16.mxu0 0
      %3230 = vmatpush1.bf16.xpose.msra.mxu0 0
      %3231 = vmatprep.subr.bf16.mxu0 0
      %3232 = vmatpush1.bf16.xpose.msra.mxu0 0
      %3233 = vmatprep.subr.bf16.mxu0 0
      %3234 = vmatpush1.bf16.xpose.msra.mxu0 0
      %3235 = vmatprep.subr.bf16.mxu0 0
      %3236 = vmatpush1.bf16.xpose.msra.mxu0 0
      %3237 = vmatprep.subr.bf16.mxu0 0
      %3238 = vmatpush1.bf16.xpose.msra.mxu0 0
      %3239 = vmatprep.subr.bf16.mxu0 0
      %3240 = vmatpush1.bf16.xpose.msra.mxu0 0
      %3241 = vmatprep.subr.bf16.mxu0 0
      %3242 = vmatpush1.bf16.xpose.msra.mxu0 0
      %3243 = vmatprep.subr.bf16.mxu0 0
      %3244 = vmatpush1.bf16.xpose.msra.mxu0 0
      %3245 = vmatprep.subr.bf16.mxu0 0
      %3246 = vmatpush1.bf16.xpose.msra.mxu0 0
      %3247 = vmatprep.subr.bf16.mxu0 0
      %3248 = vmatpush1.bf16.xpose.msra.mxu0 0
      %3249 = vmatprep.mubr.bf16.mxu0 0
      %3250 = vmatmul.mubr.bf16.gmra.mrb[0].mxu0 %v3212
      %v3251 = vpop.f32.mrb[0].mxu0
      %v3252 = vadd.f32 0.0, %v3251
      %v3253 = vpop.f32.mrb[0].mxu0
      %v3254 = vpop.f32.mrb[0].mxu0
      %v3255 = vadd.f32 0.0, %v3254
      %v3256 = vpop.f32.mrb[0].mxu0
      %3257 = vdwg.mxu0
      %v3258 = vmul.f32 %v3099, 0.25
      %v3259 = vmul.f32 %v3102, 0.25
      %v3260 = vmul.f32 %v3150, 0.25
      %v3261 = vmul.f32 %v3153, 0.25
      %v3262 = vmul.f32 %v3201, 0.25
      %v3263 = vmul.f32 %v3204, 0.25
      %v3264 = vmul.f32 %v3252, 0.25
      %v3265 = vmul.f32 %v3255, 0.25
      %v3266 = vadd.f32 %v3258, %v486
      %v3267 = vadd.f32 %v3259, %v486
      %v3268 = vadd.f32 %v3260, %v486
      %v3269 = vadd.f32 %v3261, %v486
      %v3270 = vadd.f32 %v3262, %v486
      %v3271 = vadd.f32 %v3263, %v486
      %v3272 = vadd.f32 %v3264, %v486
      %v3273 = vadd.f32 %v3265, %v486
      %v3274 = vsel %vm727, %v3266, -inf
      %3275 = vmax.xlane.f32.xlu0 %v3274
      %v3276 = vpop.xlane.xlu0 %3275
      %v3277 = vsel %vm727, %v3267, -inf
      %3278 = vmax.xlane.f32.xlu0 %v3277
      %v3279 = vpop.xlane.xlu0 %3278
      %v3280 = vsel %vm727, %v3268, -inf
      %3281 = vmax.xlane.f32.xlu0 %v3280
      %v3282 = vpop.xlane.xlu0 %3281
      %v3283 = vsel %vm727, %v3269, -inf
      %3284 = vmax.xlane.f32.xlu0 %v3283
      %v3285 = vpop.xlane.xlu0 %3284
      %v3286 = vsel %vm727, %v3270, -inf
      %3287 = vmax.xlane.f32.xlu0 %v3286
      %v3288 = vpop.xlane.xlu0 %3287
      %v3289 = vsel %vm727, %v3271, -inf
      %3290 = vmax.xlane.f32.xlu0 %v3289
      %v3291 = vpop.xlane.xlu0 %3290
      %v3292 = vsel %vm727, %v3272, -inf
      %3293 = vmax.xlane.f32.xlu0 %v3292
      %v3294 = vpop.xlane.xlu0 %3293
      %v3295 = vsel %vm727, %v3273, -inf
      %3296 = vmax.xlane.f32.xlu0 %v3295
      %v3297 = vpop.xlane.xlu0 %3296
      %v3298 = vsub.f32 %v3266, %v3276
      %v3299 = vsub.f32 %v3267, %v3279
      %v3300 = vsub.f32 %v3268, %v3282
      %v3301 = vsub.f32 %v3269, %v3285
      %v3302 = vsub.f32 %v3270, %v3288
      %v3303 = vsub.f32 %v3271, %v3291
      %v3304 = vsub.f32 %v3272, %v3294
      %v3305 = vsub.f32 %v3273, %v3297
      %v3306 = vmul.f32 %v3298, 1.442695
      %v3307 = vpow.pop %v3306
      %v3308 = vmul.f32 %v3299, 1.442695
      %v3309 = vpow.pop %v3308
      %v3310 = vmul.f32 %v3300, 1.442695
      %v3311 = vpow.pop %v3310
      %v3312 = vmul.f32 %v3301, 1.442695
      %v3313 = vpow.pop %v3312
      %v3314 = vmul.f32 %v3302, 1.442695
      %v3315 = vpow.pop %v3314
      %v3316 = vmul.f32 %v3303, 1.442695
      %v3317 = vpow.pop %v3316
      %v3318 = vmul.f32 %v3304, 1.442695
      %v3319 = vpow.pop %v3318
      %v3320 = vmul.f32 %v3305, 1.442695
      %v3321 = vpow.pop %v3320
      %v3322 = vsel %vm727, %v3307, 0.0
      %3323 = vadd.xlane.f32.xlu0 %v3322
      %v3324 = vpop.xlane.xlu0 %3323
      %v3325 = vsel %vm727, %v3309, 0.0
      %3326 = vadd.xlane.f32.xlu0 %v3325
      %v3327 = vpop.xlane.xlu0 %3326
      %v3328 = vsel %vm727, %v3311, 0.0
      %3329 = vadd.xlane.f32.xlu0 %v3328
      %v3330 = vpop.xlane.xlu0 %3329
      %v3331 = vsel %vm727, %v3313, 0.0
      %3332 = vadd.xlane.f32.xlu0 %v3331
      %v3333 = vpop.xlane.xlu0 %3332
      %v3334 = vsel %vm727, %v3315, 0.0
      %3335 = vadd.xlane.f32.xlu0 %v3334
      %v3336 = vpop.xlane.xlu0 %3335
      %v3337 = vsel %vm727, %v3317, 0.0
      %3338 = vadd.xlane.f32.xlu0 %v3337
      %v3339 = vpop.xlane.xlu0 %3338
      %v3340 = vsel %vm727, %v3319, 0.0
      %3341 = vadd.xlane.f32.xlu0 %v3340
      %v3342 = vpop.xlane.xlu0 %3341
      %v3343 = vsel %vm727, %v3321, 0.0
      %3344 = vadd.xlane.f32.xlu0 %v3343
      %v3345 = vpop.xlane.xlu0 %3344
      %v3346 = vrcp.pop %v3324
      %v3347 = vrcp.pop %v3327
      %v3348 = vrcp.pop %v3330
      %v3349 = vrcp.pop %v3333
      %v3350 = vrcp.pop %v3336
      %v3351 = vrcp.pop %v3339
      %v3352 = vrcp.pop %v3342
      %v3353 = vrcp.pop %v3345
      %v3354 = vmul.f32 %v3307, %v3346
      %v3355 = vmul.f32 %v3309, %v3347
      %v3356 = vmul.f32 %v3311, %v3348
      %v3357 = vmul.f32 %v3313, %v3349
      %v3358 = vmul.f32 %v3315, %v3350
      %v3359 = vmul.f32 %v3317, %v3351
      %v3360 = vmul.f32 %v3319, %v3352
      %v3361 = vmul.f32 %v3321, %v3353
      %v3362 = vpack.c.bf16 %v3355, %v3354
      %v3363 = vpack.c.bf16 %v3357, %v3356
      %v3364 = vpack.c.bf16 %v3359, %v3358
      %v3365 = vpack.c.bf16 %v3361, %v3360
      %3366 = vrot.lane.b32.xlu0 %v2554, 48
      %v3367 = vpop.permute.xlu0 %3366
      %v3370 = vsel %vm727, %v3362, 0
      %3372 = vmatprep.subr.bf16.mxu0 0
      %3373 = vmatpush1.bf16.msra.mxu0 %v3367
      %3374 = vmatprep.subr.bf16.mxu0 0
      %3375 = vmatpush1.bf16.msra.mxu0 0
      %3376 = vmatprep.subr.bf16.mxu0 0
      %3377 = vmatpush1.bf16.msra.mxu0 0
      %3378 = vmatprep.subr.bf16.mxu0 0
      %3379 = vmatpush1.bf16.msra.mxu0 0
      %3380 = vmatprep.subr.bf16.mxu0 0
      %3381 = vmatpush1.bf16.msra.mxu0 0
      %3382 = vmatprep.subr.bf16.mxu0 0
      %3383 = vmatpush1.bf16.msra.mxu0 0
      %3384 = vmatprep.subr.bf16.mxu0 0
      %3385 = vmatpush1.bf16.msra.mxu0 0
      %3386 = vmatprep.subr.bf16.mxu0 0
      %3387 = vmatpush1.bf16.msra.mxu0 0
      %3388 = vmatprep.subr.bf16.mxu0 0
      %3389 = vmatpush1.bf16.msra.mxu0 0
      %3390 = vmatprep.subr.bf16.mxu0 0
      %3391 = vmatpush1.bf16.msra.mxu0 0
      %3392 = vmatprep.subr.bf16.mxu0 0
      %3393 = vmatpush1.bf16.msra.mxu0 0
      %3394 = vmatprep.subr.bf16.mxu0 0
      %3395 = vmatpush1.bf16.msra.mxu0 0
      %3396 = vmatprep.subr.bf16.mxu0 0
      %3397 = vmatpush1.bf16.msra.mxu0 0
      %3398 = vmatprep.subr.bf16.mxu0 0
      %3399 = vmatpush1.bf16.msra.mxu0 0
      %3400 = vmatprep.subr.bf16.mxu0 0
      %3401 = vmatpush1.bf16.msra.mxu0 0
      %3402 = vmatprep.subr.bf16.mxu0 0
      %3403 = vmatpush1.bf16.msra.mxu0 0
      %3404 = vmatprep.mubr.bf16.mxu0 0
      %3405 = vmatmul.mubr.bf16.gmra.mrb[0].mxu0 %v3370
      %v3406 = vpop.f32.mrb[0].mxu0
      %v3407 = vadd.f32 0.0, %v3406
      %v3408 = vpop.f32.mrb[0].mxu0
      %v3409 = vpop.f32.mrb[0].mxu0
      %v3410 = vadd.f32 0.0, %v3409
      %v3411 = vpop.f32.mrb[0].mxu0
      %3412 = vdwg.mxu0
      %3413 = vrot.lane.b32.xlu0 %v2555, 48
      %v3414 = vpop.permute.xlu0 %3413
      %v3417 = vsel %vm727, %v3363, 0
      %3419 = vmatprep.subr.bf16.mxu0 0
      %3420 = vmatpush1.bf16.msra.mxu0 %v3414
      %3421 = vmatprep.subr.bf16.mxu0 0
      %3422 = vmatpush1.bf16.msra.mxu0 0
      %3423 = vmatprep.subr.bf16.mxu0 0
      %3424 = vmatpush1.bf16.msra.mxu0 0
      %3425 = vmatprep.subr.bf16.mxu0 0
      %3426 = vmatpush1.bf16.msra.mxu0 0
      %3427 = vmatprep.subr.bf16.mxu0 0
      %3428 = vmatpush1.bf16.msra.mxu0 0
      %3429 = vmatprep.subr.bf16.mxu0 0
      %3430 = vmatpush1.bf16.msra.mxu0 0
      %3431 = vmatprep.subr.bf16.mxu0 0
      %3432 = vmatpush1.bf16.msra.mxu0 0
      %3433 = vmatprep.subr.bf16.mxu0 0
      %3434 = vmatpush1.bf16.msra.mxu0 0
      %3435 = vmatprep.subr.bf16.mxu0 0
      %3436 = vmatpush1.bf16.msra.mxu0 0
      %3437 = vmatprep.subr.bf16.mxu0 0
      %3438 = vmatpush1.bf16.msra.mxu0 0
      %3439 = vmatprep.subr.bf16.mxu0 0
      %3440 = vmatpush1.bf16.msra.mxu0 0
      %3441 = vmatprep.subr.bf16.mxu0 0
      %3442 = vmatpush1.bf16.msra.mxu0 0
      %3443 = vmatprep.subr.bf16.mxu0 0
      %3444 = vmatpush1.bf16.msra.mxu0 0
      %3445 = vmatprep.subr.bf16.mxu0 0
      %3446 = vmatpush1.bf16.msra.mxu0 0
      %3447 = vmatprep.subr.bf16.mxu0 0
      %3448 = vmatpush1.bf16.msra.mxu0 0
      %3449 = vmatprep.subr.bf16.mxu0 0
      %3450 = vmatpush1.bf16.msra.mxu0 0
      %3451 = vmatprep.mubr.bf16.mxu0 0
      %3452 = vmatmul.mubr.bf16.gmra.mrb[0].mxu0 %v3417
      %v3453 = vpop.f32.mrb[0].mxu0
      %v3454 = vadd.f32 0.0, %v3453
      %v3455 = vpop.f32.mrb[0].mxu0
      %v3456 = vpop.f32.mrb[0].mxu0
      %v3457 = vadd.f32 0.0, %v3456
      %v3458 = vpop.f32.mrb[0].mxu0
      %3459 = vdwg.mxu0
      %3460 = vrot.lane.b32.xlu0 %v2556, 48
      %v3461 = vpop.permute.xlu0 %3460
      %v3464 = vsel %vm727, %v3364, 0
      %3466 = vmatprep.subr.bf16.mxu0 0
      %3467 = vmatpush1.bf16.msra.mxu0 %v3461
      %3468 = vmatprep.subr.bf16.mxu0 0
      %3469 = vmatpush1.bf16.msra.mxu0 0
      %3470 = vmatprep.subr.bf16.mxu0 0
      %3471 = vmatpush1.bf16.msra.mxu0 0
      %3472 = vmatprep.subr.bf16.mxu0 0
      %3473 = vmatpush1.bf16.msra.mxu0 0
      %3474 = vmatprep.subr.bf16.mxu0 0
      %3475 = vmatpush1.bf16.msra.mxu0 0
      %3476 = vmatprep.subr.bf16.mxu0 0
      %3477 = vmatpush1.bf16.msra.mxu0 0
      %3478 = vmatprep.subr.bf16.mxu0 0
      %3479 = vmatpush1.bf16.msra.mxu0 0
      %3480 = vmatprep.subr.bf16.mxu0 0
      %3481 = vmatpush1.bf16.msra.mxu0 0
      %3482 = vmatprep.subr.bf16.mxu0 0
      %3483 = vmatpush1.bf16.msra.mxu0 0
      %3484 = vmatprep.subr.bf16.mxu0 0
      %3485 = vmatpush1.bf16.msra.mxu0 0
      %3486 = vmatprep.subr.bf16.mxu0 0
      %3487 = vmatpush1.bf16.msra.mxu0 0
      %3488 = vmatprep.subr.bf16.mxu0 0
      %3489 = vmatpush1.bf16.msra.mxu0 0
      %3490 = vmatprep.subr.bf16.mxu0 0
      %3491 = vmatpush1.bf16.msra.mxu0 0
      %3492 = vmatprep.subr.bf16.mxu0 0
      %3493 = vmatpush1.bf16.msra.mxu0 0
      %3494 = vmatprep.subr.bf16.mxu0 0
      %3495 = vmatpush1.bf16.msra.mxu0 0
      %3496 = vmatprep.subr.bf16.mxu0 0
      %3497 = vmatpush1.bf16.msra.mxu0 0
      %3498 = vmatprep.mubr.bf16.mxu0 0
      %3499 = vmatmul.mubr.bf16.gmra.mrb[0].mxu0 %v3464
      %v3500 = vpop.f32.mrb[0].mxu0
      %v3501 = vadd.f32 0.0, %v3500
      %v3502 = vpop.f32.mrb[0].mxu0
      %v3503 = vpop.f32.mrb[0].mxu0
      %v3504 = vadd.f32 0.0, %v3503
      %v3505 = vpop.f32.mrb[0].mxu0
      %3506 = vdwg.mxu0
      %3507 = vrot.lane.b32.xlu0 %v2557, 48
      %v3508 = vpop.permute.xlu0 %3507
      %v3511 = vsel %vm727, %v3365, 0
      %3513 = vmatprep.subr.bf16.mxu0 0
      %3514 = vmatpush1.bf16.msra.mxu0 %v3508
      %3515 = vmatprep.subr.bf16.mxu0 0
      %3516 = vmatpush1.bf16.msra.mxu0 0
      %3517 = vmatprep.subr.bf16.mxu0 0
      %3518 = vmatpush1.bf16.msra.mxu0 0
      %3519 = vmatprep.subr.bf16.mxu0 0
      %3520 = vmatpush1.bf16.msra.mxu0 0
      %3521 = vmatprep.subr.bf16.mxu0 0
      %3522 = vmatpush1.bf16.msra.mxu0 0
      %3523 = vmatprep.subr.bf16.mxu0 0
      %3524 = vmatpush1.bf16.msra.mxu0 0
      %3525 = vmatprep.subr.bf16.mxu0 0
      %3526 = vmatpush1.bf16.msra.mxu0 0
      %3527 = vmatprep.subr.bf16.mxu0 0
      %3528 = vmatpush1.bf16.msra.mxu0 0
      %3529 = vmatprep.subr.bf16.mxu0 0
      %3530 = vmatpush1.bf16.msra.mxu0 0
      %3531 = vmatprep.subr.bf16.mxu0 0
      %3532 = vmatpush1.bf16.msra.mxu0 0
      %3533 = vmatprep.subr.bf16.mxu0 0
      %3534 = vmatpush1.bf16.msra.mxu0 0
      %3535 = vmatprep.subr.bf16.mxu0 0
      %3536 = vmatpush1.bf16.msra.mxu0 0
      %3537 = vmatprep.subr.bf16.mxu0 0
      %3538 = vmatpush1.bf16.msra.mxu0 0
      %3539 = vmatprep.subr.bf16.mxu0 0
      %3540 = vmatpush1.bf16.msra.mxu0 0
      %3541 = vmatprep.subr.bf16.mxu0 0
      %3542 = vmatpush1.bf16.msra.mxu0 0
      %3543 = vmatprep.subr.bf16.mxu0 0
      %3544 = vmatpush1.bf16.msra.mxu0 0
      %3545 = vmatprep.mubr.bf16.mxu0 0
      %3546 = vmatmul.mubr.bf16.gmra.mrb[0].mxu0 %v3511
      %v3547 = vpop.f32.mrb[0].mxu0
      %v3548 = vadd.f32 0.0, %v3547
      %v3549 = vpop.f32.mrb[0].mxu0
      %v3550 = vpop.f32.mrb[0].mxu0
      %v3551 = vadd.f32 0.0, %v3550
      %v3552 = vpop.f32.mrb[0].mxu0
      %3553 = vdwg.mxu0
      %3562 = vrot.lane.b32.xlu0 %v3407, 16
      %v3563 = vpop.permute.xlu0 %3562
      %3564 = vrot.lane.b32.xlu0 %v3410, 16
      %v3565 = vpop.permute.xlu0 %3564
      %3566 = vrot.lane.b32.xlu0 %v3454, 16
      %v3567 = vpop.permute.xlu0 %3566
      %3568 = vrot.lane.b32.xlu0 %v3457, 16
      %v3569 = vpop.permute.xlu0 %3568
      %3570 = vrot.lane.b32.xlu0 %v3501, 16
      %v3571 = vpop.permute.xlu0 %3570
      %3572 = vrot.lane.b32.xlu0 %v3504, 16
      %v3573 = vpop.permute.xlu0 %3572
      %3574 = vrot.lane.b32.xlu0 %v3548, 16
      %v3575 = vpop.permute.xlu0 %3574
      %3576 = vrot.lane.b32.xlu0 %v3551, 16
      %v3577 = vpop.permute.xlu0 %3576
      %v3586 = vsel %vm727, %v2907, %v3563
      %v3587 = vsel %vm727, %v2910, %v3565
      %v3588 = vsel %vm727, %v2954, %v3567
      %v3589 = vsel %vm727, %v2957, %v3569
      %v3590 = vsel %vm727, %v3001, %v3571
      %v3591 = vsel %vm727, %v3004, %v3573
      %v3592 = vsel %vm727, %v3048, %v3575
      %v3593 = vsel %vm727, %v3051, %v3577
      %v3594 = vpack.c.bf16 %v3587, %v3586
      %v3595 = vpack.c.bf16 %v3589, %v3588
      %v3596 = vpack.c.bf16 %v3591, %v3590
      %v3597 = vpack.c.bf16 %v3593, %v3592
      %s3598 = scalar_lea.vmem %s4, 16
      %v3599 = vld [vmem:[%s3598] sm:$0xf]
      %v3600 = vld [vmem:[%s3598 + $0x4] sm:$0xf]
      %v3601 = vld [vmem:[%s3598 + $0x8] sm:$0xf]
      %v3602 = vld [vmem:[%s3598 + $0xc] sm:$0xf]
      %v3607 = vunpack.c.l.b16 %v3599
      %v3608 = vunpack.c.l.b16 %v3600
      %v3609 = vunpack.c.l.b16 %v3601
      %v3610 = vunpack.c.l.b16 %v3602
      %v3611 = vpack.c.b16 %v3608, %v3607
      %v3612 = vpack.c.b16 %v3610, %v3609
      %v3616 = vsel %vm489, %v3594, 0
      %v3619 = vsel %vm489, %v3595, 0
      %v3622 = vsel %vm489, %v3596, 0
      %v3625 = vsel %vm489, %v3597, 0
      %3627 = vmatprep.subr.bf16.mxu0 0
      %3628 = vmatpush1.bf16.msra.mxu0 %v3611
      %3629 = vmatprep.subr.bf16.mxu0 0
      %3630 = vmatpush1.bf16.msra.mxu0 %v3612
      %3631 = vmatprep.subr.bf16.mxu0 0
      %3632 = vmatpush1.bf16.msra.mxu0 0
      %3633 = vmatprep.subr.bf16.mxu0 0
      %3634 = vmatpush1.bf16.msra.mxu0 0
      %3635 = vmatprep.subr.bf16.mxu0 0
      %3636 = vmatpush1.bf16.msra.mxu0 0
      %3637 = vmatprep.subr.bf16.mxu0 0
      %3638 = vmatpush1.bf16.msra.mxu0 0
      %3639 = vmatprep.subr.bf16.mxu0 0
      %3640 = vmatpush1.bf16.msra.mxu0 0
      %3641 = vmatprep.subr.bf16.mxu0 0
      %3642 = vmatpush1.bf16.msra.mxu0 0
      %3643 = vmatprep.subr.bf16.mxu0 0
      %3644 = vmatpush1.bf16.msra.mxu0 0
      %3645 = vmatprep.subr.bf16.mxu0 0
      %3646 = vmatpush1.bf16.msra.mxu0 0
      %3647 = vmatprep.subr.bf16.mxu0 0
      %3648 = vmatpush1.bf16.msra.mxu0 0
      %3649 = vmatprep.subr.bf16.mxu0 0
      %3650 = vmatpush1.bf16.msra.mxu0 0
      %3651 = vmatprep.subr.bf16.mxu0 0
      %3652 = vmatpush1.bf16.msra.mxu0 0
      %3653 = vmatprep.subr.bf16.mxu0 0
      %3654 = vmatpush1.bf16.msra.mxu0 0
      %3655 = vmatprep.subr.bf16.mxu0 0
      %3656 = vmatpush1.bf16.msra.mxu0 0
      %3657 = vmatprep.subr.bf16.mxu0 0
      %3658 = vmatpush1.bf16.msra.mxu0 0
      %3659 = vmatprep.mubr.bf16.mxu0 0
      %3660 = vmatmul.mubr.bf16.gmra.mrb[0].mxu0 %v3616
      %v3661 = vpop.f32.mrb[0].mxu0
      %v3662 = vadd.f32 0.0, %v3661
      %v3663 = vpop.f32.mrb[0].mxu0
      %v3664 = vpop.f32.mrb[0].mxu0
      %v3665 = vadd.f32 0.0, %v3664
      %v3666 = vpop.f32.mrb[0].mxu0
      %3667 = vmatprep.mubr.bf16.mxu0 0
      %3668 = vmatmul.mubr.bf16.gmra.mrb[0].mxu0 %v3619
      %v3669 = vpop.f32.mrb[0].mxu0
      %v3670 = vadd.f32 0.0, %v3669
      %v3671 = vpop.f32.mrb[0].mxu0
      %v3672 = vpop.f32.mrb[0].mxu0
      %v3673 = vadd.f32 0.0, %v3672
      %v3674 = vpop.f32.mrb[0].mxu0
      %3675 = vmatprep.mubr.bf16.mxu0 0
      %3676 = vmatmul.mubr.bf16.gmra.mrb[0].mxu0 %v3622
      %v3677 = vpop.f32.mrb[0].mxu0
      %v3678 = vadd.f32 0.0, %v3677
      %v3679 = vpop.f32.mrb[0].mxu0
      %v3680 = vpop.f32.mrb[0].mxu0
      %v3681 = vadd.f32 0.0, %v3680
      %v3682 = vpop.f32.mrb[0].mxu0
      %3683 = vmatprep.mubr.bf16.mxu0 0
      %3684 = vmatmul.mubr.bf16.gmra.mrb[0].mxu0 %v3625
      %v3685 = vpop.f32.mrb[0].mxu0
      %v3686 = vadd.f32 0.0, %v3685
      %v3687 = vpop.f32.mrb[0].mxu0
      %v3688 = vpop.f32.mrb[0].mxu0
      %v3689 = vadd.f32 0.0, %v3688
      %v3690 = vpop.f32.mrb[0].mxu0
      %3691 = vdwg.mxu0
      %v3692 = vadd.f32 %v2312, %v3662
      %v3693 = vadd.f32 %v2313, %v3665
      %v3694 = vadd.f32 %v2314, %v3670
      %v3695 = vadd.f32 %v2315, %v3673
      %v3696 = vadd.f32 %v2316, %v3678
      %v3697 = vadd.f32 %v2317, %v3681
      %v3698 = vadd.f32 %v2318, %v3686
      %v3699 = vadd.f32 %v2319, %v3689
      %s3700 = scalar_lea.vmem %s5, 1
      %v3701 = vld [vmem:[%s3700] sm:$0x1]
      %v3703 = vlaneseq
      %v3704 = vshrl.u32 %v3703, 7
      %v3705 = vsub.s32 0, %v3704
      %v3706 = vrot.slane %v3701, %v3705
      %v3708 = vadd.f32 %v3692, %v3706
      %v3709 = vadd.f32 %v3693, %v3706
      %v3710 = vadd.f32 %v3694, %v3706
      %v3711 = vadd.f32 %v3695, %v3706
      %v3712 = vadd.f32 %v3696, %v3706
      %v3713 = vadd.f32 %v3697, %v3706
      %v3714 = vadd.f32 %v3698, %v3706
      %v3715 = vadd.f32 %v3699, %v3706
      %s3716 = scalar_lea.vmem %s6, 1
      %v3717 = vld [vmem:[%s3716] sm:$0x1]
      %s3718 = scalar_lea.vmem %s7, 1
      %v3719 = vld [vmem:[%s3718] sm:$0x1]
      %v3720 = vsel %vm489, %v3708, 0.0
      %3721 = vadd.xlane.f32.xlu0 %v3720
      %v3722 = vpop.xlane.xlu0 %3721
      %v3723 = vsel %vm489, %v3709, 0.0
      %3724 = vadd.xlane.f32.xlu0 %v3723
      %v3725 = vpop.xlane.xlu0 %3724
      %v3726 = vsel %vm489, %v3710, 0.0
      %3727 = vadd.xlane.f32.xlu0 %v3726
      %v3728 = vpop.xlane.xlu0 %3727
      %v3729 = vsel %vm489, %v3711, 0.0
      %3730 = vadd.xlane.f32.xlu0 %v3729
      %v3731 = vpop.xlane.xlu0 %3730
      %v3732 = vsel %vm489, %v3712, 0.0
      %3733 = vadd.xlane.f32.xlu0 %v3732
      %v3734 = vpop.xlane.xlu0 %3733
      %v3735 = vsel %vm489, %v3713, 0.0
      %3736 = vadd.xlane.f32.xlu0 %v3735
      %v3737 = vpop.xlane.xlu0 %3736
      %v3738 = vsel %vm489, %v3714, 0.0
      %3739 = vadd.xlane.f32.xlu0 %v3738
      %v3740 = vpop.xlane.xlu0 %3739
      %v3741 = vsel %vm489, %v3715, 0.0
      %3742 = vadd.xlane.f32.xlu0 %v3741
      %v3743 = vpop.xlane.xlu0 %3742
      %v3744 = vmul.f32 %v3722, %v514
      %v3745 = vmul.f32 %v3725, %v514
      %v3746 = vmul.f32 %v3728, %v514
      %v3747 = vmul.f32 %v3731, %v514
      %v3748 = vmul.f32 %v3734, %v514
      %v3749 = vmul.f32 %v3737, %v514
      %v3750 = vmul.f32 %v3740, %v514
      %v3751 = vmul.f32 %v3743, %v514
      %v3752 = vsub.f32 %v3708, %v3744
      %v3753 = vsub.f32 %v3709, %v3745
      %v3754 = vsub.f32 %v3710, %v3746
      %v3755 = vsub.f32 %v3711, %v3747
      %v3756 = vsub.f32 %v3712, %v3748
      %v3757 = vsub.f32 %v3713, %v3749
      %v3758 = vsub.f32 %v3714, %v3750
      %v3759 = vsub.f32 %v3715, %v3751
      %v3760 = vmul.f32 %v3752, %v3752
      %v3761 = vmul.f32 %v3753, %v3753
      %v3762 = vmul.f32 %v3754, %v3754
      %v3763 = vmul.f32 %v3755, %v3755
      %v3764 = vmul.f32 %v3756, %v3756
      %v3765 = vmul.f32 %v3757, %v3757
      %v3766 = vmul.f32 %v3758, %v3758
      %v3767 = vmul.f32 %v3759, %v3759
      %v3768 = vsel %vm489, %v3760, 0.0
      %3769 = vadd.xlane.f32.xlu0 %v3768
      %v3770 = vpop.xlane.xlu0 %3769
      %v3771 = vsel %vm489, %v3761, 0.0
      %3772 = vadd.xlane.f32.xlu0 %v3771
      %v3773 = vpop.xlane.xlu0 %3772
      %v3774 = vsel %vm489, %v3762, 0.0
      %3775 = vadd.xlane.f32.xlu0 %v3774
      %v3776 = vpop.xlane.xlu0 %3775
      %v3777 = vsel %vm489, %v3763, 0.0
      %3778 = vadd.xlane.f32.xlu0 %v3777
      %v3779 = vpop.xlane.xlu0 %3778
      %v3780 = vsel %vm489, %v3764, 0.0
      %3781 = vadd.xlane.f32.xlu0 %v3780
      %v3782 = vpop.xlane.xlu0 %3781
      %v3783 = vsel %vm489, %v3765, 0.0
      %3784 = vadd.xlane.f32.xlu0 %v3783
      %v3785 = vpop.xlane.xlu0 %3784
      %v3786 = vsel %vm489, %v3766, 0.0
      %3787 = vadd.xlane.f32.xlu0 %v3786
      %v3788 = vpop.xlane.xlu0 %3787
      %v3789 = vsel %vm489, %v3767, 0.0
      %3790 = vadd.xlane.f32.xlu0 %v3789
      %v3791 = vpop.xlane.xlu0 %3790
      %v3792 = vmul.f32 %v3770, %v514
      %v3793 = vmul.f32 %v3773, %v514
      %v3794 = vmul.f32 %v3776, %v514
      %v3795 = vmul.f32 %v3779, %v514
      %v3796 = vmul.f32 %v3782, %v514
      %v3797 = vmul.f32 %v3785, %v514
      %v3798 = vmul.f32 %v3788, %v514
      %v3799 = vmul.f32 %v3791, %v514
      %v3800 = vadd.f32 %v3792, 1e-05
      %v3801 = vadd.f32 %v3793, 1e-05
      %v3802 = vadd.f32 %v3794, 1e-05
      %v3803 = vadd.f32 %v3795, 1e-05
      %v3804 = vadd.f32 %v3796, 1e-05
      %v3805 = vadd.f32 %v3797, 1e-05
      %v3806 = vadd.f32 %v3798, 1e-05
      %v3807 = vadd.f32 %v3799, 1e-05
      %v3808 = vrsqrt.pop %v3800
      %v3809 = vrsqrt.pop %v3801
      %v3810 = vrsqrt.pop %v3802
      %v3811 = vrsqrt.pop %v3803
      %v3812 = vrsqrt.pop %v3804
      %v3813 = vrsqrt.pop %v3805
      %v3814 = vrsqrt.pop %v3806
      %v3815 = vrsqrt.pop %v3807
      %v3816 = vmul.f32 %v3752, %v3808
      %v3817 = vmul.f32 %v3753, %v3809
      %v3818 = vmul.f32 %v3754, %v3810
      %v3819 = vmul.f32 %v3755, %v3811
      %v3820 = vmul.f32 %v3756, %v3812
      %v3821 = vmul.f32 %v3757, %v3813
      %v3822 = vmul.f32 %v3758, %v3814
      %v3823 = vmul.f32 %v3759, %v3815
      %v3825 = vlaneseq
      %v3826 = vshrl.u32 %v3825, 7
      %v3827 = vsub.s32 0, %v3826
      %v3828 = vrot.slane %v3717, %v3827
      %v3830 = vmul.f32 %v3816, %v3828
      %v3831 = vmul.f32 %v3817, %v3828
      %v3832 = vmul.f32 %v3818, %v3828
      %v3833 = vmul.f32 %v3819, %v3828
      %v3834 = vmul.f32 %v3820, %v3828
      %v3835 = vmul.f32 %v3821, %v3828
      %v3836 = vmul.f32 %v3822, %v3828
      %v3837 = vmul.f32 %v3823, %v3828
      %v3839 = vlaneseq
      %v3840 = vshrl.u32 %v3839, 7
      %v3841 = vsub.s32 0, %v3840
      %v3842 = vrot.slane %v3719, %v3841
      %v3844 = vadd.f32 %v3830, %v3842
      %v3845 = vadd.f32 %v3831, %v3842
      %v3846 = vadd.f32 %v3832, %v3842
      %v3847 = vadd.f32 %v3833, %v3842
      %v3848 = vadd.f32 %v3834, %v3842
      %v3849 = vadd.f32 %v3835, %v3842
      %v3850 = vadd.f32 %v3836, %v3842
      %v3851 = vadd.f32 %v3837, %v3842
      %v3852 = vpack.c.bf16 %v3845, %v3844
      %v3853 = vpack.c.bf16 %v3847, %v3846
      %v3854 = vpack.c.bf16 %v3849, %v3848
      %v3855 = vpack.c.bf16 %v3851, %v3850
      %s3856 = scalar_lea.vmem %s8, 16
      %v3857 = vld [vmem:[%s3856] sm:$0xf]
      %v3858 = vld [vmem:[%s3856 + $0x4] sm:$0xf]
      %v3859 = vld [vmem:[%s3856 + $0x8] sm:$0xf]
      %v3860 = vld [vmem:[%s3856 + $0xc] sm:$0xf]
      %s3861 = scalar_lea.vmem %s9, 1
      %v3862 = vld [vmem:[%s3861] sm:$0x1]
      %v3864 = vlaneseq
      %v3865 = vshrl.u32 %v3864, 7
      %v3866 = vsub.s32 0, %v3865
      %v3867 = vrot.slane %v3862, %v3866
      %v3873 = vunpack.c.l.b16 %v3857
      %v3874 = vunpack.c.l.b16 %v3858
      %v3875 = vunpack.c.l.b16 %v3859
      %v3876 = vunpack.c.l.b16 %v3860
      %v3877 = vpack.c.b16 %v3874, %v3873
      %v3878 = vpack.c.b16 %v3876, %v3875
      %v3882 = vsel %vm489, %v3852, 0
      %v3885 = vsel %vm489, %v3853, 0
      %v3888 = vsel %vm489, %v3854, 0
      %v3891 = vsel %vm489, %v3855, 0
      %3893 = vmatprep.subr.bf16.mxu0 0
      %3894 = vmatpush1.bf16.msra.mxu0 %v3877
      %3895 = vmatprep.subr.bf16.mxu0 0
      %3896 = vmatpush1.bf16.msra.mxu0 %v3878
      %3897 = vmatprep.subr.bf16.mxu0 0
      %3898 = vmatpush1.bf16.msra.mxu0 0
      %3899 = vmatprep.subr.bf16.mxu0 0
      %3900 = vmatpush1.bf16.msra.mxu0 0
      %3901 = vmatprep.subr.bf16.mxu0 0
      %3902 = vmatpush1.bf16.msra.mxu0 0
      %3903 = vmatprep.subr.bf16.mxu0 0
      %3904 = vmatpush1.bf16.msra.mxu0 0
      %3905 = vmatprep.subr.bf16.mxu0 0
      %3906 = vmatpush1.bf16.msra.mxu0 0
      %3907 = vmatprep.subr.bf16.mxu0 0
      %3908 = vmatpush1.bf16.msra.mxu0 0
      %3909 = vmatprep.subr.bf16.mxu0 0
      %3910 = vmatpush1.bf16.msra.mxu0 0
      %3911 = vmatprep.subr.bf16.mxu0 0
      %3912 = vmatpush1.bf16.msra.mxu0 0
      %3913 = vmatprep.subr.bf16.mxu0 0
      %3914 = vmatpush1.bf16.msra.mxu0 0
      %3915 = vmatprep.subr.bf16.mxu0 0
      %3916 = vmatpush1.bf16.msra.mxu0 0
      %3917 = vmatprep.subr.bf16.mxu0 0
      %3918 = vmatpush1.bf16.msra.mxu0 0
      %3919 = vmatprep.subr.bf16.mxu0 0
      %3920 = vmatpush1.bf16.msra.mxu0 0
      %3921 = vmatprep.subr.bf16.mxu0 0
      %3922 = vmatpush1.bf16.msra.mxu0 0
      %3923 = vmatprep.subr.bf16.mxu0 0
      %3924 = vmatpush1.bf16.msra.mxu0 0
      %3925 = vmatprep.mubr.bf16.mxu0 0
      %3926 = vmatmul.mubr.bf16.gmra.mrb[0].mxu0 %v3882
      %v3927 = vpop.f32.mrb[0].mxu0
      %v3928 = vadd.f32 %v3867, %v3927
      %v3929 = vpop.f32.mrb[0].mxu0
      %v3930 = vpop.f32.mrb[0].mxu0
      %v3931 = vadd.f32 %v3867, %v3930
      %v3932 = vpop.f32.mrb[0].mxu0
      %3933 = vmatprep.mubr.bf16.mxu0 0
      %3934 = vmatmul.mubr.bf16.gmra.mrb[0].mxu0 %v3885
      %v3935 = vpop.f32.mrb[0].mxu0
      %v3936 = vadd.f32 %v3867, %v3935
      %v3937 = vpop.f32.mrb[0].mxu0
      %v3938 = vpop.f32.mrb[0].mxu0
      %v3939 = vadd.f32 %v3867, %v3938
      %v3940 = vpop.f32.mrb[0].mxu0
      %3941 = vmatprep.mubr.bf16.mxu0 0
      %3942 = vmatmul.mubr.bf16.gmra.mrb[0].mxu0 %v3888
      %v3943 = vpop.f32.mrb[0].mxu0
      %v3944 = vadd.f32 %v3867, %v3943
      %v3945 = vpop.f32.mrb[0].mxu0
      %v3946 = vpop.f32.mrb[0].mxu0
      %v3947 = vadd.f32 %v3867, %v3946
      %v3948 = vpop.f32.mrb[0].mxu0
      %3949 = vmatprep.mubr.bf16.mxu0 0
      %3950 = vmatmul.mubr.bf16.gmra.mrb[0].mxu0 %v3891
      %v3951 = vpop.f32.mrb[0].mxu0
      %v3952 = vadd.f32 %v3867, %v3951
      %v3953 = vpop.f32.mrb[0].mxu0
      %v3954 = vpop.f32.mrb[0].mxu0
      %v3955 = vadd.f32 %v3867, %v3954
      %v3956 = vpop.f32.mrb[0].mxu0
      %3957 = vdwg.mxu0
      %v3958 = vmul.f32 %v3928, 0.5
      %v3959 = vmul.f32 %v3931, 0.5
      %v3960 = vmul.f32 %v3936, 0.5
      %v3961 = vmul.f32 %v3939, 0.5
      %v3962 = vmul.f32 %v3944, 0.5
      %v3963 = vmul.f32 %v3947, 0.5
      %v3964 = vmul.f32 %v3952, 0.5
      %v3965 = vmul.f32 %v3955, 0.5
      %v3966 = vmul.f32 %v3928, 0.044715
      %v3967 = vmul.f32 %v3931, 0.044715
      %v3968 = vmul.f32 %v3936, 0.044715
      %v3969 = vmul.f32 %v3939, 0.044715
      %v3970 = vmul.f32 %v3944, 0.044715
      %v3971 = vmul.f32 %v3947, 0.044715
      %v3972 = vmul.f32 %v3952, 0.044715
      %v3973 = vmul.f32 %v3955, 0.044715
      %v3974 = vmul.f32 %v3966, %v3928
      %v3975 = vmul.f32 %v3967, %v3931
      %v3976 = vmul.f32 %v3968, %v3936
      %v3977 = vmul.f32 %v3969, %v3939
      %v3978 = vmul.f32 %v3970, %v3944
      %v3979 = vmul.f32 %v3971, %v3947
      %v3980 = vmul.f32 %v3972, %v3952
      %v3981 = vmul.f32 %v3973, %v3955
      %v3982 = vmul.f32 %v3974, %v3928
      %v3983 = vmul.f32 %v3975, %v3931
      %v3984 = vmul.f32 %v3976, %v3936
      %v3985 = vmul.f32 %v3977, %v3939
      %v3986 = vmul.f32 %v3978, %v3944
      %v3987 = vmul.f32 %v3979, %v3947
      %v3988 = vmul.f32 %v3980, %v3952
      %v3989 = vmul.f32 %v3981, %v3955
      %v3990 = vadd.f32 %v3928, %v3982
      %v3991 = vadd.f32 %v3931, %v3983
      %v3992 = vadd.f32 %v3936, %v3984
      %v3993 = vadd.f32 %v3939, %v3985
      %v3994 = vadd.f32 %v3944, %v3986
      %v3995 = vadd.f32 %v3947, %v3987
      %v3996 = vadd.f32 %v3952, %v3988
      %v3997 = vadd.f32 %v3955, %v3989
      %v3998 = vmul.f32 %v3990, 0.7978846
      %v3999 = vmul.f32 %v3991, 0.7978846
      %v4000 = vmul.f32 %v3992, 0.7978846
      %v4001 = vmul.f32 %v3993, 0.7978846
      %v4002 = vmul.f32 %v3994, 0.7978846
      %v4003 = vmul.f32 %v3995, 0.7978846
      %v4004 = vmul.f32 %v3996, 0.7978846
      %v4005 = vmul.f32 %v3997, 0.7978846
      %v4006 = vtanh.pop %v3998
      %v4007 = vtanh.pop %v3999
      %v4008 = vtanh.pop %v4000
      %v4009 = vtanh.pop %v4001
      %v4010 = vtanh.pop %v4002
      %v4011 = vtanh.pop %v4003
      %v4012 = vtanh.pop %v4004
      %v4013 = vtanh.pop %v4005
      %v4014 = vadd.f32 %v4006, 1.0
      %v4015 = vadd.f32 %v4007, 1.0
      %v4016 = vadd.f32 %v4008, 1.0
      %v4017 = vadd.f32 %v4009, 1.0
      %v4018 = vadd.f32 %v4010, 1.0
      %v4019 = vadd.f32 %v4011, 1.0
      %v4020 = vadd.f32 %v4012, 1.0
      %v4021 = vadd.f32 %v4013, 1.0
      %v4022 = vmul.f32 %v3958, %v4014
      %v4023 = vmul.f32 %v3959, %v4015
      %v4024 = vmul.f32 %v3960, %v4016
      %v4025 = vmul.f32 %v3961, %v4017
      %v4026 = vmul.f32 %v3962, %v4018
      %v4027 = vmul.f32 %v3963, %v4019
      %v4028 = vmul.f32 %v3964, %v4020
      %v4029 = vmul.f32 %v3965, %v4021
      %v4030 = vpack.c.bf16 %v4023, %v4022
      %v4031 = vpack.c.bf16 %v4025, %v4024
      %v4032 = vpack.c.bf16 %v4027, %v4026
      %v4033 = vpack.c.bf16 %v4029, %v4028
      %s4034 = scalar_lea.vmem %s10, 32
      %v4035 = vld [vmem:[%s4034] sm:$0xf]
      %v4036 = vld [vmem:[%s4034 + $0x4] sm:$0xf]
      %v4037 = vld [vmem:[%s4034 + $0x8] sm:$0xf]
      %v4038 = vld [vmem:[%s4034 + $0xc] sm:$0xf]
      %v4039 = vld [vmem:[%s4034 + $0x10] sm:$0xf]
      %v4040 = vld [vmem:[%s4034 + $0x14] sm:$0xf]
      %v4041 = vld [vmem:[%s4034 + $0x18] sm:$0xf]
      %v4042 = vld [vmem:[%s4034 + $0x1c] sm:$0xf]
      %s4043 = scalar_lea.vmem %s11, 1
      %v4044 = vld [vmem:[%s4043] sm:$0x1]
      %v4046 = vlaneseq
      %v4047 = vshrl.u32 %v4046, 7
      %v4048 = vsub.s32 0, %v4047
      %v4049 = vrot.slane %v4044, %v4048
      %v4059 = vunpack.c.l.b16 %v4035
      %v4060 = vunpack.c.l.b16 %v4036
      %v4061 = vunpack.c.l.b16 %v4037
      %v4062 = vunpack.c.l.b16 %v4038
      %v4063 = vunpack.c.l.b16 %v4039
      %v4064 = vunpack.c.l.b16 %v4040
      %v4065 = vunpack.c.l.b16 %v4041
      %v4066 = vunpack.c.l.b16 %v4042
      %v4067 = vpack.c.b16 %v4060, %v4059
      %v4068 = vpack.c.b16 %v4062, %v4061
      %v4069 = vpack.c.b16 %v4064, %v4063
      %v4070 = vpack.c.b16 %v4066, %v4065
      %v4076 = vsel %vm2234, %v4030, 0
      %v4079 = vsel %vm2234, %v4031, 0
      %v4082 = vsel %vm2234, %v4032, 0
      %v4085 = vsel %vm2234, %v4033, 0
      %4087 = vmatprep.subr.bf16.mxu0 0
      %4088 = vmatpush1.bf16.msra.mxu0 %v4067
      %4089 = vmatprep.subr.bf16.mxu0 0
      %4090 = vmatpush1.bf16.msra.mxu0 %v4068
      %4091 = vmatprep.subr.bf16.mxu0 0
      %4092 = vmatpush1.bf16.msra.mxu0 %v4069
      %4093 = vmatprep.subr.bf16.mxu0 0
      %4094 = vmatpush1.bf16.msra.mxu0 %v4070
      %4095 = vmatprep.subr.bf16.mxu0 0
      %4096 = vmatpush1.bf16.msra.mxu0 0
      %4097 = vmatprep.subr.bf16.mxu0 0
      %4098 = vmatpush1.bf16.msra.mxu0 0
      %4099 = vmatprep.subr.bf16.mxu0 0
      %4100 = vmatpush1.bf16.msra.mxu0 0
      %4101 = vmatprep.subr.bf16.mxu0 0
      %4102 = vmatpush1.bf16.msra.mxu0 0
      %4103 = vmatprep.subr.bf16.mxu0 0
      %4104 = vmatpush1.bf16.msra.mxu0 0
      %4105 = vmatprep.subr.bf16.mxu0 0
      %4106 = vmatpush1.bf16.msra.mxu0 0
      %4107 = vmatprep.subr.bf16.mxu0 0
      %4108 = vmatpush1.bf16.msra.mxu0 0
      %4109 = vmatprep.subr.bf16.mxu0 0
      %4110 = vmatpush1.bf16.msra.mxu0 0
      %4111 = vmatprep.subr.bf16.mxu0 0
      %4112 = vmatpush1.bf16.msra.mxu0 0
      %4113 = vmatprep.subr.bf16.mxu0 0
      %4114 = vmatpush1.bf16.msra.mxu0 0
      %4115 = vmatprep.subr.bf16.mxu0 0
      %4116 = vmatpush1.bf16.msra.mxu0 0
      %4117 = vmatprep.subr.bf16.mxu0 0
      %4118 = vmatpush1.bf16.msra.mxu0 0
      %4119 = vmatprep.mubr.bf16.mxu0 0
      %4120 = vmatmul.mubr.bf16.gmra.mrb[0].mxu0 %v4076
      %v4121 = vpop.f32.mrb[0].mxu0
      %v4122 = vadd.f32 %v4049, %v4121
      %v4123 = vpop.f32.mrb[0].mxu0
      %v4124 = vpop.f32.mrb[0].mxu0
      %v4125 = vpop.f32.mrb[0].mxu0
      %4126 = vmatprep.mubr.bf16.mxu0 0
      %4127 = vmatmul.mubr.bf16.gmra.mrb[0].mxu0 %v4079
      %v4128 = vpop.f32.mrb[0].mxu0
      %v4129 = vadd.f32 %v4049, %v4128
      %v4130 = vpop.f32.mrb[0].mxu0
      %v4131 = vpop.f32.mrb[0].mxu0
      %v4132 = vpop.f32.mrb[0].mxu0
      %4133 = vmatprep.mubr.bf16.mxu0 0
      %4134 = vmatmul.mubr.bf16.gmra.mrb[0].mxu0 %v4082
      %v4135 = vpop.f32.mrb[0].mxu0
      %v4136 = vadd.f32 %v4049, %v4135
      %v4137 = vpop.f32.mrb[0].mxu0
      %v4138 = vpop.f32.mrb[0].mxu0
      %v4139 = vpop.f32.mrb[0].mxu0
      %4140 = vmatprep.mubr.bf16.mxu0 0
      %4141 = vmatmul.mubr.bf16.gmra.mrb[0].mxu0 %v4085
      %v4142 = vpop.f32.mrb[0].mxu0
      %v4143 = vadd.f32 %v4049, %v4142
      %v4144 = vpop.f32.mrb[0].mxu0
      %v4145 = vpop.f32.mrb[0].mxu0
      %v4146 = vpop.f32.mrb[0].mxu0
      %4147 = vdwg.mxu0
      %v4148 = vadd.f32 %v3708, %v4122
      %v4149 = vadd.f32 %v3710, %v4129
      %v4150 = vadd.f32 %v3712, %v4136
      %v4151 = vadd.f32 %v3714, %v4143
      %v4152 = vld [vmem:[%s12] sm:$0x1]
      %v4153 = vld [vmem:[%s13] sm:$0x1]
      %vm4154 = vcmask 257024
      %v4155 = vsel %vm4154, %v4148, 0.0
      %4156 = vadd.xlane.f32.xlu0 %v4155
      %v4157 = vpop.xlane.xlu0 %4156
      %v4158 = vsel %vm4154, %v4149, 0.0
      %4159 = vadd.xlane.f32.xlu0 %v4158
      %v4160 = vpop.xlane.xlu0 %4159
      %v4161 = vsel %vm4154, %v4150, 0.0
      %4162 = vadd.xlane.f32.xlu0 %v4161
      %v4163 = vpop.xlane.xlu0 %4162
      %v4164 = vsel %vm4154, %v4151, 0.0
      %4165 = vadd.xlane.f32.xlu0 %v4164
      %v4166 = vpop.xlane.xlu0 %4165
      %v4167 = vmul.f32 %v4157, %v514
      %v4168 = vmul.f32 %v4160, %v514
      %v4169 = vmul.f32 %v4163, %v514
      %v4170 = vmul.f32 %v4166, %v514
      %v4171 = vsub.f32 %v4148, %v4167
      %v4172 = vsub.f32 %v4149, %v4168
      %v4173 = vsub.f32 %v4150, %v4169
      %v4174 = vsub.f32 %v4151, %v4170
      %v4175 = vmul.f32 %v4171, %v4171
      %v4176 = vmul.f32 %v4172, %v4172
      %v4177 = vmul.f32 %v4173, %v4173
      %v4178 = vmul.f32 %v4174, %v4174
      %v4179 = vsel %vm4154, %v4175, 0.0
      %4180 = vadd.xlane.f32.xlu0 %v4179
      %v4181 = vpop.xlane.xlu0 %4180
      %v4182 = vsel %vm4154, %v4176, 0.0
      %4183 = vadd.xlane.f32.xlu0 %v4182
      %v4184 = vpop.xlane.xlu0 %4183
      %v4185 = vsel %vm4154, %v4177, 0.0
      %4186 = vadd.xlane.f32.xlu0 %v4185
      %v4187 = vpop.xlane.xlu0 %4186
      %v4188 = vsel %vm4154, %v4178, 0.0
      %4189 = vadd.xlane.f32.xlu0 %v4188
      %v4190 = vpop.xlane.xlu0 %4189
      %v4191 = vmul.f32 %v4181, %v514
      %v4192 = vmul.f32 %v4184, %v514
      %v4193 = vmul.f32 %v4187, %v514
      %v4194 = vmul.f32 %v4190, %v514
      %v4195 = vadd.f32 %v4191, 1e-05
      %v4196 = vadd.f32 %v4192, 1e-05
      %v4197 = vadd.f32 %v4193, 1e-05
      %v4198 = vadd.f32 %v4194, 1e-05
      %v4199 = vrsqrt.pop %v4195
      %v4200 = vrsqrt.pop %v4196
      %v4201 = vrsqrt.pop %v4197
      %v4202 = vrsqrt.pop %v4198
      %v4203 = vmul.f32 %v4171, %v4199
      %v4204 = vmul.f32 %v4172, %v4200
      %v4205 = vmul.f32 %v4173, %v4201
      %v4206 = vmul.f32 %v4174, %v4202
      %v4208 = vlaneseq
      %v4209 = vshrl.u32 %v4208, 7
      %v4210 = vsub.s32 0, %v4209
      %v4211 = vrot.slane %v4152, %v4210
      %v4213 = vmul.f32 %v4203, %v4211
      %v4214 = vmul.f32 %v4204, %v4211
      %v4215 = vmul.f32 %v4205, %v4211
      %v4216 = vmul.f32 %v4206, %v4211
      %v4218 = vlaneseq
      %v4219 = vshrl.u32 %v4218, 7
      %v4220 = vsub.s32 0, %v4219
      %v4221 = vrot.slane %v4153, %v4220
      %v4223 = vadd.f32 %v4213, %v4221
      %v4224 = vadd.f32 %v4214, %v4221
      %v4225 = vadd.f32 %v4215, %v4221
      %v4226 = vadd.f32 %v4216, %v4221
      %4227 = vst.msk [vmem:[%s472] sm:$0xf] %vm4154, %v4223
      %4228 = vst.msk [vmem:[%s472 + $0x4] sm:$0xf] %vm4154, %v4224
      %4229 = vst.msk [vmem:[%s472 + $0x8] sm:$0xf] %vm4154, %v4225
      %4230 = vst.msk [vmem:[%s472 + $0xc] sm:$0xf] %vm4154, %v4226
      %s4231 = smul.u32 4, %s25
      %p4232 = scmp.lt.s32.totalorder %s4231, 7
      %s4233 = scalar_select %p4232, %s4231, 7
      %s4234 = smul.addr %s4233, 4
      %s4235 = scalar_lea.vmem %s14, %s4234
      // Predicated region
      $region77: #{tsvit_forward.4} parent=75 // pred_check
        %p4236 = pneg %p342
      $region78: #{tsvit_forward.4} parent=75 // pred_check_branch
        %4238 = sbr.rel (%p4236) target = $region80
      $region79: #{tsvit_forward.4} parent=75 // pred_region
        %s4239 = smul.u32 4, %s25
      $region80: #{tsvit_forward.4} parent=75 // pred_fallthru
        _
    $region76: #{tsvit_forward.4} parent=5 // pred_fallthru
      _
    %p4240 = scmp.le.s32.totalorder 2, %s20
    // Predicated region
    $region81: #{tsvit_forward.4} parent=5 // pred_check
      %p4241 = pneg %p4240
    $region82: #{tsvit_forward.4} parent=5 // pred_check_branch
      %4243 = sbr.rel (%p4241) target = $region84
    $region83: #{tsvit_forward.4} parent=5 // pred_region
      %s4244 = ssub.s32 %s20, 2
      // Predicated region
      $region85: #{tsvit_forward.4} parent=83 // pred_check
        %p4245 = pneg %p348
      $region86: #{tsvit_forward.4} parent=83 // pred_check_branch
        %4247 = sbr.rel (%p4245) target = $region88
      $region87: #{tsvit_forward.4} parent=83 // pred_region
        %s4248 = smul.u32 4, %s26
        %p4249 = scmp.lt.s32.totalorder %s4248, 7
        %s4250 = scalar_select %p4249, %s4248, 7
        %s4251 = smul.addr %s4250, 4
        %s4252 = scalar_lea.vmem %s14, %s4251
      $region88: #{tsvit_forward.4} parent=83 // pred_fallthru
        _
    $region84: #{tsvit_forward.4} parent=5 // pred_fallthru
      _
  $region6: #{tsvit_forward.4} parent=0 // loop_footer
    %s24 = sadd.s32 1, %s20
  $region7: #{tsvit_forward.4} parent=0 // loop_footer_branch
    %19 = sbr.rel target = $region3
  $region8: #{tsvit_forward.4} parent=0 // loop_exit
    _

// kernel: tsvit_forward.5
$region0: #{tsvit_forward.5}
  #allocation0 [shape = 'u32[]', space=smem, size = 0x4, offset = 0x4, fixed_abs, tag = 'smem constant byte address 0x4 - core index']
  #allocation1 [shape = 'u32[144,128]{1,0:T(1,128)}', space=vmem, size = 0x12000, scoped, tag = 'internal scratch']
  #allocation2 [shape = 'f32[1,1]{1,0:T(1,128)S(1)}', space=vmem, size = 0x200, scoped, tag = 'scoped memory for tsvit_forward.5']
  %s0 = inlined_call_operand.vmem [shape: f32[8,8,32], index: 0, kind: input, shape index: {}]
  %s1 = inlined_call_operand.vmem [shape: f32[2,1,32], index: 1, kind: input, shape index: {}]
  %s2 = inlined_call_operand.vmem [shape: f32[2,1,32], index: 2, kind: input, shape index: {}]
  %s3 = inlined_call_operand.vmem [shape: bf16[2,32,96], index: 3, kind: input, shape index: {}]
  %s4 = inlined_call_operand.vmem [shape: bf16[2,32,32], index: 4, kind: input, shape index: {}]
  %s5 = inlined_call_operand.vmem [shape: f32[2,1,32], index: 5, kind: input, shape index: {}]
  %s6 = inlined_call_operand.vmem [shape: f32[2,1,32], index: 6, kind: input, shape index: {}]
  %s7 = inlined_call_operand.vmem [shape: f32[2,1,32], index: 7, kind: input, shape index: {}]
  %s8 = inlined_call_operand.vmem [shape: bf16[2,32,64], index: 8, kind: input, shape index: {}]
  %s9 = inlined_call_operand.vmem [shape: f32[2,1,64], index: 9, kind: input, shape index: {}]
  %s10 = inlined_call_operand.vmem [shape: bf16[2,64,32], index: 10, kind: input, shape index: {}]
  %s11 = inlined_call_operand.vmem [shape: f32[2,1,32], index: 11, kind: input, shape index: {}]
  %s12 = inlined_call_operand.vmem [shape: f32[1,32], index: 12, kind: input, shape index: {}]
  %s13 = inlined_call_operand.vmem [shape: f32[1,32], index: 13, kind: input, shape index: {}]
  %s14 = inlined_call_operand.vmem [shape: f32[1,32], index: 14, kind: input, shape index: {}]
  %s15 = inlined_call_operand.vmem [shape: f32[1,32], index: 15, kind: input, shape index: {}]
  %s16 = inlined_call_operand.vmem [shape: f32[1,32], index: 16, kind: input, shape index: {}]
  %s17 = inlined_call_operand.<no memory space> [shape: f32[1,1], index: 17, kind: input, shape index: {}]
  %s18 = inlined_call_operand.vmem [shape: f32[8,1,1], index: 18, kind: output, shape index: {}]
  %s19 = sld [smem:[#allocation0]]
  $region105: #{tsvit_forward.5} parent=0
    _
  %s21 = ssub.s32 1, %s19
  %s22 = scalar_select 0, %s21, %s19
  %v23 = vstv %s17
  %24 = vst [vmem:[#allocation2] sm:$0x1] %v23
  loop: start=0, step=1, limit=4
  $region2: #{tsvit_forward.5} parent=0 // loop_pre_header
    _
  $region3: #{tsvit_forward.5} parent=0 // loop_header
    %s26 = sphi 0, %s30
    %p27 = scmp.ge.s32.totalorder %s26, 4
    %s36 = sphi 0, %s38
    %s39 = sphi 0, %s36
    %s40 = sphi 0, %s39
    %s56 = sphi 0, %s40
    %s60 = sphi 0, %s60
    %s62 = sphi 0, %s60
    %s63 = sphi 0, %s62
    %s77 = sphi 0, %s63
    %s81 = sphi 0, %s81
    %s83 = sphi 0, %s81
    %s84 = sphi 0, %s83
    %s98 = sphi 0, %s84
    %s102 = sphi 0, %s102
    %s104 = sphi 0, %s102
    %s105 = sphi 0, %s104
    %s119 = sphi 0, %s105
    %s123 = sphi 0, %s123
    %s125 = sphi 0, %s123
    %s126 = sphi 0, %s125
    %s140 = sphi 0, %s126
    %s144 = sphi 0, %s144
    %s146 = sphi 0, %s144
    %s147 = sphi 0, %s146
    %s161 = sphi 0, %s147
    %s165 = sphi 0, %s165
    %s167 = sphi 0, %s165
    %s168 = sphi 0, %s167
    %s182 = sphi 0, %s168
    %s186 = sphi 0, %s186
    %s188 = sphi 0, %s186
    %s189 = sphi 0, %s188
    %s203 = sphi 0, %s189
    %s207 = sphi 0, %s207
    %s209 = sphi 0, %s207
    %s210 = sphi 0, %s209
    %s224 = sphi 0, %s210
    %s228 = sphi 0, %s228
    %s230 = sphi 0, %s228
    %s231 = sphi 0, %s230
    %s245 = sphi 0, %s231
    %s249 = sphi 0, %s249
    %s251 = sphi 0, %s249
    %s252 = sphi 0, %s251
    %s266 = sphi 0, %s252
    %s270 = sphi 0, %s270
    %s272 = sphi 0, %s270
    %s273 = sphi 0, %s272
    %s287 = sphi 0, %s273
    %s291 = sphi 0, %s291
    %s293 = sphi 0, %s291
    %s294 = sphi 0, %s293
    %s308 = sphi 0, %s294
    %s312 = sphi 0, %s312
    %s314 = sphi 0, %s312
    %s315 = sphi 0, %s314
    %s329 = sphi 0, %s315
    %s333 = sphi 0, %s333
    %s335 = sphi 0, %s333
    %s336 = sphi 0, %s335
    %s350 = sphi 0, %s336
    %s354 = sphi 0, %s354
    %s356 = sphi 0, %s354
    %s357 = sphi 0, %s356
    %s371 = sphi 0, %s357
    %s375 = sphi 0, %s375
    %s377 = sphi 0, %s375
    %s378 = sphi 0, %s377
    %s392 = sphi 0, %s378
    %s396 = sphi 0, %s396
    %s398 = sphi 0, %s396
    %s399 = sphi 0, %s398
    %s413 = sphi 0, %s399
    %s419 = sphi 0, %s421
    %s422 = sphi 0, %s419
    %s423 = sphi 0, %s422
    %s439 = sphi 0, %s423
  $region4: #{tsvit_forward.5} parent=0 // loop_header_branch
    %29 = sbr.rel (%p27) target = $region8
  $region5: #{tsvit_forward.5} parent=0 // loop_body
    %s31 = ssub.s32 %s26, 1
    %s32 = ssub.s32 %s26, 2
    %s33 = sadd.s32 %s26, 1
    %s34 = ssub.s32 %s26, %s33
    %p35 = scmp.eq.s32.totalorder %s34, 0
    %s37 = sadd.s32 %s36, 1
    %s38 = scalar_select %p35, %s36, %s37
    %p41 = pneg %p35
    %p42 = scmp.eq.s32.totalorder %s26, 1
    %p43 = por %p41, %p42
    %p44 = scmp.ne.s32.totalorder %s36, %s39
    %p45 = scmp.eq.s32.totalorder %s26, 0
    %p46 = por %p44, %p45
    %p47 = scmp.ne.s32.totalorder %s36, %s39
    %p48 = scmp.eq.s32.totalorder %s31, 1
    %p49 = por %p47, %p48
    %p50 = scmp.ne.s32.totalorder %s39, %s40
    %p51 = scmp.eq.s32.totalorder %s31, 0
    %p52 = por %p50, %p51
    %p53 = scmp.ne.s32.totalorder %s39, %s40
    %p54 = scmp.eq.s32.totalorder %s32, 1
    %p55 = por %p53, %p54
    %p57 = scmp.ne.s32.totalorder %s40, %s56
    %p58 = scmp.eq.s32.totalorder %s32, 0
    %p59 = por %p57, %p58
    %s61 = sadd.s32 %s60, 1
    %p64 = scmp.eq.s32.totalorder %s26, 1
    %p65 = scmp.ne.s32.totalorder %s60, %s62
    %p66 = scmp.eq.s32.totalorder %s26, 0
    %p67 = por %p65, %p66
    %p68 = scmp.ne.s32.totalorder %s60, %s62
    %p69 = scmp.eq.s32.totalorder %s31, 1
    %p70 = por %p68, %p69
    %p71 = scmp.ne.s32.totalorder %s62, %s63
    %p72 = scmp.eq.s32.totalorder %s31, 0
    %p73 = por %p71, %p72
    %p74 = scmp.ne.s32.totalorder %s62, %s63
    %p75 = scmp.eq.s32.totalorder %s32, 1
    %p76 = por %p74, %p75
    %p78 = scmp.ne.s32.totalorder %s63, %s77
    %p79 = scmp.eq.s32.totalorder %s32, 0
    %p80 = por %p78, %p79
    %s82 = sadd.s32 %s81, 1
    %p85 = scmp.eq.s32.totalorder %s26, 1
    %p86 = scmp.ne.s32.totalorder %s81, %s83
    %p87 = scmp.eq.s32.totalorder %s26, 0
    %p88 = por %p86, %p87
    %p89 = scmp.ne.s32.totalorder %s81, %s83
    %p90 = scmp.eq.s32.totalorder %s31, 1
    %p91 = por %p89, %p90
    %p92 = scmp.ne.s32.totalorder %s83, %s84
    %p93 = scmp.eq.s32.totalorder %s31, 0
    %p94 = por %p92, %p93
    %p95 = scmp.ne.s32.totalorder %s83, %s84
    %p96 = scmp.eq.s32.totalorder %s32, 1
    %p97 = por %p95, %p96
    %p99 = scmp.ne.s32.totalorder %s84, %s98
    %p100 = scmp.eq.s32.totalorder %s32, 0
    %p101 = por %p99, %p100
    %s103 = sadd.s32 %s102, 1
    %p106 = scmp.eq.s32.totalorder %s26, 1
    %p107 = scmp.ne.s32.totalorder %s102, %s104
    %p108 = scmp.eq.s32.totalorder %s26, 0
    %p109 = por %p107, %p108
    %p110 = scmp.ne.s32.totalorder %s102, %s104
    %p111 = scmp.eq.s32.totalorder %s31, 1
    %p112 = por %p110, %p111
    %p113 = scmp.ne.s32.totalorder %s104, %s105
    %p114 = scmp.eq.s32.totalorder %s31, 0
    %p115 = por %p113, %p114
    %p116 = scmp.ne.s32.totalorder %s104, %s105
    %p117 = scmp.eq.s32.totalorder %s32, 1
    %p118 = por %p116, %p117
    %p120 = scmp.ne.s32.totalorder %s105, %s119
    %p121 = scmp.eq.s32.totalorder %s32, 0
    %p122 = por %p120, %p121
    %s124 = sadd.s32 %s123, 1
    %p127 = scmp.eq.s32.totalorder %s26, 1
    %p128 = scmp.ne.s32.totalorder %s123, %s125
    %p129 = scmp.eq.s32.totalorder %s26, 0
    %p130 = por %p128, %p129
    %p131 = scmp.ne.s32.totalorder %s123, %s125
    %p132 = scmp.eq.s32.totalorder %s31, 1
    %p133 = por %p131, %p132
    %p134 = scmp.ne.s32.totalorder %s125, %s126
    %p135 = scmp.eq.s32.totalorder %s31, 0
    %p136 = por %p134, %p135
    %p137 = scmp.ne.s32.totalorder %s125, %s126
    %p138 = scmp.eq.s32.totalorder %s32, 1
    %p139 = por %p137, %p138
    %p141 = scmp.ne.s32.totalorder %s126, %s140
    %p142 = scmp.eq.s32.totalorder %s32, 0
    %p143 = por %p141, %p142
    %s145 = sadd.s32 %s144, 1
    %p148 = scmp.eq.s32.totalorder %s26, 1
    %p149 = scmp.ne.s32.totalorder %s144, %s146
    %p150 = scmp.eq.s32.totalorder %s26, 0
    %p151 = por %p149, %p150
    %p152 = scmp.ne.s32.totalorder %s144, %s146
    %p153 = scmp.eq.s32.totalorder %s31, 1
    %p154 = por %p152, %p153
    %p155 = scmp.ne.s32.totalorder %s146, %s147
    %p156 = scmp.eq.s32.totalorder %s31, 0
    %p157 = por %p155, %p156
    %p158 = scmp.ne.s32.totalorder %s146, %s147
    %p159 = scmp.eq.s32.totalorder %s32, 1
    %p160 = por %p158, %p159
    %p162 = scmp.ne.s32.totalorder %s147, %s161
    %p163 = scmp.eq.s32.totalorder %s32, 0
    %p164 = por %p162, %p163
    %s166 = sadd.s32 %s165, 1
    %p169 = scmp.eq.s32.totalorder %s26, 1
    %p170 = scmp.ne.s32.totalorder %s165, %s167
    %p171 = scmp.eq.s32.totalorder %s26, 0
    %p172 = por %p170, %p171
    %p173 = scmp.ne.s32.totalorder %s165, %s167
    %p174 = scmp.eq.s32.totalorder %s31, 1
    %p175 = por %p173, %p174
    %p176 = scmp.ne.s32.totalorder %s167, %s168
    %p177 = scmp.eq.s32.totalorder %s31, 0
    %p178 = por %p176, %p177
    %p179 = scmp.ne.s32.totalorder %s167, %s168
    %p180 = scmp.eq.s32.totalorder %s32, 1
    %p181 = por %p179, %p180
    %p183 = scmp.ne.s32.totalorder %s168, %s182
    %p184 = scmp.eq.s32.totalorder %s32, 0
    %p185 = por %p183, %p184
    %s187 = sadd.s32 %s186, 1
    %p190 = scmp.eq.s32.totalorder %s26, 1
    %p191 = scmp.ne.s32.totalorder %s186, %s188
    %p192 = scmp.eq.s32.totalorder %s26, 0
    %p193 = por %p191, %p192
    %p194 = scmp.ne.s32.totalorder %s186, %s188
    %p195 = scmp.eq.s32.totalorder %s31, 1
    %p196 = por %p194, %p195
    %p197 = scmp.ne.s32.totalorder %s188, %s189
    %p198 = scmp.eq.s32.totalorder %s31, 0
    %p199 = por %p197, %p198
    %p200 = scmp.ne.s32.totalorder %s188, %s189
    %p201 = scmp.eq.s32.totalorder %s32, 1
    %p202 = por %p200, %p201
    %p204 = scmp.ne.s32.totalorder %s189, %s203
    %p205 = scmp.eq.s32.totalorder %s32, 0
    %p206 = por %p204, %p205
    %s208 = sadd.s32 %s207, 1
    %p211 = scmp.eq.s32.totalorder %s26, 1
    %p212 = scmp.ne.s32.totalorder %s207, %s209
    %p213 = scmp.eq.s32.totalorder %s26, 0
    %p214 = por %p212, %p213
    %p215 = scmp.ne.s32.totalorder %s207, %s209
    %p216 = scmp.eq.s32.totalorder %s31, 1
    %p217 = por %p215, %p216
    %p218 = scmp.ne.s32.totalorder %s209, %s210
    %p219 = scmp.eq.s32.totalorder %s31, 0
    %p220 = por %p218, %p219
    %p221 = scmp.ne.s32.totalorder %s209, %s210
    %p222 = scmp.eq.s32.totalorder %s32, 1
    %p223 = por %p221, %p222
    %p225 = scmp.ne.s32.totalorder %s210, %s224
    %p226 = scmp.eq.s32.totalorder %s32, 0
    %p227 = por %p225, %p226
    %s229 = sadd.s32 %s228, 1
    %p232 = scmp.eq.s32.totalorder %s26, 1
    %p233 = scmp.ne.s32.totalorder %s228, %s230
    %p234 = scmp.eq.s32.totalorder %s26, 0
    %p235 = por %p233, %p234
    %p236 = scmp.ne.s32.totalorder %s228, %s230
    %p237 = scmp.eq.s32.totalorder %s31, 1
    %p238 = por %p236, %p237
    %p239 = scmp.ne.s32.totalorder %s230, %s231
    %p240 = scmp.eq.s32.totalorder %s31, 0
    %p241 = por %p239, %p240
    %p242 = scmp.ne.s32.totalorder %s230, %s231
    %p243 = scmp.eq.s32.totalorder %s32, 1
    %p244 = por %p242, %p243
    %p246 = scmp.ne.s32.totalorder %s231, %s245
    %p247 = scmp.eq.s32.totalorder %s32, 0
    %p248 = por %p246, %p247
    %s250 = sadd.s32 %s249, 1
    %p253 = scmp.eq.s32.totalorder %s26, 1
    %p254 = scmp.ne.s32.totalorder %s249, %s251
    %p255 = scmp.eq.s32.totalorder %s26, 0
    %p256 = por %p254, %p255
    %p257 = scmp.ne.s32.totalorder %s249, %s251
    %p258 = scmp.eq.s32.totalorder %s31, 1
    %p259 = por %p257, %p258
    %p260 = scmp.ne.s32.totalorder %s251, %s252
    %p261 = scmp.eq.s32.totalorder %s31, 0
    %p262 = por %p260, %p261
    %p263 = scmp.ne.s32.totalorder %s251, %s252
    %p264 = scmp.eq.s32.totalorder %s32, 1
    %p265 = por %p263, %p264
    %p267 = scmp.ne.s32.totalorder %s252, %s266
    %p268 = scmp.eq.s32.totalorder %s32, 0
    %p269 = por %p267, %p268
    %s271 = sadd.s32 %s270, 1
    %p274 = scmp.eq.s32.totalorder %s26, 1
    %p275 = scmp.ne.s32.totalorder %s270, %s272
    %p276 = scmp.eq.s32.totalorder %s26, 0
    %p277 = por %p275, %p276
    %p278 = scmp.ne.s32.totalorder %s270, %s272
    %p279 = scmp.eq.s32.totalorder %s31, 1
    %p280 = por %p278, %p279
    %p281 = scmp.ne.s32.totalorder %s272, %s273
    %p282 = scmp.eq.s32.totalorder %s31, 0
    %p283 = por %p281, %p282
    %p284 = scmp.ne.s32.totalorder %s272, %s273
    %p285 = scmp.eq.s32.totalorder %s32, 1
    %p286 = por %p284, %p285
    %p288 = scmp.ne.s32.totalorder %s273, %s287
    %p289 = scmp.eq.s32.totalorder %s32, 0
    %p290 = por %p288, %p289
    %s292 = sadd.s32 %s291, 1
    %p295 = scmp.eq.s32.totalorder %s26, 1
    %p296 = scmp.ne.s32.totalorder %s291, %s293
    %p297 = scmp.eq.s32.totalorder %s26, 0
    %p298 = por %p296, %p297
    %p299 = scmp.ne.s32.totalorder %s291, %s293
    %p300 = scmp.eq.s32.totalorder %s31, 1
    %p301 = por %p299, %p300
    %p302 = scmp.ne.s32.totalorder %s293, %s294
    %p303 = scmp.eq.s32.totalorder %s31, 0
    %p304 = por %p302, %p303
    %p305 = scmp.ne.s32.totalorder %s293, %s294
    %p306 = scmp.eq.s32.totalorder %s32, 1
    %p307 = por %p305, %p306
    %p309 = scmp.ne.s32.totalorder %s294, %s308
    %p310 = scmp.eq.s32.totalorder %s32, 0
    %p311 = por %p309, %p310
    %s313 = sadd.s32 %s312, 1
    %p316 = scmp.eq.s32.totalorder %s26, 1
    %p317 = scmp.ne.s32.totalorder %s312, %s314
    %p318 = scmp.eq.s32.totalorder %s26, 0
    %p319 = por %p317, %p318
    %p320 = scmp.ne.s32.totalorder %s312, %s314
    %p321 = scmp.eq.s32.totalorder %s31, 1
    %p322 = por %p320, %p321
    %p323 = scmp.ne.s32.totalorder %s314, %s315
    %p324 = scmp.eq.s32.totalorder %s31, 0
    %p325 = por %p323, %p324
    %p326 = scmp.ne.s32.totalorder %s314, %s315
    %p327 = scmp.eq.s32.totalorder %s32, 1
    %p328 = por %p326, %p327
    %p330 = scmp.ne.s32.totalorder %s315, %s329
    %p331 = scmp.eq.s32.totalorder %s32, 0
    %p332 = por %p330, %p331
    %s334 = sadd.s32 %s333, 1
    %p337 = scmp.eq.s32.totalorder %s26, 1
    %p338 = scmp.ne.s32.totalorder %s333, %s335
    %p339 = scmp.eq.s32.totalorder %s26, 0
    %p340 = por %p338, %p339
    %p341 = scmp.ne.s32.totalorder %s333, %s335
    %p342 = scmp.eq.s32.totalorder %s31, 1
    %p343 = por %p341, %p342
    %p344 = scmp.ne.s32.totalorder %s335, %s336
    %p345 = scmp.eq.s32.totalorder %s31, 0
    %p346 = por %p344, %p345
    %p347 = scmp.ne.s32.totalorder %s335, %s336
    %p348 = scmp.eq.s32.totalorder %s32, 1
    %p349 = por %p347, %p348
    %p351 = scmp.ne.s32.totalorder %s336, %s350
    %p352 = scmp.eq.s32.totalorder %s32, 0
    %p353 = por %p351, %p352
    %s355 = sadd.s32 %s354, 1
    %p358 = scmp.eq.s32.totalorder %s26, 1
    %p359 = scmp.ne.s32.totalorder %s354, %s356
    %p360 = scmp.eq.s32.totalorder %s26, 0
    %p361 = por %p359, %p360
    %p362 = scmp.ne.s32.totalorder %s354, %s356
    %p363 = scmp.eq.s32.totalorder %s31, 1
    %p364 = por %p362, %p363
    %p365 = scmp.ne.s32.totalorder %s356, %s357
    %p366 = scmp.eq.s32.totalorder %s31, 0
    %p367 = por %p365, %p366
    %p368 = scmp.ne.s32.totalorder %s356, %s357
    %p369 = scmp.eq.s32.totalorder %s32, 1
    %p370 = por %p368, %p369
    %p372 = scmp.ne.s32.totalorder %s357, %s371
    %p373 = scmp.eq.s32.totalorder %s32, 0
    %p374 = por %p372, %p373
    %s376 = sadd.s32 %s375, 1
    %p379 = scmp.eq.s32.totalorder %s26, 1
    %p380 = scmp.ne.s32.totalorder %s375, %s377
    %p381 = scmp.eq.s32.totalorder %s26, 0
    %p382 = por %p380, %p381
    %p383 = scmp.ne.s32.totalorder %s375, %s377
    %p384 = scmp.eq.s32.totalorder %s31, 1
    %p385 = por %p383, %p384
    %p386 = scmp.ne.s32.totalorder %s377, %s378
    %p387 = scmp.eq.s32.totalorder %s31, 0
    %p388 = por %p386, %p387
    %p389 = scmp.ne.s32.totalorder %s377, %s378
    %p390 = scmp.eq.s32.totalorder %s32, 1
    %p391 = por %p389, %p390
    %p393 = scmp.ne.s32.totalorder %s378, %s392
    %p394 = scmp.eq.s32.totalorder %s32, 0
    %p395 = por %p393, %p394
    %s397 = sadd.s32 %s396, 1
    %p400 = scmp.eq.s32.totalorder %s26, 1
    %p401 = scmp.ne.s32.totalorder %s396, %s398
    %p402 = scmp.eq.s32.totalorder %s26, 0
    %p403 = por %p401, %p402
    %p404 = scmp.ne.s32.totalorder %s396, %s398
    %p405 = scmp.eq.s32.totalorder %s31, 1
    %p406 = por %p404, %p405
    %p407 = scmp.ne.s32.totalorder %s398, %s399
    %p408 = scmp.eq.s32.totalorder %s31, 0
    %p409 = por %p407, %p408
    %p410 = scmp.ne.s32.totalorder %s398, %s399
    %p411 = scmp.eq.s32.totalorder %s32, 1
    %p412 = por %p410, %p411
    %p414 = scmp.ne.s32.totalorder %s399, %s413
    %p415 = scmp.eq.s32.totalorder %s32, 0
    %p416 = por %p414, %p415
    %s417 = ssub.s32 %s26, %s33
    %p418 = scmp.eq.s32.totalorder %s417, 0
    %s420 = sadd.s32 %s419, 1
    %s421 = scalar_select %p418, %s419, %s420
    %p424 = pneg %p418
    %p425 = scmp.eq.s32.totalorder %s26, 1
    %p426 = por %p424, %p425
    %p427 = scmp.ne.s32.totalorder %s419, %s422
    %p428 = scmp.eq.s32.totalorder %s26, 0
    %p429 = por %p427, %p428
    %p430 = scmp.ne.s32.totalorder %s419, %s422
    %p431 = scmp.eq.s32.totalorder %s31, 1
    %p432 = por %p430, %p431
    %p433 = scmp.ne.s32.totalorder %s422, %s423
    %p434 = scmp.eq.s32.totalorder %s31, 0
    %p435 = por %p433, %p434
    %p436 = scmp.ne.s32.totalorder %s422, %s423
    %p437 = scmp.eq.s32.totalorder %s32, 1
    %p438 = por %p436, %p437
    %p440 = scmp.ne.s32.totalorder %s423, %s439
    %p441 = scmp.eq.s32.totalorder %s32, 0
    %p442 = por %p440, %p441
    %p443 = scmp.le.s32.totalorder 1, %s26
    %p444 = scmp.lt.s32.totalorder %s26, 3
    %p445 = pnand %p443, %p444
    %p446 = pneg %p445
    // Predicated region
    $region9: #{tsvit_forward.5} parent=5 // pred_check
      _
    $region10: #{tsvit_forward.5} parent=5 // pred_check_branch
      %448 = sbr.rel (%p445) target = $region12
    $region11: #{tsvit_forward.5} parent=5 // pred_region
      %s449 = ssub.s32 %s26, 1
      // Predicated region
      $region13: #{tsvit_forward.5} parent=11 // pred_check
        %p450 = pneg %p73
      $region14: #{tsvit_forward.5} parent=11 // pred_check_branch
        %452 = sbr.rel (%p450) target = $region16
      $region15: #{tsvit_forward.5} parent=11 // pred_region
        _
      $region16: #{tsvit_forward.5} parent=11 // pred_fallthru
        _
      // Predicated region
      $region17: #{tsvit_forward.5} parent=11 // pred_check
        %p453 = pneg %p94
      $region18: #{tsvit_forward.5} parent=11 // pred_check_branch
        %455 = sbr.rel (%p453) target = $region20
      $region19: #{tsvit_forward.5} parent=11 // pred_region
        _
      $region20: #{tsvit_forward.5} parent=11 // pred_fallthru
        _
      // Predicated region
      $region21: #{tsvit_forward.5} parent=11 // pred_check
        %p456 = pneg %p115
      $region22: #{tsvit_forward.5} parent=11 // pred_check_branch
        %458 = sbr.rel (%p456) target = $region24
      $region23: #{tsvit_forward.5} parent=11 // pred_region
        _
      $region24: #{tsvit_forward.5} parent=11 // pred_fallthru
        _
      // Predicated region
      $region25: #{tsvit_forward.5} parent=11 // pred_check
        %p459 = pneg %p136
      $region26: #{tsvit_forward.5} parent=11 // pred_check_branch
        %461 = sbr.rel (%p459) target = $region28
      $region27: #{tsvit_forward.5} parent=11 // pred_region
        _
      $region28: #{tsvit_forward.5} parent=11 // pred_fallthru
        _
      // Predicated region
      $region29: #{tsvit_forward.5} parent=11 // pred_check
        %p462 = pneg %p157
      $region30: #{tsvit_forward.5} parent=11 // pred_check_branch
        %464 = sbr.rel (%p462) target = $region32
      $region31: #{tsvit_forward.5} parent=11 // pred_region
        _
      $region32: #{tsvit_forward.5} parent=11 // pred_fallthru
        _
      // Predicated region
      $region33: #{tsvit_forward.5} parent=11 // pred_check
        %p465 = pneg %p178
      $region34: #{tsvit_forward.5} parent=11 // pred_check_branch
        %467 = sbr.rel (%p465) target = $region36
      $region35: #{tsvit_forward.5} parent=11 // pred_region
        _
      $region36: #{tsvit_forward.5} parent=11 // pred_fallthru
        _
      // Predicated region
      $region37: #{tsvit_forward.5} parent=11 // pred_check
        %p468 = pneg %p199
      $region38: #{tsvit_forward.5} parent=11 // pred_check_branch
        %470 = sbr.rel (%p468) target = $region40
      $region39: #{tsvit_forward.5} parent=11 // pred_region
        _
      $region40: #{tsvit_forward.5} parent=11 // pred_fallthru
        _
      // Predicated region
      $region41: #{tsvit_forward.5} parent=11 // pred_check
        %p471 = pneg %p220
      $region42: #{tsvit_forward.5} parent=11 // pred_check_branch
        %473 = sbr.rel (%p471) target = $region44
      $region43: #{tsvit_forward.5} parent=11 // pred_region
        _
      $region44: #{tsvit_forward.5} parent=11 // pred_fallthru
        _
      // Predicated region
      $region45: #{tsvit_forward.5} parent=11 // pred_check
        %p474 = pneg %p241
      $region46: #{tsvit_forward.5} parent=11 // pred_check_branch
        %476 = sbr.rel (%p474) target = $region48
      $region47: #{tsvit_forward.5} parent=11 // pred_region
        _
      $region48: #{tsvit_forward.5} parent=11 // pred_fallthru
        _
      // Predicated region
      $region49: #{tsvit_forward.5} parent=11 // pred_check
        %p477 = pneg %p262
      $region50: #{tsvit_forward.5} parent=11 // pred_check_branch
        %479 = sbr.rel (%p477) target = $region52
      $region51: #{tsvit_forward.5} parent=11 // pred_region
        _
      $region52: #{tsvit_forward.5} parent=11 // pred_fallthru
        _
      // Predicated region
      $region53: #{tsvit_forward.5} parent=11 // pred_check
        %p480 = pneg %p283
      $region54: #{tsvit_forward.5} parent=11 // pred_check_branch
        %482 = sbr.rel (%p480) target = $region56
      $region55: #{tsvit_forward.5} parent=11 // pred_region
        _
      $region56: #{tsvit_forward.5} parent=11 // pred_fallthru
        _
      // Predicated region
      $region57: #{tsvit_forward.5} parent=11 // pred_check
        %p483 = pneg %p304
      $region58: #{tsvit_forward.5} parent=11 // pred_check_branch
        %485 = sbr.rel (%p483) target = $region60
      $region59: #{tsvit_forward.5} parent=11 // pred_region
        _
      $region60: #{tsvit_forward.5} parent=11 // pred_fallthru
        _
      // Predicated region
      $region61: #{tsvit_forward.5} parent=11 // pred_check
        %p486 = pneg %p325
      $region62: #{tsvit_forward.5} parent=11 // pred_check_branch
        %488 = sbr.rel (%p486) target = $region64
      $region63: #{tsvit_forward.5} parent=11 // pred_region
        _
      $region64: #{tsvit_forward.5} parent=11 // pred_fallthru
        _
      // Predicated region
      $region65: #{tsvit_forward.5} parent=11 // pred_check
        %p489 = pneg %p346
      $region66: #{tsvit_forward.5} parent=11 // pred_check_branch
        %491 = sbr.rel (%p489) target = $region68
      $region67: #{tsvit_forward.5} parent=11 // pred_region
        _
      $region68: #{tsvit_forward.5} parent=11 // pred_fallthru
        _
      // Predicated region
      $region69: #{tsvit_forward.5} parent=11 // pred_check
        %p492 = pneg %p367
      $region70: #{tsvit_forward.5} parent=11 // pred_check_branch
        %494 = sbr.rel (%p492) target = $region72
      $region71: #{tsvit_forward.5} parent=11 // pred_region
        _
      $region72: #{tsvit_forward.5} parent=11 // pred_fallthru
        _
      // Predicated region
      $region73: #{tsvit_forward.5} parent=11 // pred_check
        %p495 = pneg %p388
      $region74: #{tsvit_forward.5} parent=11 // pred_check_branch
        %497 = sbr.rel (%p495) target = $region76
      $region75: #{tsvit_forward.5} parent=11 // pred_region
        _
      $region76: #{tsvit_forward.5} parent=11 // pred_fallthru
        _
      // Predicated region
      $region77: #{tsvit_forward.5} parent=11 // pred_check
        %p498 = pneg %p409
      $region78: #{tsvit_forward.5} parent=11 // pred_check_branch
        %500 = sbr.rel (%p498) target = $region80
      $region79: #{tsvit_forward.5} parent=11 // pred_region
        _
      $region80: #{tsvit_forward.5} parent=11 // pred_fallthru
        _
    $region12: #{tsvit_forward.5} parent=5 // pred_fallthru
      _
    %p501 = scmp.lt.s32.totalorder %s26, 2
    // Predicated region
    $region81: #{tsvit_forward.5} parent=5 // pred_check
      %p502 = pneg %p501
    $region82: #{tsvit_forward.5} parent=5 // pred_check_branch
      %504 = sbr.rel (%p502) target = $region84
    $region83: #{tsvit_forward.5} parent=5 // pred_region
      // Predicated region
      $region85: #{tsvit_forward.5} parent=83 // pred_check
        %p505 = pneg %p46
      $region86: #{tsvit_forward.5} parent=83 // pred_check_branch
        %507 = sbr.rel (%p505) target = $region88
      $region87: #{tsvit_forward.5} parent=83 // pred_region
        %s508 = smul.u32 4, %s26
        %p509 = scmp.lt.s32.totalorder %s508, 7
        %s510 = scalar_select %p509, %s508, 7
        %s511 = smul.addr %s510, 8
        %s512 = scalar_lea.vmem %s0, %s511
        %s513 = smul.u32 4, %s26
      $region88: #{tsvit_forward.5} parent=83 // pred_fallthru
        _
    $region84: #{tsvit_forward.5} parent=5 // pred_fallthru
      _
    %p514 = scmp.le.s32.totalorder 1, %s26
    %p515 = scmp.lt.s32.totalorder %s26, 3
    %p516 = pnand %p514, %p515
    %p517 = pneg %p516
    // Predicated region
    $region89: #{tsvit_forward.5} parent=5 // pred_check
      _
    $region90: #{tsvit_forward.5} parent=5 // pred_check_branch
      %519 = sbr.rel (%p516) target = $region92
    $region91: #{tsvit_forward.5} parent=5 // pred_region
      %s520 = ssub.s32 %s26, 1
      %s521 = smul.u32 4, %s31
      %p522 = scmp.lt.s32.totalorder %s521, 7
      %s523 = scalar_select %p522, %s521, 7
      %s524 = smul.addr %s523, 8
      %s525 = scalar_lea.vmem %s0, %s524
      %p526 = pneg %p52
      %p527 = pneg %p49
      %p528 = pneg %p73
      %p529 = pneg %p70
      %p530 = pneg %p94
      %p531 = pneg %p91
      %p532 = pneg %p115
      %p533 = pneg %p112
      %p534 = pneg %p136
      %p535 = pneg %p133
      %p536 = pneg %p157
      %p537 = pneg %p154
      %p538 = pneg %p178
      %p539 = pneg %p175
      %p540 = pneg %p199
      %p541 = pneg %p196
      %p542 = pneg %p220
      %p543 = pneg %p217
      %p544 = pneg %p241
      %p545 = pneg %p238
      %p546 = pneg %p262
      %p547 = pneg %p259
      %p548 = pneg %p283
      %p549 = pneg %p280
      %p550 = pneg %p304
      %p551 = pneg %p301
      %p552 = pneg %p325
      %p553 = pneg %p322
      %p554 = pneg %p346
      %p555 = pneg %p343
      %p556 = pneg %p367
      %p557 = pneg %p364
      %p558 = pneg %p388
      %p559 = pneg %p385
      %p560 = pneg %p409
      %p561 = pneg %p406
      %p562 = pneg %p435
      %p563 = pneg %p432
      %s564 = smul.u32 4, %s31
      %p565 = scmp.lt.s32.totalorder %s564, 7
      %s566 = scalar_select %p565, %s564, 7
      %s567 = scalar_lea.vmem %s18, %s566
      %s568 = smul.u32 4, %s31
      %p569 = scmp.lt.s32.totalorder %s568, 7
      %s570 = scalar_select %p569, %s568, 7
      %s571 = smul.addr %s570, 8
      %s572 = scalar_lea.vmem %s0, %s571
      %s573 = smul.u32 4, %s31
      %s574 = smul.u32 4, %s31
      %p575 = scmp.lt.s32.totalorder %s574, 7
      %s576 = scalar_select %p575, %s574, 7
      %s577 = scalar_lea.vmem %s18, %s576
      %s578 = smul.u32 4, %s31
      %v580 = vld [vmem:[%s572] sm:$0xff]
      %v581 = vld [vmem:[%s572 + $0x8] sm:$0xff]
      %v582 = vld [vmem:[%s572 + $0x10] sm:$0xff]
      %v583 = vld [vmem:[%s572 + $0x18] sm:$0xff]
      %v584 = vlaneseq
      %v585 = vand.u32 %v584, 127
      %vm586 = vcmp.lt.s32.totalorder %v585, 5
      %v587 = vsel %vm586, 0.0, -1e+30
      %v588 = vld [vmem:[%s1] sm:$0x1]
      %v589 = vld [vmem:[%s2] sm:$0x1]
      %vm590 = vcmask 261120
      %v591 = vsel %vm590, %v580, 0.0
      %592 = vadd.xlane.f32.xlu0 %v591
      %v593 = vpop.xlane.xlu0 %592
      %v594 = vsel %vm590, %v581, 0.0
      %595 = vadd.xlane.f32.xlu0 %v594
      %v596 = vpop.xlane.xlu0 %595
      %v597 = vsel %vm590, %v582, 0.0
      %598 = vadd.xlane.f32.xlu0 %v597
      %v599 = vpop.xlane.xlu0 %598
      %v600 = vsel %vm590, %v583, 0.0
      %601 = vadd.xlane.f32.xlu0 %v600
      %v602 = vpop.xlane.xlu0 %601
      %v603 = vrcp.pop 32.0
      %v604 = vmul.f32 %v593, %v603
      %v605 = vmul.f32 %v596, %v603
      %v606 = vmul.f32 %v599, %v603
      %v607 = vmul.f32 %v602, %v603
      %v608 = vsub.f32 %v580, %v604
      %v609 = vsub.f32 %v581, %v605
      %v610 = vsub.f32 %v582, %v606
      %v611 = vsub.f32 %v583, %v607
      %v612 = vmul.f32 %v608, %v608
      %v613 = vmul.f32 %v609, %v609
      %v614 = vmul.f32 %v610, %v610
      %v615 = vmul.f32 %v611, %v611
      %v616 = vsel %vm590, %v612, 0.0
      %617 = vadd.xlane.f32.xlu0 %v616
      %v618 = vpop.xlane.xlu0 %617
      %v619 = vsel %vm590, %v613, 0.0
      %620 = vadd.xlane.f32.xlu0 %v619
      %v621 = vpop.xlane.xlu0 %620
      %v622 = vsel %vm590, %v614, 0.0
      %623 = vadd.xlane.f32.xlu0 %v622
      %v624 = vpop.xlane.xlu0 %623
      %v625 = vsel %vm590, %v615, 0.0
      %626 = vadd.xlane.f32.xlu0 %v625
      %v627 = vpop.xlane.xlu0 %626
      %v628 = vmul.f32 %v618, %v603
      %v629 = vmul.f32 %v621, %v603
      %v630 = vmul.f32 %v624, %v603
      %v631 = vmul.f32 %v627, %v603
      %v632 = vadd.f32 %v628, 1e-05
      %v633 = vadd.f32 %v629, 1e-05
      %v634 = vadd.f32 %v630, 1e-05
      %v635 = vadd.f32 %v631, 1e-05
      %v636 = vrsqrt.pop %v632
      %v637 = vrsqrt.pop %v633
      %v638 = vrsqrt.pop %v634
      %v639 = vrsqrt.pop %v635
      %v640 = vmul.f32 %v608, %v636
      %v641 = vmul.f32 %v609, %v637
      %v642 = vmul.f32 %v610, %v638
      %v643 = vmul.f32 %v611, %v639
      %v645 = vlaneseq
      %v646 = vshrl.u32 %v645, 7
      %v647 = vsub.s32 0, %v646
      %v648 = vrot.slane %v588, %v647
      %v650 = vmul.f32 %v640, %v648
      %v651 = vmul.f32 %v641, %v648
      %v652 = vmul.f32 %v642, %v648
      %v653 = vmul.f32 %v643, %v648
      %v655 = vlaneseq
      %v656 = vshrl.u32 %v655, 7
      %v657 = vsub.s32 0, %v656
      %v658 = vrot.slane %v589, %v657
      %v660 = vadd.f32 %v650, %v658
      %v661 = vadd.f32 %v651, %v658
      %v662 = vadd.f32 %v652, %v658
      %v663 = vadd.f32 %v653, %v658
      %v664 = vpack.c.bf16 %v661, %v660
      %v665 = vpack.c.bf16 %v663, %v662
      %v666 = vld [vmem:[%s3] sm:$0xf]
      %v667 = vld [vmem:[%s3 + $0x4] sm:$0xf]
      %v668 = vld [vmem:[%s3 + $0x8] sm:$0xf]
      %v669 = vld [vmem:[%s3 + $0xc] sm:$0xf]
      %v674 = vunpack.c.l.b16 %v666
      %v675 = vunpack.c.l.b16 %v667
      %v676 = vunpack.c.l.b16 %v668
      %v677 = vunpack.c.l.b16 %v669
      %v678 = vpack.c.b16 %v675, %v674
      %v679 = vpack.c.b16 %v677, %v676
      %v683 = vsel %vm590, %v664, 0
      %v686 = vsel %vm590, %v665, 0
      %688 = vmatprep.subr.bf16.mxu0 0
      %689 = vmatpush1.bf16.msra.mxu0 %v678
      %690 = vmatprep.subr.bf16.mxu0 0
      %691 = vmatpush1.bf16.msra.mxu0 %v679
      %692 = vmatprep.subr.bf16.mxu0 0
      %693 = vmatpush1.bf16.msra.mxu0 0
      %694 = vmatprep.subr.bf16.mxu0 0
      %695 = vmatpush1.bf16.msra.mxu0 0
      %696 = vmatprep.subr.bf16.mxu0 0
      %697 = vmatpush1.bf16.msra.mxu0 0
      %698 = vmatprep.subr.bf16.mxu0 0
      %699 = vmatpush1.bf16.msra.mxu0 0
      %700 = vmatprep.subr.bf16.mxu0 0
      %701 = vmatpush1.bf16.msra.mxu0 0
      %702 = vmatprep.subr.bf16.mxu0 0
      %703 = vmatpush1.bf16.msra.mxu0 0
      %704 = vmatprep.subr.bf16.mxu0 0
      %705 = vmatpush1.bf16.msra.mxu0 0
      %706 = vmatprep.subr.bf16.mxu0 0
      %707 = vmatpush1.bf16.msra.mxu0 0
      %708 = vmatprep.subr.bf16.mxu0 0
      %709 = vmatpush1.bf16.msra.mxu0 0
      %710 = vmatprep.subr.bf16.mxu0 0
      %711 = vmatpush1.bf16.msra.mxu0 0
      %712 = vmatprep.subr.bf16.mxu0 0
      %713 = vmatpush1.bf16.msra.mxu0 0
      %714 = vmatprep.subr.bf16.mxu0 0
      %715 = vmatpush1.bf16.msra.mxu0 0
      %716 = vmatprep.subr.bf16.mxu0 0
      %717 = vmatpush1.bf16.msra.mxu0 0
      %718 = vmatprep.subr.bf16.mxu0 0
      %719 = vmatpush1.bf16.msra.mxu0 0
      %720 = vmatprep.mubr.bf16.mxu0 0
      %721 = vmatmul.mubr.bf16.gmra.mrb[0].mxu0 %v683
      %v722 = vpop.f32.mrb[0].mxu0
      %v723 = vadd.f32 0.0, %v722
      %v724 = vpop.f32.mrb[0].mxu0
      %v725 = vpop.f32.mrb[0].mxu0
      %v726 = vadd.f32 0.0, %v725
      %v727 = vpop.f32.mrb[0].mxu0
      %728 = vmatprep.mubr.bf16.mxu0 0
      %729 = vmatmul.mubr.bf16.gmra.mrb[0].mxu0 %v686
      %v730 = vpop.f32.mrb[0].mxu0
      %v731 = vadd.f32 0.0, %v730
      %v732 = vpop.f32.mrb[0].mxu0
      %v733 = vpop.f32.mrb[0].mxu0
      %v734 = vadd.f32 0.0, %v733
      %v735 = vpop.f32.mrb[0].mxu0
      %736 = vdwg.mxu0
      %v737 = vpack.c.bf16 %v723, %v723
      %v738 = vpack.c.bf16 %v726, %v726
      %v739 = vpack.c.bf16 %v731, %v731
      %v740 = vpack.c.bf16 %v734, %v734
      %742 = vrot.lane.b32.xlu0 %v737, 96
      %v743 = vpop.permute.xlu0 %742
      %vm744 = vcmask 130048
      %v746 = vsel %vm744, %v737, 0
      %v749 = vsel %vm744, %v743, 0
      %751 = vmatprep.subr.bf16.mxu0 0
      %752 = vmatpush1.bf16.xpose.msra.mxu0 %v749
      %753 = vmatprep.subr.bf16.mxu0 0
      %754 = vmatpush1.bf16.xpose.msra.mxu0 0
      %755 = vmatprep.subr.bf16.mxu0 0
      %756 = vmatpush1.bf16.xpose.msra.mxu0 0
      %757 = vmatprep.subr.bf16.mxu0 0
      %758 = vmatpush1.bf16.xpose.msra.mxu0 0
      %759 = vmatprep.subr.bf16.mxu0 0
      %760 = vmatpush1.bf16.xpose.msra.mxu0 0
      %761 = vmatprep.subr.bf16.mxu0 0
      %762 = vmatpush1.bf16.xpose.msra.mxu0 0
      %763 = vmatprep.subr.bf16.mxu0 0
      %764 = vmatpush1.bf16.xpose.msra.mxu0 0
      %765 = vmatprep.subr.bf16.mxu0 0
      %766 = vmatpush1.bf16.xpose.msra.mxu0 0
      %767 = vmatprep.subr.bf16.mxu0 0
      %768 = vmatpush1.bf16.xpose.msra.mxu0 0
      %769 = vmatprep.subr.bf16.mxu0 0
      %770 = vmatpush1.bf16.xpose.msra.mxu0 0
      %771 = vmatprep.subr.bf16.mxu0 0
      %772 = vmatpush1.bf16.xpose.msra.mxu0 0
      %773 = vmatprep.subr.bf16.mxu0 0
      %774 = vmatpush1.bf16.xpose.msra.mxu0 0
      %775 = vmatprep.subr.bf16.mxu0 0
      %776 = vmatpush1.bf16.xpose.msra.mxu0 0
      %777 = vmatprep.subr.bf16.mxu0 0
      %778 = vmatpush1.bf16.xpose.msra.mxu0 0
      %779 = vmatprep.subr.bf16.mxu0 0
      %780 = vmatpush1.bf16.xpose.msra.mxu0 0
      %781 = vmatprep.subr.bf16.mxu0 0
      %782 = vmatpush1.bf16.xpose.msra.mxu0 0
      %783 = vmatprep.mubr.bf16.mxu0 0
      %784 = vmatmul.mubr.bf16.gmra.mrb[0].mxu0 %v746
      %v785 = vpop.f32.mrb[0].mxu0
      %v786 = vadd.f32 0.0, %v785
      %v787 = vpop.f32.mrb[0].mxu0
      %v788 = vpop.f32.mrb[0].mxu0
      %v789 = vpop.f32.mrb[0].mxu0
      %790 = vdwg.mxu0
      %792 = vrot.lane.b32.xlu0 %v738, 96
      %v793 = vpop.permute.xlu0 %792
      %v795 = vsel %vm744, %v738, 0
      %v798 = vsel %vm744, %v793, 0
      %800 = vmatprep.subr.bf16.mxu0 0
      %801 = vmatpush1.bf16.xpose.msra.mxu0 %v798
      %802 = vmatprep.subr.bf16.mxu0 0
      %803 = vmatpush1.bf16.xpose.msra.mxu0 0
      %804 = vmatprep.subr.bf16.mxu0 0
      %805 = vmatpush1.bf16.xpose.msra.mxu0 0
      %806 = vmatprep.subr.bf16.mxu0 0
      %807 = vmatpush1.bf16.xpose.msra.mxu0 0
      %808 = vmatprep.subr.bf16.mxu0 0
      %809 = vmatpush1.bf16.xpose.msra.mxu0 0
      %810 = vmatprep.subr.bf16.mxu0 0
      %811 = vmatpush1.bf16.xpose.msra.mxu0 0
      %812 = vmatprep.subr.bf16.mxu0 0
      %813 = vmatpush1.bf16.xpose.msra.mxu0 0
      %814 = vmatprep.subr.bf16.mxu0 0
      %815 = vmatpush1.bf16.xpose.msra.mxu0 0
      %816 = vmatprep.subr.bf16.mxu0 0
      %817 = vmatpush1.bf16.xpose.msra.mxu0 0
      %818 = vmatprep.subr.bf16.mxu0 0
      %819 = vmatpush1.bf16.xpose.msra.mxu0 0
      %820 = vmatprep.subr.bf16.mxu0 0
      %821 = vmatpush1.bf16.xpose.msra.mxu0 0
      %822 = vmatprep.subr.bf16.mxu0 0
      %823 = vmatpush1.bf16.xpose.msra.mxu0 0
      %824 = vmatprep.subr.bf16.mxu0 0
      %825 = vmatpush1.bf16.xpose.msra.mxu0 0
      %826 = vmatprep.subr.bf16.mxu0 0
      %827 = vmatpush1.bf16.xpose.msra.mxu0 0
      %828 = vmatprep.subr.bf16.mxu0 0
      %829 = vmatpush1.bf16.xpose.msra.mxu0 0
      %830 = vmatprep.subr.bf16.mxu0 0
      %831 = vmatpush1.bf16.xpose.msra.mxu0 0
      %832 = vmatprep.mubr.bf16.mxu0 0
      %833 = vmatmul.mubr.bf16.gmra.mrb[0].mxu0 %v795
      %v834 = vpop.f32.mrb[0].mxu0
      %v835 = vadd.f32 0.0, %v834
      %v836 = vpop.f32.mrb[0].mxu0
      %v837 = vpop.f32.mrb[0].mxu0
      %v838 = vpop.f32.mrb[0].mxu0
      %839 = vdwg.mxu0
      %841 = vrot.lane.b32.xlu0 %v739, 96
      %v842 = vpop.permute.xlu0 %841
      %v844 = vsel %vm744, %v739, 0
      %v847 = vsel %vm744, %v842, 0
      %849 = vmatprep.subr.bf16.mxu0 0
      %850 = vmatpush1.bf16.xpose.msra.mxu0 %v847
      %851 = vmatprep.subr.bf16.mxu0 0
      %852 = vmatpush1.bf16.xpose.msra.mxu0 0
      %853 = vmatprep.subr.bf16.mxu0 0
      %854 = vmatpush1.bf16.xpose.msra.mxu0 0
      %855 = vmatprep.subr.bf16.mxu0 0
      %856 = vmatpush1.bf16.xpose.msra.mxu0 0
      %857 = vmatprep.subr.bf16.mxu0 0
      %858 = vmatpush1.bf16.xpose.msra.mxu0 0
      %859 = vmatprep.subr.bf16.mxu0 0
      %860 = vmatpush1.bf16.xpose.msra.mxu0 0
      %861 = vmatprep.subr.bf16.mxu0 0
      %862 = vmatpush1.bf16.xpose.msra.mxu0 0
      %863 = vmatprep.subr.bf16.mxu0 0
      %864 = vmatpush1.bf16.xpose.msra.mxu0 0
      %865 = vmatprep.subr.bf16.mxu0 0
      %866 = vmatpush1.bf16.xpose.msra.mxu0 0
      %867 = vmatprep.subr.bf16.mxu0 0
      %868 = vmatpush1.bf16.xpose.msra.mxu0 0
      %869 = vmatprep.subr.bf16.mxu0 0
      %870 = vmatpush1.bf16.xpose.msra.mxu0 0
      %871 = vmatprep.subr.bf16.mxu0 0
      %872 = vmatpush1.bf16.xpose.msra.mxu0 0
      %873 = vmatprep.subr.bf16.mxu0 0
      %874 = vmatpush1.bf16.xpose.msra.mxu0 0
      %875 = vmatprep.subr.bf16.mxu0 0
      %876 = vmatpush1.bf16.xpose.msra.mxu0 0
      %877 = vmatprep.subr.bf16.mxu0 0
      %878 = vmatpush1.bf16.xpose.msra.mxu0 0
      %879 = vmatprep.subr.bf16.mxu0 0
      %880 = vmatpush1.bf16.xpose.msra.mxu0 0
      %881 = vmatprep.mubr.bf16.mxu0 0
      %882 = vmatmul.mubr.bf16.gmra.mrb[0].mxu0 %v844
      %v883 = vpop.f32.mrb[0].mxu0
      %v884 = vadd.f32 0.0, %v883
      %v885 = vpop.f32.mrb[0].mxu0
      %v886 = vpop.f32.mrb[0].mxu0
      %v887 = vpop.f32.mrb[0].mxu0
      %888 = vdwg.mxu0
      %890 = vrot.lane.b32.xlu0 %v740, 96
      %v891 = vpop.permute.xlu0 %890
      %v893 = vsel %vm744, %v740, 0
      %v896 = vsel %vm744, %v891, 0
      %898 = vmatprep.subr.bf16.mxu0 0
      %899 = vmatpush1.bf16.xpose.msra.mxu0 %v896
      %900 = vmatprep.subr.bf16.mxu0 0
      %901 = vmatpush1.bf16.xpose.msra.mxu0 0
      %902 = vmatprep.subr.bf16.mxu0 0
      %903 = vmatpush1.bf16.xpose.msra.mxu0 0
      %904 = vmatprep.subr.bf16.mxu0 0
      %905 = vmatpush1.bf16.xpose.msra.mxu0 0
      %906 = vmatprep.subr.bf16.mxu0 0
      %907 = vmatpush1.bf16.xpose.msra.mxu0 0
      %908 = vmatprep.subr.bf16.mxu0 0
      %909 = vmatpush1.bf16.xpose.msra.mxu0 0
      %910 = vmatprep.subr.bf16.mxu0 0
      %911 = vmatpush1.bf16.xpose.msra.mxu0 0
      %912 = vmatprep.subr.bf16.mxu0 0
      %913 = vmatpush1.bf16.xpose.msra.mxu0 0
      %914 = vmatprep.subr.bf16.mxu0 0
      %915 = vmatpush1.bf16.xpose.msra.mxu0 0
      %916 = vmatprep.subr.bf16.mxu0 0
      %917 = vmatpush1.bf16.xpose.msra.mxu0 0
      %918 = vmatprep.subr.bf16.mxu0 0
      %919 = vmatpush1.bf16.xpose.msra.mxu0 0
      %920 = vmatprep.subr.bf16.mxu0 0
      %921 = vmatpush1.bf16.xpose.msra.mxu0 0
      %922 = vmatprep.subr.bf16.mxu0 0
      %923 = vmatpush1.bf16.xpose.msra.mxu0 0
      %924 = vmatprep.subr.bf16.mxu0 0
      %925 = vmatpush1.bf16.xpose.msra.mxu0 0
      %926 = vmatprep.subr.bf16.mxu0 0
      %927 = vmatpush1.bf16.xpose.msra.mxu0 0
      %928 = vmatprep.subr.bf16.mxu0 0
      %929 = vmatpush1.bf16.xpose.msra.mxu0 0
      %930 = vmatprep.mubr.bf16.mxu0 0
      %931 = vmatmul.mubr.bf16.gmra.mrb[0].mxu0 %v893
      %v932 = vpop.f32.mrb[0].mxu0
      %v933 = vadd.f32 0.0, %v932
      %v934 = vpop.f32.mrb[0].mxu0
      %v935 = vpop.f32.mrb[0].mxu0
      %v936 = vpop.f32.mrb[0].mxu0
      %937 = vdwg.mxu0
      %v938 = vmul.f32 %v786, 0.25
      %v939 = vmul.f32 %v835, 0.25
      %v940 = vmul.f32 %v884, 0.25
      %v941 = vmul.f32 %v933, 0.25
      %v942 = vadd.f32 %v938, %v587
      %v943 = vadd.f32 %v939, %v587
      %v944 = vadd.f32 %v940, %v587
      %v945 = vadd.f32 %v941, %v587
      %vm946 = vcmask 64512
      %v947 = vsel %vm946, %v942, -inf
      %948 = vmax.xlane.f32.xlu0 %v947
      %v949 = vpop.xlane.xlu0 %948
      %v950 = vsel %vm946, %v943, -inf
      %951 = vmax.xlane.f32.xlu0 %v950
      %v952 = vpop.xlane.xlu0 %951
      %v953 = vsel %vm946, %v944, -inf
      %954 = vmax.xlane.f32.xlu0 %v953
      %v955 = vpop.xlane.xlu0 %954
      %v956 = vsel %vm946, %v945, -inf
      %957 = vmax.xlane.f32.xlu0 %v956
      %v958 = vpop.xlane.xlu0 %957
      %v959 = vsub.f32 %v942, %v949
      %v960 = vsub.f32 %v943, %v952
      %v961 = vsub.f32 %v944, %v955
      %v962 = vsub.f32 %v945, %v958
      %v963 = vmul.f32 %v959, 1.442695
      %v964 = vpow.pop %v963
      %v965 = vmul.f32 %v960, 1.442695
      %v966 = vpow.pop %v965
      %v967 = vmul.f32 %v961, 1.442695
      %v968 = vpow.pop %v967
      %v969 = vmul.f32 %v962, 1.442695
      %v970 = vpow.pop %v969
      %v971 = vsel %vm946, %v964, 0.0
      %972 = vadd.xlane.f32.xlu0 %v971
      %v973 = vpop.xlane.xlu0 %972
      %v974 = vsel %vm946, %v966, 0.0
      %975 = vadd.xlane.f32.xlu0 %v974
      %v976 = vpop.xlane.xlu0 %975
      %v977 = vsel %vm946, %v968, 0.0
      %978 = vadd.xlane.f32.xlu0 %v977
      %v979 = vpop.xlane.xlu0 %978
      %v980 = vsel %vm946, %v970, 0.0
      %981 = vadd.xlane.f32.xlu0 %v980
      %v982 = vpop.xlane.xlu0 %981
      %v983 = vrcp.pop %v973
      %v984 = vrcp.pop %v976
      %v985 = vrcp.pop %v979
      %v986 = vrcp.pop %v982
      %v987 = vmul.f32 %v964, %v983
      %v988 = vmul.f32 %v966, %v984
      %v989 = vmul.f32 %v968, %v985
      %v990 = vmul.f32 %v970, %v986
      %v991 = vpack.c.bf16 %v987, %v987
      %v992 = vpack.c.bf16 %v988, %v988
      %v993 = vpack.c.bf16 %v989, %v989
      %v994 = vpack.c.bf16 %v990, %v990
      %995 = vrot.lane.b32.xlu0 %v737, 64
      %v996 = vpop.permute.xlu0 %995
      %v998 = vsel %vm946, %v991, 0
      %vm1000 = vcmask 1043456
      %v1002 = vsel %vm1000, %v996, 0
      %1004 = vmatprep.subr.bf16.mxu0 0
      %1005 = vmatpush1.bf16.msra.mxu0 %v1002
      %1006 = vmatprep.subr.bf16.mxu0 0
      %1007 = vmatpush1.bf16.msra.mxu0 0
      %1008 = vmatprep.subr.bf16.mxu0 0
      %1009 = vmatpush1.bf16.msra.mxu0 0
      %1010 = vmatprep.subr.bf16.mxu0 0
      %1011 = vmatpush1.bf16.msra.mxu0 0
      %1012 = vmatprep.subr.bf16.mxu0 0
      %1013 = vmatpush1.bf16.msra.mxu0 0
      %1014 = vmatprep.subr.bf16.mxu0 0
      %1015 = vmatpush1.bf16.msra.mxu0 0
      %1016 = vmatprep.subr.bf16.mxu0 0
      %1017 = vmatpush1.bf16.msra.mxu0 0
      %1018 = vmatprep.subr.bf16.mxu0 0
      %1019 = vmatpush1.bf16.msra.mxu0 0
      %1020 = vmatprep.subr.bf16.mxu0 0
      %1021 = vmatpush1.bf16.msra.mxu0 0
      %1022 = vmatprep.subr.bf16.mxu0 0
      %1023 = vmatpush1.bf16.msra.mxu0 0
      %1024 = vmatprep.subr.bf16.mxu0 0
      %1025 = vmatpush1.bf16.msra.mxu0 0
      %1026 = vmatprep.subr.bf16.mxu0 0
      %1027 = vmatpush1.bf16.msra.mxu0 0
      %1028 = vmatprep.subr.bf16.mxu0 0
      %1029 = vmatpush1.bf16.msra.mxu0 0
      %1030 = vmatprep.subr.bf16.mxu0 0
      %1031 = vmatpush1.bf16.msra.mxu0 0
      %1032 = vmatprep.subr.bf16.mxu0 0
      %1033 = vmatpush1.bf16.msra.mxu0 0
      %1034 = vmatprep.subr.bf16.mxu0 0
      %1035 = vmatpush1.bf16.msra.mxu0 0
      %1036 = vmatprep.mubr.bf16.mxu0 0
      %1037 = vmatmul.mubr.bf16.gmra.mrb[0].mxu0 %v998
      %v1038 = vpop.f32.mrb[0].mxu0
      %v1039 = vadd.f32 0.0, %v1038
      %v1040 = vpop.f32.mrb[0].mxu0
      %v1041 = vpop.f32.mrb[0].mxu0
      %v1042 = vpop.f32.mrb[0].mxu0
      %1043 = vdwg.mxu0
      %1044 = vrot.lane.b32.xlu0 %v738, 64
      %v1045 = vpop.permute.xlu0 %1044
      %v1047 = vsel %vm946, %v992, 0
      %v1050 = vsel %vm1000, %v1045, 0
      %1052 = vmatprep.subr.bf16.mxu0 0
      %1053 = vmatpush1.bf16.msra.mxu0 %v1050
      %1054 = vmatprep.subr.bf16.mxu0 0
      %1055 = vmatpush1.bf16.msra.mxu0 0
      %1056 = vmatprep.subr.bf16.mxu0 0
      %1057 = vmatpush1.bf16.msra.mxu0 0
      %1058 = vmatprep.subr.bf16.mxu0 0
      %1059 = vmatpush1.bf16.msra.mxu0 0
      %1060 = vmatprep.subr.bf16.mxu0 0
      %1061 = vmatpush1.bf16.msra.mxu0 0
      %1062 = vmatprep.subr.bf16.mxu0 0
      %1063 = vmatpush1.bf16.msra.mxu0 0
      %1064 = vmatprep.subr.bf16.mxu0 0
      %1065 = vmatpush1.bf16.msra.mxu0 0
      %1066 = vmatprep.subr.bf16.mxu0 0
      %1067 = vmatpush1.bf16.msra.mxu0 0
      %1068 = vmatprep.subr.bf16.mxu0 0
      %1069 = vmatpush1.bf16.msra.mxu0 0
      %1070 = vmatprep.subr.bf16.mxu0 0
      %1071 = vmatpush1.bf16.msra.mxu0 0
      %1072 = vmatprep.subr.bf16.mxu0 0
      %1073 = vmatpush1.bf16.msra.mxu0 0
      %1074 = vmatprep.subr.bf16.mxu0 0
      %1075 = vmatpush1.bf16.msra.mxu0 0
      %1076 = vmatprep.subr.bf16.mxu0 0
      %1077 = vmatpush1.bf16.msra.mxu0 0
      %1078 = vmatprep.subr.bf16.mxu0 0
      %1079 = vmatpush1.bf16.msra.mxu0 0
      %1080 = vmatprep.subr.bf16.mxu0 0
      %1081 = vmatpush1.bf16.msra.mxu0 0
      %1082 = vmatprep.subr.bf16.mxu0 0
      %1083 = vmatpush1.bf16.msra.mxu0 0
      %1084 = vmatprep.mubr.bf16.mxu0 0
      %1085 = vmatmul.mubr.bf16.gmra.mrb[0].mxu0 %v1047
      %v1086 = vpop.f32.mrb[0].mxu0
      %v1087 = vadd.f32 0.0, %v1086
      %v1088 = vpop.f32.mrb[0].mxu0
      %v1089 = vpop.f32.mrb[0].mxu0
      %v1090 = vpop.f32.mrb[0].mxu0
      %1091 = vdwg.mxu0
      %1092 = vrot.lane.b32.xlu0 %v739, 64
      %v1093 = vpop.permute.xlu0 %1092
      %v1095 = vsel %vm946, %v993, 0
      %v1098 = vsel %vm1000, %v1093, 0
      %1100 = vmatprep.subr.bf16.mxu0 0
      %1101 = vmatpush1.bf16.msra.mxu0 %v1098
      %1102 = vmatprep.subr.bf16.mxu0 0
      %1103 = vmatpush1.bf16.msra.mxu0 0
      %1104 = vmatprep.subr.bf16.mxu0 0
      %1105 = vmatpush1.bf16.msra.mxu0 0
      %1106 = vmatprep.subr.bf16.mxu0 0
      %1107 = vmatpush1.bf16.msra.mxu0 0
      %1108 = vmatprep.subr.bf16.mxu0 0
      %1109 = vmatpush1.bf16.msra.mxu0 0
      %1110 = vmatprep.subr.bf16.mxu0 0
      %1111 = vmatpush1.bf16.msra.mxu0 0
      %1112 = vmatprep.subr.bf16.mxu0 0
      %1113 = vmatpush1.bf16.msra.mxu0 0
      %1114 = vmatprep.subr.bf16.mxu0 0
      %1115 = vmatpush1.bf16.msra.mxu0 0
      %1116 = vmatprep.subr.bf16.mxu0 0
      %1117 = vmatpush1.bf16.msra.mxu0 0
      %1118 = vmatprep.subr.bf16.mxu0 0
      %1119 = vmatpush1.bf16.msra.mxu0 0
      %1120 = vmatprep.subr.bf16.mxu0 0
      %1121 = vmatpush1.bf16.msra.mxu0 0
      %1122 = vmatprep.subr.bf16.mxu0 0
      %1123 = vmatpush1.bf16.msra.mxu0 0
      %1124 = vmatprep.subr.bf16.mxu0 0
      %1125 = vmatpush1.bf16.msra.mxu0 0
      %1126 = vmatprep.subr.bf16.mxu0 0
      %1127 = vmatpush1.bf16.msra.mxu0 0
      %1128 = vmatprep.subr.bf16.mxu0 0
      %1129 = vmatpush1.bf16.msra.mxu0 0
      %1130 = vmatprep.subr.bf16.mxu0 0
      %1131 = vmatpush1.bf16.msra.mxu0 0
      %1132 = vmatprep.mubr.bf16.mxu0 0
      %1133 = vmatmul.mubr.bf16.gmra.mrb[0].mxu0 %v1095
      %v1134 = vpop.f32.mrb[0].mxu0
      %v1135 = vadd.f32 0.0, %v1134
      %v1136 = vpop.f32.mrb[0].mxu0
      %v1137 = vpop.f32.mrb[0].mxu0
      %v1138 = vpop.f32.mrb[0].mxu0
      %1139 = vdwg.mxu0
      %1140 = vrot.lane.b32.xlu0 %v740, 64
      %v1141 = vpop.permute.xlu0 %1140
      %v1143 = vsel %vm946, %v994, 0
      %v1146 = vsel %vm1000, %v1141, 0
      %1148 = vmatprep.subr.bf16.mxu0 0
      %1149 = vmatpush1.bf16.msra.mxu0 %v1146
      %1150 = vmatprep.subr.bf16.mxu0 0
      %1151 = vmatpush1.bf16.msra.mxu0 0
      %1152 = vmatprep.subr.bf16.mxu0 0
      %1153 = vmatpush1.bf16.msra.mxu0 0
      %1154 = vmatprep.subr.bf16.mxu0 0
      %1155 = vmatpush1.bf16.msra.mxu0 0
      %1156 = vmatprep.subr.bf16.mxu0 0
      %1157 = vmatpush1.bf16.msra.mxu0 0
      %1158 = vmatprep.subr.bf16.mxu0 0
      %1159 = vmatpush1.bf16.msra.mxu0 0
      %1160 = vmatprep.subr.bf16.mxu0 0
      %1161 = vmatpush1.bf16.msra.mxu0 0
      %1162 = vmatprep.subr.bf16.mxu0 0
      %1163 = vmatpush1.bf16.msra.mxu0 0
      %1164 = vmatprep.subr.bf16.mxu0 0
      %1165 = vmatpush1.bf16.msra.mxu0 0
      %1166 = vmatprep.subr.bf16.mxu0 0
      %1167 = vmatpush1.bf16.msra.mxu0 0
      %1168 = vmatprep.subr.bf16.mxu0 0
      %1169 = vmatpush1.bf16.msra.mxu0 0
      %1170 = vmatprep.subr.bf16.mxu0 0
      %1171 = vmatpush1.bf16.msra.mxu0 0
      %1172 = vmatprep.subr.bf16.mxu0 0
      %1173 = vmatpush1.bf16.msra.mxu0 0
      %1174 = vmatprep.subr.bf16.mxu0 0
      %1175 = vmatpush1.bf16.msra.mxu0 0
      %1176 = vmatprep.subr.bf16.mxu0 0
      %1177 = vmatpush1.bf16.msra.mxu0 0
      %1178 = vmatprep.subr.bf16.mxu0 0
      %1179 = vmatpush1.bf16.msra.mxu0 0
      %1180 = vmatprep.mubr.bf16.mxu0 0
      %1181 = vmatmul.mubr.bf16.gmra.mrb[0].mxu0 %v1143
      %v1182 = vpop.f32.mrb[0].mxu0
      %v1183 = vadd.f32 0.0, %v1182
      %v1184 = vpop.f32.mrb[0].mxu0
      %v1185 = vpop.f32.mrb[0].mxu0
      %v1186 = vpop.f32.mrb[0].mxu0
      %1187 = vdwg.mxu0
      %1188 = vrot.lane.b32.xlu0 %v737, 112
      %v1189 = vpop.permute.xlu0 %1188
      %1190 = vrot.lane.b32.xlu0 %v737, 80
      %v1191 = vpop.permute.xlu0 %1190
      %v1193 = vsel %vm744, %v1189, 0
      %v1196 = vsel %vm744, %v1191, 0
      %1198 = vmatprep.subr.bf16.mxu0 0
      %1199 = vmatpush1.bf16.xpose.msra.mxu0 %v1196
      %1200 = vmatprep.subr.bf16.mxu0 0
      %1201 = vmatpush1.bf16.xpose.msra.mxu0 0
      %1202 = vmatprep.subr.bf16.mxu0 0
      %1203 = vmatpush1.bf16.xpose.msra.mxu0 0
      %1204 = vmatprep.subr.bf16.mxu0 0
      %1205 = vmatpush1.bf16.xpose.msra.mxu0 0
      %1206 = vmatprep.subr.bf16.mxu0 0
      %1207 = vmatpush1.bf16.xpose.msra.mxu0 0
      %1208 = vmatprep.subr.bf16.mxu0 0
      %1209 = vmatpush1.bf16.xpose.msra.mxu0 0
      %1210 = vmatprep.subr.bf16.mxu0 0
      %1211 = vmatpush1.bf16.xpose.msra.mxu0 0
      %1212 = vmatprep.subr.bf16.mxu0 0
      %1213 = vmatpush1.bf16.xpose.msra.mxu0 0
      %1214 = vmatprep.subr.bf16.mxu0 0
      %1215 = vmatpush1.bf16.xpose.msra.mxu0 0
      %1216 = vmatprep.subr.bf16.mxu0 0
      %1217 = vmatpush1.bf16.xpose.msra.mxu0 0
      %1218 = vmatprep.subr.bf16.mxu0 0
      %1219 = vmatpush1.bf16.xpose.msra.mxu0 0
      %1220 = vmatprep.subr.bf16.mxu0 0
      %1221 = vmatpush1.bf16.xpose.msra.mxu0 0
      %1222 = vmatprep.subr.bf16.mxu0 0
      %1223 = vmatpush1.bf16.xpose.msra.mxu0 0
      %1224 = vmatprep.subr.bf16.mxu0 0
      %1225 = vmatpush1.bf16.xpose.msra.mxu0 0
      %1226 = vmatprep.subr.bf16.mxu0 0
      %1227 = vmatpush1.bf16.xpose.msra.mxu0 0
      %1228 = vmatprep.subr.bf16.mxu0 0
      %1229 = vmatpush1.bf16.xpose.msra.mxu0 0
      %1230 = vmatprep.mubr.bf16.mxu0 0
      %1231 = vmatmul.mubr.bf16.gmra.mrb[0].mxu0 %v1193
      %v1232 = vpop.f32.mrb[0].mxu0
      %v1233 = vadd.f32 0.0, %v1232
      %v1234 = vpop.f32.mrb[0].mxu0
      %v1235 = vpop.f32.mrb[0].mxu0
      %v1236 = vpop.f32.mrb[0].mxu0
      %1237 = vdwg.mxu0
      %1238 = vrot.lane.b32.xlu0 %v738, 112
      %v1239 = vpop.permute.xlu0 %1238
      %1240 = vrot.lane.b32.xlu0 %v738, 80
      %v1241 = vpop.permute.xlu0 %1240
      %v1243 = vsel %vm744, %v1239, 0
      %v1246 = vsel %vm744, %v1241, 0
      %1248 = vmatprep.subr.bf16.mxu0 0
      %1249 = vmatpush1.bf16.xpose.msra.mxu0 %v1246
      %1250 = vmatprep.subr.bf16.mxu0 0
      %1251 = vmatpush1.bf16.xpose.msra.mxu0 0
      %1252 = vmatprep.subr.bf16.mxu0 0
      %1253 = vmatpush1.bf16.xpose.msra.mxu0 0
      %1254 = vmatprep.subr.bf16.mxu0 0
      %1255 = vmatpush1.bf16.xpose.msra.mxu0 0
      %1256 = vmatprep.subr.bf16.mxu0 0
      %1257 = vmatpush1.bf16.xpose.msra.mxu0 0
      %1258 = vmatprep.subr.bf16.mxu0 0
      %1259 = vmatpush1.bf16.xpose.msra.mxu0 0
      %1260 = vmatprep.subr.bf16.mxu0 0
      %1261 = vmatpush1.bf16.xpose.msra.mxu0 0
      %1262 = vmatprep.subr.bf16.mxu0 0
      %1263 = vmatpush1.bf16.xpose.msra.mxu0 0
      %1264 = vmatprep.subr.bf16.mxu0 0
      %1265 = vmatpush1.bf16.xpose.msra.mxu0 0
      %1266 = vmatprep.subr.bf16.mxu0 0
      %1267 = vmatpush1.bf16.xpose.msra.mxu0 0
      %1268 = vmatprep.subr.bf16.mxu0 0
      %1269 = vmatpush1.bf16.xpose.msra.mxu0 0
      %1270 = vmatprep.subr.bf16.mxu0 0
      %1271 = vmatpush1.bf16.xpose.msra.mxu0 0
      %1272 = vmatprep.subr.bf16.mxu0 0
      %1273 = vmatpush1.bf16.xpose.msra.mxu0 0
      %1274 = vmatprep.subr.bf16.mxu0 0
      %1275 = vmatpush1.bf16.xpose.msra.mxu0 0
      %1276 = vmatprep.subr.bf16.mxu0 0
      %1277 = vmatpush1.bf16.xpose.msra.mxu0 0
      %1278 = vmatprep.subr.bf16.mxu0 0
      %1279 = vmatpush1.bf16.xpose.msra.mxu0 0
      %1280 = vmatprep.mubr.bf16.mxu0 0
      %1281 = vmatmul.mubr.bf16.gmra.mrb[0].mxu0 %v1243
      %v1282 = vpop.f32.mrb[0].mxu0
      %v1283 = vadd.f32 0.0, %v1282
      %v1284 = vpop.f32.mrb[0].mxu0
      %v1285 = vpop.f32.mrb[0].mxu0
      %v1286 = vpop.f32.mrb[0].mxu0
      %1287 = vdwg.mxu0
      %1288 = vrot.lane.b32.xlu0 %v739, 112
      %v1289 = vpop.permute.xlu0 %1288
      %1290 = vrot.lane.b32.xlu0 %v739, 80
      %v1291 = vpop.permute.xlu0 %1290
      %v1293 = vsel %vm744, %v1289, 0
      %v1296 = vsel %vm744, %v1291, 0
      %1298 = vmatprep.subr.bf16.mxu0 0
      %1299 = vmatpush1.bf16.xpose.msra.mxu0 %v1296
      %1300 = vmatprep.subr.bf16.mxu0 0
      %1301 = vmatpush1.bf16.xpose.msra.mxu0 0
      %1302 = vmatprep.subr.bf16.mxu0 0
      %1303 = vmatpush1.bf16.xpose.msra.mxu0 0
      %1304 = vmatprep.subr.bf16.mxu0 0
      %1305 = vmatpush1.bf16.xpose.msra.mxu0 0
      %1306 = vmatprep.subr.bf16.mxu0 0
      %1307 = vmatpush1.bf16.xpose.msra.mxu0 0
      %1308 = vmatprep.subr.bf16.mxu0 0
      %1309 = vmatpush1.bf16.xpose.msra.mxu0 0
      %1310 = vmatprep.subr.bf16.mxu0 0
      %1311 = vmatpush1.bf16.xpose.msra.mxu0 0
      %1312 = vmatprep.subr.bf16.mxu0 0
      %1313 = vmatpush1.bf16.xpose.msra.mxu0 0
      %1314 = vmatprep.subr.bf16.mxu0 0
      %1315 = vmatpush1.bf16.xpose.msra.mxu0 0
      %1316 = vmatprep.subr.bf16.mxu0 0
      %1317 = vmatpush1.bf16.xpose.msra.mxu0 0
      %1318 = vmatprep.subr.bf16.mxu0 0
      %1319 = vmatpush1.bf16.xpose.msra.mxu0 0
      %1320 = vmatprep.subr.bf16.mxu0 0
      %1321 = vmatpush1.bf16.xpose.msra.mxu0 0
      %1322 = vmatprep.subr.bf16.mxu0 0
      %1323 = vmatpush1.bf16.xpose.msra.mxu0 0
      %1324 = vmatprep.subr.bf16.mxu0 0
      %1325 = vmatpush1.bf16.xpose.msra.mxu0 0
      %1326 = vmatprep.subr.bf16.mxu0 0
      %1327 = vmatpush1.bf16.xpose.msra.mxu0 0
      %1328 = vmatprep.subr.bf16.mxu0 0
      %1329 = vmatpush1.bf16.xpose.msra.mxu0 0
      %1330 = vmatprep.mubr.bf16.mxu0 0
      %1331 = vmatmul.mubr.bf16.gmra.mrb[0].mxu0 %v1293
      %v1332 = vpop.f32.mrb[0].mxu0
      %v1333 = vadd.f32 0.0, %v1332
      %v1334 = vpop.f32.mrb[0].mxu0
      %v1335 = vpop.f32.mrb[0].mxu0
      %v1336 = vpop.f32.mrb[0].mxu0
      %1337 = vdwg.mxu0
      %1338 = vrot.lane.b32.xlu0 %v740, 112
      %v1339 = vpop.permute.xlu0 %1338
      %1340 = vrot.lane.b32.xlu0 %v740, 80
      %v1341 = vpop.permute.xlu0 %1340
      %v1343 = vsel %vm744, %v1339, 0
      %v1346 = vsel %vm744, %v1341, 0
      %1348 = vmatprep.subr.bf16.mxu0 0
      %1349 = vmatpush1.bf16.xpose.msra.mxu0 %v1346
      %1350 = vmatprep.subr.bf16.mxu0 0
      %1351 = vmatpush1.bf16.xpose.msra.mxu0 0
      %1352 = vmatprep.subr.bf16.mxu0 0
      %1353 = vmatpush1.bf16.xpose.msra.mxu0 0
      %1354 = vmatprep.subr.bf16.mxu0 0
      %1355 = vmatpush1.bf16.xpose.msra.mxu0 0
      %1356 = vmatprep.subr.bf16.mxu0 0
      %1357 = vmatpush1.bf16.xpose.msra.mxu0 0
      %1358 = vmatprep.subr.bf16.mxu0 0
      %1359 = vmatpush1.bf16.xpose.msra.mxu0 0
      %1360 = vmatprep.subr.bf16.mxu0 0
      %1361 = vmatpush1.bf16.xpose.msra.mxu0 0
      %1362 = vmatprep.subr.bf16.mxu0 0
      %1363 = vmatpush1.bf16.xpose.msra.mxu0 0
      %1364 = vmatprep.subr.bf16.mxu0 0
      %1365 = vmatpush1.bf16.xpose.msra.mxu0 0
      %1366 = vmatprep.subr.bf16.mxu0 0
      %1367 = vmatpush1.bf16.xpose.msra.mxu0 0
      %1368 = vmatprep.subr.bf16.mxu0 0
      %1369 = vmatpush1.bf16.xpose.msra.mxu0 0
      %1370 = vmatprep.subr.bf16.mxu0 0
      %1371 = vmatpush1.bf16.xpose.msra.mxu0 0
      %1372 = vmatprep.subr.bf16.mxu0 0
      %1373 = vmatpush1.bf16.xpose.msra.mxu0 0
      %1374 = vmatprep.subr.bf16.mxu0 0
      %1375 = vmatpush1.bf16.xpose.msra.mxu0 0
      %1376 = vmatprep.subr.bf16.mxu0 0
      %1377 = vmatpush1.bf16.xpose.msra.mxu0 0
      %1378 = vmatprep.subr.bf16.mxu0 0
      %1379 = vmatpush1.bf16.xpose.msra.mxu0 0
      %1380 = vmatprep.mubr.bf16.mxu0 0
      %1381 = vmatmul.mubr.bf16.gmra.mrb[0].mxu0 %v1343
      %v1382 = vpop.f32.mrb[0].mxu0
      %v1383 = vadd.f32 0.0, %v1382
      %v1384 = vpop.f32.mrb[0].mxu0
      %v1385 = vpop.f32.mrb[0].mxu0
      %v1386 = vpop.f32.mrb[0].mxu0
      %1387 = vdwg.mxu0
      %v1388 = vmul.f32 %v1233, 0.25
      %v1389 = vmul.f32 %v1283, 0.25
      %v1390 = vmul.f32 %v1333, 0.25
      %v1391 = vmul.f32 %v1383, 0.25
      %v1392 = vadd.f32 %v1388, %v587
      %v1393 = vadd.f32 %v1389, %v587
      %v1394 = vadd.f32 %v1390, %v587
      %v1395 = vadd.f32 %v1391, %v587
      %v1396 = vsel %vm946, %v1392, -inf
      %1397 = vmax.xlane.f32.xlu0 %v1396
      %v1398 = vpop.xlane.xlu0 %1397
      %v1399 = vsel %vm946, %v1393, -inf
      %1400 = vmax.xlane.f32.xlu0 %v1399
      %v1401 = vpop.xlane.xlu0 %1400
      %v1402 = vsel %vm946, %v1394, -inf
      %1403 = vmax.xlane.f32.xlu0 %v1402
      %v1404 = vpop.xlane.xlu0 %1403
      %v1405 = vsel %vm946, %v1395, -inf
      %1406 = vmax.xlane.f32.xlu0 %v1405
      %v1407 = vpop.xlane.xlu0 %1406
      %v1408 = vsub.f32 %v1392, %v1398
      %v1409 = vsub.f32 %v1393, %v1401
      %v1410 = vsub.f32 %v1394, %v1404
      %v1411 = vsub.f32 %v1395, %v1407
      %v1412 = vmul.f32 %v1408, 1.442695
      %v1413 = vpow.pop %v1412
      %v1414 = vmul.f32 %v1409, 1.442695
      %v1415 = vpow.pop %v1414
      %v1416 = vmul.f32 %v1410, 1.442695
      %v1417 = vpow.pop %v1416
      %v1418 = vmul.f32 %v1411, 1.442695
      %v1419 = vpow.pop %v1418
      %v1420 = vsel %vm946, %v1413, 0.0
      %1421 = vadd.xlane.f32.xlu0 %v1420
      %v1422 = vpop.xlane.xlu0 %1421
      %v1423 = vsel %vm946, %v1415, 0.0
      %1424 = vadd.xlane.f32.xlu0 %v1423
      %v1425 = vpop.xlane.xlu0 %1424
      %v1426 = vsel %vm946, %v1417, 0.0
      %1427 = vadd.xlane.f32.xlu0 %v1426
      %v1428 = vpop.xlane.xlu0 %1427
      %v1429 = vsel %vm946, %v1419, 0.0
      %1430 = vadd.xlane.f32.xlu0 %v1429
      %v1431 = vpop.xlane.xlu0 %1430
      %v1432 = vrcp.pop %v1422
      %v1433 = vrcp.pop %v1425
      %v1434 = vrcp.pop %v1428
      %v1435 = vrcp.pop %v1431
      %v1436 = vmul.f32 %v1413, %v1432
      %v1437 = vmul.f32 %v1415, %v1433
      %v1438 = vmul.f32 %v1417, %v1434
      %v1439 = vmul.f32 %v1419, %v1435
      %v1440 = vpack.c.bf16 %v1436, %v1436
      %v1441 = vpack.c.bf16 %v1437, %v1437
      %v1442 = vpack.c.bf16 %v1438, %v1438
      %v1443 = vpack.c.bf16 %v1439, %v1439
      %1444 = vrot.lane.b32.xlu0 %v737, 48
      %v1445 = vpop.permute.xlu0 %1444
      %v1447 = vsel %vm946, %v1440, 0
      %v1450 = vsel %vm1000, %v1445, 0
      %1452 = vmatprep.subr.bf16.mxu0 0
      %1453 = vmatpush1.bf16.msra.mxu0 %v1450
      %1454 = vmatprep.subr.bf16.mxu0 0
      %1455 = vmatpush1.bf16.msra.mxu0 0
      %1456 = vmatprep.subr.bf16.mxu0 0
      %1457 = vmatpush1.bf16.msra.mxu0 0
      %1458 = vmatprep.subr.bf16.mxu0 0
      %1459 = vmatpush1.bf16.msra.mxu0 0
      %1460 = vmatprep.subr.bf16.mxu0 0
      %1461 = vmatpush1.bf16.msra.mxu0 0
      %1462 = vmatprep.subr.bf16.mxu0 0
      %1463 = vmatpush1.bf16.msra.mxu0 0
      %1464 = vmatprep.subr.bf16.mxu0 0
      %1465 = vmatpush1.bf16.msra.mxu0 0
      %1466 = vmatprep.subr.bf16.mxu0 0
      %1467 = vmatpush1.bf16.msra.mxu0 0
      %1468 = vmatprep.subr.bf16.mxu0 0
      %1469 = vmatpush1.bf16.msra.mxu0 0
      %1470 = vmatprep.subr.bf16.mxu0 0
      %1471 = vmatpush1.bf16.msra.mxu0 0
      %1472 = vmatprep.subr.bf16.mxu0 0
      %1473 = vmatpush1.bf16.msra.mxu0 0
      %1474 = vmatprep.subr.bf16.mxu0 0
      %1475 = vmatpush1.bf16.msra.mxu0 0
      %1476 = vmatprep.subr.bf16.mxu0 0
      %1477 = vmatpush1.bf16.msra.mxu0 0
      %1478 = vmatprep.subr.bf16.mxu0 0
      %1479 = vmatpush1.bf16.msra.mxu0 0
      %1480 = vmatprep.subr.bf16.mxu0 0
      %1481 = vmatpush1.bf16.msra.mxu0 0
      %1482 = vmatprep.subr.bf16.mxu0 0
      %1483 = vmatpush1.bf16.msra.mxu0 0
      %1484 = vmatprep.mubr.bf16.mxu0 0
      %1485 = vmatmul.mubr.bf16.gmra.mrb[0].mxu0 %v1447
      %v1486 = vpop.f32.mrb[0].mxu0
      %v1487 = vadd.f32 0.0, %v1486
      %v1488 = vpop.f32.mrb[0].mxu0
      %v1489 = vpop.f32.mrb[0].mxu0
      %v1490 = vpop.f32.mrb[0].mxu0
      %1491 = vdwg.mxu0
      %1492 = vrot.lane.b32.xlu0 %v738, 48
      %v1493 = vpop.permute.xlu0 %1492
      %v1495 = vsel %vm946, %v1441, 0
      %v1498 = vsel %vm1000, %v1493, 0
      %1500 = vmatprep.subr.bf16.mxu0 0
      %1501 = vmatpush1.bf16.msra.mxu0 %v1498
      %1502 = vmatprep.subr.bf16.mxu0 0
      %1503 = vmatpush1.bf16.msra.mxu0 0
      %1504 = vmatprep.subr.bf16.mxu0 0
      %1505 = vmatpush1.bf16.msra.mxu0 0
      %1506 = vmatprep.subr.bf16.mxu0 0
      %1507 = vmatpush1.bf16.msra.mxu0 0
      %1508 = vmatprep.subr.bf16.mxu0 0
      %1509 = vmatpush1.bf16.msra.mxu0 0
      %1510 = vmatprep.subr.bf16.mxu0 0
      %1511 = vmatpush1.bf16.msra.mxu0 0
      %1512 = vmatprep.subr.bf16.mxu0 0
      %1513 = vmatpush1.bf16.msra.mxu0 0
      %1514 = vmatprep.subr.bf16.mxu0 0
      %1515 = vmatpush1.bf16.msra.mxu0 0
      %1516 = vmatprep.subr.bf16.mxu0 0
      %1517 = vmatpush1.bf16.msra.mxu0 0
      %1518 = vmatprep.subr.bf16.mxu0 0
      %1519 = vmatpush1.bf16.msra.mxu0 0
      %1520 = vmatprep.subr.bf16.mxu0 0
      %1521 = vmatpush1.bf16.msra.mxu0 0
      %1522 = vmatprep.subr.bf16.mxu0 0
      %1523 = vmatpush1.bf16.msra.mxu0 0
      %1524 = vmatprep.subr.bf16.mxu0 0
      %1525 = vmatpush1.bf16.msra.mxu0 0
      %1526 = vmatprep.subr.bf16.mxu0 0
      %1527 = vmatpush1.bf16.msra.mxu0 0
      %1528 = vmatprep.subr.bf16.mxu0 0
      %1529 = vmatpush1.bf16.msra.mxu0 0
      %1530 = vmatprep.subr.bf16.mxu0 0
      %1531 = vmatpush1.bf16.msra.mxu0 0
      %1532 = vmatprep.mubr.bf16.mxu0 0
      %1533 = vmatmul.mubr.bf16.gmra.mrb[0].mxu0 %v1495
      %v1534 = vpop.f32.mrb[0].mxu0
      %v1535 = vadd.f32 0.0, %v1534
      %v1536 = vpop.f32.mrb[0].mxu0
      %v1537 = vpop.f32.mrb[0].mxu0
      %v1538 = vpop.f32.mrb[0].mxu0
      %1539 = vdwg.mxu0
      %1540 = vrot.lane.b32.xlu0 %v739, 48
      %v1541 = vpop.permute.xlu0 %1540
      %v1543 = vsel %vm946, %v1442, 0
      %v1546 = vsel %vm1000, %v1541, 0
      %1548 = vmatprep.subr.bf16.mxu0 0
      %1549 = vmatpush1.bf16.msra.mxu0 %v1546
      %1550 = vmatprep.subr.bf16.mxu0 0
      %1551 = vmatpush1.bf16.msra.mxu0 0
      %1552 = vmatprep.subr.bf16.mxu0 0
      %1553 = vmatpush1.bf16.msra.mxu0 0
      %1554 = vmatprep.subr.bf16.mxu0 0
      %1555 = vmatpush1.bf16.msra.mxu0 0
      %1556 = vmatprep.subr.bf16.mxu0 0
      %1557 = vmatpush1.bf16.msra.mxu0 0
      %1558 = vmatprep.subr.bf16.mxu0 0
      %1559 = vmatpush1.bf16.msra.mxu0 0
      %1560 = vmatprep.subr.bf16.mxu0 0
      %1561 = vmatpush1.bf16.msra.mxu0 0
      %1562 = vmatprep.subr.bf16.mxu0 0
      %1563 = vmatpush1.bf16.msra.mxu0 0
      %1564 = vmatprep.subr.bf16.mxu0 0
      %1565 = vmatpush1.bf16.msra.mxu0 0
      %1566 = vmatprep.subr.bf16.mxu0 0
      %1567 = vmatpush1.bf16.msra.mxu0 0
      %1568 = vmatprep.subr.bf16.mxu0 0
      %1569 = vmatpush1.bf16.msra.mxu0 0
      %1570 = vmatprep.subr.bf16.mxu0 0
      %1571 = vmatpush1.bf16.msra.mxu0 0
      %1572 = vmatprep.subr.bf16.mxu0 0
      %1573 = vmatpush1.bf16.msra.mxu0 0
      %1574 = vmatprep.subr.bf16.mxu0 0
      %1575 = vmatpush1.bf16.msra.mxu0 0
      %1576 = vmatprep.subr.bf16.mxu0 0
      %1577 = vmatpush1.bf16.msra.mxu0 0
      %1578 = vmatprep.subr.bf16.mxu0 0
      %1579 = vmatpush1.bf16.msra.mxu0 0
      %1580 = vmatprep.mubr.bf16.mxu0 0
      %1581 = vmatmul.mubr.bf16.gmra.mrb[0].mxu0 %v1543
      %v1582 = vpop.f32.mrb[0].mxu0
      %v1583 = vadd.f32 0.0, %v1582
      %v1584 = vpop.f32.mrb[0].mxu0
      %v1585 = vpop.f32.mrb[0].mxu0
      %v1586 = vpop.f32.mrb[0].mxu0
      %1587 = vdwg.mxu0
      %1588 = vrot.lane.b32.xlu0 %v740, 48
      %v1589 = vpop.permute.xlu0 %1588
      %v1591 = vsel %vm946, %v1443, 0
      %v1594 = vsel %vm1000, %v1589, 0
      %1596 = vmatprep.subr.bf16.mxu0 0
      %1597 = vmatpush1.bf16.msra.mxu0 %v1594
      %1598 = vmatprep.subr.bf16.mxu0 0
      %1599 = vmatpush1.bf16.msra.mxu0 0
      %1600 = vmatprep.subr.bf16.mxu0 0
      %1601 = vmatpush1.bf16.msra.mxu0 0
      %1602 = vmatprep.subr.bf16.mxu0 0
      %1603 = vmatpush1.bf16.msra.mxu0 0
      %1604 = vmatprep.subr.bf16.mxu0 0
      %1605 = vmatpush1.bf16.msra.mxu0 0
      %1606 = vmatprep.subr.bf16.mxu0 0
      %1607 = vmatpush1.bf16.msra.mxu0 0
      %1608 = vmatprep.subr.bf16.mxu0 0
      %1609 = vmatpush1.bf16.msra.mxu0 0
      %1610 = vmatprep.subr.bf16.mxu0 0
      %1611 = vmatpush1.bf16.msra.mxu0 0
      %1612 = vmatprep.subr.bf16.mxu0 0
      %1613 = vmatpush1.bf16.msra.mxu0 0
      %1614 = vmatprep.subr.bf16.mxu0 0
      %1615 = vmatpush1.bf16.msra.mxu0 0
      %1616 = vmatprep.subr.bf16.mxu0 0
      %1617 = vmatpush1.bf16.msra.mxu0 0
      %1618 = vmatprep.subr.bf16.mxu0 0
      %1619 = vmatpush1.bf16.msra.mxu0 0
      %1620 = vmatprep.subr.bf16.mxu0 0
      %1621 = vmatpush1.bf16.msra.mxu0 0
      %1622 = vmatprep.subr.bf16.mxu0 0
      %1623 = vmatpush1.bf16.msra.mxu0 0
      %1624 = vmatprep.subr.bf16.mxu0 0
      %1625 = vmatpush1.bf16.msra.mxu0 0
      %1626 = vmatprep.subr.bf16.mxu0 0
      %1627 = vmatpush1.bf16.msra.mxu0 0
      %1628 = vmatprep.mubr.bf16.mxu0 0
      %1629 = vmatmul.mubr.bf16.gmra.mrb[0].mxu0 %v1591
      %v1630 = vpop.f32.mrb[0].mxu0
      %v1631 = vadd.f32 0.0, %v1630
      %v1632 = vpop.f32.mrb[0].mxu0
      %v1633 = vpop.f32.mrb[0].mxu0
      %v1634 = vpop.f32.mrb[0].mxu0
      %1635 = vdwg.mxu0
      %1640 = vrot.lane.b32.xlu0 %v1487, 16
      %v1641 = vpop.permute.xlu0 %1640
      %1642 = vrot.lane.b32.xlu0 %v1535, 16
      %v1643 = vpop.permute.xlu0 %1642
      %1644 = vrot.lane.b32.xlu0 %v1583, 16
      %v1645 = vpop.permute.xlu0 %1644
      %1646 = vrot.lane.b32.xlu0 %v1631, 16
      %v1647 = vpop.permute.xlu0 %1646
      %v1652 = vsel %vm744, %v1039, %v1641
      %v1653 = vsel %vm744, %v1087, %v1643
      %v1654 = vsel %vm744, %v1135, %v1645
      %v1655 = vsel %vm744, %v1183, %v1647
      %v1656 = vpack.c.bf16 %v1653, %v1652
      %v1657 = vpack.c.bf16 %v1655, %v1654
      %v1658 = vld [vmem:[%s4] sm:$0xf]
      %v1659 = vld [vmem:[%s4 + $0x4] sm:$0xf]
      %v1660 = vld [vmem:[%s4 + $0x8] sm:$0xf]
      %v1661 = vld [vmem:[%s4 + $0xc] sm:$0xf]
      %v1666 = vunpack.c.l.b16 %v1658
      %v1667 = vunpack.c.l.b16 %v1659
      %v1668 = vunpack.c.l.b16 %v1660
      %v1669 = vunpack.c.l.b16 %v1661
      %v1670 = vpack.c.b16 %v1667, %v1666
      %v1671 = vpack.c.b16 %v1669, %v1668
      %v1675 = vsel %vm590, %v1656, 0
      %v1678 = vsel %vm590, %v1657, 0
      %1680 = vmatprep.subr.bf16.mxu0 0
      %1681 = vmatpush1.bf16.msra.mxu0 %v1670
      %1682 = vmatprep.subr.bf16.mxu0 0
      %1683 = vmatpush1.bf16.msra.mxu0 %v1671
      %1684 = vmatprep.subr.bf16.mxu0 0
      %1685 = vmatpush1.bf16.msra.mxu0 0
      %1686 = vmatprep.subr.bf16.mxu0 0
      %1687 = vmatpush1.bf16.msra.mxu0 0
      %1688 = vmatprep.subr.bf16.mxu0 0
      %1689 = vmatpush1.bf16.msra.mxu0 0
      %1690 = vmatprep.subr.bf16.mxu0 0
      %1691 = vmatpush1.bf16.msra.mxu0 0
      %1692 = vmatprep.subr.bf16.mxu0 0
      %1693 = vmatpush1.bf16.msra.mxu0 0
      %1694 = vmatprep.subr.bf16.mxu0 0
      %1695 = vmatpush1.bf16.msra.mxu0 0
      %1696 = vmatprep.subr.bf16.mxu0 0
      %1697 = vmatpush1.bf16.msra.mxu0 0
      %1698 = vmatprep.subr.bf16.mxu0 0
      %1699 = vmatpush1.bf16.msra.mxu0 0
      %1700 = vmatprep.subr.bf16.mxu0 0
      %1701 = vmatpush1.bf16.msra.mxu0 0
      %1702 = vmatprep.subr.bf16.mxu0 0
      %1703 = vmatpush1.bf16.msra.mxu0 0
      %1704 = vmatprep.subr.bf16.mxu0 0
      %1705 = vmatpush1.bf16.msra.mxu0 0
      %1706 = vmatprep.subr.bf16.mxu0 0
      %1707 = vmatpush1.bf16.msra.mxu0 0
      %1708 = vmatprep.subr.bf16.mxu0 0
      %1709 = vmatpush1.bf16.msra.mxu0 0
      %1710 = vmatprep.subr.bf16.mxu0 0
      %1711 = vmatpush1.bf16.msra.mxu0 0
      %1712 = vmatprep.mubr.bf16.mxu0 0
      %1713 = vmatmul.mubr.bf16.gmra.mrb[0].mxu0 %v1675
      %v1714 = vpop.f32.mrb[0].mxu0
      %v1715 = vadd.f32 0.0, %v1714
      %v1716 = vpop.f32.mrb[0].mxu0
      %v1717 = vpop.f32.mrb[0].mxu0
      %v1718 = vadd.f32 0.0, %v1717
      %v1719 = vpop.f32.mrb[0].mxu0
      %1720 = vmatprep.mubr.bf16.mxu0 0
      %1721 = vmatmul.mubr.bf16.gmra.mrb[0].mxu0 %v1678
      %v1722 = vpop.f32.mrb[0].mxu0
      %v1723 = vadd.f32 0.0, %v1722
      %v1724 = vpop.f32.mrb[0].mxu0
      %v1725 = vpop.f32.mrb[0].mxu0
      %v1726 = vadd.f32 0.0, %v1725
      %v1727 = vpop.f32.mrb[0].mxu0
      %1728 = vdwg.mxu0
      %v1729 = vadd.f32 %v580, %v1715
      %v1730 = vadd.f32 %v581, %v1718
      %v1731 = vadd.f32 %v582, %v1723
      %v1732 = vadd.f32 %v583, %v1726
      %v1733 = vld [vmem:[%s5] sm:$0x1]
      %v1735 = vlaneseq
      %v1736 = vshrl.u32 %v1735, 7
      %v1737 = vsub.s32 0, %v1736
      %v1738 = vrot.slane %v1733, %v1737
      %v1740 = vadd.f32 %v1729, %v1738
      %v1741 = vadd.f32 %v1730, %v1738
      %v1742 = vadd.f32 %v1731, %v1738
      %v1743 = vadd.f32 %v1732, %v1738
      %v1744 = vld [vmem:[%s6] sm:$0x1]
      %v1745 = vld [vmem:[%s7] sm:$0x1]
      %v1746 = vsel %vm590, %v1740, 0.0
      %1747 = vadd.xlane.f32.xlu0 %v1746
      %v1748 = vpop.xlane.xlu0 %1747
      %v1749 = vsel %vm590, %v1741, 0.0
      %1750 = vadd.xlane.f32.xlu0 %v1749
      %v1751 = vpop.xlane.xlu0 %1750
      %v1752 = vsel %vm590, %v1742, 0.0
      %1753 = vadd.xlane.f32.xlu0 %v1752
      %v1754 = vpop.xlane.xlu0 %1753
      %v1755 = vsel %vm590, %v1743, 0.0
      %1756 = vadd.xlane.f32.xlu0 %v1755
      %v1757 = vpop.xlane.xlu0 %1756
      %v1758 = vmul.f32 %v1748, %v603
      %v1759 = vmul.f32 %v1751, %v603
      %v1760 = vmul.f32 %v1754, %v603
      %v1761 = vmul.f32 %v1757, %v603
      %v1762 = vsub.f32 %v1740, %v1758
      %v1763 = vsub.f32 %v1741, %v1759
      %v1764 = vsub.f32 %v1742, %v1760
      %v1765 = vsub.f32 %v1743, %v1761
      %v1766 = vmul.f32 %v1762, %v1762
      %v1767 = vmul.f32 %v1763, %v1763
      %v1768 = vmul.f32 %v1764, %v1764
      %v1769 = vmul.f32 %v1765, %v1765
      %v1770 = vsel %vm590, %v1766, 0.0
      %1771 = vadd.xlane.f32.xlu0 %v1770
      %v1772 = vpop.xlane.xlu0 %1771
      %v1773 = vsel %vm590, %v1767, 0.0
      %1774 = vadd.xlane.f32.xlu0 %v1773
      %v1775 = vpop.xlane.xlu0 %1774
      %v1776 = vsel %vm590, %v1768, 0.0
      %1777 = vadd.xlane.f32.xlu0 %v1776
      %v1778 = vpop.xlane.xlu0 %1777
      %v1779 = vsel %vm590, %v1769, 0.0
      %1780 = vadd.xlane.f32.xlu0 %v1779
      %v1781 = vpop.xlane.xlu0 %1780
      %v1782 = vmul.f32 %v1772, %v603
      %v1783 = vmul.f32 %v1775, %v603
      %v1784 = vmul.f32 %v1778, %v603
      %v1785 = vmul.f32 %v1781, %v603
      %v1786 = vadd.f32 %v1782, 1e-05
      %v1787 = vadd.f32 %v1783, 1e-05
      %v1788 = vadd.f32 %v1784, 1e-05
      %v1789 = vadd.f32 %v1785, 1e-05
      %v1790 = vrsqrt.pop %v1786
      %v1791 = vrsqrt.pop %v1787
      %v1792 = vrsqrt.pop %v1788
      %v1793 = vrsqrt.pop %v1789
      %v1794 = vmul.f32 %v1762, %v1790
      %v1795 = vmul.f32 %v1763, %v1791
      %v1796 = vmul.f32 %v1764, %v1792
      %v1797 = vmul.f32 %v1765, %v1793
      %v1799 = vlaneseq
      %v1800 = vshrl.u32 %v1799, 7
      %v1801 = vsub.s32 0, %v1800
      %v1802 = vrot.slane %v1744, %v1801
      %v1804 = vmul.f32 %v1794, %v1802
      %v1805 = vmul.f32 %v1795, %v1802
      %v1806 = vmul.f32 %v1796, %v1802
      %v1807 = vmul.f32 %v1797, %v1802
      %v1809 = vlaneseq
      %v1810 = vshrl.u32 %v1809, 7
      %v1811 = vsub.s32 0, %v1810
      %v1812 = vrot.slane %v1745, %v1811
      %v1814 = vadd.f32 %v1804, %v1812
      %v1815 = vadd.f32 %v1805, %v1812
      %v1816 = vadd.f32 %v1806, %v1812
      %v1817 = vadd.f32 %v1807, %v1812
      %v1818 = vpack.c.bf16 %v1815, %v1814
      %v1819 = vpack.c.bf16 %v1817, %v1816
      %v1820 = vld [vmem:[%s8] sm:$0xf]
      %v1821 = vld [vmem:[%s8 + $0x4] sm:$0xf]
      %v1822 = vld [vmem:[%s8 + $0x8] sm:$0xf]
      %v1823 = vld [vmem:[%s8 + $0xc] sm:$0xf]
      %v1824 = vld [vmem:[%s9] sm:$0x1]
      %v1826 = vlaneseq
      %v1827 = vshrl.u32 %v1826, 7
      %v1828 = vsub.s32 0, %v1827
      %v1829 = vrot.slane %v1824, %v1828
      %v1835 = vunpack.c.l.b16 %v1820
      %v1836 = vunpack.c.l.b16 %v1821
      %v1837 = vunpack.c.l.b16 %v1822
      %v1838 = vunpack.c.l.b16 %v1823
      %v1839 = vpack.c.b16 %v1836, %v1835
      %v1840 = vpack.c.b16 %v1838, %v1837
      %v1844 = vsel %vm590, %v1818, 0
      %v1847 = vsel %vm590, %v1819, 0
      %1849 = vmatprep.subr.bf16.mxu0 0
      %1850 = vmatpush1.bf16.msra.mxu0 %v1839
      %1851 = vmatprep.subr.bf16.mxu0 0
      %1852 = vmatpush1.bf16.msra.mxu0 %v1840
      %1853 = vmatprep.subr.bf16.mxu0 0
      %1854 = vmatpush1.bf16.msra.mxu0 0
      %1855 = vmatprep.subr.bf16.mxu0 0
      %1856 = vmatpush1.bf16.msra.mxu0 0
      %1857 = vmatprep.subr.bf16.mxu0 0
      %1858 = vmatpush1.bf16.msra.mxu0 0
      %1859 = vmatprep.subr.bf16.mxu0 0
      %1860 = vmatpush1.bf16.msra.mxu0 0
      %1861 = vmatprep.subr.bf16.mxu0 0
      %1862 = vmatpush1.bf16.msra.mxu0 0
      %1863 = vmatprep.subr.bf16.mxu0 0
      %1864 = vmatpush1.bf16.msra.mxu0 0
      %1865 = vmatprep.subr.bf16.mxu0 0
      %1866 = vmatpush1.bf16.msra.mxu0 0
      %1867 = vmatprep.subr.bf16.mxu0 0
      %1868 = vmatpush1.bf16.msra.mxu0 0
      %1869 = vmatprep.subr.bf16.mxu0 0
      %1870 = vmatpush1.bf16.msra.mxu0 0
      %1871 = vmatprep.subr.bf16.mxu0 0
      %1872 = vmatpush1.bf16.msra.mxu0 0
      %1873 = vmatprep.subr.bf16.mxu0 0
      %1874 = vmatpush1.bf16.msra.mxu0 0
      %1875 = vmatprep.subr.bf16.mxu0 0
      %1876 = vmatpush1.bf16.msra.mxu0 0
      %1877 = vmatprep.subr.bf16.mxu0 0
      %1878 = vmatpush1.bf16.msra.mxu0 0
      %1879 = vmatprep.subr.bf16.mxu0 0
      %1880 = vmatpush1.bf16.msra.mxu0 0
      %1881 = vmatprep.mubr.bf16.mxu0 0
      %1882 = vmatmul.mubr.bf16.gmra.mrb[0].mxu0 %v1844
      %v1883 = vpop.f32.mrb[0].mxu0
      %v1884 = vadd.f32 %v1829, %v1883
      %v1885 = vpop.f32.mrb[0].mxu0
      %v1886 = vpop.f32.mrb[0].mxu0
      %v1887 = vadd.f32 %v1829, %v1886
      %v1888 = vpop.f32.mrb[0].mxu0
      %1889 = vmatprep.mubr.bf16.mxu0 0
      %1890 = vmatmul.mubr.bf16.gmra.mrb[0].mxu0 %v1847
      %v1891 = vpop.f32.mrb[0].mxu0
      %v1892 = vadd.f32 %v1829, %v1891
      %v1893 = vpop.f32.mrb[0].mxu0
      %v1894 = vpop.f32.mrb[0].mxu0
      %v1895 = vadd.f32 %v1829, %v1894
      %v1896 = vpop.f32.mrb[0].mxu0
      %1897 = vdwg.mxu0
      %v1898 = vmul.f32 %v1884, 0.5
      %v1899 = vmul.f32 %v1887, 0.5
      %v1900 = vmul.f32 %v1892, 0.5
      %v1901 = vmul.f32 %v1895, 0.5
      %v1902 = vmul.f32 %v1884, 0.044715
      %v1903 = vmul.f32 %v1887, 0.044715
      %v1904 = vmul.f32 %v1892, 0.044715
      %v1905 = vmul.f32 %v1895, 0.044715
      %v1906 = vmul.f32 %v1902, %v1884
      %v1907 = vmul.f32 %v1903, %v1887
      %v1908 = vmul.f32 %v1904, %v1892
      %v1909 = vmul.f32 %v1905, %v1895
      %v1910 = vmul.f32 %v1906, %v1884
      %v1911 = vmul.f32 %v1907, %v1887
      %v1912 = vmul.f32 %v1908, %v1892
      %v1913 = vmul.f32 %v1909, %v1895
      %v1914 = vadd.f32 %v1884, %v1910
      %v1915 = vadd.f32 %v1887, %v1911
      %v1916 = vadd.f32 %v1892, %v1912
      %v1917 = vadd.f32 %v1895, %v1913
      %v1918 = vmul.f32 %v1914, 0.7978846
      %v1919 = vmul.f32 %v1915, 0.7978846
      %v1920 = vmul.f32 %v1916, 0.7978846
      %v1921 = vmul.f32 %v1917, 0.7978846
      %v1922 = vtanh.pop %v1918
      %v1923 = vtanh.pop %v1919
      %v1924 = vtanh.pop %v1920
      %v1925 = vtanh.pop %v1921
      %v1926 = vadd.f32 %v1922, 1.0
      %v1927 = vadd.f32 %v1923, 1.0
      %v1928 = vadd.f32 %v1924, 1.0
      %v1929 = vadd.f32 %v1925, 1.0
      %v1930 = vmul.f32 %v1898, %v1926
      %v1931 = vmul.f32 %v1899, %v1927
      %v1932 = vmul.f32 %v1900, %v1928
      %v1933 = vmul.f32 %v1901, %v1929
      %v1934 = vpack.c.bf16 %v1931, %v1930
      %v1935 = vpack.c.bf16 %v1933, %v1932
      %v1936 = vld [vmem:[%s10] sm:$0xf]
      %v1937 = vld [vmem:[%s10 + $0x4] sm:$0xf]
      %v1938 = vld [vmem:[%s10 + $0x8] sm:$0xf]
      %v1939 = vld [vmem:[%s10 + $0xc] sm:$0xf]
      %v1940 = vld [vmem:[%s10 + $0x10] sm:$0xf]
      %v1941 = vld [vmem:[%s10 + $0x14] sm:$0xf]
      %v1942 = vld [vmem:[%s10 + $0x18] sm:$0xf]
      %v1943 = vld [vmem:[%s10 + $0x1c] sm:$0xf]
      %v1944 = vld [vmem:[%s11] sm:$0x1]
      %v1946 = vlaneseq
      %v1947 = vshrl.u32 %v1946, 7
      %v1948 = vsub.s32 0, %v1947
      %v1949 = vrot.slane %v1944, %v1948
      %v1959 = vunpack.c.l.b16 %v1936
      %v1960 = vunpack.c.l.b16 %v1937
      %v1961 = vunpack.c.l.b16 %v1938
      %v1962 = vunpack.c.l.b16 %v1939
      %v1963 = vunpack.c.l.b16 %v1940
      %v1964 = vunpack.c.l.b16 %v1941
      %v1965 = vunpack.c.l.b16 %v1942
      %v1966 = vunpack.c.l.b16 %v1943
      %v1967 = vpack.c.b16 %v1960, %v1959
      %v1968 = vpack.c.b16 %v1962, %v1961
      %v1969 = vpack.c.b16 %v1964, %v1963
      %v1970 = vpack.c.b16 %v1966, %v1965
      %vm1975 = vcmask 523264
      %v1977 = vsel %vm1975, %v1934, 0
      %v1980 = vsel %vm1975, %v1935, 0
      %1982 = vmatprep.subr.bf16.mxu0 0
      %1983 = vmatpush1.bf16.msra.mxu0 %v1967
      %1984 = vmatprep.subr.bf16.mxu0 0
      %1985 = vmatpush1.bf16.msra.mxu0 %v1968
      %1986 = vmatprep.subr.bf16.mxu0 0
      %1987 = vmatpush1.bf16.msra.mxu0 %v1969
      %1988 = vmatprep.subr.bf16.mxu0 0
      %1989 = vmatpush1.bf16.msra.mxu0 %v1970
      %1990 = vmatprep.subr.bf16.mxu0 0
      %1991 = vmatpush1.bf16.msra.mxu0 0
      %1992 = vmatprep.subr.bf16.mxu0 0
      %1993 = vmatpush1.bf16.msra.mxu0 0
      %1994 = vmatprep.subr.bf16.mxu0 0
      %1995 = vmatpush1.bf16.msra.mxu0 0
      %1996 = vmatprep.subr.bf16.mxu0 0
      %1997 = vmatpush1.bf16.msra.mxu0 0
      %1998 = vmatprep.subr.bf16.mxu0 0
      %1999 = vmatpush1.bf16.msra.mxu0 0
      %2000 = vmatprep.subr.bf16.mxu0 0
      %2001 = vmatpush1.bf16.msra.mxu0 0
      %2002 = vmatprep.subr.bf16.mxu0 0
      %2003 = vmatpush1.bf16.msra.mxu0 0
      %2004 = vmatprep.subr.bf16.mxu0 0
      %2005 = vmatpush1.bf16.msra.mxu0 0
      %2006 = vmatprep.subr.bf16.mxu0 0
      %2007 = vmatpush1.bf16.msra.mxu0 0
      %2008 = vmatprep.subr.bf16.mxu0 0
      %2009 = vmatpush1.bf16.msra.mxu0 0
      %2010 = vmatprep.subr.bf16.mxu0 0
      %2011 = vmatpush1.bf16.msra.mxu0 0
      %2012 = vmatprep.subr.bf16.mxu0 0
      %2013 = vmatpush1.bf16.msra.mxu0 0
      %2014 = vmatprep.mubr.bf16.mxu0 0
      %2015 = vmatmul.mubr.bf16.gmra.mrb[0].mxu0 %v1977
      %v2016 = vpop.f32.mrb[0].mxu0
      %v2017 = vadd.f32 %v1949, %v2016
      %v2018 = vpop.f32.mrb[0].mxu0
      %v2019 = vpop.f32.mrb[0].mxu0
      %v2020 = vadd.f32 %v1949, %v2019
      %v2021 = vpop.f32.mrb[0].mxu0
      %2022 = vmatprep.mubr.bf16.mxu0 0
      %2023 = vmatmul.mubr.bf16.gmra.mrb[0].mxu0 %v1980
      %v2024 = vpop.f32.mrb[0].mxu0
      %v2025 = vadd.f32 %v1949, %v2024
      %v2026 = vpop.f32.mrb[0].mxu0
      %v2027 = vpop.f32.mrb[0].mxu0
      %v2028 = vadd.f32 %v1949, %v2027
      %v2029 = vpop.f32.mrb[0].mxu0
      %2030 = vdwg.mxu0
      %v2031 = vadd.f32 %v1740, %v2017
      %v2032 = vadd.f32 %v1741, %v2020
      %v2033 = vadd.f32 %v1742, %v2025
      %v2034 = vadd.f32 %v1743, %v2028
      %s2035 = scalar_lea.vmem %s1, 1
      %v2036 = vld [vmem:[%s2035] sm:$0x1]
      %s2037 = scalar_lea.vmem %s2, 1
      %v2038 = vld [vmem:[%s2037] sm:$0x1]
      %v2039 = vsel %vm590, %v2031, 0.0
      %2040 = vadd.xlane.f32.xlu0 %v2039
      %v2041 = vpop.xlane.xlu0 %2040
      %v2042 = vsel %vm590, %v2032, 0.0
      %2043 = vadd.xlane.f32.xlu0 %v2042
      %v2044 = vpop.xlane.xlu0 %2043
      %v2045 = vsel %vm590, %v2033, 0.0
      %2046 = vadd.xlane.f32.xlu0 %v2045
      %v2047 = vpop.xlane.xlu0 %2046
      %v2048 = vsel %vm590, %v2034, 0.0
      %2049 = vadd.xlane.f32.xlu0 %v2048
      %v2050 = vpop.xlane.xlu0 %2049
      %v2051 = vmul.f32 %v2041, %v603
      %v2052 = vmul.f32 %v2044, %v603
      %v2053 = vmul.f32 %v2047, %v603
      %v2054 = vmul.f32 %v2050, %v603
      %v2055 = vsub.f32 %v2031, %v2051
      %v2056 = vsub.f32 %v2032, %v2052
      %v2057 = vsub.f32 %v2033, %v2053
      %v2058 = vsub.f32 %v2034, %v2054
      %v2059 = vmul.f32 %v2055, %v2055
      %v2060 = vmul.f32 %v2056, %v2056
      %v2061 = vmul.f32 %v2057, %v2057
      %v2062 = vmul.f32 %v2058, %v2058
      %v2063 = vsel %vm590, %v2059, 0.0
      %2064 = vadd.xlane.f32.xlu0 %v2063
      %v2065 = vpop.xlane.xlu0 %2064
      %v2066 = vsel %vm590, %v2060, 0.0
      %2067 = vadd.xlane.f32.xlu0 %v2066
      %v2068 = vpop.xlane.xlu0 %2067
      %v2069 = vsel %vm590, %v2061, 0.0
      %2070 = vadd.xlane.f32.xlu0 %v2069
      %v2071 = vpop.xlane.xlu0 %2070
      %v2072 = vsel %vm590, %v2062, 0.0
      %2073 = vadd.xlane.f32.xlu0 %v2072
      %v2074 = vpop.xlane.xlu0 %2073
      %v2075 = vmul.f32 %v2065, %v603
      %v2076 = vmul.f32 %v2068, %v603
      %v2077 = vmul.f32 %v2071, %v603
      %v2078 = vmul.f32 %v2074, %v603
      %v2079 = vadd.f32 %v2075, 1e-05
      %v2080 = vadd.f32 %v2076, 1e-05
      %v2081 = vadd.f32 %v2077, 1e-05
      %v2082 = vadd.f32 %v2078, 1e-05
      %v2083 = vrsqrt.pop %v2079
      %v2084 = vrsqrt.pop %v2080
      %v2085 = vrsqrt.pop %v2081
      %v2086 = vrsqrt.pop %v2082
      %v2087 = vmul.f32 %v2055, %v2083
      %v2088 = vmul.f32 %v2056, %v2084
      %v2089 = vmul.f32 %v2057, %v2085
      %v2090 = vmul.f32 %v2058, %v2086
      %v2092 = vlaneseq
      %v2093 = vshrl.u32 %v2092, 7
      %v2094 = vsub.s32 0, %v2093
      %v2095 = vrot.slane %v2036, %v2094
      %v2097 = vmul.f32 %v2087, %v2095
      %v2098 = vmul.f32 %v2088, %v2095
      %v2099 = vmul.f32 %v2089, %v2095
      %v2100 = vmul.f32 %v2090, %v2095
      %v2102 = vlaneseq
      %v2103 = vshrl.u32 %v2102, 7
      %v2104 = vsub.s32 0, %v2103
      %v2105 = vrot.slane %v2038, %v2104
      %v2107 = vadd.f32 %v2097, %v2105
      %v2108 = vadd.f32 %v2098, %v2105
      %v2109 = vadd.f32 %v2099, %v2105
      %v2110 = vadd.f32 %v2100, %v2105
      %v2111 = vpack.c.bf16 %v2108, %v2107
      %v2112 = vpack.c.bf16 %v2110, %v2109
      %s2113 = scalar_lea.vmem %s3, 16
      %v2114 = vld [vmem:[%s2113] sm:$0xf]
      %v2115 = vld [vmem:[%s2113 + $0x4] sm:$0xf]
      %v2116 = vld [vmem:[%s2113 + $0x8] sm:$0xf]
      %v2117 = vld [vmem:[%s2113 + $0xc] sm:$0xf]
      %v2122 = vunpack.c.l.b16 %v2114
      %v2123 = vunpack.c.l.b16 %v2115
      %v2124 = vunpack.c.l.b16 %v2116
      %v2125 = vunpack.c.l.b16 %v2117
      %v2126 = vpack.c.b16 %v2123, %v2122
      %v2127 = vpack.c.b16 %v2125, %v2124
      %v2131 = vsel %vm590, %v2111, 0
      %v2134 = vsel %vm590, %v2112, 0
      %2136 = vmatprep.subr.bf16.mxu0 0
      %2137 = vmatpush1.bf16.msra.mxu0 %v2126
      %2138 = vmatprep.subr.bf16.mxu0 0
      %2139 = vmatpush1.bf16.msra.mxu0 %v2127
      %2140 = vmatprep.subr.bf16.mxu0 0
      %2141 = vmatpush1.bf16.msra.mxu0 0
      %2142 = vmatprep.subr.bf16.mxu0 0
      %2143 = vmatpush1.bf16.msra.mxu0 0
      %2144 = vmatprep.subr.bf16.mxu0 0
      %2145 = vmatpush1.bf16.msra.mxu0 0
      %2146 = vmatprep.subr.bf16.mxu0 0
      %2147 = vmatpush1.bf16.msra.mxu0 0
      %2148 = vmatprep.subr.bf16.mxu0 0
      %2149 = vmatpush1.bf16.msra.mxu0 0
      %2150 = vmatprep.subr.bf16.mxu0 0
      %2151 = vmatpush1.bf16.msra.mxu0 0
      %2152 = vmatprep.subr.bf16.mxu0 0
      %2153 = vmatpush1.bf16.msra.mxu0 0
      %2154 = vmatprep.subr.bf16.mxu0 0
      %2155 = vmatpush1.bf16.msra.mxu0 0
      %2156 = vmatprep.subr.bf16.mxu0 0
      %2157 = vmatpush1.bf16.msra.mxu0 0
      %2158 = vmatprep.subr.bf16.mxu0 0
      %2159 = vmatpush1.bf16.msra.mxu0 0
      %2160 = vmatprep.subr.bf16.mxu0 0
      %2161 = vmatpush1.bf16.msra.mxu0 0
      %2162 = vmatprep.subr.bf16.mxu0 0
      %2163 = vmatpush1.bf16.msra.mxu0 0
      %2164 = vmatprep.subr.bf16.mxu0 0
      %2165 = vmatpush1.bf16.msra.mxu0 0
      %2166 = vmatprep.subr.bf16.mxu0 0
      %2167 = vmatpush1.bf16.msra.mxu0 0
      %2168 = vmatprep.mubr.bf16.mxu0 0
      %2169 = vmatmul.mubr.bf16.gmra.mrb[0].mxu0 %v2131
      %v2170 = vpop.f32.mrb[0].mxu0
      %v2171 = vadd.f32 0.0, %v2170
      %v2172 = vpop.f32.mrb[0].mxu0
      %v2173 = vpop.f32.mrb[0].mxu0
      %v2174 = vadd.f32 0.0, %v2173
      %v2175 = vpop.f32.mrb[0].mxu0
      %2176 = vmatprep.mubr.bf16.mxu0 0
      %2177 = vmatmul.mubr.bf16.gmra.mrb[0].mxu0 %v2134
      %v2178 = vpop.f32.mrb[0].mxu0
      %v2179 = vadd.f32 0.0, %v2178
      %v2180 = vpop.f32.mrb[0].mxu0
      %v2181 = vpop.f32.mrb[0].mxu0
      %v2182 = vadd.f32 0.0, %v2181
      %v2183 = vpop.f32.mrb[0].mxu0
      %2184 = vdwg.mxu0
      %v2185 = vpack.c.bf16 %v2171, %v2171
      %v2186 = vpack.c.bf16 %v2174, %v2174
      %v2187 = vpack.c.bf16 %v2179, %v2179
      %v2188 = vpack.c.bf16 %v2182, %v2182
      %2190 = vrot.lane.b32.xlu0 %v2185, 96
      %v2191 = vpop.permute.xlu0 %2190
      %v2193 = vsel %vm744, %v2185, 0
      %v2196 = vsel %vm744, %v2191, 0
      %2198 = vmatprep.subr.bf16.mxu0 0
      %2199 = vmatpush1.bf16.xpose.msra.mxu0 %v2196
      %2200 = vmatprep.subr.bf16.mxu0 0
      %2201 = vmatpush1.bf16.xpose.msra.mxu0 0
      %2202 = vmatprep.subr.bf16.mxu0 0
      %2203 = vmatpush1.bf16.xpose.msra.mxu0 0
      %2204 = vmatprep.subr.bf16.mxu0 0
      %2205 = vmatpush1.bf16.xpose.msra.mxu0 0
      %2206 = vmatprep.subr.bf16.mxu0 0
      %2207 = vmatpush1.bf16.xpose.msra.mxu0 0
      %2208 = vmatprep.subr.bf16.mxu0 0
      %2209 = vmatpush1.bf16.xpose.msra.mxu0 0
      %2210 = vmatprep.subr.bf16.mxu0 0
      %2211 = vmatpush1.bf16.xpose.msra.mxu0 0
      %2212 = vmatprep.subr.bf16.mxu0 0
      %2213 = vmatpush1.bf16.xpose.msra.mxu0 0
      %2214 = vmatprep.subr.bf16.mxu0 0
      %2215 = vmatpush1.bf16.xpose.msra.mxu0 0
      %2216 = vmatprep.subr.bf16.mxu0 0
      %2217 = vmatpush1.bf16.xpose.msra.mxu0 0
      %2218 = vmatprep.subr.bf16.mxu0 0
      %2219 = vmatpush1.bf16.xpose.msra.mxu0 0
      %2220 = vmatprep.subr.bf16.mxu0 0
      %2221 = vmatpush1.bf16.xpose.msra.mxu0 0
      %2222 = vmatprep.subr.bf16.mxu0 0
      %2223 = vmatpush1.bf16.xpose.msra.mxu0 0
      %2224 = vmatprep.subr.bf16.mxu0 0
      %2225 = vmatpush1.bf16.xpose.msra.mxu0 0
      %2226 = vmatprep.subr.bf16.mxu0 0
      %2227 = vmatpush1.bf16.xpose.msra.mxu0 0
      %2228 = vmatprep.subr.bf16.mxu0 0
      %2229 = vmatpush1.bf16.xpose.msra.mxu0 0
      %2230 = vmatprep.mubr.bf16.mxu0 0
      %2231 = vmatmul.mubr.bf16.gmra.mrb[0].mxu0 %v2193
      %v2232 = vpop.f32.mrb[0].mxu0
      %v2233 = vadd.f32 0.0, %v2232
      %v2234 = vpop.f32.mrb[0].mxu0
      %v2235 = vpop.f32.mrb[0].mxu0
      %v2236 = vpop.f32.mrb[0].mxu0
      %2237 = vdwg.mxu0
      %2239 = vrot.lane.b32.xlu0 %v2186, 96
      %v2240 = vpop.permute.xlu0 %2239
      %v2242 = vsel %vm744, %v2186, 0
      %v2245 = vsel %vm744, %v2240, 0
      %2247 = vmatprep.subr.bf16.mxu0 0
      %2248 = vmatpush1.bf16.xpose.msra.mxu0 %v2245
      %2249 = vmatprep.subr.bf16.mxu0 0
      %2250 = vmatpush1.bf16.xpose.msra.mxu0 0
      %2251 = vmatprep.subr.bf16.mxu0 0
      %2252 = vmatpush1.bf16.xpose.msra.mxu0 0
      %2253 = vmatprep.subr.bf16.mxu0 0
      %2254 = vmatpush1.bf16.xpose.msra.mxu0 0
      %2255 = vmatprep.subr.bf16.mxu0 0
      %2256 = vmatpush1.bf16.xpose.msra.mxu0 0
      %2257 = vmatprep.subr.bf16.mxu0 0
      %2258 = vmatpush1.bf16.xpose.msra.mxu0 0
      %2259 = vmatprep.subr.bf16.mxu0 0
      %2260 = vmatpush1.bf16.xpose.msra.mxu0 0
      %2261 = vmatprep.subr.bf16.mxu0 0
      %2262 = vmatpush1.bf16.xpose.msra.mxu0 0
      %2263 = vmatprep.subr.bf16.mxu0 0
      %2264 = vmatpush1.bf16.xpose.msra.mxu0 0
      %2265 = vmatprep.subr.bf16.mxu0 0
      %2266 = vmatpush1.bf16.xpose.msra.mxu0 0
      %2267 = vmatprep.subr.bf16.mxu0 0
      %2268 = vmatpush1.bf16.xpose.msra.mxu0 0
      %2269 = vmatprep.subr.bf16.mxu0 0
      %2270 = vmatpush1.bf16.xpose.msra.mxu0 0
      %2271 = vmatprep.subr.bf16.mxu0 0
      %2272 = vmatpush1.bf16.xpose.msra.mxu0 0
      %2273 = vmatprep.subr.bf16.mxu0 0
      %2274 = vmatpush1.bf16.xpose.msra.mxu0 0
      %2275 = vmatprep.subr.bf16.mxu0 0
      %2276 = vmatpush1.bf16.xpose.msra.mxu0 0
      %2277 = vmatprep.subr.bf16.mxu0 0
      %2278 = vmatpush1.bf16.xpose.msra.mxu0 0
      %2279 = vmatprep.mubr.bf16.mxu0 0
      %2280 = vmatmul.mubr.bf16.gmra.mrb[0].mxu0 %v2242
      %v2281 = vpop.f32.mrb[0].mxu0
      %v2282 = vadd.f32 0.0, %v2281
      %v2283 = vpop.f32.mrb[0].mxu0
      %v2284 = vpop.f32.mrb[0].mxu0
      %v2285 = vpop.f32.mrb[0].mxu0
      %2286 = vdwg.mxu0
      %2288 = vrot.lane.b32.xlu0 %v2187, 96
      %v2289 = vpop.permute.xlu0 %2288
      %v2291 = vsel %vm744, %v2187, 0
      %v2294 = vsel %vm744, %v2289, 0
      %2296 = vmatprep.subr.bf16.mxu0 0
      %2297 = vmatpush1.bf16.xpose.msra.mxu0 %v2294
      %2298 = vmatprep.subr.bf16.mxu0 0
      %2299 = vmatpush1.bf16.xpose.msra.mxu0 0
      %2300 = vmatprep.subr.bf16.mxu0 0
      %2301 = vmatpush1.bf16.xpose.msra.mxu0 0
      %2302 = vmatprep.subr.bf16.mxu0 0
      %2303 = vmatpush1.bf16.xpose.msra.mxu0 0
      %2304 = vmatprep.subr.bf16.mxu0 0
      %2305 = vmatpush1.bf16.xpose.msra.mxu0 0
      %2306 = vmatprep.subr.bf16.mxu0 0
      %2307 = vmatpush1.bf16.xpose.msra.mxu0 0
      %2308 = vmatprep.subr.bf16.mxu0 0
      %2309 = vmatpush1.bf16.xpose.msra.mxu0 0
      %2310 = vmatprep.subr.bf16.mxu0 0
      %2311 = vmatpush1.bf16.xpose.msra.mxu0 0
      %2312 = vmatprep.subr.bf16.mxu0 0
      %2313 = vmatpush1.bf16.xpose.msra.mxu0 0
      %2314 = vmatprep.subr.bf16.mxu0 0
      %2315 = vmatpush1.bf16.xpose.msra.mxu0 0
      %2316 = vmatprep.subr.bf16.mxu0 0
      %2317 = vmatpush1.bf16.xpose.msra.mxu0 0
      %2318 = vmatprep.subr.bf16.mxu0 0
      %2319 = vmatpush1.bf16.xpose.msra.mxu0 0
      %2320 = vmatprep.subr.bf16.mxu0 0
      %2321 = vmatpush1.bf16.xpose.msra.mxu0 0
      %2322 = vmatprep.subr.bf16.mxu0 0
      %2323 = vmatpush1.bf16.xpose.msra.mxu0 0
      %2324 = vmatprep.subr.bf16.mxu0 0
      %2325 = vmatpush1.bf16.xpose.msra.mxu0 0
      %2326 = vmatprep.subr.bf16.mxu0 0
      %2327 = vmatpush1.bf16.xpose.msra.mxu0 0
      %2328 = vmatprep.mubr.bf16.mxu0 0
      %2329 = vmatmul.mubr.bf16.gmra.mrb[0].mxu0 %v2291
      %v2330 = vpop.f32.mrb[0].mxu0
      %v2331 = vadd.f32 0.0, %v2330
      %v2332 = vpop.f32.mrb[0].mxu0
      %v2333 = vpop.f32.mrb[0].mxu0
      %v2334 = vpop.f32.mrb[0].mxu0
      %2335 = vdwg.mxu0
      %2337 = vrot.lane.b32.xlu0 %v2188, 96
      %v2338 = vpop.permute.xlu0 %2337
      %v2340 = vsel %vm744, %v2188, 0
      %v2343 = vsel %vm744, %v2338, 0
      %2345 = vmatprep.subr.bf16.mxu0 0
      %2346 = vmatpush1.bf16.xpose.msra.mxu0 %v2343
      %2347 = vmatprep.subr.bf16.mxu0 0
      %2348 = vmatpush1.bf16.xpose.msra.mxu0 0
      %2349 = vmatprep.subr.bf16.mxu0 0
      %2350 = vmatpush1.bf16.xpose.msra.mxu0 0
      %2351 = vmatprep.subr.bf16.mxu0 0
      %2352 = vmatpush1.bf16.xpose.msra.mxu0 0
      %2353 = vmatprep.subr.bf16.mxu0 0
      %2354 = vmatpush1.bf16.xpose.msra.mxu0 0
      %2355 = vmatprep.subr.bf16.mxu0 0
      %2356 = vmatpush1.bf16.xpose.msra.mxu0 0
      %2357 = vmatprep.subr.bf16.mxu0 0
      %2358 = vmatpush1.bf16.xpose.msra.mxu0 0
      %2359 = vmatprep.subr.bf16.mxu0 0
      %2360 = vmatpush1.bf16.xpose.msra.mxu0 0
      %2361 = vmatprep.subr.bf16.mxu0 0
      %2362 = vmatpush1.bf16.xpose.msra.mxu0 0
      %2363 = vmatprep.subr.bf16.mxu0 0
      %2364 = vmatpush1.bf16.xpose.msra.mxu0 0
      %2365 = vmatprep.subr.bf16.mxu0 0
      %2366 = vmatpush1.bf16.xpose.msra.mxu0 0
      %2367 = vmatprep.subr.bf16.mxu0 0
      %2368 = vmatpush1.bf16.xpose.msra.mxu0 0
      %2369 = vmatprep.subr.bf16.mxu0 0
      %2370 = vmatpush1.bf16.xpose.msra.mxu0 0
      %2371 = vmatprep.subr.bf16.mxu0 0
      %2372 = vmatpush1.bf16.xpose.msra.mxu0 0
      %2373 = vmatprep.subr.bf16.mxu0 0
      %2374 = vmatpush1.bf16.xpose.msra.mxu0 0
      %2375 = vmatprep.subr.bf16.mxu0 0
      %2376 = vmatpush1.bf16.xpose.msra.mxu0 0
      %2377 = vmatprep.mubr.bf16.mxu0 0
      %2378 = vmatmul.mubr.bf16.gmra.mrb[0].mxu0 %v2340
      %v2379 = vpop.f32.mrb[0].mxu0
      %v2380 = vadd.f32 0.0, %v2379
      %v2381 = vpop.f32.mrb[0].mxu0
      %v2382 = vpop.f32.mrb[0].mxu0
      %v2383 = vpop.f32.mrb[0].mxu0
      %2384 = vdwg.mxu0
      %v2385 = vmul.f32 %v2233, 0.25
      %v2386 = vmul.f32 %v2282, 0.25
      %v2387 = vmul.f32 %v2331, 0.25
      %v2388 = vmul.f32 %v2380, 0.25
      %v2389 = vadd.f32 %v2385, %v587
      %v2390 = vadd.f32 %v2386, %v587
      %v2391 = vadd.f32 %v2387, %v587
      %v2392 = vadd.f32 %v2388, %v587
      %v2393 = vsel %vm946, %v2389, -inf
      %2394 = vmax.xlane.f32.xlu0 %v2393
      %v2395 = vpop.xlane.xlu0 %2394
      %v2396 = vsel %vm946, %v2390, -inf
      %2397 = vmax.xlane.f32.xlu0 %v2396
      %v2398 = vpop.xlane.xlu0 %2397
      %v2399 = vsel %vm946, %v2391, -inf
      %2400 = vmax.xlane.f32.xlu0 %v2399
      %v2401 = vpop.xlane.xlu0 %2400
      %v2402 = vsel %vm946, %v2392, -inf
      %2403 = vmax.xlane.f32.xlu0 %v2402
      %v2404 = vpop.xlane.xlu0 %2403
      %v2405 = vsub.f32 %v2389, %v2395
      %v2406 = vsub.f32 %v2390, %v2398
      %v2407 = vsub.f32 %v2391, %v2401
      %v2408 = vsub.f32 %v2392, %v2404
      %v2409 = vmul.f32 %v2405, 1.442695
      %v2410 = vpow.pop %v2409
      %v2411 = vmul.f32 %v2406, 1.442695
      %v2412 = vpow.pop %v2411
      %v2413 = vmul.f32 %v2407, 1.442695
      %v2414 = vpow.pop %v2413
      %v2415 = vmul.f32 %v2408, 1.442695
      %v2416 = vpow.pop %v2415
      %v2417 = vsel %vm946, %v2410, 0.0
      %2418 = vadd.xlane.f32.xlu0 %v2417
      %v2419 = vpop.xlane.xlu0 %2418
      %v2420 = vsel %vm946, %v2412, 0.0
      %2421 = vadd.xlane.f32.xlu0 %v2420
      %v2422 = vpop.xlane.xlu0 %2421
      %v2423 = vsel %vm946, %v2414, 0.0
      %2424 = vadd.xlane.f32.xlu0 %v2423
      %v2425 = vpop.xlane.xlu0 %2424
      %v2426 = vsel %vm946, %v2416, 0.0
      %2427 = vadd.xlane.f32.xlu0 %v2426
      %v2428 = vpop.xlane.xlu0 %2427
      %v2429 = vrcp.pop %v2419
      %v2430 = vrcp.pop %v2422
      %v2431 = vrcp.pop %v2425
      %v2432 = vrcp.pop %v2428
      %v2433 = vmul.f32 %v2410, %v2429
      %v2434 = vmul.f32 %v2412, %v2430
      %v2435 = vmul.f32 %v2414, %v2431
      %v2436 = vmul.f32 %v2416, %v2432
      %v2437 = vpack.c.bf16 %v2433, %v2433
      %v2438 = vpack.c.bf16 %v2434, %v2434
      %v2439 = vpack.c.bf16 %v2435, %v2435
      %v2440 = vpack.c.bf16 %v2436, %v2436
      %2441 = vrot.lane.b32.xlu0 %v2185, 64
      %v2442 = vpop.permute.xlu0 %2441
      %v2444 = vsel %vm946, %v2437, 0
      %v2447 = vsel %vm1000, %v2442, 0
      %2449 = vmatprep.subr.bf16.mxu0 0
      %2450 = vmatpush1.bf16.msra.mxu0 %v2447
      %2451 = vmatprep.subr.bf16.mxu0 0
      %2452 = vmatpush1.bf16.msra.mxu0 0
      %2453 = vmatprep.subr.bf16.mxu0 0
      %2454 = vmatpush1.bf16.msra.mxu0 0
      %2455 = vmatprep.subr.bf16.mxu0 0
      %2456 = vmatpush1.bf16.msra.mxu0 0
      %2457 = vmatprep.subr.bf16.mxu0 0
      %2458 = vmatpush1.bf16.msra.mxu0 0
      %2459 = vmatprep.subr.bf16.mxu0 0
      %2460 = vmatpush1.bf16.msra.mxu0 0
      %2461 = vmatprep.subr.bf16.mxu0 0
      %2462 = vmatpush1.bf16.msra.mxu0 0
      %2463 = vmatprep.subr.bf16.mxu0 0
      %2464 = vmatpush1.bf16.msra.mxu0 0
      %2465 = vmatprep.subr.bf16.mxu0 0
      %2466 = vmatpush1.bf16.msra.mxu0 0
      %2467 = vmatprep.subr.bf16.mxu0 0
      %2468 = vmatpush1.bf16.msra.mxu0 0
      %2469 = vmatprep.subr.bf16.mxu0 0
      %2470 = vmatpush1.bf16.msra.mxu0 0
      %2471 = vmatprep.subr.bf16.mxu0 0
      %2472 = vmatpush1.bf16.msra.mxu0 0
      %2473 = vmatprep.subr.bf16.mxu0 0
      %2474 = vmatpush1.bf16.msra.mxu0 0
      %2475 = vmatprep.subr.bf16.mxu0 0
      %2476 = vmatpush1.bf16.msra.mxu0 0
      %2477 = vmatprep.subr.bf16.mxu0 0
      %2478 = vmatpush1.bf16.msra.mxu0 0
      %2479 = vmatprep.subr.bf16.mxu0 0
      %2480 = vmatpush1.bf16.msra.mxu0 0
      %2481 = vmatprep.mubr.bf16.mxu0 0
      %2482 = vmatmul.mubr.bf16.gmra.mrb[0].mxu0 %v2444
      %v2483 = vpop.f32.mrb[0].mxu0
      %v2484 = vadd.f32 0.0, %v2483
      %v2485 = vpop.f32.mrb[0].mxu0
      %v2486 = vpop.f32.mrb[0].mxu0
      %v2487 = vpop.f32.mrb[0].mxu0
      %2488 = vdwg.mxu0
      %2489 = vrot.lane.b32.xlu0 %v2186, 64
      %v2490 = vpop.permute.xlu0 %2489
      %v2492 = vsel %vm946, %v2438, 0
      %v2495 = vsel %vm1000, %v2490, 0
      %2497 = vmatprep.subr.bf16.mxu0 0
      %2498 = vmatpush1.bf16.msra.mxu0 %v2495
      %2499 = vmatprep.subr.bf16.mxu0 0
      %2500 = vmatpush1.bf16.msra.mxu0 0
      %2501 = vmatprep.subr.bf16.mxu0 0
      %2502 = vmatpush1.bf16.msra.mxu0 0
      %2503 = vmatprep.subr.bf16.mxu0 0
      %2504 = vmatpush1.bf16.msra.mxu0 0
      %2505 = vmatprep.subr.bf16.mxu0 0
      %2506 = vmatpush1.bf16.msra.mxu0 0
      %2507 = vmatprep.subr.bf16.mxu0 0
      %2508 = vmatpush1.bf16.msra.mxu0 0
      %2509 = vmatprep.subr.bf16.mxu0 0
      %2510 = vmatpush1.bf16.msra.mxu0 0
      %2511 = vmatprep.subr.bf16.mxu0 0
      %2512 = vmatpush1.bf16.msra.mxu0 0
      %2513 = vmatprep.subr.bf16.mxu0 0
      %2514 = vmatpush1.bf16.msra.mxu0 0
      %2515 = vmatprep.subr.bf16.mxu0 0
      %2516 = vmatpush1.bf16.msra.mxu0 0
      %2517 = vmatprep.subr.bf16.mxu0 0
      %2518 = vmatpush1.bf16.msra.mxu0 0
      %2519 = vmatprep.subr.bf16.mxu0 0
      %2520 = vmatpush1.bf16.msra.mxu0 0
      %2521 = vmatprep.subr.bf16.mxu0 0
      %2522 = vmatpush1.bf16.msra.mxu0 0
      %2523 = vmatprep.subr.bf16.mxu0 0
      %2524 = vmatpush1.bf16.msra.mxu0 0
      %2525 = vmatprep.subr.bf16.mxu0 0
      %2526 = vmatpush1.bf16.msra.mxu0 0
      %2527 = vmatprep.subr.bf16.mxu0 0
      %2528 = vmatpush1.bf16.msra.mxu0 0
      %2529 = vmatprep.mubr.bf16.mxu0 0
      %2530 = vmatmul.mubr.bf16.gmra.mrb[0].mxu0 %v2492
      %v2531 = vpop.f32.mrb[0].mxu0
      %v2532 = vadd.f32 0.0, %v2531
      %v2533 = vpop.f32.mrb[0].mxu0
      %v2534 = vpop.f32.mrb[0].mxu0
      %v2535 = vpop.f32.mrb[0].mxu0
      %2536 = vdwg.mxu0
      %2537 = vrot.lane.b32.xlu0 %v2187, 64
      %v2538 = vpop.permute.xlu0 %2537
      %v2540 = vsel %vm946, %v2439, 0
      %v2543 = vsel %vm1000, %v2538, 0
      %2545 = vmatprep.subr.bf16.mxu0 0
      %2546 = vmatpush1.bf16.msra.mxu0 %v2543
      %2547 = vmatprep.subr.bf16.mxu0 0
      %2548 = vmatpush1.bf16.msra.mxu0 0
      %2549 = vmatprep.subr.bf16.mxu0 0
      %2550 = vmatpush1.bf16.msra.mxu0 0
      %2551 = vmatprep.subr.bf16.mxu0 0
      %2552 = vmatpush1.bf16.msra.mxu0 0
      %2553 = vmatprep.subr.bf16.mxu0 0
      %2554 = vmatpush1.bf16.msra.mxu0 0
      %2555 = vmatprep.subr.bf16.mxu0 0
      %2556 = vmatpush1.bf16.msra.mxu0 0
      %2557 = vmatprep.subr.bf16.mxu0 0
      %2558 = vmatpush1.bf16.msra.mxu0 0
      %2559 = vmatprep.subr.bf16.mxu0 0
      %2560 = vmatpush1.bf16.msra.mxu0 0
      %2561 = vmatprep.subr.bf16.mxu0 0
      %2562 = vmatpush1.bf16.msra.mxu0 0
      %2563 = vmatprep.subr.bf16.mxu0 0
      %2564 = vmatpush1.bf16.msra.mxu0 0
      %2565 = vmatprep.subr.bf16.mxu0 0
      %2566 = vmatpush1.bf16.msra.mxu0 0
      %2567 = vmatprep.subr.bf16.mxu0 0
      %2568 = vmatpush1.bf16.msra.mxu0 0
      %2569 = vmatprep.subr.bf16.mxu0 0
      %2570 = vmatpush1.bf16.msra.mxu0 0
      %2571 = vmatprep.subr.bf16.mxu0 0
      %2572 = vmatpush1.bf16.msra.mxu0 0
      %2573 = vmatprep.subr.bf16.mxu0 0
      %2574 = vmatpush1.bf16.msra.mxu0 0
      %2575 = vmatprep.subr.bf16.mxu0 0
      %2576 = vmatpush1.bf16.msra.mxu0 0
      %2577 = vmatprep.mubr.bf16.mxu0 0
      %2578 = vmatmul.mubr.bf16.gmra.mrb[0].mxu0 %v2540
      %v2579 = vpop.f32.mrb[0].mxu0
      %v2580 = vadd.f32 0.0, %v2579
      %v2581 = vpop.f32.mrb[0].mxu0
      %v2582 = vpop.f32.mrb[0].mxu0
      %v2583 = vpop.f32.mrb[0].mxu0
      %2584 = vdwg.mxu0
      %2585 = vrot.lane.b32.xlu0 %v2188, 64
      %v2586 = vpop.permute.xlu0 %2585
      %v2588 = vsel %vm946, %v2440, 0
      %v2591 = vsel %vm1000, %v2586, 0
      %2593 = vmatprep.subr.bf16.mxu0 0
      %2594 = vmatpush1.bf16.msra.mxu0 %v2591
      %2595 = vmatprep.subr.bf16.mxu0 0
      %2596 = vmatpush1.bf16.msra.mxu0 0
      %2597 = vmatprep.subr.bf16.mxu0 0
      %2598 = vmatpush1.bf16.msra.mxu0 0
      %2599 = vmatprep.subr.bf16.mxu0 0
      %2600 = vmatpush1.bf16.msra.mxu0 0
      %2601 = vmatprep.subr.bf16.mxu0 0
      %2602 = vmatpush1.bf16.msra.mxu0 0
      %2603 = vmatprep.subr.bf16.mxu0 0
      %2604 = vmatpush1.bf16.msra.mxu0 0
      %2605 = vmatprep.subr.bf16.mxu0 0
      %2606 = vmatpush1.bf16.msra.mxu0 0
      %2607 = vmatprep.subr.bf16.mxu0 0
      %2608 = vmatpush1.bf16.msra.mxu0 0
      %2609 = vmatprep.subr.bf16.mxu0 0
      %2610 = vmatpush1.bf16.msra.mxu0 0
      %2611 = vmatprep.subr.bf16.mxu0 0
      %2612 = vmatpush1.bf16.msra.mxu0 0
      %2613 = vmatprep.subr.bf16.mxu0 0
      %2614 = vmatpush1.bf16.msra.mxu0 0
      %2615 = vmatprep.subr.bf16.mxu0 0
      %2616 = vmatpush1.bf16.msra.mxu0 0
      %2617 = vmatprep.subr.bf16.mxu0 0
      %2618 = vmatpush1.bf16.msra.mxu0 0
      %2619 = vmatprep.subr.bf16.mxu0 0
      %2620 = vmatpush1.bf16.msra.mxu0 0
      %2621 = vmatprep.subr.bf16.mxu0 0
      %2622 = vmatpush1.bf16.msra.mxu0 0
      %2623 = vmatprep.subr.bf16.mxu0 0
      %2624 = vmatpush1.bf16.msra.mxu0 0
      %2625 = vmatprep.mubr.bf16.mxu0 0
      %2626 = vmatmul.mubr.bf16.gmra.mrb[0].mxu0 %v2588
      %v2627 = vpop.f32.mrb[0].mxu0
      %v2628 = vadd.f32 0.0, %v2627
      %v2629 = vpop.f32.mrb[0].mxu0
      %v2630 = vpop.f32.mrb[0].mxu0
      %v2631 = vpop.f32.mrb[0].mxu0
      %2632 = vdwg.mxu0
      %2633 = vrot.lane.b32.xlu0 %v2185, 112
      %v2634 = vpop.permute.xlu0 %2633
      %2635 = vrot.lane.b32.xlu0 %v2185, 80
      %v2636 = vpop.permute.xlu0 %2635
      %v2638 = vsel %vm744, %v2634, 0
      %v2641 = vsel %vm744, %v2636, 0
      %2643 = vmatprep.subr.bf16.mxu0 0
      %2644 = vmatpush1.bf16.xpose.msra.mxu0 %v2641
      %2645 = vmatprep.subr.bf16.mxu0 0
      %2646 = vmatpush1.bf16.xpose.msra.mxu0 0
      %2647 = vmatprep.subr.bf16.mxu0 0
      %2648 = vmatpush1.bf16.xpose.msra.mxu0 0
      %2649 = vmatprep.subr.bf16.mxu0 0
      %2650 = vmatpush1.bf16.xpose.msra.mxu0 0
      %2651 = vmatprep.subr.bf16.mxu0 0
      %2652 = vmatpush1.bf16.xpose.msra.mxu0 0
      %2653 = vmatprep.subr.bf16.mxu0 0
      %2654 = vmatpush1.bf16.xpose.msra.mxu0 0
      %2655 = vmatprep.subr.bf16.mxu0 0
      %2656 = vmatpush1.bf16.xpose.msra.mxu0 0
      %2657 = vmatprep.subr.bf16.mxu0 0
      %2658 = vmatpush1.bf16.xpose.msra.mxu0 0
      %2659 = vmatprep.subr.bf16.mxu0 0
      %2660 = vmatpush1.bf16.xpose.msra.mxu0 0
      %2661 = vmatprep.subr.bf16.mxu0 0
      %2662 = vmatpush1.bf16.xpose.msra.mxu0 0
      %2663 = vmatprep.subr.bf16.mxu0 0
      %2664 = vmatpush1.bf16.xpose.msra.mxu0 0
      %2665 = vmatprep.subr.bf16.mxu0 0
      %2666 = vmatpush1.bf16.xpose.msra.mxu0 0
      %2667 = vmatprep.subr.bf16.mxu0 0
      %2668 = vmatpush1.bf16.xpose.msra.mxu0 0
      %2669 = vmatprep.subr.bf16.mxu0 0
      %2670 = vmatpush1.bf16.xpose.msra.mxu0 0
      %2671 = vmatprep.subr.bf16.mxu0 0
      %2672 = vmatpush1.bf16.xpose.msra.mxu0 0
      %2673 = vmatprep.subr.bf16.mxu0 0
      %2674 = vmatpush1.bf16.xpose.msra.mxu0 0
      %2675 = vmatprep.mubr.bf16.mxu0 0
      %2676 = vmatmul.mubr.bf16.gmra.mrb[0].mxu0 %v2638
      %v2677 = vpop.f32.mrb[0].mxu0
      %v2678 = vadd.f32 0.0, %v2677
      %v2679 = vpop.f32.mrb[0].mxu0
      %v2680 = vpop.f32.mrb[0].mxu0
      %v2681 = vpop.f32.mrb[0].mxu0
      %2682 = vdwg.mxu0
      %2683 = vrot.lane.b32.xlu0 %v2186, 112
      %v2684 = vpop.permute.xlu0 %2683
      %2685 = vrot.lane.b32.xlu0 %v2186, 80
      %v2686 = vpop.permute.xlu0 %2685
      %v2688 = vsel %vm744, %v2684, 0
      %v2691 = vsel %vm744, %v2686, 0
      %2693 = vmatprep.subr.bf16.mxu0 0
      %2694 = vmatpush1.bf16.xpose.msra.mxu0 %v2691
      %2695 = vmatprep.subr.bf16.mxu0 0
      %2696 = vmatpush1.bf16.xpose.msra.mxu0 0
      %2697 = vmatprep.subr.bf16.mxu0 0
      %2698 = vmatpush1.bf16.xpose.msra.mxu0 0
      %2699 = vmatprep.subr.bf16.mxu0 0
      %2700 = vmatpush1.bf16.xpose.msra.mxu0 0
      %2701 = vmatprep.subr.bf16.mxu0 0
      %2702 = vmatpush1.bf16.xpose.msra.mxu0 0
      %2703 = vmatprep.subr.bf16.mxu0 0
      %2704 = vmatpush1.bf16.xpose.msra.mxu0 0
      %2705 = vmatprep.subr.bf16.mxu0 0
      %2706 = vmatpush1.bf16.xpose.msra.mxu0 0
      %2707 = vmatprep.subr.bf16.mxu0 0
      %2708 = vmatpush1.bf16.xpose.msra.mxu0 0
      %2709 = vmatprep.subr.bf16.mxu0 0
      %2710 = vmatpush1.bf16.xpose.msra.mxu0 0
      %2711 = vmatprep.subr.bf16.mxu0 0
      %2712 = vmatpush1.bf16.xpose.msra.mxu0 0
      %2713 = vmatprep.subr.bf16.mxu0 0
      %2714 = vmatpush1.bf16.xpose.msra.mxu0 0
      %2715 = vmatprep.subr.bf16.mxu0 0
      %2716 = vmatpush1.bf16.xpose.msra.mxu0 0
      %2717 = vmatprep.subr.bf16.mxu0 0
      %2718 = vmatpush1.bf16.xpose.msra.mxu0 0
      %2719 = vmatprep.subr.bf16.mxu0 0
      %2720 = vmatpush1.bf16.xpose.msra.mxu0 0
      %2721 = vmatprep.subr.bf16.mxu0 0
      %2722 = vmatpush1.bf16.xpose.msra.mxu0 0
      %2723 = vmatprep.subr.bf16.mxu0 0
      %2724 = vmatpush1.bf16.xpose.msra.mxu0 0
      %2725 = vmatprep.mubr.bf16.mxu0 0
      %2726 = vmatmul.mubr.bf16.gmra.mrb[0].mxu0 %v2688
      %v2727 = vpop.f32.mrb[0].mxu0
      %v2728 = vadd.f32 0.0, %v2727
      %v2729 = vpop.f32.mrb[0].mxu0
      %v2730 = vpop.f32.mrb[0].mxu0
      %v2731 = vpop.f32.mrb[0].mxu0
      %2732 = vdwg.mxu0
      %2733 = vrot.lane.b32.xlu0 %v2187, 112
      %v2734 = vpop.permute.xlu0 %2733
      %2735 = vrot.lane.b32.xlu0 %v2187, 80
      %v2736 = vpop.permute.xlu0 %2735
      %v2738 = vsel %vm744, %v2734, 0
      %v2741 = vsel %vm744, %v2736, 0
      %2743 = vmatprep.subr.bf16.mxu0 0
      %2744 = vmatpush1.bf16.xpose.msra.mxu0 %v2741
      %2745 = vmatprep.subr.bf16.mxu0 0
      %2746 = vmatpush1.bf16.xpose.msra.mxu0 0
      %2747 = vmatprep.subr.bf16.mxu0 0
      %2748 = vmatpush1.bf16.xpose.msra.mxu0 0
      %2749 = vmatprep.subr.bf16.mxu0 0
      %2750 = vmatpush1.bf16.xpose.msra.mxu0 0
      %2751 = vmatprep.subr.bf16.mxu0 0
      %2752 = vmatpush1.bf16.xpose.msra.mxu0 0
      %2753 = vmatprep.subr.bf16.mxu0 0
      %2754 = vmatpush1.bf16.xpose.msra.mxu0 0
      %2755 = vmatprep.subr.bf16.mxu0 0
      %2756 = vmatpush1.bf16.xpose.msra.mxu0 0
      %2757 = vmatprep.subr.bf16.mxu0 0
      %2758 = vmatpush1.bf16.xpose.msra.mxu0 0
      %2759 = vmatprep.subr.bf16.mxu0 0
      %2760 = vmatpush1.bf16.xpose.msra.mxu0 0
      %2761 = vmatprep.subr.bf16.mxu0 0
      %2762 = vmatpush1.bf16.xpose.msra.mxu0 0
      %2763 = vmatprep.subr.bf16.mxu0 0
      %2764 = vmatpush1.bf16.xpose.msra.mxu0 0
      %2765 = vmatprep.subr.bf16.mxu0 0
      %2766 = vmatpush1.bf16.xpose.msra.mxu0 0
      %2767 = vmatprep.subr.bf16.mxu0 0
      %2768 = vmatpush1.bf16.xpose.msra.mxu0 0
      %2769 = vmatprep.subr.bf16.mxu0 0
      %2770 = vmatpush1.bf16.xpose.msra.mxu0 0
      %2771 = vmatprep.subr.bf16.mxu0 0
      %2772 = vmatpush1.bf16.xpose.msra.mxu0 0
      %2773 = vmatprep.subr.bf16.mxu0 0
      %2774 = vmatpush1.bf16.xpose.msra.mxu0 0
      %2775 = vmatprep.mubr.bf16.mxu0 0
      %2776 = vmatmul.mubr.bf16.gmra.mrb[0].mxu0 %v2738
      %v2777 = vpop.f32.mrb[0].mxu0
      %v2778 = vadd.f32 0.0, %v2777
      %v2779 = vpop.f32.mrb[0].mxu0
      %v2780 = vpop.f32.mrb[0].mxu0
      %v2781 = vpop.f32.mrb[0].mxu0
      %2782 = vdwg.mxu0
      %2783 = vrot.lane.b32.xlu0 %v2188, 112
      %v2784 = vpop.permute.xlu0 %2783
      %2785 = vrot.lane.b32.xlu0 %v2188, 80
      %v2786 = vpop.permute.xlu0 %2785
      %v2788 = vsel %vm744, %v2784, 0
      %v2791 = vsel %vm744, %v2786, 0
      %2793 = vmatprep.subr.bf16.mxu0 0
      %2794 = vmatpush1.bf16.xpose.msra.mxu0 %v2791
      %2795 = vmatprep.subr.bf16.mxu0 0
      %2796 = vmatpush1.bf16.xpose.msra.mxu0 0
      %2797 = vmatprep.subr.bf16.mxu0 0
      %2798 = vmatpush1.bf16.xpose.msra.mxu0 0
      %2799 = vmatprep.subr.bf16.mxu0 0
      %2800 = vmatpush1.bf16.xpose.msra.mxu0 0
      %2801 = vmatprep.subr.bf16.mxu0 0
      %2802 = vmatpush1.bf16.xpose.msra.mxu0 0
      %2803 = vmatprep.subr.bf16.mxu0 0
      %2804 = vmatpush1.bf16.xpose.msra.mxu0 0
      %2805 = vmatprep.subr.bf16.mxu0 0
      %2806 = vmatpush1.bf16.xpose.msra.mxu0 0
      %2807 = vmatprep.subr.bf16.mxu0 0
      %2808 = vmatpush1.bf16.xpose.msra.mxu0 0
      %2809 = vmatprep.subr.bf16.mxu0 0
      %2810 = vmatpush1.bf16.xpose.msra.mxu0 0
      %2811 = vmatprep.subr.bf16.mxu0 0
      %2812 = vmatpush1.bf16.xpose.msra.mxu0 0
      %2813 = vmatprep.subr.bf16.mxu0 0
      %2814 = vmatpush1.bf16.xpose.msra.mxu0 0
      %2815 = vmatprep.subr.bf16.mxu0 0
      %2816 = vmatpush1.bf16.xpose.msra.mxu0 0
      %2817 = vmatprep.subr.bf16.mxu0 0
      %2818 = vmatpush1.bf16.xpose.msra.mxu0 0
      %2819 = vmatprep.subr.bf16.mxu0 0
      %2820 = vmatpush1.bf16.xpose.msra.mxu0 0
      %2821 = vmatprep.subr.bf16.mxu0 0
      %2822 = vmatpush1.bf16.xpose.msra.mxu0 0
      %2823 = vmatprep.subr.bf16.mxu0 0
      %2824 = vmatpush1.bf16.xpose.msra.mxu0 0
      %2825 = vmatprep.mubr.bf16.mxu0 0
      %2826 = vmatmul.mubr.bf16.gmra.mrb[0].mxu0 %v2788
      %v2827 = vpop.f32.mrb[0].mxu0
      %v2828 = vadd.f32 0.0, %v2827
      %v2829 = vpop.f32.mrb[0].mxu0
      %v2830 = vpop.f32.mrb[0].mxu0
      %v2831 = vpop.f32.mrb[0].mxu0
      %2832 = vdwg.mxu0
      %v2833 = vmul.f32 %v2678, 0.25
      %v2834 = vmul.f32 %v2728, 0.25
      %v2835 = vmul.f32 %v2778, 0.25
      %v2836 = vmul.f32 %v2828, 0.25
      %v2837 = vadd.f32 %v2833, %v587
      %v2838 = vadd.f32 %v2834, %v587
      %v2839 = vadd.f32 %v2835, %v587
      %v2840 = vadd.f32 %v2836, %v587
      %v2841 = vsel %vm946, %v2837, -inf
      %2842 = vmax.xlane.f32.xlu0 %v2841
      %v2843 = vpop.xlane.xlu0 %2842
      %v2844 = vsel %vm946, %v2838, -inf
      %2845 = vmax.xlane.f32.xlu0 %v2844
      %v2846 = vpop.xlane.xlu0 %2845
      %v2847 = vsel %vm946, %v2839, -inf
      %2848 = vmax.xlane.f32.xlu0 %v2847
      %v2849 = vpop.xlane.xlu0 %2848
      %v2850 = vsel %vm946, %v2840, -inf
      %2851 = vmax.xlane.f32.xlu0 %v2850
      %v2852 = vpop.xlane.xlu0 %2851
      %v2853 = vsub.f32 %v2837, %v2843
      %v2854 = vsub.f32 %v2838, %v2846
      %v2855 = vsub.f32 %v2839, %v2849
      %v2856 = vsub.f32 %v2840, %v2852
      %v2857 = vmul.f32 %v2853, 1.442695
      %v2858 = vpow.pop %v2857
      %v2859 = vmul.f32 %v2854, 1.442695
      %v2860 = vpow.pop %v2859
      %v2861 = vmul.f32 %v2855, 1.442695
      %v2862 = vpow.pop %v2861
      %v2863 = vmul.f32 %v2856, 1.442695
      %v2864 = vpow.pop %v2863
      %v2865 = vsel %vm946, %v2858, 0.0
      %2866 = vadd.xlane.f32.xlu0 %v2865
      %v2867 = vpop.xlane.xlu0 %2866
      %v2868 = vsel %vm946, %v2860, 0.0
      %2869 = vadd.xlane.f32.xlu0 %v2868
      %v2870 = vpop.xlane.xlu0 %2869
      %v2871 = vsel %vm946, %v2862, 0.0
      %2872 = vadd.xlane.f32.xlu0 %v2871
      %v2873 = vpop.xlane.xlu0 %2872
      %v2874 = vsel %vm946, %v2864, 0.0
      %2875 = vadd.xlane.f32.xlu0 %v2874
      %v2876 = vpop.xlane.xlu0 %2875
      %v2877 = vrcp.pop %v2867
      %v2878 = vrcp.pop %v2870
      %v2879 = vrcp.pop %v2873
      %v2880 = vrcp.pop %v2876
      %v2881 = vmul.f32 %v2858, %v2877
      %v2882 = vmul.f32 %v2860, %v2878
      %v2883 = vmul.f32 %v2862, %v2879
      %v2884 = vmul.f32 %v2864, %v2880
      %v2885 = vpack.c.bf16 %v2881, %v2881
      %v2886 = vpack.c.bf16 %v2882, %v2882
      %v2887 = vpack.c.bf16 %v2883, %v2883
      %v2888 = vpack.c.bf16 %v2884, %v2884
      %2889 = vrot.lane.b32.xlu0 %v2185, 48
      %v2890 = vpop.permute.xlu0 %2889
      %v2892 = vsel %vm946, %v2885, 0
      %v2895 = vsel %vm1000, %v2890, 0
      %2897 = vmatprep.subr.bf16.mxu0 0
      %2898 = vmatpush1.bf16.msra.mxu0 %v2895
      %2899 = vmatprep.subr.bf16.mxu0 0
      %2900 = vmatpush1.bf16.msra.mxu0 0
      %2901 = vmatprep.subr.bf16.mxu0 0
      %2902 = vmatpush1.bf16.msra.mxu0 0
      %2903 = vmatprep.subr.bf16.mxu0 0
      %2904 = vmatpush1.bf16.msra.mxu0 0
      %2905 = vmatprep.subr.bf16.mxu0 0
      %2906 = vmatpush1.bf16.msra.mxu0 0
      %2907 = vmatprep.subr.bf16.mxu0 0
      %2908 = vmatpush1.bf16.msra.mxu0 0
      %2909 = vmatprep.subr.bf16.mxu0 0
      %2910 = vmatpush1.bf16.msra.mxu0 0
      %2911 = vmatprep.subr.bf16.mxu0 0
      %2912 = vmatpush1.bf16.msra.mxu0 0
      %2913 = vmatprep.subr.bf16.mxu0 0
      %2914 = vmatpush1.bf16.msra.mxu0 0
      %2915 = vmatprep.subr.bf16.mxu0 0
      %2916 = vmatpush1.bf16.msra.mxu0 0
      %2917 = vmatprep.subr.bf16.mxu0 0
      %2918 = vmatpush1.bf16.msra.mxu0 0
      %2919 = vmatprep.subr.bf16.mxu0 0
      %2920 = vmatpush1.bf16.msra.mxu0 0
      %2921 = vmatprep.subr.bf16.mxu0 0
      %2922 = vmatpush1.bf16.msra.mxu0 0
      %2923 = vmatprep.subr.bf16.mxu0 0
      %2924 = vmatpush1.bf16.msra.mxu0 0
      %2925 = vmatprep.subr.bf16.mxu0 0
      %2926 = vmatpush1.bf16.msra.mxu0 0
      %2927 = vmatprep.subr.bf16.mxu0 0
      %2928 = vmatpush1.bf16.msra.mxu0 0
      %2929 = vmatprep.mubr.bf16.mxu0 0
      %2930 = vmatmul.mubr.bf16.gmra.mrb[0].mxu0 %v2892
      %v2931 = vpop.f32.mrb[0].mxu0
      %v2932 = vadd.f32 0.0, %v2931
      %v2933 = vpop.f32.mrb[0].mxu0
      %v2934 = vpop.f32.mrb[0].mxu0
      %v2935 = vpop.f32.mrb[0].mxu0
      %2936 = vdwg.mxu0
      %2937 = vrot.lane.b32.xlu0 %v2186, 48
      %v2938 = vpop.permute.xlu0 %2937
      %v2940 = vsel %vm946, %v2886, 0
      %v2943 = vsel %vm1000, %v2938, 0
      %2945 = vmatprep.subr.bf16.mxu0 0
      %2946 = vmatpush1.bf16.msra.mxu0 %v2943
      %2947 = vmatprep.subr.bf16.mxu0 0
      %2948 = vmatpush1.bf16.msra.mxu0 0
      %2949 = vmatprep.subr.bf16.mxu0 0
      %2950 = vmatpush1.bf16.msra.mxu0 0
      %2951 = vmatprep.subr.bf16.mxu0 0
      %2952 = vmatpush1.bf16.msra.mxu0 0
      %2953 = vmatprep.subr.bf16.mxu0 0
      %2954 = vmatpush1.bf16.msra.mxu0 0
      %2955 = vmatprep.subr.bf16.mxu0 0
      %2956 = vmatpush1.bf16.msra.mxu0 0
      %2957 = vmatprep.subr.bf16.mxu0 0
      %2958 = vmatpush1.bf16.msra.mxu0 0
      %2959 = vmatprep.subr.bf16.mxu0 0
      %2960 = vmatpush1.bf16.msra.mxu0 0
      %2961 = vmatprep.subr.bf16.mxu0 0
      %2962 = vmatpush1.bf16.msra.mxu0 0
      %2963 = vmatprep.subr.bf16.mxu0 0
      %2964 = vmatpush1.bf16.msra.mxu0 0
      %2965 = vmatprep.subr.bf16.mxu0 0
      %2966 = vmatpush1.bf16.msra.mxu0 0
      %2967 = vmatprep.subr.bf16.mxu0 0
      %2968 = vmatpush1.bf16.msra.mxu0 0
      %2969 = vmatprep.subr.bf16.mxu0 0
      %2970 = vmatpush1.bf16.msra.mxu0 0
      %2971 = vmatprep.subr.bf16.mxu0 0
      %2972 = vmatpush1.bf16.msra.mxu0 0
      %2973 = vmatprep.subr.bf16.mxu0 0
      %2974 = vmatpush1.bf16.msra.mxu0 0
      %2975 = vmatprep.subr.bf16.mxu0 0
      %2976 = vmatpush1.bf16.msra.mxu0 0
      %2977 = vmatprep.mubr.bf16.mxu0 0
      %2978 = vmatmul.mubr.bf16.gmra.mrb[0].mxu0 %v2940
      %v2979 = vpop.f32.mrb[0].mxu0
      %v2980 = vadd.f32 0.0, %v2979
      %v2981 = vpop.f32.mrb[0].mxu0
      %v2982 = vpop.f32.mrb[0].mxu0
      %v2983 = vpop.f32.mrb[0].mxu0
      %2984 = vdwg.mxu0
      %2985 = vrot.lane.b32.xlu0 %v2187, 48
      %v2986 = vpop.permute.xlu0 %2985
      %v2988 = vsel %vm946, %v2887, 0
      %v2991 = vsel %vm1000, %v2986, 0
      %2993 = vmatprep.subr.bf16.mxu0 0
      %2994 = vmatpush1.bf16.msra.mxu0 %v2991
      %2995 = vmatprep.subr.bf16.mxu0 0
      %2996 = vmatpush1.bf16.msra.mxu0 0
      %2997 = vmatprep.subr.bf16.mxu0 0
      %2998 = vmatpush1.bf16.msra.mxu0 0
      %2999 = vmatprep.subr.bf16.mxu0 0
      %3000 = vmatpush1.bf16.msra.mxu0 0
      %3001 = vmatprep.subr.bf16.mxu0 0
      %3002 = vmatpush1.bf16.msra.mxu0 0
      %3003 = vmatprep.subr.bf16.mxu0 0
      %3004 = vmatpush1.bf16.msra.mxu0 0
      %3005 = vmatprep.subr.bf16.mxu0 0
      %3006 = vmatpush1.bf16.msra.mxu0 0
      %3007 = vmatprep.subr.bf16.mxu0 0
      %3008 = vmatpush1.bf16.msra.mxu0 0
      %3009 = vmatprep.subr.bf16.mxu0 0
      %3010 = vmatpush1.bf16.msra.mxu0 0
      %3011 = vmatprep.subr.bf16.mxu0 0
      %3012 = vmatpush1.bf16.msra.mxu0 0
      %3013 = vmatprep.subr.bf16.mxu0 0
      %3014 = vmatpush1.bf16.msra.mxu0 0
      %3015 = vmatprep.subr.bf16.mxu0 0
      %3016 = vmatpush1.bf16.msra.mxu0 0
      %3017 = vmatprep.subr.bf16.mxu0 0
      %3018 = vmatpush1.bf16.msra.mxu0 0
      %3019 = vmatprep.subr.bf16.mxu0 0
      %3020 = vmatpush1.bf16.msra.mxu0 0
      %3021 = vmatprep.subr.bf16.mxu0 0
      %3022 = vmatpush1.bf16.msra.mxu0 0
      %3023 = vmatprep.subr.bf16.mxu0 0
      %3024 = vmatpush1.bf16.msra.mxu0 0
      %3025 = vmatprep.mubr.bf16.mxu0 0
      %3026 = vmatmul.mubr.bf16.gmra.mrb[0].mxu0 %v2988
      %v3027 = vpop.f32.mrb[0].mxu0
      %v3028 = vadd.f32 0.0, %v3027
      %v3029 = vpop.f32.mrb[0].mxu0
      %v3030 = vpop.f32.mrb[0].mxu0
      %v3031 = vpop.f32.mrb[0].mxu0
      %3032 = vdwg.mxu0
      %3033 = vrot.lane.b32.xlu0 %v2188, 48
      %v3034 = vpop.permute.xlu0 %3033
      %v3036 = vsel %vm946, %v2888, 0
      %v3039 = vsel %vm1000, %v3034, 0
      %3041 = vmatprep.subr.bf16.mxu0 0
      %3042 = vmatpush1.bf16.msra.mxu0 %v3039
      %3043 = vmatprep.subr.bf16.mxu0 0
      %3044 = vmatpush1.bf16.msra.mxu0 0
      %3045 = vmatprep.subr.bf16.mxu0 0
      %3046 = vmatpush1.bf16.msra.mxu0 0
      %3047 = vmatprep.subr.bf16.mxu0 0
      %3048 = vmatpush1.bf16.msra.mxu0 0
      %3049 = vmatprep.subr.bf16.mxu0 0
      %3050 = vmatpush1.bf16.msra.mxu0 0
      %3051 = vmatprep.subr.bf16.mxu0 0
      %3052 = vmatpush1.bf16.msra.mxu0 0
      %3053 = vmatprep.subr.bf16.mxu0 0
      %3054 = vmatpush1.bf16.msra.mxu0 0
      %3055 = vmatprep.subr.bf16.mxu0 0
      %3056 = vmatpush1.bf16.msra.mxu0 0
      %3057 = vmatprep.subr.bf16.mxu0 0
      %3058 = vmatpush1.bf16.msra.mxu0 0
      %3059 = vmatprep.subr.bf16.mxu0 0
      %3060 = vmatpush1.bf16.msra.mxu0 0
      %3061 = vmatprep.subr.bf16.mxu0 0
      %3062 = vmatpush1.bf16.msra.mxu0 0
      %3063 = vmatprep.subr.bf16.mxu0 0
      %3064 = vmatpush1.bf16.msra.mxu0 0
      %3065 = vmatprep.subr.bf16.mxu0 0
      %3066 = vmatpush1.bf16.msra.mxu0 0
      %3067 = vmatprep.subr.bf16.mxu0 0
      %3068 = vmatpush1.bf16.msra.mxu0 0
      %3069 = vmatprep.subr.bf16.mxu0 0
      %3070 = vmatpush1.bf16.msra.mxu0 0
      %3071 = vmatprep.subr.bf16.mxu0 0
      %3072 = vmatpush1.bf16.msra.mxu0 0
      %3073 = vmatprep.mubr.bf16.mxu0 0
      %3074 = vmatmul.mubr.bf16.gmra.mrb[0].mxu0 %v3036
      %v3075 = vpop.f32.mrb[0].mxu0
      %v3076 = vadd.f32 0.0, %v3075
      %v3077 = vpop.f32.mrb[0].mxu0
      %v3078 = vpop.f32.mrb[0].mxu0
      %v3079 = vpop.f32.mrb[0].mxu0
      %3080 = vdwg.mxu0
      %3085 = vrot.lane.b32.xlu0 %v2932, 16
      %v3086 = vpop.permute.xlu0 %3085
      %3087 = vrot.lane.b32.xlu0 %v2980, 16
      %v3088 = vpop.permute.xlu0 %3087
      %3089 = vrot.lane.b32.xlu0 %v3028, 16
      %v3090 = vpop.permute.xlu0 %3089
      %3091 = vrot.lane.b32.xlu0 %v3076, 16
      %v3092 = vpop.permute.xlu0 %3091
      %v3097 = vsel %vm744, %v2484, %v3086
      %v3098 = vsel %vm744, %v2532, %v3088
      %v3099 = vsel %vm744, %v2580, %v3090
      %v3100 = vsel %vm744, %v2628, %v3092
      %v3101 = vpack.c.bf16 %v3098, %v3097
      %v3102 = vpack.c.bf16 %v3100, %v3099
      %s3103 = scalar_lea.vmem %s4, 16
      %v3104 = vld [vmem:[%s3103] sm:$0xf]
      %v3105 = vld [vmem:[%s3103 + $0x4] sm:$0xf]
      %v3106 = vld [vmem:[%s3103 + $0x8] sm:$0xf]
      %v3107 = vld [vmem:[%s3103 + $0xc] sm:$0xf]
      %v3112 = vunpack.c.l.b16 %v3104
      %v3113 = vunpack.c.l.b16 %v3105
      %v3114 = vunpack.c.l.b16 %v3106
      %v3115 = vunpack.c.l.b16 %v3107
      %v3116 = vpack.c.b16 %v3113, %v3112
      %v3117 = vpack.c.b16 %v3115, %v3114
      %v3121 = vsel %vm590, %v3101, 0
      %v3124 = vsel %vm590, %v3102, 0
      %3126 = vmatprep.subr.bf16.mxu0 0
      %3127 = vmatpush1.bf16.msra.mxu0 %v3116
      %3128 = vmatprep.subr.bf16.mxu0 0
      %3129 = vmatpush1.bf16.msra.mxu0 %v3117
      %3130 = vmatprep.subr.bf16.mxu0 0
      %3131 = vmatpush1.bf16.msra.mxu0 0
      %3132 = vmatprep.subr.bf16.mxu0 0
      %3133 = vmatpush1.bf16.msra.mxu0 0
      %3134 = vmatprep.subr.bf16.mxu0 0
      %3135 = vmatpush1.bf16.msra.mxu0 0
      %3136 = vmatprep.subr.bf16.mxu0 0
      %3137 = vmatpush1.bf16.msra.mxu0 0
      %3138 = vmatprep.subr.bf16.mxu0 0
      %3139 = vmatpush1.bf16.msra.mxu0 0
      %3140 = vmatprep.subr.bf16.mxu0 0
      %3141 = vmatpush1.bf16.msra.mxu0 0
      %3142 = vmatprep.subr.bf16.mxu0 0
      %3143 = vmatpush1.bf16.msra.mxu0 0
      %3144 = vmatprep.subr.bf16.mxu0 0
      %3145 = vmatpush1.bf16.msra.mxu0 0
      %3146 = vmatprep.subr.bf16.mxu0 0
      %3147 = vmatpush1.bf16.msra.mxu0 0
      %3148 = vmatprep.subr.bf16.mxu0 0
      %3149 = vmatpush1.bf16.msra.mxu0 0
      %3150 = vmatprep.subr.bf16.mxu0 0
      %3151 = vmatpush1.bf16.msra.mxu0 0
      %3152 = vmatprep.subr.bf16.mxu0 0
      %3153 = vmatpush1.bf16.msra.mxu0 0
      %3154 = vmatprep.subr.bf16.mxu0 0
      %3155 = vmatpush1.bf16.msra.mxu0 0
      %3156 = vmatprep.subr.bf16.mxu0 0
      %3157 = vmatpush1.bf16.msra.mxu0 0
      %3158 = vmatprep.mubr.bf16.mxu0 0
      %3159 = vmatmul.mubr.bf16.gmra.mrb[0].mxu0 %v3121
      %v3160 = vpop.f32.mrb[0].mxu0
      %v3161 = vadd.f32 0.0, %v3160
      %v3162 = vpop.f32.mrb[0].mxu0
      %v3163 = vpop.f32.mrb[0].mxu0
      %v3164 = vadd.f32 0.0, %v3163
      %v3165 = vpop.f32.mrb[0].mxu0
      %3166 = vmatprep.mubr.bf16.mxu0 0
      %3167 = vmatmul.mubr.bf16.gmra.mrb[0].mxu0 %v3124
      %v3168 = vpop.f32.mrb[0].mxu0
      %v3169 = vadd.f32 0.0, %v3168
      %v3170 = vpop.f32.mrb[0].mxu0
      %v3171 = vpop.f32.mrb[0].mxu0
      %v3172 = vadd.f32 0.0, %v3171
      %v3173 = vpop.f32.mrb[0].mxu0
      %3174 = vdwg.mxu0
      %v3175 = vadd.f32 %v2031, %v3161
      %v3176 = vadd.f32 %v2032, %v3164
      %v3177 = vadd.f32 %v2033, %v3169
      %v3178 = vadd.f32 %v2034, %v3172
      %s3179 = scalar_lea.vmem %s5, 1
      %v3180 = vld [vmem:[%s3179] sm:$0x1]
      %v3182 = vlaneseq
      %v3183 = vshrl.u32 %v3182, 7
      %v3184 = vsub.s32 0, %v3183
      %v3185 = vrot.slane %v3180, %v3184
      %v3187 = vadd.f32 %v3175, %v3185
      %v3188 = vadd.f32 %v3176, %v3185
      %v3189 = vadd.f32 %v3177, %v3185
      %v3190 = vadd.f32 %v3178, %v3185
      %s3191 = scalar_lea.vmem %s6, 1
      %v3192 = vld [vmem:[%s3191] sm:$0x1]
      %s3193 = scalar_lea.vmem %s7, 1
      %v3194 = vld [vmem:[%s3193] sm:$0x1]
      %v3195 = vsel %vm590, %v3187, 0.0
      %3196 = vadd.xlane.f32.xlu0 %v3195
      %v3197 = vpop.xlane.xlu0 %3196
      %v3198 = vsel %vm590, %v3188, 0.0
      %3199 = vadd.xlane.f32.xlu0 %v3198
      %v3200 = vpop.xlane.xlu0 %3199
      %v3201 = vsel %vm590, %v3189, 0.0
      %3202 = vadd.xlane.f32.xlu0 %v3201
      %v3203 = vpop.xlane.xlu0 %3202
      %v3204 = vsel %vm590, %v3190, 0.0
      %3205 = vadd.xlane.f32.xlu0 %v3204
      %v3206 = vpop.xlane.xlu0 %3205
      %v3207 = vmul.f32 %v3197, %v603
      %v3208 = vmul.f32 %v3200, %v603
      %v3209 = vmul.f32 %v3203, %v603
      %v3210 = vmul.f32 %v3206, %v603
      %v3211 = vsub.f32 %v3187, %v3207
      %v3212 = vsub.f32 %v3188, %v3208
      %v3213 = vsub.f32 %v3189, %v3209
      %v3214 = vsub.f32 %v3190, %v3210
      %v3215 = vmul.f32 %v3211, %v3211
      %v3216 = vmul.f32 %v3212, %v3212
      %v3217 = vmul.f32 %v3213, %v3213
      %v3218 = vmul.f32 %v3214, %v3214
      %v3219 = vsel %vm590, %v3215, 0.0
      %3220 = vadd.xlane.f32.xlu0 %v3219
      %v3221 = vpop.xlane.xlu0 %3220
      %v3222 = vsel %vm590, %v3216, 0.0
      %3223 = vadd.xlane.f32.xlu0 %v3222
      %v3224 = vpop.xlane.xlu0 %3223
      %v3225 = vsel %vm590, %v3217, 0.0
      %3226 = vadd.xlane.f32.xlu0 %v3225
      %v3227 = vpop.xlane.xlu0 %3226
      %v3228 = vsel %vm590, %v3218, 0.0
      %3229 = vadd.xlane.f32.xlu0 %v3228
      %v3230 = vpop.xlane.xlu0 %3229
      %v3231 = vmul.f32 %v3221, %v603
      %v3232 = vmul.f32 %v3224, %v603
      %v3233 = vmul.f32 %v3227, %v603
      %v3234 = vmul.f32 %v3230, %v603
      %v3235 = vadd.f32 %v3231, 1e-05
      %v3236 = vadd.f32 %v3232, 1e-05
      %v3237 = vadd.f32 %v3233, 1e-05
      %v3238 = vadd.f32 %v3234, 1e-05
      %v3239 = vrsqrt.pop %v3235
      %v3240 = vrsqrt.pop %v3236
      %v3241 = vrsqrt.pop %v3237
      %v3242 = vrsqrt.pop %v3238
      %v3243 = vmul.f32 %v3211, %v3239
      %v3244 = vmul.f32 %v3212, %v3240
      %v3245 = vmul.f32 %v3213, %v3241
      %v3246 = vmul.f32 %v3214, %v3242
      %v3248 = vlaneseq
      %v3249 = vshrl.u32 %v3248, 7
      %v3250 = vsub.s32 0, %v3249
      %v3251 = vrot.slane %v3192, %v3250
      %v3253 = vmul.f32 %v3243, %v3251
      %v3254 = vmul.f32 %v3244, %v3251
      %v3255 = vmul.f32 %v3245, %v3251
      %v3256 = vmul.f32 %v3246, %v3251
      %v3258 = vlaneseq
      %v3259 = vshrl.u32 %v3258, 7
      %v3260 = vsub.s32 0, %v3259
      %v3261 = vrot.slane %v3194, %v3260
      %v3263 = vadd.f32 %v3253, %v3261
      %v3264 = vadd.f32 %v3254, %v3261
      %v3265 = vadd.f32 %v3255, %v3261
      %v3266 = vadd.f32 %v3256, %v3261
      %v3267 = vpack.c.bf16 %v3264, %v3263
      %v3268 = vpack.c.bf16 %v3266, %v3265
      %s3269 = scalar_lea.vmem %s8, 16
      %v3270 = vld [vmem:[%s3269] sm:$0xf]
      %v3271 = vld [vmem:[%s3269 + $0x4] sm:$0xf]
      %v3272 = vld [vmem:[%s3269 + $0x8] sm:$0xf]
      %v3273 = vld [vmem:[%s3269 + $0xc] sm:$0xf]
      %s3274 = scalar_lea.vmem %s9, 1
      %v3275 = vld [vmem:[%s3274] sm:$0x1]
      %v3277 = vlaneseq
      %v3278 = vshrl.u32 %v3277, 7
      %v3279 = vsub.s32 0, %v3278
      %v3280 = vrot.slane %v3275, %v3279
      %v3286 = vunpack.c.l.b16 %v3270
      %v3287 = vunpack.c.l.b16 %v3271
      %v3288 = vunpack.c.l.b16 %v3272
      %v3289 = vunpack.c.l.b16 %v3273
      %v3290 = vpack.c.b16 %v3287, %v3286
      %v3291 = vpack.c.b16 %v3289, %v3288
      %v3295 = vsel %vm590, %v3267, 0
      %v3298 = vsel %vm590, %v3268, 0
      %3300 = vmatprep.subr.bf16.mxu0 0
      %3301 = vmatpush1.bf16.msra.mxu0 %v3290
      %3302 = vmatprep.subr.bf16.mxu0 0
      %3303 = vmatpush1.bf16.msra.mxu0 %v3291
      %3304 = vmatprep.subr.bf16.mxu0 0
      %3305 = vmatpush1.bf16.msra.mxu0 0
      %3306 = vmatprep.subr.bf16.mxu0 0
      %3307 = vmatpush1.bf16.msra.mxu0 0
      %3308 = vmatprep.subr.bf16.mxu0 0
      %3309 = vmatpush1.bf16.msra.mxu0 0
      %3310 = vmatprep.subr.bf16.mxu0 0
      %3311 = vmatpush1.bf16.msra.mxu0 0
      %3312 = vmatprep.subr.bf16.mxu0 0
      %3313 = vmatpush1.bf16.msra.mxu0 0
      %3314 = vmatprep.subr.bf16.mxu0 0
      %3315 = vmatpush1.bf16.msra.mxu0 0
      %3316 = vmatprep.subr.bf16.mxu0 0
      %3317 = vmatpush1.bf16.msra.mxu0 0
      %3318 = vmatprep.subr.bf16.mxu0 0
      %3319 = vmatpush1.bf16.msra.mxu0 0
      %3320 = vmatprep.subr.bf16.mxu0 0
      %3321 = vmatpush1.bf16.msra.mxu0 0
      %3322 = vmatprep.subr.bf16.mxu0 0
      %3323 = vmatpush1.bf16.msra.mxu0 0
      %3324 = vmatprep.subr.bf16.mxu0 0
      %3325 = vmatpush1.bf16.msra.mxu0 0
      %3326 = vmatprep.subr.bf16.mxu0 0
      %3327 = vmatpush1.bf16.msra.mxu0 0
      %3328 = vmatprep.subr.bf16.mxu0 0
      %3329 = vmatpush1.bf16.msra.mxu0 0
      %3330 = vmatprep.subr.bf16.mxu0 0
      %3331 = vmatpush1.bf16.msra.mxu0 0
      %3332 = vmatprep.mubr.bf16.mxu0 0
      %3333 = vmatmul.mubr.bf16.gmra.mrb[0].mxu0 %v3295
      %v3334 = vpop.f32.mrb[0].mxu0
      %v3335 = vadd.f32 %v3280, %v3334
      %v3336 = vpop.f32.mrb[0].mxu0
      %v3337 = vpop.f32.mrb[0].mxu0
      %v3338 = vadd.f32 %v3280, %v3337
      %v3339 = vpop.f32.mrb[0].mxu0
      %3340 = vmatprep.mubr.bf16.mxu0 0
      %3341 = vmatmul.mubr.bf16.gmra.mrb[0].mxu0 %v3298
      %v3342 = vpop.f32.mrb[0].mxu0
      %v3343 = vadd.f32 %v3280, %v3342
      %v3344 = vpop.f32.mrb[0].mxu0
      %v3345 = vpop.f32.mrb[0].mxu0
      %v3346 = vadd.f32 %v3280, %v3345
      %v3347 = vpop.f32.mrb[0].mxu0
      %3348 = vdwg.mxu0
      %v3349 = vmul.f32 %v3335, 0.5
      %v3350 = vmul.f32 %v3338, 0.5
      %v3351 = vmul.f32 %v3343, 0.5
      %v3352 = vmul.f32 %v3346, 0.5
      %v3353 = vmul.f32 %v3335, 0.044715
      %v3354 = vmul.f32 %v3338, 0.044715
      %v3355 = vmul.f32 %v3343, 0.044715
      %v3356 = vmul.f32 %v3346, 0.044715
      %v3357 = vmul.f32 %v3353, %v3335
      %v3358 = vmul.f32 %v3354, %v3338
      %v3359 = vmul.f32 %v3355, %v3343
      %v3360 = vmul.f32 %v3356, %v3346
      %v3361 = vmul.f32 %v3357, %v3335
      %v3362 = vmul.f32 %v3358, %v3338
      %v3363 = vmul.f32 %v3359, %v3343
      %v3364 = vmul.f32 %v3360, %v3346
      %v3365 = vadd.f32 %v3335, %v3361
      %v3366 = vadd.f32 %v3338, %v3362
      %v3367 = vadd.f32 %v3343, %v3363
      %v3368 = vadd.f32 %v3346, %v3364
      %v3369 = vmul.f32 %v3365, 0.7978846
      %v3370 = vmul.f32 %v3366, 0.7978846
      %v3371 = vmul.f32 %v3367, 0.7978846
      %v3372 = vmul.f32 %v3368, 0.7978846
      %v3373 = vtanh.pop %v3369
      %v3374 = vtanh.pop %v3370
      %v3375 = vtanh.pop %v3371
      %v3376 = vtanh.pop %v3372
      %v3377 = vadd.f32 %v3373, 1.0
      %v3378 = vadd.f32 %v3374, 1.0
      %v3379 = vadd.f32 %v3375, 1.0
      %v3380 = vadd.f32 %v3376, 1.0
      %v3381 = vmul.f32 %v3349, %v3377
      %v3382 = vmul.f32 %v3350, %v3378
      %v3383 = vmul.f32 %v3351, %v3379
      %v3384 = vmul.f32 %v3352, %v3380
      %v3385 = vpack.c.bf16 %v3382, %v3381
      %v3386 = vpack.c.bf16 %v3384, %v3383
      %s3387 = scalar_lea.vmem %s10, 32
      %v3388 = vld [vmem:[%s3387] sm:$0xf]
      %v3389 = vld [vmem:[%s3387 + $0x4] sm:$0xf]
      %v3390 = vld [vmem:[%s3387 + $0x8] sm:$0xf]
      %v3391 = vld [vmem:[%s3387 + $0xc] sm:$0xf]
      %v3392 = vld [vmem:[%s3387 + $0x10] sm:$0xf]
      %v3393 = vld [vmem:[%s3387 + $0x14] sm:$0xf]
      %v3394 = vld [vmem:[%s3387 + $0x18] sm:$0xf]
      %v3395 = vld [vmem:[%s3387 + $0x1c] sm:$0xf]
      %s3396 = scalar_lea.vmem %s11, 1
      %v3397 = vld [vmem:[%s3396] sm:$0x1]
      %v3399 = vlaneseq
      %v3400 = vshrl.u32 %v3399, 7
      %v3401 = vsub.s32 0, %v3400
      %v3402 = vrot.slane %v3397, %v3401
      %v3412 = vunpack.c.l.b16 %v3388
      %v3413 = vunpack.c.l.b16 %v3389
      %v3414 = vunpack.c.l.b16 %v3390
      %v3415 = vunpack.c.l.b16 %v3391
      %v3416 = vunpack.c.l.b16 %v3392
      %v3417 = vunpack.c.l.b16 %v3393
      %v3418 = vunpack.c.l.b16 %v3394
      %v3419 = vunpack.c.l.b16 %v3395
      %v3420 = vpack.c.b16 %v3413, %v3412
      %v3421 = vpack.c.b16 %v3415, %v3414
      %v3422 = vpack.c.b16 %v3417, %v3416
      %v3423 = vpack.c.b16 %v3419, %v3418
      %v3429 = vsel %vm1975, %v3385, 0
      %v3432 = vsel %vm1975, %v3386, 0
      %3434 = vmatprep.subr.bf16.mxu0 0
      %3435 = vmatpush1.bf16.msra.mxu0 %v3420
      %3436 = vmatprep.subr.bf16.mxu0 0
      %3437 = vmatpush1.bf16.msra.mxu0 %v3421
      %3438 = vmatprep.subr.bf16.mxu0 0
      %3439 = vmatpush1.bf16.msra.mxu0 %v3422
      %3440 = vmatprep.subr.bf16.mxu0 0
      %3441 = vmatpush1.bf16.msra.mxu0 %v3423
      %3442 = vmatprep.subr.bf16.mxu0 0
      %3443 = vmatpush1.bf16.msra.mxu0 0
      %3444 = vmatprep.subr.bf16.mxu0 0
      %3445 = vmatpush1.bf16.msra.mxu0 0
      %3446 = vmatprep.subr.bf16.mxu0 0
      %3447 = vmatpush1.bf16.msra.mxu0 0
      %3448 = vmatprep.subr.bf16.mxu0 0
      %3449 = vmatpush1.bf16.msra.mxu0 0
      %3450 = vmatprep.subr.bf16.mxu0 0
      %3451 = vmatpush1.bf16.msra.mxu0 0
      %3452 = vmatprep.subr.bf16.mxu0 0
      %3453 = vmatpush1.bf16.msra.mxu0 0
      %3454 = vmatprep.subr.bf16.mxu0 0
      %3455 = vmatpush1.bf16.msra.mxu0 0
      %3456 = vmatprep.subr.bf16.mxu0 0
      %3457 = vmatpush1.bf16.msra.mxu0 0
      %3458 = vmatprep.subr.bf16.mxu0 0
      %3459 = vmatpush1.bf16.msra.mxu0 0
      %3460 = vmatprep.subr.bf16.mxu0 0
      %3461 = vmatpush1.bf16.msra.mxu0 0
      %3462 = vmatprep.subr.bf16.mxu0 0
      %3463 = vmatpush1.bf16.msra.mxu0 0
      %3464 = vmatprep.subr.bf16.mxu0 0
      %3465 = vmatpush1.bf16.msra.mxu0 0
      %3466 = vmatprep.mubr.bf16.mxu0 0
      %3467 = vmatmul.mubr.bf16.gmra.mrb[0].mxu0 %v3429
      %v3468 = vpop.f32.mrb[0].mxu0
      %v3469 = vadd.f32 %v3402, %v3468
      %v3470 = vpop.f32.mrb[0].mxu0
      %v3471 = vpop.f32.mrb[0].mxu0
      %v3472 = vadd.f32 %v3402, %v3471
      %v3473 = vpop.f32.mrb[0].mxu0
      %3474 = vmatprep.mubr.bf16.mxu0 0
      %3475 = vmatmul.mubr.bf16.gmra.mrb[0].mxu0 %v3432
      %v3476 = vpop.f32.mrb[0].mxu0
      %v3477 = vadd.f32 %v3402, %v3476
      %v3478 = vpop.f32.mrb[0].mxu0
      %v3479 = vpop.f32.mrb[0].mxu0
      %v3480 = vadd.f32 %v3402, %v3479
      %v3481 = vpop.f32.mrb[0].mxu0
      %3482 = vdwg.mxu0
      %v3483 = vadd.f32 %v3187, %v3469
      %v3484 = vadd.f32 %v3188, %v3472
      %v3485 = vadd.f32 %v3189, %v3477
      %v3486 = vadd.f32 %v3190, %v3480
      %v3487 = vld [vmem:[%s12] sm:$0x1]
      %v3488 = vld [vmem:[%s13] sm:$0x1]
      %vm3489 = vcmask 253952
      %v3490 = vsel %vm3489, %v3483, 0.0
      %3491 = vadd.xlane.f32.xlu0 %v3490
      %v3492 = vpop.xlane.xlu0 %3491
      %v3493 = vsel %vm3489, %v3484, 0.0
      %3494 = vadd.xlane.f32.xlu0 %v3493
      %v3495 = vpop.xlane.xlu0 %3494
      %v3496 = vsel %vm3489, %v3485, 0.0
      %3497 = vadd.xlane.f32.xlu0 %v3496
      %v3498 = vpop.xlane.xlu0 %3497
      %v3499 = vsel %vm3489, %v3486, 0.0
      %3500 = vadd.xlane.f32.xlu0 %v3499
      %v3501 = vpop.xlane.xlu0 %3500
      %v3502 = vmul.f32 %v3492, %v603
      %v3503 = vmul.f32 %v3495, %v603
      %v3504 = vmul.f32 %v3498, %v603
      %v3505 = vmul.f32 %v3501, %v603
      %v3506 = vsub.f32 %v3483, %v3502
      %v3507 = vsub.f32 %v3484, %v3503
      %v3508 = vsub.f32 %v3485, %v3504
      %v3509 = vsub.f32 %v3486, %v3505
      %v3510 = vmul.f32 %v3506, %v3506
      %v3511 = vmul.f32 %v3507, %v3507
      %v3512 = vmul.f32 %v3508, %v3508
      %v3513 = vmul.f32 %v3509, %v3509
      %v3514 = vsel %vm3489, %v3510, 0.0
      %3515 = vadd.xlane.f32.xlu0 %v3514
      %v3516 = vpop.xlane.xlu0 %3515
      %v3517 = vsel %vm3489, %v3511, 0.0
      %3518 = vadd.xlane.f32.xlu0 %v3517
      %v3519 = vpop.xlane.xlu0 %3518
      %v3520 = vsel %vm3489, %v3512, 0.0
      %3521 = vadd.xlane.f32.xlu0 %v3520
      %v3522 = vpop.xlane.xlu0 %3521
      %v3523 = vsel %vm3489, %v3513, 0.0
      %3524 = vadd.xlane.f32.xlu0 %v3523
      %v3525 = vpop.xlane.xlu0 %3524
      %v3526 = vmul.f32 %v3516, %v603
      %v3527 = vmul.f32 %v3519, %v603
      %v3528 = vmul.f32 %v3522, %v603
      %v3529 = vmul.f32 %v3525, %v603
      %v3530 = vadd.f32 %v3526, 1e-05
      %v3531 = vadd.f32 %v3527, 1e-05
      %v3532 = vadd.f32 %v3528, 1e-05
      %v3533 = vadd.f32 %v3529, 1e-05
      %v3534 = vrsqrt.pop %v3530
      %v3535 = vrsqrt.pop %v3531
      %v3536 = vrsqrt.pop %v3532
      %v3537 = vrsqrt.pop %v3533
      %v3538 = vmul.f32 %v3506, %v3534
      %v3539 = vmul.f32 %v3507, %v3535
      %v3540 = vmul.f32 %v3508, %v3536
      %v3541 = vmul.f32 %v3509, %v3537
      %v3542 = vmul.f32 %v3538, %v3487
      %v3543 = vmul.f32 %v3539, %v3487
      %v3544 = vmul.f32 %v3540, %v3487
      %v3545 = vmul.f32 %v3541, %v3487
      %v3546 = vadd.f32 %v3542, %v3488
      %v3547 = vadd.f32 %v3543, %v3488
      %v3548 = vadd.f32 %v3544, %v3488
      %v3549 = vadd.f32 %v3545, %v3488
      %v3550 = vld [vmem:[%s14] sm:$0x1]
      %v3551 = vld [vmem:[%s15] sm:$0x1]
      %v3552 = vsel %vm3489, %v3546, 0.0
      %3553 = vadd.xlane.f32.xlu0 %v3552
      %v3554 = vpop.xlane.xlu0 %3553
      %v3555 = vsel %vm3489, %v3547, 0.0
      %3556 = vadd.xlane.f32.xlu0 %v3555
      %v3557 = vpop.xlane.xlu0 %3556
      %v3558 = vsel %vm3489, %v3548, 0.0
      %3559 = vadd.xlane.f32.xlu0 %v3558
      %v3560 = vpop.xlane.xlu0 %3559
      %v3561 = vsel %vm3489, %v3549, 0.0
      %3562 = vadd.xlane.f32.xlu0 %v3561
      %v3563 = vpop.xlane.xlu0 %3562
      %v3564 = vmul.f32 %v3554, %v603
      %v3565 = vmul.f32 %v3557, %v603
      %v3566 = vmul.f32 %v3560, %v603
      %v3567 = vmul.f32 %v3563, %v603
      %v3568 = vsub.f32 %v3546, %v3564
      %v3569 = vsub.f32 %v3547, %v3565
      %v3570 = vsub.f32 %v3548, %v3566
      %v3571 = vsub.f32 %v3549, %v3567
      %v3572 = vmul.f32 %v3568, %v3568
      %v3573 = vmul.f32 %v3569, %v3569
      %v3574 = vmul.f32 %v3570, %v3570
      %v3575 = vmul.f32 %v3571, %v3571
      %v3576 = vsel %vm3489, %v3572, 0.0
      %3577 = vadd.xlane.f32.xlu0 %v3576
      %v3578 = vpop.xlane.xlu0 %3577
      %v3579 = vsel %vm3489, %v3573, 0.0
      %3580 = vadd.xlane.f32.xlu0 %v3579
      %v3581 = vpop.xlane.xlu0 %3580
      %v3582 = vsel %vm3489, %v3574, 0.0
      %3583 = vadd.xlane.f32.xlu0 %v3582
      %v3584 = vpop.xlane.xlu0 %3583
      %v3585 = vsel %vm3489, %v3575, 0.0
      %3586 = vadd.xlane.f32.xlu0 %v3585
      %v3587 = vpop.xlane.xlu0 %3586
      %v3588 = vmul.f32 %v3578, %v603
      %v3589 = vmul.f32 %v3581, %v603
      %v3590 = vmul.f32 %v3584, %v603
      %v3591 = vmul.f32 %v3587, %v603
      %v3592 = vadd.f32 %v3588, 1e-05
      %v3593 = vadd.f32 %v3589, 1e-05
      %v3594 = vadd.f32 %v3590, 1e-05
      %v3595 = vadd.f32 %v3591, 1e-05
      %v3596 = vrsqrt.pop %v3592
      %v3597 = vrsqrt.pop %v3593
      %v3598 = vrsqrt.pop %v3594
      %v3599 = vrsqrt.pop %v3595
      %v3600 = vmul.f32 %v3568, %v3596
      %v3601 = vmul.f32 %v3569, %v3597
      %v3602 = vmul.f32 %v3570, %v3598
      %v3603 = vmul.f32 %v3571, %v3599
      %v3604 = vmul.f32 %v3600, %v3550
      %v3605 = vmul.f32 %v3601, %v3550
      %v3606 = vmul.f32 %v3602, %v3550
      %v3607 = vmul.f32 %v3603, %v3550
      %v3608 = vadd.f32 %v3604, %v3551
      %v3609 = vadd.f32 %v3605, %v3551
      %v3610 = vadd.f32 %v3606, %v3551
      %v3611 = vadd.f32 %v3607, %v3551
      %v3612 = vld [vmem:[%s16] sm:$0x1]
      %v3613 = vmul.f32 %v3608, %v3612
      %v3614 = vmul.f32 %v3609, %v3612
      %v3615 = vmul.f32 %v3610, %v3612
      %v3616 = vmul.f32 %v3611, %v3612
      %v3617 = vsel %vm3489, %v3613, 0.0
      %3618 = vadd.xlane.f32.xlu0 %v3617
      %v3619 = vpop.xlane.xlu0 %3618
      %v3620 = vsel %vm3489, %v3614, 0.0
      %3621 = vadd.xlane.f32.xlu0 %v3620
      %v3622 = vpop.xlane.xlu0 %3621
      %v3623 = vsel %vm3489, %v3615, 0.0
      %3624 = vadd.xlane.f32.xlu0 %v3623
      %v3625 = vpop.xlane.xlu0 %3624
      %v3626 = vsel %vm3489, %v3616, 0.0
      %3627 = vadd.xlane.f32.xlu0 %v3626
      %v3628 = vpop.xlane.xlu0 %3627
      %v3629 = vld [vmem:[#allocation2] sm:$0x1]
      %v3630 = vadd.f32 %v3619, %v3629
      %v3631 = vadd.f32 %v3622, %v3629
      %v3632 = vadd.f32 %v3625, %v3629
      %v3633 = vadd.f32 %v3628, %v3629
      %vm3634 = vcmask 0
      %3635 = vst.msk [vmem:[%s577] sm:$0x1] %vm3634, %v3630
      %3636 = vst.msk [vmem:[%s577 + $0x1] sm:$0x1] %vm3634, %v3631
      %3637 = vst.msk [vmem:[%s577 + $0x2] sm:$0x1] %vm3634, %v3632
      %3638 = vst.msk [vmem:[%s577 + $0x3] sm:$0x1] %vm3634, %v3633
      %s3639 = smul.u32 4, %s31
      %p3640 = scmp.lt.s32.totalorder %s3639, 7
      %s3641 = scalar_select %p3640, %s3639, 7
      %s3642 = scalar_lea.vmem %s18, %s3641
      // Predicated region
      $region93: #{tsvit_forward.5} parent=91 // pred_check
        %p3643 = pneg %p432
      $region94: #{tsvit_forward.5} parent=91 // pred_check_branch
        %3645 = sbr.rel (%p3643) target = $region96
      $region95: #{tsvit_forward.5} parent=91 // pred_region
        %s3646 = smul.u32 4, %s31
      $region96: #{tsvit_forward.5} parent=91 // pred_fallthru
        _
    $region92: #{tsvit_forward.5} parent=5 // pred_fallthru
      _
    %p3647 = scmp.le.s32.totalorder 2, %s26
    // Predicated region
    $region97: #{tsvit_forward.5} parent=5 // pred_check
      %p3648 = pneg %p3647
    $region98: #{tsvit_forward.5} parent=5 // pred_check_branch
      %3650 = sbr.rel (%p3648) target = $region100
    $region99: #{tsvit_forward.5} parent=5 // pred_region
      %s3651 = ssub.s32 %s26, 2
      // Predicated region
      $region101: #{tsvit_forward.5} parent=99 // pred_check
        %p3652 = pneg %p438
      $region102: #{tsvit_forward.5} parent=99 // pred_check_branch
        %3654 = sbr.rel (%p3652) target = $region104
      $region103: #{tsvit_forward.5} parent=99 // pred_region
        %s3655 = smul.u32 4, %s32
        %p3656 = scmp.lt.s32.totalorder %s3655, 7
        %s3657 = scalar_select %p3656, %s3655, 7
        %s3658 = scalar_lea.vmem %s18, %s3657
      $region104: #{tsvit_forward.5} parent=99 // pred_fallthru
        _
    $region100: #{tsvit_forward.5} parent=5 // pred_fallthru
      _
  $region6: #{tsvit_forward.5} parent=0 // loop_footer
    %s30 = sadd.s32 1, %s26
  $region7: #{tsvit_forward.5} parent=0 // loop_footer_branch
    %25 = sbr.rel target = $region3
  $region8: #{tsvit_forward.5} parent=0 // loop_exit
    _

</llo_original>
